<compile_context>
chip_gen: v5e
topology: v5e:2x2
jax: 0.10.0
libtpu: 0.0.40
codegen_flags: <defaults>
</compile_context>

<pallas_src>
import functools

import jax
import jax.numpy as jnp
from jax import lax
from jax.experimental import pallas as pl
from jax.experimental.pallas import tpu as pltpu


# --------------------------------------------------------------------------
# Pallas kernel
# --------------------------------------------------------------------------
def ltc_cell_kernel(
    # batch-tiled inputs
    inputs_ref,          # (TB, I_sub)
    state_ref,           # (TB, S_pad)
    # resident parameters
    input_w_ref,         # (1, I_sub)
    input_b_ref,         # (1, I_sub)
    sensory_w_ref,       # (I_sub, S_pad)
    sensory_mu_ref,      # (I_sub, S_pad)
    sensory_sigma_ref,   # (I_sub, S_pad)
    sensory_erev_ref,    # (I_sub, S_pad)
    sensory_mask_ref,    # (I_sub, S_pad)
    w_ref,               # (S_sub, S_pad)
    mu_ref,              # (S_sub, S_pad)
    sigma_ref,           # (S_sub, S_pad)
    erev_ref,            # (S_sub, S_pad)
    mask_ref,            # (S_sub, S_pad)
    gleak_ref,           # (1, S_pad)
    vleak_ref,           # (1, S_pad)
    cm_ref,              # (1, S_pad)
    output_w_ref,        # (1, S_pad)  (zero beyond motor_size)
    output_b_ref,        # (1, S_pad)
    # outputs
    out_ref,             # (TB, S_pad)
    next_state_ref,      # (TB, S_pad)
    *,
    ode_unfolds: int,
    epsilon: float,
    elapsed_time: float,
    s_pre: int,
    unroll: bool,
):
    # ---- fold sparsity masks / reversal potentials into weights ONCE ----
    w_eff = w_ref[...] * mask_ref[...]                       # (S_sub, S_pad)
    w_erev = w_eff * erev_ref[...]
    sw_eff = sensory_w_ref[...] * sensory_mask_ref[...]      # (I_sub, S_pad)
    sw_erev = sw_eff * sensory_erev_ref[...]

    # ---- _map_inputs (affine) ----
    x = inputs_ref[...] * input_w_ref[...] + input_b_ref[...]       # (TB, I_sub)

    # ---- sensory synapse activation (loop invariant) ----
    s_sig = jax.nn.sigmoid(
        (x[:, :, None] - sensory_mu_ref[...][None, :, :])
        * sensory_sigma_ref[...][None, :, :])                       # (TB, I_sub, S_pad)
    w_num_sensory = jnp.sum(sw_erev[None, :, :] * s_sig, axis=1)    # (TB, S_pad)
    w_den_sensory = jnp.sum(sw_eff[None, :, :] * s_sig, axis=1)     # (TB, S_pad)

    # ---- hoisted ODE-loop invariants (broadcast once) ----
    cm_t = cm_ref[...] / (elapsed_time / float(ode_unfolds))        # (1, S_pad)
    gleak = gleak_ref[...]
    bshape = w_num_sensory.shape                                    # (TB, S_pad)
    cm_t_b = jnp.broadcast_to(cm_t, bshape)
    num_base = jnp.broadcast_to(gleak * vleak_ref[...], bshape) + w_num_sensory
    den_base = jnp.broadcast_to(cm_t + gleak, bshape) + w_den_sensory + epsilon

    mu_p = mu_ref[...][None, :, :]                                  # (1, S_sub, S_pad)
    sigma_p = sigma_ref[...][None, :, :]
    w_eff_p = w_eff[None, :, :]
    w_erev_p = w_erev[None, :, :]

    # ---- ODE solver ----
    def body(_, v_pre):                                             # v_pre: (TB, S_pad)
        pre = v_pre[:, 0:s_pre]                                     # (TB, S_sub)
        sig = jax.nn.sigmoid((pre[:, :, None] - mu_p) * sigma_p)    # (TB, S_sub, S_pad)
        w_num = jnp.sum(w_erev_p * sig, axis=1)                     # (TB, S_pad)
        w_den = jnp.sum(w_eff_p * sig, axis=1)                      # (TB, S_pad)
        numerator = cm_t_b * v_pre + num_base + w_num
        denominator = den_base + w_den
        return numerator / denominator

    v = lax.fori_loop(0, ode_unfolds, body, state_ref[...], unroll=unroll)

    next_state_ref[...] = v
    # ---- _map_outputs: lane-dense store; wrapper slices to motor_size ----
    out_ref[...] = v * output_w_ref[...] + output_b_ref[...]


# --------------------------------------------------------------------------
# Wrapper
# --------------------------------------------------------------------------
def _round_up(n, m):
    return ((n + m - 1) // m) * m


def ltc_cell_forward(inputs, states, params, *, ode_unfolds=6, epsilon=1e-8,
                     elapsed_time=1.0, batch_tile=None, unroll=True):
    B, I = inputs.shape
    _, S = states.shape
    M = params["output_w"].shape[0]

    LANE, SUB = 128, 8
    S_pad = _round_up(S, LANE)     # lane-dense post-synaptic axis
    S_sub = _round_up(S, SUB)      # sublane-aligned pre-synaptic axis
    I_sub = _round_up(I, SUB)

    TB = B if batch_tile is None else int(batch_tile)
    assert B % TB == 0, "batch must be divisible by batch_tile"
    assert TB == B or TB % SUB == 0, "batch_tile must be a multiple of 8 (or == B)"
    grid = (B // TB,)

    f32 = jnp.float32

    def row(v, n):   # 1-D parameter vector -> zero-padded (1, n)
        v = jnp.asarray(v, f32).reshape(1, -1)
        return jnp.pad(v, ((0, 0), (0, n - v.shape[1])))

    def mat(m_, r, c):   # 2-D tensor -> zero-padded (r, c)
        m_ = jnp.asarray(m_, f32)
        return jnp.pad(m_, ((0, r - m_.shape[0]), (0, c - m_.shape[1])))

    args = (
        mat(inputs, B, I_sub),
        mat(states, B, S_pad),
        row(params["input_w"], I_sub),
        row(params["input_b"], I_sub),
        mat(params["sensory_w"], I_sub, S_pad),
        mat(params["sensory_mu"], I_sub, S_pad),
        mat(params["sensory_sigma"], I_sub, S_pad),
        mat(params["sensory_erev"], I_sub, S_pad),
        mat(params["sensory_sparsity_mask"], I_sub, S_pad),
        mat(params["w"], S_sub, S_pad),
        mat(params["mu"], S_sub, S_pad),
        mat(params["sigma"], S_sub, S_pad),
        mat(params["erev"], S_sub, S_pad),
        mat(params["sparsity_mask"], S_sub, S_pad),
        row(params["gleak"], S_pad),
        row(params["vleak"], S_pad),
        row(params["cm"], S_pad),
        row(params["output_w"], S_pad),
        row(params["output_b"], S_pad),
    )

    def batch_spec(last):
        return pl.BlockSpec((TB, last), lambda i: (i, 0))

    def param_spec(shape):
        return pl.BlockSpec(shape, lambda i: (0, 0))

    in_specs = [batch_spec(I_sub), batch_spec(S_pad)]
    in_specs += [param_spec(a.shape) for a in args[2:]]

    out_specs = (batch_spec(S_pad), batch_spec(S_pad))
    out_shape = (jax.ShapeDtypeStruct((B, S_pad), f32),
                 jax.ShapeDtypeStruct((B, S_pad), f32))

    kernel = functools.partial(
        ltc_cell_kernel,
        ode_unfolds=int(ode_unfolds),
        epsilon=float(epsilon),
        elapsed_time=float(elapsed_time),
        s_pre=S_sub,
        unroll=bool(unroll),
    )

    out_p, next_p = pl.pallas_call(
        kernel,
        grid=grid,
        in_specs=in_specs,
        out_specs=out_specs,
        out_shape=out_shape,
        compiler_params=pltpu.CompilerParams(
            dimension_semantics=("parallel",)),
    )(*args)

    # slice the lane padding back off (cheap wrapper-side plumbing)
    return out_p[:, :M], next_p[:, :S]


# --------------------------------------------------------------------------
# Deterministic parameter init (mirrors LTCCell._allocate_parameters ranges)
# --------------------------------------------------------------------------
def make_params(key, sensory_size, state_size, motor_size):
    ranges = {
        "gleak": (0.001, 1.0), "vleak": (-0.2, 0.2), "cm": (0.4, 0.6),
        "w": (0.001, 1.0), "sigma": (3.0, 8.0), "mu": (0.3, 0.8),
        "sensory_w": (0.001, 1.0), "sensory_sigma": (3.0, 8.0),
        "sensory_mu": (0.3, 0.8),
    }
    shapes = {
        "gleak": (state_size,), "vleak": (state_size,), "cm": (state_size,),
        "sigma": (state_size, state_size), "mu": (state_size, state_size),
        "w": (state_size, state_size),
        "sensory_sigma": (sensory_size, state_size),
        "sensory_mu": (sensory_size, state_size),
        "sensory_w": (sensory_size, state_size),
    }
    params = {}
    keys = jax.random.split(key, len(shapes) + 2)
    for i, (name, shp) in enumerate(sorted(shapes.items())):
        lo, hi = ranges[name]
        params[name] = jax.random.uniform(
            keys[i], shp, jnp.float32, minval=lo, maxval=hi)

    # erev initializers: random +/-1 polarity (fully-connected synthetic wiring)
    params["erev"] = jnp.where(
        jax.random.bernoulli(keys[-2], 0.5, (state_size, state_size)),
        1.0, -1.0).astype(jnp.float32)
    params["sensory_erev"] = jnp.where(
        jax.random.bernoulli(keys[-1], 0.5, (sensory_size, state_size)),
        1.0, -1.0).astype(jnp.float32)

    # fully-connected wiring -> sparsity masks of |adjacency| = ones
    params["sparsity_mask"] = jnp.ones((state_size, state_size), jnp.float32)
    params["sensory_sparsity_mask"] = jnp.ones(
        (sensory_size, state_size), jnp.float32)

    # affine input/output maps
    params["input_w"] = jnp.ones((sensory_size,), jnp.float32)
    params["input_b"] = jnp.zeros((sensory_size,), jnp.float32)
    params["output_w"] = jnp.ones((motor_size,), jnp.float32)
    params["output_b"] = jnp.zeros((motor_size,), jnp.float32)
    return params


# --------------------------------------------------------------------------
# Pure-JAX reference (same math as the torch forward)
# --------------------------------------------------------------------------
def ltc_cell_ref(inputs, states, p, *, ode_unfolds=6, epsilon=1e-8,
                 elapsed_time=1.0):
    x = inputs * p["input_w"] + p["input_b"]
    v = states
    sact = p["sensory_w"] * jax.nn.sigmoid(
        (x[:, :, None] - p["sensory_mu"]) * p["sensory_sigma"])
    sact = sact * p["sensory_sparsity_mask"]
    wns = jnp.sum(sact * p["sensory_erev"], axis=1)
    wds = jnp.sum(sact, axis=1)
    cm_t = p["cm"] / (elapsed_time / ode_unfolds)
    for _ in range(ode_unfolds):
        wa = p["w"] * jax.nn.sigmoid((v[:, :, None] - p["mu"]) * p["sigma"])
        wa = wa * p["sparsity_mask"]
        wn = jnp.sum(wa * p["erev"], axis=1) + wns
        wd = jnp.sum(wa, axis=1) + wds
        num = cm_t * v + p["gleak"] * p["vleak"] + wn
        den = cm_t + p["gleak"] + wd
        v = num / (den + epsilon)
    M = p["output_w"].shape[0]
    out = v[:, :M] * p["output_w"] + p["output_b"]
    return out, v


if __name__ == "__main__":
    # batch, sensory_size, state_size, motor_size
    B, I, S, M = 16, 8, 32, 8

    key = jax.random.PRNGKey(0)
    k_in, k_st, k_p = jax.random.split(key, 3)
    inputs = jax.random.normal(k_in, (B, I), jnp.float32)
    states = jax.random.normal(k_st, (B, S), jnp.float32)
    params = make_params(k_p, I, S, M)

    # batch_tile=8 -> grid=(2,) with parallel semantics (multi-TC sharding on v7x)
    out, next_state = ltc_cell_forward(inputs, states, params, batch_tile=8)
    out = jax.block_until_ready(out)
    next_state = jax.block_until_ready(next_state)

    ref_out, ref_state = ltc_cell_ref(inputs, states, params)
    assert out.shape == (B, M) and next_state.shape == (B, S)
    assert jnp.allclose(out, ref_out, atol=1e-5, rtol=1e-5)
    assert jnp.allclose(next_state, ref_state, atol=1e-5, rtol=1e-5)

    print("KERNEL_OK")
</pallas_src>

<mosaic_0001>
module attributes {stable_mosaic.version = 11 : i64} {
  func.func @ltc_cell_kernel(%arg0: i32, %arg1: memref<8x8xf32, #tpu.memory_space<vmem>>, %arg2: memref<8x128xf32, #tpu.memory_space<vmem>>, %arg3: memref<1x8xf32, #tpu.memory_space<vmem>>, %arg4: memref<1x8xf32, #tpu.memory_space<vmem>>, %arg5: memref<8x128xf32, #tpu.memory_space<vmem>>, %arg6: memref<8x128xf32, #tpu.memory_space<vmem>>, %arg7: memref<8x128xf32, #tpu.memory_space<vmem>>, %arg8: memref<8x128xf32, #tpu.memory_space<vmem>>, %arg9: memref<8x128xf32, #tpu.memory_space<vmem>>, %arg10: memref<32x128xf32, #tpu.memory_space<vmem>>, %arg11: memref<32x128xf32, #tpu.memory_space<vmem>>, %arg12: memref<32x128xf32, #tpu.memory_space<vmem>>, %arg13: memref<32x128xf32, #tpu.memory_space<vmem>>, %arg14: memref<32x128xf32, #tpu.memory_space<vmem>>, %arg15: memref<1x128xf32, #tpu.memory_space<vmem>>, %arg16: memref<1x128xf32, #tpu.memory_space<vmem>>, %arg17: memref<1x128xf32, #tpu.memory_space<vmem>>, %arg18: memref<1x128xf32, #tpu.memory_space<vmem>>, %arg19: memref<1x128xf32, #tpu.memory_space<vmem>>, %arg20: memref<8x128xf32, #tpu.memory_space<vmem>>, %arg21: memref<8x128xf32, #tpu.memory_space<vmem>>) attributes {dimension_semantics = [#tpu.dimension_semantics<parallel>], iteration_bounds = array<i64: 2>, scalar_prefetch = 0 : i64, scratch_operands = 0 : i64, tpu.core_type = #tpu.core_type<tc>, window_params = [{transform_indices = @transform_0, window_bounds = array<i64: 8, 8>}, {transform_indices = @transform_1, window_bounds = array<i64: 8, 128>}, {pipeline_mode = #tpu.pipeline_mode<synchronous>, transform_indices = @transform_2, window_bounds = array<i64: 1, 8>}, {pipeline_mode = #tpu.pipeline_mode<synchronous>, transform_indices = @transform_3, window_bounds = array<i64: 1, 8>}, {pipeline_mode = #tpu.pipeline_mode<synchronous>, transform_indices = @transform_4, window_bounds = array<i64: 8, 128>}, {pipeline_mode = #tpu.pipeline_mode<synchronous>, transform_indices = @transform_5, window_bounds = array<i64: 8, 128>}, {pipeline_mode = #tpu.pipeline_mode<synchronous>, transform_indices = @transform_6, window_bounds = array<i64: 8, 128>}, {pipeline_mode = #tpu.pipeline_mode<synchronous>, transform_indices = @transform_7, window_bounds = array<i64: 8, 128>}, {pipeline_mode = #tpu.pipeline_mode<synchronous>, transform_indices = @transform_8, window_bounds = array<i64: 8, 128>}, {pipeline_mode = #tpu.pipeline_mode<synchronous>, transform_indices = @transform_9, window_bounds = array<i64: 32, 128>}, {pipeline_mode = #tpu.pipeline_mode<synchronous>, transform_indices = @transform_10, window_bounds = array<i64: 32, 128>}, {pipeline_mode = #tpu.pipeline_mode<synchronous>, transform_indices = @transform_11, window_bounds = array<i64: 32, 128>}, {pipeline_mode = #tpu.pipeline_mode<synchronous>, transform_indices = @transform_12, window_bounds = array<i64: 32, 128>}, {pipeline_mode = #tpu.pipeline_mode<synchronous>, transform_indices = @transform_13, window_bounds = array<i64: 32, 128>}, {pipeline_mode = #tpu.pipeline_mode<synchronous>, transform_indices = @transform_14, window_bounds = array<i64: 1, 128>}, {pipeline_mode = #tpu.pipeline_mode<synchronous>, transform_indices = @transform_15, window_bounds = array<i64: 1, 128>}, {pipeline_mode = #tpu.pipeline_mode<synchronous>, transform_indices = @transform_16, window_bounds = array<i64: 1, 128>}, {pipeline_mode = #tpu.pipeline_mode<synchronous>, transform_indices = @transform_17, window_bounds = array<i64: 1, 128>}, {pipeline_mode = #tpu.pipeline_mode<synchronous>, transform_indices = @transform_18, window_bounds = array<i64: 1, 128>}, {transform_indices = @transform_19, window_bounds = array<i64: 8, 128>}, {transform_indices = @transform_20, window_bounds = array<i64: 8, 128>}]} {
    %c0 = arith.constant 0 : index
    %c0_0 = arith.constant 0 : index
    %0 = vector.load %arg10[%c0, %c0_0] : memref<32x128xf32, #tpu.memory_space<vmem>>, vector<32x128xf32>
    %c0_1 = arith.constant 0 : index
    %c0_2 = arith.constant 0 : index
    %1 = vector.load %arg14[%c0_1, %c0_2] : memref<32x128xf32, #tpu.memory_space<vmem>>, vector<32x128xf32>
    %2 = arith.mulf %0, %1 : vector<32x128xf32>
    %c0_3 = arith.constant 0 : index
    %c0_4 = arith.constant 0 : index
    %3 = vector.load %arg13[%c0_3, %c0_4] : memref<32x128xf32, #tpu.memory_space<vmem>>, vector<32x128xf32>
    %4 = arith.mulf %2, %3 : vector<32x128xf32>
    %c0_5 = arith.constant 0 : index
    %c0_6 = arith.constant 0 : index
    %5 = vector.load %arg5[%c0_5, %c0_6] : memref<8x128xf32, #tpu.memory_space<vmem>>, vector<8x128xf32>
    %c0_7 = arith.constant 0 : index
    %c0_8 = arith.constant 0 : index
    %6 = vector.load %arg9[%c0_7, %c0_8] : memref<8x128xf32, #tpu.memory_space<vmem>>, vector<8x128xf32>
    %7 = arith.mulf %5, %6 : vector<8x128xf32>
    %c0_9 = arith.constant 0 : index
    %c0_10 = arith.constant 0 : index
    %8 = vector.load %arg8[%c0_9, %c0_10] : memref<8x128xf32, #tpu.memory_space<vmem>>, vector<8x128xf32>
    %9 = arith.mulf %7, %8 : vector<8x128xf32>
    %c0_11 = arith.constant 0 : index
    %c0_12 = arith.constant 0 : index
    %10 = vector.load %arg1[%c0_11, %c0_12] : memref<8x8xf32, #tpu.memory_space<vmem>>, vector<8x8xf32>
    %c0_13 = arith.constant 0 : index
    %c0_14 = arith.constant 0 : index
    %11 = vector.load %arg3[%c0_13, %c0_14] : memref<1x8xf32, #tpu.memory_space<vmem>>, vector<1x8xf32>
    %12 = vector.broadcast %11 : vector<1x8xf32> to vector<8x8xf32>
    %13 = arith.mulf %10, %12 : vector<8x8xf32>
    %c0_15 = arith.constant 0 : index
    %c0_16 = arith.constant 0 : index
    %14 = vector.load %arg4[%c0_15, %c0_16] : memref<1x8xf32, #tpu.memory_space<vmem>>, vector<1x8xf32>
    %15 = vector.broadcast %14 : vector<1x8xf32> to vector<8x8xf32>
    %16 = arith.addf %13, %15 : vector<8x8xf32>
    %17 = vector.shape_cast %16 : vector<8x8xf32> to vector<8x8x1xf32>
    %c0_17 = arith.constant 0 : index
    %c0_18 = arith.constant 0 : index
    %18 = vector.load %arg6[%c0_17, %c0_18] : memref<8x128xf32, #tpu.memory_space<vmem>>, vector<8x128xf32>
    %19 = vector.shape_cast %18 : vector<8x128xf32> to vector<1x8x128xf32>
    %20 = vector.broadcast %17 : vector<8x8x1xf32> to vector<8x8x128xf32>
    %21 = vector.broadcast %19 : vector<1x8x128xf32> to vector<8x8x128xf32>
    %22 = arith.subf %20, %21 : vector<8x8x128xf32>
    %c0_19 = arith.constant 0 : index
    %c0_20 = arith.constant 0 : index
    %23 = vector.load %arg7[%c0_19, %c0_20] : memref<8x128xf32, #tpu.memory_space<vmem>>, vector<8x128xf32>
    %24 = vector.shape_cast %23 : vector<8x128xf32> to vector<1x8x128xf32>
    %25 = vector.broadcast %24 : vector<1x8x128xf32> to vector<8x8x128xf32>
    %26 = arith.mulf %22, %25 : vector<8x8x128xf32>
    %27 = arith.negf %26 : vector<8x8x128xf32>
    %28 = math.exp %27 : vector<8x8x128xf32>
    %cst = arith.constant 1.000000e+00 : f32
    %29 = vector.broadcast %cst : f32 to vector<8x8x128xf32>
    %30 = arith.addf %29, %28 : vector<8x8x128xf32>
    %31 = arith.divf %29, %30 : vector<8x8x128xf32>
    %32 = vector.shape_cast %9 : vector<8x128xf32> to vector<1x8x128xf32>
    %33 = vector.broadcast %32 : vector<1x8x128xf32> to vector<8x8x128xf32>
    %34 = arith.mulf %33, %31 : vector<8x8x128xf32>
    %cst_21 = arith.constant dense<0.000000e+00> : vector<8x128xf32>
    %35 = vector.multi_reduction <add>, %34, %cst_21 [1] : vector<8x8x128xf32> to vector<8x128xf32>
    %36 = vector.shape_cast %7 : vector<8x128xf32> to vector<1x8x128xf32>
    %37 = vector.broadcast %36 : vector<1x8x128xf32> to vector<8x8x128xf32>
    %38 = arith.mulf %37, %31 : vector<8x8x128xf32>
    %cst_22 = arith.constant dense<0.000000e+00> : vector<8x128xf32>
    %39 = vector.multi_reduction <add>, %38, %cst_22 [1] : vector<8x8x128xf32> to vector<8x128xf32>
    %c0_23 = arith.constant 0 : index
    %c0_24 = arith.constant 0 : index
    %40 = vector.load %arg17[%c0_23, %c0_24] : memref<1x128xf32, #tpu.memory_space<vmem>>, vector<1x128xf32>
    %cst_25 = arith.constant 0.166666672 : f32
    %41 = vector.broadcast %cst_25 : f32 to vector<1x128xf32>
    %42 = arith.divf %40, %41 : vector<1x128xf32>
    %c0_26 = arith.constant 0 : index
    %c0_27 = arith.constant 0 : index
    %43 = vector.load %arg15[%c0_26, %c0_27] : memref<1x128xf32, #tpu.memory_space<vmem>>, vector<1x128xf32>
    %44 = vector.shape_cast %42 : vector<1x128xf32> to vector<1x128xf32>
    %45 = vector.broadcast %44 : vector<1x128xf32> to vector<8x128xf32>
    %c0_28 = arith.constant 0 : index
    %c0_29 = arith.constant 0 : index
    %46 = vector.load %arg16[%c0_28, %c0_29] : memref<1x128xf32, #tpu.memory_space<vmem>>, vector<1x128xf32>
    %47 = arith.mulf %43, %46 : vector<1x128xf32>
    %48 = vector.shape_cast %47 : vector<1x128xf32> to vector<1x128xf32>
    %49 = vector.broadcast %48 : vector<1x128xf32> to vector<8x128xf32>
    %50 = arith.addf %49, %35 : vector<8x128xf32>
    %51 = arith.addf %42, %43 : vector<1x128xf32>
    %52 = vector.shape_cast %51 : vector<1x128xf32> to vector<1x128xf32>
    %53 = vector.broadcast %52 : vector<1x128xf32> to vector<8x128xf32>
    %54 = arith.addf %53, %39 : vector<8x128xf32>
    %cst_30 = arith.constant 9.99999993E-9 : f32
    %55 = vector.broadcast %cst_30 : f32 to vector<8x128xf32>
    %56 = arith.addf %54, %55 : vector<8x128xf32>
    %c0_31 = arith.constant 0 : index
    %c0_32 = arith.constant 0 : index
    %57 = vector.load %arg11[%c0_31, %c0_32] : memref<32x128xf32, #tpu.memory_space<vmem>>, vector<32x128xf32>
    %58 = vector.shape_cast %57 : vector<32x128xf32> to vector<1x32x128xf32>
    %c0_33 = arith.constant 0 : index
    %c0_34 = arith.constant 0 : index
    %59 = vector.load %arg12[%c0_33, %c0_34] : memref<32x128xf32, #tpu.memory_space<vmem>>, vector<32x128xf32>
    %60 = vector.shape_cast %59 : vector<32x128xf32> to vector<1x32x128xf32>
    %61 = vector.shape_cast %2 : vector<32x128xf32> to vector<1x32x128xf32>
    %62 = vector.shape_cast %4 : vector<32x128xf32> to vector<1x32x128xf32>
    %c0_35 = arith.constant 0 : index
    %c0_36 = arith.constant 0 : index
    %63 = vector.load %arg2[%c0_35, %c0_36] : memref<8x128xf32, #tpu.memory_space<vmem>>, vector<8x128xf32>
    %c0_i32 = arith.constant 0 : i32
    %64 = vector.extract_strided_slice %63 {offsets = [0, 0], sizes = [8, 32], strides = [1, 1]} : vector<8x128xf32> to vector<8x32xf32>
    %65 = vector.shape_cast %64 : vector<8x32xf32> to vector<8x32x1xf32>
    %66 = vector.broadcast %65 : vector<8x32x1xf32> to vector<8x32x128xf32>
    %67 = vector.broadcast %58 : vector<1x32x128xf32> to vector<8x32x128xf32>
    %68 = arith.subf %66, %67 : vector<8x32x128xf32>
    %69 = vector.broadcast %60 : vector<1x32x128xf32> to vector<8x32x128xf32>
    %70 = arith.mulf %68, %69 : vector<8x32x128xf32>
    %71 = arith.negf %70 : vector<8x32x128xf32>
    %72 = math.exp %71 : vector<8x32x128xf32>
    %cst_37 = arith.constant 1.000000e+00 : f32
    %73 = vector.broadcast %cst_37 : f32 to vector<8x32x128xf32>
    %74 = arith.addf %73, %72 : vector<8x32x128xf32>
    %75 = arith.divf %73, %74 : vector<8x32x128xf32>
    %76 = vector.broadcast %62 : vector<1x32x128xf32> to vector<8x32x128xf32>
    %77 = arith.mulf %76, %75 : vector<8x32x128xf32>
    %cst_38 = arith.constant dense<0.000000e+00> : vector<8x128xf32>
    %78 = vector.multi_reduction <add>, %77, %cst_38 [1] : vector<8x32x128xf32> to vector<8x128xf32>
    %79 = vector.broadcast %61 : vector<1x32x128xf32> to vector<8x32x128xf32>
    %80 = arith.mulf %79, %75 : vector<8x32x128xf32>
    %cst_39 = arith.constant dense<0.000000e+00> : vector<8x128xf32>
    %81 = vector.multi_reduction <add>, %80, %cst_39 [1] : vector<8x32x128xf32> to vector<8x128xf32>
    %82 = arith.mulf %45, %63 : vector<8x128xf32>
    %83 = arith.addf %82, %50 : vector<8x128xf32>
    %84 = arith.addf %83, %78 : vector<8x128xf32>
    %85 = arith.addf %56, %81 : vector<8x128xf32>
    %86 = arith.divf %84, %85 : vector<8x128xf32>
    %c1_i32 = arith.constant 1 : i32
    %87 = vector.extract_strided_slice %86 {offsets = [0, 0], sizes = [8, 32], strides = [1, 1]} : vector<8x128xf32> to vector<8x32xf32>
    %88 = vector.shape_cast %87 : vector<8x32xf32> to vector<8x32x1xf32>
    %89 = vector.broadcast %88 : vector<8x32x1xf32> to vector<8x32x128xf32>
    %90 = vector.broadcast %58 : vector<1x32x128xf32> to vector<8x32x128xf32>
    %91 = arith.subf %89, %90 : vector<8x32x128xf32>
    %92 = vector.broadcast %60 : vector<1x32x128xf32> to vector<8x32x128xf32>
    %93 = arith.mulf %91, %92 : vector<8x32x128xf32>
    %94 = arith.negf %93 : vector<8x32x128xf32>
    %95 = math.exp %94 : vector<8x32x128xf32>
    %cst_40 = arith.constant 1.000000e+00 : f32
    %96 = vector.broadcast %cst_40 : f32 to vector<8x32x128xf32>
    %97 = arith.addf %96, %95 : vector<8x32x128xf32>
    %98 = arith.divf %96, %97 : vector<8x32x128xf32>
    %99 = vector.broadcast %62 : vector<1x32x128xf32> to vector<8x32x128xf32>
    %100 = arith.mulf %99, %98 : vector<8x32x128xf32>
    %cst_41 = arith.constant dense<0.000000e+00> : vector<8x128xf32>
    %101 = vector.multi_reduction <add>, %100, %cst_41 [1] : vector<8x32x128xf32> to vector<8x128xf32>
    %102 = vector.broadcast %61 : vector<1x32x128xf32> to vector<8x32x128xf32>
    %103 = arith.mulf %102, %98 : vector<8x32x128xf32>
    %cst_42 = arith.constant dense<0.000000e+00> : vector<8x128xf32>
    %104 = vector.multi_reduction <add>, %103, %cst_42 [1] : vector<8x32x128xf32> to vector<8x128xf32>
    %105 = arith.mulf %45, %86 : vector<8x128xf32>
    %106 = arith.addf %105, %50 : vector<8x128xf32>
    %107 = arith.addf %106, %101 : vector<8x128xf32>
    %108 = arith.addf %56, %104 : vector<8x128xf32>
    %109 = arith.divf %107, %108 : vector<8x128xf32>
    %c2_i32 = arith.constant 2 : i32
    %110 = vector.extract_strided_slice %109 {offsets = [0, 0], sizes = [8, 32], strides = [1, 1]} : vector<8x128xf32> to vector<8x32xf32>
    %111 = vector.shape_cast %110 : vector<8x32xf32> to vector<8x32x1xf32>
    %112 = vector.broadcast %111 : vector<8x32x1xf32> to vector<8x32x128xf32>
    %113 = vector.broadcast %58 : vector<1x32x128xf32> to vector<8x32x128xf32>
    %114 = arith.subf %112, %113 : vector<8x32x128xf32>
    %115 = vector.broadcast %60 : vector<1x32x128xf32> to vector<8x32x128xf32>
    %116 = arith.mulf %114, %115 : vector<8x32x128xf32>
    %117 = arith.negf %116 : vector<8x32x128xf32>
    %118 = math.exp %117 : vector<8x32x128xf32>
    %cst_43 = arith.constant 1.000000e+00 : f32
    %119 = vector.broadcast %cst_43 : f32 to vector<8x32x128xf32>
    %120 = arith.addf %119, %118 : vector<8x32x128xf32>
    %121 = arith.divf %119, %120 : vector<8x32x128xf32>
    %122 = vector.broadcast %62 : vector<1x32x128xf32> to vector<8x32x128xf32>
    %123 = arith.mulf %122, %121 : vector<8x32x128xf32>
    %cst_44 = arith.constant dense<0.000000e+00> : vector<8x128xf32>
    %124 = vector.multi_reduction <add>, %123, %cst_44 [1] : vector<8x32x128xf32> to vector<8x128xf32>
    %125 = vector.broadcast %61 : vector<1x32x128xf32> to vector<8x32x128xf32>
    %126 = arith.mulf %125, %121 : vector<8x32x128xf32>
    %cst_45 = arith.constant dense<0.000000e+00> : vector<8x128xf32>
    %127 = vector.multi_reduction <add>, %126, %cst_45 [1] : vector<8x32x128xf32> to vector<8x128xf32>
    %128 = arith.mulf %45, %109 : vector<8x128xf32>
    %129 = arith.addf %128, %50 : vector<8x128xf32>
    %130 = arith.addf %129, %124 : vector<8x128xf32>
    %131 = arith.addf %56, %127 : vector<8x128xf32>
    %132 = arith.divf %130, %131 : vector<8x128xf32>
    %c3_i32 = arith.constant 3 : i32
    %133 = vector.extract_strided_slice %132 {offsets = [0, 0], sizes = [8, 32], strides = [1, 1]} : vector<8x128xf32> to vector<8x32xf32>
    %134 = vector.shape_cast %133 : vector<8x32xf32> to vector<8x32x1xf32>
    %135 = vector.broadcast %134 : vector<8x32x1xf32> to vector<8x32x128xf32>
    %136 = vector.broadcast %58 : vector<1x32x128xf32> to vector<8x32x128xf32>
    %137 = arith.subf %135, %136 : vector<8x32x128xf32>
    %138 = vector.broadcast %60 : vector<1x32x128xf32> to vector<8x32x128xf32>
    %139 = arith.mulf %137, %138 : vector<8x32x128xf32>
    %140 = arith.negf %139 : vector<8x32x128xf32>
    %141 = math.exp %140 : vector<8x32x128xf32>
    %cst_46 = arith.constant 1.000000e+00 : f32
    %142 = vector.broadcast %cst_46 : f32 to vector<8x32x128xf32>
    %143 = arith.addf %142, %141 : vector<8x32x128xf32>
    %144 = arith.divf %142, %143 : vector<8x32x128xf32>
    %145 = vector.broadcast %62 : vector<1x32x128xf32> to vector<8x32x128xf32>
    %146 = arith.mulf %145, %144 : vector<8x32x128xf32>
    %cst_47 = arith.constant dense<0.000000e+00> : vector<8x128xf32>
    %147 = vector.multi_reduction <add>, %146, %cst_47 [1] : vector<8x32x128xf32> to vector<8x128xf32>
    %148 = vector.broadcast %61 : vector<1x32x128xf32> to vector<8x32x128xf32>
    %149 = arith.mulf %148, %144 : vector<8x32x128xf32>
    %cst_48 = arith.constant dense<0.000000e+00> : vector<8x128xf32>
    %150 = vector.multi_reduction <add>, %149, %cst_48 [1] : vector<8x32x128xf32> to vector<8x128xf32>
    %151 = arith.mulf %45, %132 : vector<8x128xf32>
    %152 = arith.addf %151, %50 : vector<8x128xf32>
    %153 = arith.addf %152, %147 : vector<8x128xf32>
    %154 = arith.addf %56, %150 : vector<8x128xf32>
    %155 = arith.divf %153, %154 : vector<8x128xf32>
    %c4_i32 = arith.constant 4 : i32
    %156 = vector.extract_strided_slice %155 {offsets = [0, 0], sizes = [8, 32], strides = [1, 1]} : vector<8x128xf32> to vector<8x32xf32>
    %157 = vector.shape_cast %156 : vector<8x32xf32> to vector<8x32x1xf32>
    %158 = vector.broadcast %157 : vector<8x32x1xf32> to vector<8x32x128xf32>
    %159 = vector.broadcast %58 : vector<1x32x128xf32> to vector<8x32x128xf32>
    %160 = arith.subf %158, %159 : vector<8x32x128xf32>
    %161 = vector.broadcast %60 : vector<1x32x128xf32> to vector<8x32x128xf32>
    %162 = arith.mulf %160, %161 : vector<8x32x128xf32>
    %163 = arith.negf %162 : vector<8x32x128xf32>
    %164 = math.exp %163 : vector<8x32x128xf32>
    %cst_49 = arith.constant 1.000000e+00 : f32
    %165 = vector.broadcast %cst_49 : f32 to vector<8x32x128xf32>
    %166 = arith.addf %165, %164 : vector<8x32x128xf32>
    %167 = arith.divf %165, %166 : vector<8x32x128xf32>
    %168 = vector.broadcast %62 : vector<1x32x128xf32> to vector<8x32x128xf32>
    %169 = arith.mulf %168, %167 : vector<8x32x128xf32>
    %cst_50 = arith.constant dense<0.000000e+00> : vector<8x128xf32>
    %170 = vector.multi_reduction <add>, %169, %cst_50 [1] : vector<8x32x128xf32> to vector<8x128xf32>
    %171 = vector.broadcast %61 : vector<1x32x128xf32> to vector<8x32x128xf32>
    %172 = arith.mulf %171, %167 : vector<8x32x128xf32>
    %cst_51 = arith.constant dense<0.000000e+00> : vector<8x128xf32>
    %173 = vector.multi_reduction <add>, %172, %cst_51 [1] : vector<8x32x128xf32> to vector<8x128xf32>
    %174 = arith.mulf %45, %155 : vector<8x128xf32>
    %175 = arith.addf %174, %50 : vector<8x128xf32>
    %176 = arith.addf %175, %170 : vector<8x128xf32>
    %177 = arith.addf %56, %173 : vector<8x128xf32>
    %178 = arith.divf %176, %177 : vector<8x128xf32>
    %c5_i32 = arith.constant 5 : i32
    %179 = vector.extract_strided_slice %178 {offsets = [0, 0], sizes = [8, 32], strides = [1, 1]} : vector<8x128xf32> to vector<8x32xf32>
    %180 = vector.shape_cast %179 : vector<8x32xf32> to vector<8x32x1xf32>
    %181 = vector.broadcast %180 : vector<8x32x1xf32> to vector<8x32x128xf32>
    %182 = vector.broadcast %58 : vector<1x32x128xf32> to vector<8x32x128xf32>
    %183 = arith.subf %181, %182 : vector<8x32x128xf32>
    %184 = vector.broadcast %60 : vector<1x32x128xf32> to vector<8x32x128xf32>
    %185 = arith.mulf %183, %184 : vector<8x32x128xf32>
    %186 = arith.negf %185 : vector<8x32x128xf32>
    %187 = math.exp %186 : vector<8x32x128xf32>
    %cst_52 = arith.constant 1.000000e+00 : f32
    %188 = vector.broadcast %cst_52 : f32 to vector<8x32x128xf32>
    %189 = arith.addf %188, %187 : vector<8x32x128xf32>
    %190 = arith.divf %188, %189 : vector<8x32x128xf32>
    %191 = vector.broadcast %62 : vector<1x32x128xf32> to vector<8x32x128xf32>
    %192 = arith.mulf %191, %190 : vector<8x32x128xf32>
    %cst_53 = arith.constant dense<0.000000e+00> : vector<8x128xf32>
    %193 = vector.multi_reduction <add>, %192, %cst_53 [1] : vector<8x32x128xf32> to vector<8x128xf32>
    %194 = vector.broadcast %61 : vector<1x32x128xf32> to vector<8x32x128xf32>
    %195 = arith.mulf %194, %190 : vector<8x32x128xf32>
    %cst_54 = arith.constant dense<0.000000e+00> : vector<8x128xf32>
    %196 = vector.multi_reduction <add>, %195, %cst_54 [1] : vector<8x32x128xf32> to vector<8x128xf32>
    %197 = arith.mulf %45, %178 : vector<8x128xf32>
    %198 = arith.addf %197, %50 : vector<8x128xf32>
    %199 = arith.addf %198, %193 : vector<8x128xf32>
    %200 = arith.addf %56, %196 : vector<8x128xf32>
    %201 = arith.divf %199, %200 : vector<8x128xf32>
    %c0_55 = arith.constant 0 : index
    %c0_56 = arith.constant 0 : index
    %202 = vector.load %arg21[%c0_55, %c0_56] : memref<8x128xf32, #tpu.memory_space<vmem>>, vector<8x128xf32>
    tpu.vector_store %arg21[%c0_55, %c0_56], %201 {strides = array<i32>} : memref<8x128xf32, #tpu.memory_space<vmem>>, vector<8x128xf32>,
    %c0_57 = arith.constant 0 : index
    %c0_58 = arith.constant 0 : index
    %203 = vector.load %arg18[%c0_57, %c0_58] : memref<1x128xf32, #tpu.memory_space<vmem>>, vector<1x128xf32>
    %204 = vector.broadcast %203 : vector<1x128xf32> to vector<8x128xf32>
    %205 = arith.mulf %201, %204 : vector<8x128xf32>
    %c0_59 = arith.constant 0 : index
    %c0_60 = arith.constant 0 : index
    %206 = vector.load %arg19[%c0_59, %c0_60] : memref<1x128xf32, #tpu.memory_space<vmem>>, vector<1x128xf32>
    %207 = vector.broadcast %206 : vector<1x128xf32> to vector<8x128xf32>
    %208 = arith.addf %205, %207 : vector<8x128xf32>
    %c0_61 = arith.constant 0 : index
    %c0_62 = arith.constant 0 : index
    %209 = vector.load %arg20[%c0_61, %c0_62] : memref<8x128xf32, #tpu.memory_space<vmem>>, vector<8x128xf32>
    tpu.vector_store %arg20[%c0_61, %c0_62], %208 {strides = array<i32>} : memref<8x128xf32, #tpu.memory_space<vmem>>, vector<8x128xf32>,
    return
  }
  func.func @transform_0(%arg0: i32) -> (i32, i32) {
    %c0_i32 = arith.constant 0 : i32
    %c0_i32_0 = arith.constant 0 : i32
    return %arg0, %c0_i32 : i32, i32
  }
  func.func @transform_1(%arg0: i32) -> (i32, i32) {
    %c0_i32 = arith.constant 0 : i32
    %c0_i32_0 = arith.constant 0 : i32
    return %arg0, %c0_i32 : i32, i32
  }
  func.func @transform_2(%arg0: i32) -> (i32, i32) {
    %c0_i32 = arith.constant 0 : i32
    %c0_i32_0 = arith.constant 0 : i32
    %c0_i32_1 = arith.constant 0 : i32
    return %c0_i32, %c0_i32_0 : i32, i32
  }
  func.func @transform_3(%arg0: i32) -> (i32, i32) {
    %c0_i32 = arith.constant 0 : i32
    %c0_i32_0 = arith.constant 0 : i32
    %c0_i32_1 = arith.constant 0 : i32
    return %c0_i32, %c0_i32_0 : i32, i32
  }
  func.func @transform_4(%arg0: i32) -> (i32, i32) {
    %c0_i32 = arith.constant 0 : i32
    %c0_i32_0 = arith.constant 0 : i32
    %c0_i32_1 = arith.constant 0 : i32
    return %c0_i32, %c0_i32_0 : i32, i32
  }
  func.func @transform_5(%arg0: i32) -> (i32, i32) {
    %c0_i32 = arith.constant 0 : i32
    %c0_i32_0 = arith.constant 0 : i32
    %c0_i32_1 = arith.constant 0 : i32
    return %c0_i32, %c0_i32_0 : i32, i32
  }
  func.func @transform_6(%arg0: i32) -> (i32, i32) {
    %c0_i32 = arith.constant 0 : i32
    %c0_i32_0 = arith.constant 0 : i32
    %c0_i32_1 = arith.constant 0 : i32
    return %c0_i32, %c0_i32_0 : i32, i32
  }
  func.func @transform_7(%arg0: i32) -> (i32, i32) {
    %c0_i32 = arith.constant 0 : i32
    %c0_i32_0 = arith.constant 0 : i32
    %c0_i32_1 = arith.constant 0 : i32
    return %c0_i32, %c0_i32_0 : i32, i32
  }
  func.func @transform_8(%arg0: i32) -> (i32, i32) {
    %c0_i32 = arith.constant 0 : i32
    %c0_i32_0 = arith.constant 0 : i32
    %c0_i32_1 = arith.constant 0 : i32
    return %c0_i32, %c0_i32_0 : i32, i32
  }
  func.func @transform_9(%arg0: i32) -> (i32, i32) {
    %c0_i32 = arith.constant 0 : i32
    %c0_i32_0 = arith.constant 0 : i32
    %c0_i32_1 = arith.constant 0 : i32
    return %c0_i32, %c0_i32_0 : i32, i32
  }
  func.func @transform_10(%arg0: i32) -> (i32, i32) {
    %c0_i32 = arith.constant 0 : i32
    %c0_i32_0 = arith.constant 0 : i32
    %c0_i32_1 = arith.constant 0 : i32
    return %c0_i32, %c0_i32_0 : i32, i32
  }
  func.func @transform_11(%arg0: i32) -> (i32, i32) {
    %c0_i32 = arith.constant 0 : i32
    %c0_i32_0 = arith.constant 0 : i32
    %c0_i32_1 = arith.constant 0 : i32
    return %c0_i32, %c0_i32_0 : i32, i32
  }
  func.func @transform_12(%arg0: i32) -> (i32, i32) {
    %c0_i32 = arith.constant 0 : i32
    %c0_i32_0 = arith.constant 0 : i32
    %c0_i32_1 = arith.constant 0 : i32
    return %c0_i32, %c0_i32_0 : i32, i32
  }
  func.func @transform_13(%arg0: i32) -> (i32, i32) {
    %c0_i32 = arith.constant 0 : i32
    %c0_i32_0 = arith.constant 0 : i32
    %c0_i32_1 = arith.constant 0 : i32
    return %c0_i32, %c0_i32_0 : i32, i32
  }
  func.func @transform_14(%arg0: i32) -> (i32, i32) {
    %c0_i32 = arith.constant 0 : i32
    %c0_i32_0 = arith.constant 0 : i32
    %c0_i32_1 = arith.constant 0 : i32
    return %c0_i32, %c0_i32_0 : i32, i32
  }
  func.func @transform_15(%arg0: i32) -> (i32, i32) {
    %c0_i32 = arith.constant 0 : i32
    %c0_i32_0 = arith.constant 0 : i32
    %c0_i32_1 = arith.constant 0 : i32
    return %c0_i32, %c0_i32_0 : i32, i32
  }
  func.func @transform_16(%arg0: i32) -> (i32, i32) {
    %c0_i32 = arith.constant 0 : i32
    %c0_i32_0 = arith.constant 0 : i32
    %c0_i32_1 = arith.constant 0 : i32
    return %c0_i32, %c0_i32_0 : i32, i32
  }
  func.func @transform_17(%arg0: i32) -> (i32, i32) {
    %c0_i32 = arith.constant 0 : i32
    %c0_i32_0 = arith.constant 0 : i32
    %c0_i32_1 = arith.constant 0 : i32
    return %c0_i32, %c0_i32_0 : i32, i32
  }
  func.func @transform_18(%arg0: i32) -> (i32, i32) {
    %c0_i32 = arith.constant 0 : i32
    %c0_i32_0 = arith.constant 0 : i32
    %c0_i32_1 = arith.constant 0 : i32
    return %c0_i32, %c0_i32_0 : i32, i32
  }
  func.func @transform_19(%arg0: i32) -> (i32, i32) {
    %c0_i32 = arith.constant 0 : i32
    %c0_i32_0 = arith.constant 0 : i32
    return %arg0, %c0_i32 : i32, i32
  }
  func.func @transform_20(%arg0: i32) -> (i32, i32) {
    %c0_i32 = arith.constant 0 : i32
    %c0_i32_0 = arith.constant 0 : i32
    return %arg0, %c0_i32 : i32, i32
  }
}

</mosaic_0001>

<llo_original>
// kernel: tpu_custom_call.1
$region0: #{tpu_custom_call.1}
  #allocation0 [shape = 'u32[]', space=smem, size = 0x4, offset = 0x4, fixed_abs, tag = 'smem constant byte address 0x4 - core index']
  #allocation1 [shape = 'u32[72,128]{1,0:T(1,128)}', space=vmem, size = 0x9000, scoped, tag = 'internal scratch']
  %s0 = inlined_call_operand.vmem [shape: f32[16,8], index: 0, kind: input, shape index: {}]
  %s1 = inlined_call_operand.hbm [shape: f32[16,128], index: 1, kind: input, shape index: {}]
  %s2 = inlined_call_operand.hbm [shape: f32[1,8], index: 2, kind: input, shape index: {}]
  %s3 = inlined_call_operand.hbm [shape: f32[1,8], index: 3, kind: input, shape index: {}]
  %s4 = inlined_call_operand.hbm [shape: f32[8,128], index: 4, kind: input, shape index: {}]
  %s5 = inlined_call_operand.hbm [shape: f32[8,128], index: 5, kind: input, shape index: {}]
  %s6 = inlined_call_operand.hbm [shape: f32[8,128], index: 6, kind: input, shape index: {}]
  %s7 = inlined_call_operand.hbm [shape: f32[8,128], index: 7, kind: input, shape index: {}]
  %s8 = inlined_call_operand.hbm [shape: f32[8,128], index: 8, kind: input, shape index: {}]
  %s9 = inlined_call_operand.vmem [shape: f32[32,128], index: 9, kind: input, shape index: {}]
  %s10 = inlined_call_operand.hbm [shape: f32[32,128], index: 10, kind: input, shape index: {}]
  %s11 = inlined_call_operand.hbm [shape: f32[32,128], index: 11, kind: input, shape index: {}]
  %s12 = inlined_call_operand.hbm [shape: f32[32,128], index: 12, kind: input, shape index: {}]
  %s13 = inlined_call_operand.hbm [shape: f32[32,128], index: 13, kind: input, shape index: {}]
  %s14 = inlined_call_operand.vmem [shape: f32[1,128], index: 14, kind: input, shape index: {}]
  %s15 = inlined_call_operand.vmem [shape: f32[1,128], index: 15, kind: input, shape index: {}]
  %s16 = inlined_call_operand.vmem [shape: f32[1,128], index: 16, kind: input, shape index: {}]
  %s17 = inlined_call_operand.vmem [shape: f32[1,128], index: 17, kind: input, shape index: {}]
  %s18 = inlined_call_operand.vmem [shape: f32[1,128], index: 18, kind: input, shape index: {}]
  %s19 = inlined_call_operand.hbm [shape: f32[16,128], index: 19, kind: output, shape index: {0}]
  %s20 = inlined_call_operand.hbm [shape: f32[16,128], index: 20, kind: output, shape index: {1}]
  %21 = xla_tuple %s19, %s20
  %s22 = sld [smem:[#allocation0]]
  $region165: #{tpu_custom_call.1} parent=0
    _
  %s24 = ssub.s32 1, %s22
  %s25 = scalar_select 0, %s24, %s22
  $region1: #{tpu_custom_call.1} parent=0
    #allocation2 [shape = 'u8[8192]{0}', space=vmem, size = 0x2000, scoped, tag = 'input window, operand 1']
    #allocation3 [shape = 's32[2]{0}', space=sflag, size = 0x8, scoped, tag = 'scoped memory for tpu_custom_call.1']
    #allocation4 [shape = 's32[2]{0}', space=sflag, size = 0x8, scoped, tag = 'scoped memory for tpu_custom_call.1']
    #allocation5 [shape = 'u8[512]{0}', space=vmem, size = 0x400, scoped, tag = 'input window, operand 2, single buffered']
    #allocation6 [shape = 's32[1]{0}', space=sflag, size = 0x4, scoped, tag = 'scoped memory for tpu_custom_call.1']
    #allocation7 [shape = 'u8[512]{0}', space=vmem, size = 0x400, scoped, tag = 'input window, operand 3, single buffered']
    #allocation8 [shape = 'u8[4096]{0}', space=vmem, size = 0x1000, scoped, tag = 'input window, operand 4, single buffered']
    #allocation9 [shape = 's32[1]{0}', space=sflag, size = 0x4, scoped, tag = 'scoped memory for tpu_custom_call.1']
    #allocation10 [shape = 'u8[4096]{0}', space=vmem, size = 0x1000, scoped, tag = 'input window, operand 5, single buffered']
    #allocation11 [shape = 'u8[4096]{0}', space=vmem, size = 0x1000, scoped, tag = 'input window, operand 6, single buffered']
    #allocation12 [shape = 's32[1]{0}', space=sflag, size = 0x4, scoped, tag = 'scoped memory for tpu_custom_call.1']
    #allocation13 [shape = 'u8[4096]{0}', space=vmem, size = 0x1000, scoped, tag = 'input window, operand 7, single buffered']
    #allocation14 [shape = 'u8[4096]{0}', space=vmem, size = 0x1000, scoped, tag = 'input window, operand 8, single buffered']
    #allocation15 [shape = 's32[1]{0}', space=sflag, size = 0x4, scoped, tag = 'scoped memory for tpu_custom_call.1']
    #allocation16 [shape = 'u8[16384]{0}', space=vmem, size = 0x4000, scoped, tag = 'input window, operand 10, single buffered']
    #allocation17 [shape = 'u8[16384]{0}', space=vmem, size = 0x4000, scoped, tag = 'input window, operand 11, single buffered']
    #allocation18 [shape = 's32[1]{0}', space=sflag, size = 0x4, scoped, tag = 'scoped memory for tpu_custom_call.1']
    #allocation19 [shape = 'u8[16384]{0}', space=vmem, size = 0x4000, scoped, tag = 'input window, operand 12, single buffered']
    #allocation20 [shape = 'u8[16384]{0}', space=vmem, size = 0x4000, scoped, tag = 'input window, operand 13, single buffered']
    #allocation21 [shape = 's32[1]{0}', space=sflag, size = 0x4, scoped, tag = 'scoped memory for tpu_custom_call.1']
    #allocation22 [shape = 'u8[8192]{0}', space=vmem, size = 0x2000, scoped, tag = 'output window, operand 0']
    #allocation23 [shape = 'u8[8192]{0}', space=vmem, size = 0x2000, scoped, tag = 'output window, operand 1']
    #allocation24 [shape = 's32[2]{0}', space=sflag, size = 0x8, scoped, tag = 'scoped memory for tpu_custom_call.1']
    %26 = vsyncpa [#allocation3], 0
    %s27 = scalar_lea.sflag [#allocation3], 1
    %28 = vsyncpa %s27, 0
    %29 = vsyncpa [#allocation6], 0
    %30 = vsyncpa [#allocation9], 0
    %31 = vsyncpa [#allocation12], 0
    %32 = vsyncpa [#allocation15], 0
    %33 = vsyncpa [#allocation18], 0
    %34 = vsyncpa [#allocation21], 0
    %35 = vsyncpa [#allocation4], 0
    %s36 = scalar_lea.sflag [#allocation4], 1
    %37 = vsyncpa %s36, 0
    %38 = vsyncpa [#allocation24], 0
    %s39 = scalar_lea.sflag [#allocation24], 1
    %40 = vsyncpa %s39, 0
    loop: start=0, step=1, limit=4
    $region2: #{tpu_custom_call.1} parent=1 // loop_pre_header
      _
    $region3: #{tpu_custom_call.1} parent=1 // loop_header
      %s42 = sphi 0, %s46
      %p43 = scmp.ge.s32.totalorder %s42, 4
      %s52 = sphi 0, %s54
      %s55 = sphi 0, %s52
      %s56 = sphi 0, %s55
      %s72 = sphi 0, %s56
      %s78 = sphi 0, %s80
      %s81 = sphi 0, %s78
      %s82 = sphi 0, %s81
      %s98 = sphi 0, %s82
      %s102 = sphi 0, %s102
      %s104 = sphi 0, %s102
      %s105 = sphi 0, %s104
      %s119 = sphi 0, %s105
      %s123 = sphi 0, %s123
      %s125 = sphi 0, %s123
      %s126 = sphi 0, %s125
      %s140 = sphi 0, %s126
      %s144 = sphi 0, %s144
      %s146 = sphi 0, %s144
      %s147 = sphi 0, %s146
      %s161 = sphi 0, %s147
      %s165 = sphi 0, %s165
      %s167 = sphi 0, %s165
      %s168 = sphi 0, %s167
      %s182 = sphi 0, %s168
      %s186 = sphi 0, %s186
      %s188 = sphi 0, %s186
      %s189 = sphi 0, %s188
      %s203 = sphi 0, %s189
      %s207 = sphi 0, %s207
      %s209 = sphi 0, %s207
      %s210 = sphi 0, %s209
      %s224 = sphi 0, %s210
      %s228 = sphi 0, %s228
      %s230 = sphi 0, %s228
      %s231 = sphi 0, %s230
      %s245 = sphi 0, %s231
      %s249 = sphi 0, %s249
      %s251 = sphi 0, %s249
      %s252 = sphi 0, %s251
      %s266 = sphi 0, %s252
      %s270 = sphi 0, %s270
      %s272 = sphi 0, %s270
      %s273 = sphi 0, %s272
      %s287 = sphi 0, %s273
      %s291 = sphi 0, %s291
      %s293 = sphi 0, %s291
      %s294 = sphi 0, %s293
      %s308 = sphi 0, %s294
      %s312 = sphi 0, %s312
      %s314 = sphi 0, %s312
      %s315 = sphi 0, %s314
      %s329 = sphi 0, %s315
      %s333 = sphi 0, %s333
      %s335 = sphi 0, %s333
      %s336 = sphi 0, %s335
      %s350 = sphi 0, %s336
      %s354 = sphi 0, %s354
      %s356 = sphi 0, %s354
      %s357 = sphi 0, %s356
      %s371 = sphi 0, %s357
      %s375 = sphi 0, %s375
      %s377 = sphi 0, %s375
      %s378 = sphi 0, %s377
      %s392 = sphi 0, %s378
      %s396 = sphi 0, %s396
      %s398 = sphi 0, %s396
      %s399 = sphi 0, %s398
      %s413 = sphi 0, %s399
      %s417 = sphi 0, %s417
      %s419 = sphi 0, %s417
      %s420 = sphi 0, %s419
      %s434 = sphi 0, %s420
      %s438 = sphi 0, %s438
      %s440 = sphi 0, %s438
      %s441 = sphi 0, %s440
      %s455 = sphi 0, %s441
      %s461 = sphi 0, %s463
      %s464 = sphi 0, %s461
      %s465 = sphi 0, %s464
      %s481 = sphi 0, %s465
      %s487 = sphi 0, %s489
      %s490 = sphi 0, %s487
      %s491 = sphi 0, %s490
      %s507 = sphi 0, %s491
    $region4: #{tpu_custom_call.1} parent=1 // loop_header_branch
      %45 = sbr.rel (%p43) target = $region8
    $region5: #{tpu_custom_call.1} parent=1 // loop_body
      %s47 = ssub.s32 %s42, 1
      %s48 = ssub.s32 %s42, 2
      %s49 = sadd.s32 %s42, 1
      %s50 = ssub.s32 %s42, %s49
      %p51 = scmp.eq.s32.totalorder %s50, 0
      %s53 = sadd.s32 %s52, 1
      %s54 = scalar_select %p51, %s52, %s53
      %p57 = pneg %p51
      %p58 = scmp.eq.s32.totalorder %s42, 1
      %p59 = por %p57, %p58
      %p60 = scmp.ne.s32.totalorder %s52, %s55
      %p61 = scmp.eq.s32.totalorder %s42, 0
      %p62 = por %p60, %p61
      %p63 = scmp.ne.s32.totalorder %s52, %s55
      %p64 = scmp.eq.s32.totalorder %s47, 1
      %p65 = por %p63, %p64
      %p66 = scmp.ne.s32.totalorder %s55, %s56
      %p67 = scmp.eq.s32.totalorder %s47, 0
      %p68 = por %p66, %p67
      %p69 = scmp.ne.s32.totalorder %s55, %s56
      %p70 = scmp.eq.s32.totalorder %s48, 1
      %p71 = por %p69, %p70
      %p73 = scmp.ne.s32.totalorder %s56, %s72
      %p74 = scmp.eq.s32.totalorder %s48, 0
      %p75 = por %p73, %p74
      %s76 = ssub.s32 %s42, %s49
      %p77 = scmp.eq.s32.totalorder %s76, 0
      %s79 = sadd.s32 %s78, 1
      %s80 = scalar_select %p77, %s78, %s79
      %p83 = pneg %p77
      %p84 = scmp.eq.s32.totalorder %s42, 1
      %p85 = por %p83, %p84
      %p86 = scmp.ne.s32.totalorder %s78, %s81
      %p87 = scmp.eq.s32.totalorder %s42, 0
      %p88 = por %p86, %p87
      %p89 = scmp.ne.s32.totalorder %s78, %s81
      %p90 = scmp.eq.s32.totalorder %s47, 1
      %p91 = por %p89, %p90
      %p92 = scmp.ne.s32.totalorder %s81, %s82
      %p93 = scmp.eq.s32.totalorder %s47, 0
      %p94 = por %p92, %p93
      %p95 = scmp.ne.s32.totalorder %s81, %s82
      %p96 = scmp.eq.s32.totalorder %s48, 1
      %p97 = por %p95, %p96
      %p99 = scmp.ne.s32.totalorder %s82, %s98
      %p100 = scmp.eq.s32.totalorder %s48, 0
      %p101 = por %p99, %p100
      %s103 = sadd.s32 %s102, 1
      %p106 = scmp.eq.s32.totalorder %s42, 1
      %p107 = scmp.ne.s32.totalorder %s102, %s104
      %p108 = scmp.eq.s32.totalorder %s42, 0
      %p109 = por %p107, %p108
      %p110 = scmp.ne.s32.totalorder %s102, %s104
      %p111 = scmp.eq.s32.totalorder %s47, 1
      %p112 = por %p110, %p111
      %p113 = scmp.ne.s32.totalorder %s104, %s105
      %p114 = scmp.eq.s32.totalorder %s47, 0
      %p115 = por %p113, %p114
      %p116 = scmp.ne.s32.totalorder %s104, %s105
      %p117 = scmp.eq.s32.totalorder %s48, 1
      %p118 = por %p116, %p117
      %p120 = scmp.ne.s32.totalorder %s105, %s119
      %p121 = scmp.eq.s32.totalorder %s48, 0
      %p122 = por %p120, %p121
      %s124 = sadd.s32 %s123, 1
      %p127 = scmp.eq.s32.totalorder %s42, 1
      %p128 = scmp.ne.s32.totalorder %s123, %s125
      %p129 = scmp.eq.s32.totalorder %s42, 0
      %p130 = por %p128, %p129
      %p131 = scmp.ne.s32.totalorder %s123, %s125
      %p132 = scmp.eq.s32.totalorder %s47, 1
      %p133 = por %p131, %p132
      %p134 = scmp.ne.s32.totalorder %s125, %s126
      %p135 = scmp.eq.s32.totalorder %s47, 0
      %p136 = por %p134, %p135
      %p137 = scmp.ne.s32.totalorder %s125, %s126
      %p138 = scmp.eq.s32.totalorder %s48, 1
      %p139 = por %p137, %p138
      %p141 = scmp.ne.s32.totalorder %s126, %s140
      %p142 = scmp.eq.s32.totalorder %s48, 0
      %p143 = por %p141, %p142
      %s145 = sadd.s32 %s144, 1
      %p148 = scmp.eq.s32.totalorder %s42, 1
      %p149 = scmp.ne.s32.totalorder %s144, %s146
      %p150 = scmp.eq.s32.totalorder %s42, 0
      %p151 = por %p149, %p150
      %p152 = scmp.ne.s32.totalorder %s144, %s146
      %p153 = scmp.eq.s32.totalorder %s47, 1
      %p154 = por %p152, %p153
      %p155 = scmp.ne.s32.totalorder %s146, %s147
      %p156 = scmp.eq.s32.totalorder %s47, 0
      %p157 = por %p155, %p156
      %p158 = scmp.ne.s32.totalorder %s146, %s147
      %p159 = scmp.eq.s32.totalorder %s48, 1
      %p160 = por %p158, %p159
      %p162 = scmp.ne.s32.totalorder %s147, %s161
      %p163 = scmp.eq.s32.totalorder %s48, 0
      %p164 = por %p162, %p163
      %s166 = sadd.s32 %s165, 1
      %p169 = scmp.eq.s32.totalorder %s42, 1
      %p170 = scmp.ne.s32.totalorder %s165, %s167
      %p171 = scmp.eq.s32.totalorder %s42, 0
      %p172 = por %p170, %p171
      %p173 = scmp.ne.s32.totalorder %s165, %s167
      %p174 = scmp.eq.s32.totalorder %s47, 1
      %p175 = por %p173, %p174
      %p176 = scmp.ne.s32.totalorder %s167, %s168
      %p177 = scmp.eq.s32.totalorder %s47, 0
      %p178 = por %p176, %p177
      %p179 = scmp.ne.s32.totalorder %s167, %s168
      %p180 = scmp.eq.s32.totalorder %s48, 1
      %p181 = por %p179, %p180
      %p183 = scmp.ne.s32.totalorder %s168, %s182
      %p184 = scmp.eq.s32.totalorder %s48, 0
      %p185 = por %p183, %p184
      %s187 = sadd.s32 %s186, 1
      %p190 = scmp.eq.s32.totalorder %s42, 1
      %p191 = scmp.ne.s32.totalorder %s186, %s188
      %p192 = scmp.eq.s32.totalorder %s42, 0
      %p193 = por %p191, %p192
      %p194 = scmp.ne.s32.totalorder %s186, %s188
      %p195 = scmp.eq.s32.totalorder %s47, 1
      %p196 = por %p194, %p195
      %p197 = scmp.ne.s32.totalorder %s188, %s189
      %p198 = scmp.eq.s32.totalorder %s47, 0
      %p199 = por %p197, %p198
      %p200 = scmp.ne.s32.totalorder %s188, %s189
      %p201 = scmp.eq.s32.totalorder %s48, 1
      %p202 = por %p200, %p201
      %p204 = scmp.ne.s32.totalorder %s189, %s203
      %p205 = scmp.eq.s32.totalorder %s48, 0
      %p206 = por %p204, %p205
      %s208 = sadd.s32 %s207, 1
      %p211 = scmp.eq.s32.totalorder %s42, 1
      %p212 = scmp.ne.s32.totalorder %s207, %s209
      %p213 = scmp.eq.s32.totalorder %s42, 0
      %p214 = por %p212, %p213
      %p215 = scmp.ne.s32.totalorder %s207, %s209
      %p216 = scmp.eq.s32.totalorder %s47, 1
      %p217 = por %p215, %p216
      %p218 = scmp.ne.s32.totalorder %s209, %s210
      %p219 = scmp.eq.s32.totalorder %s47, 0
      %p220 = por %p218, %p219
      %p221 = scmp.ne.s32.totalorder %s209, %s210
      %p222 = scmp.eq.s32.totalorder %s48, 1
      %p223 = por %p221, %p222
      %p225 = scmp.ne.s32.totalorder %s210, %s224
      %p226 = scmp.eq.s32.totalorder %s48, 0
      %p227 = por %p225, %p226
      %s229 = sadd.s32 %s228, 1
      %p232 = scmp.eq.s32.totalorder %s42, 1
      %p233 = scmp.ne.s32.totalorder %s228, %s230
      %p234 = scmp.eq.s32.totalorder %s42, 0
      %p235 = por %p233, %p234
      %p236 = scmp.ne.s32.totalorder %s228, %s230
      %p237 = scmp.eq.s32.totalorder %s47, 1
      %p238 = por %p236, %p237
      %p239 = scmp.ne.s32.totalorder %s230, %s231
      %p240 = scmp.eq.s32.totalorder %s47, 0
      %p241 = por %p239, %p240
      %p242 = scmp.ne.s32.totalorder %s230, %s231
      %p243 = scmp.eq.s32.totalorder %s48, 1
      %p244 = por %p242, %p243
      %p246 = scmp.ne.s32.totalorder %s231, %s245
      %p247 = scmp.eq.s32.totalorder %s48, 0
      %p248 = por %p246, %p247
      %s250 = sadd.s32 %s249, 1
      %p253 = scmp.eq.s32.totalorder %s42, 1
      %p254 = scmp.ne.s32.totalorder %s249, %s251
      %p255 = scmp.eq.s32.totalorder %s42, 0
      %p256 = por %p254, %p255
      %p257 = scmp.ne.s32.totalorder %s249, %s251
      %p258 = scmp.eq.s32.totalorder %s47, 1
      %p259 = por %p257, %p258
      %p260 = scmp.ne.s32.totalorder %s251, %s252
      %p261 = scmp.eq.s32.totalorder %s47, 0
      %p262 = por %p260, %p261
      %p263 = scmp.ne.s32.totalorder %s251, %s252
      %p264 = scmp.eq.s32.totalorder %s48, 1
      %p265 = por %p263, %p264
      %p267 = scmp.ne.s32.totalorder %s252, %s266
      %p268 = scmp.eq.s32.totalorder %s48, 0
      %p269 = por %p267, %p268
      %s271 = sadd.s32 %s270, 1
      %p274 = scmp.eq.s32.totalorder %s42, 1
      %p275 = scmp.ne.s32.totalorder %s270, %s272
      %p276 = scmp.eq.s32.totalorder %s42, 0
      %p277 = por %p275, %p276
      %p278 = scmp.ne.s32.totalorder %s270, %s272
      %p279 = scmp.eq.s32.totalorder %s47, 1
      %p280 = por %p278, %p279
      %p281 = scmp.ne.s32.totalorder %s272, %s273
      %p282 = scmp.eq.s32.totalorder %s47, 0
      %p283 = por %p281, %p282
      %p284 = scmp.ne.s32.totalorder %s272, %s273
      %p285 = scmp.eq.s32.totalorder %s48, 1
      %p286 = por %p284, %p285
      %p288 = scmp.ne.s32.totalorder %s273, %s287
      %p289 = scmp.eq.s32.totalorder %s48, 0
      %p290 = por %p288, %p289
      %s292 = sadd.s32 %s291, 1
      %p295 = scmp.eq.s32.totalorder %s42, 1
      %p296 = scmp.ne.s32.totalorder %s291, %s293
      %p297 = scmp.eq.s32.totalorder %s42, 0
      %p298 = por %p296, %p297
      %p299 = scmp.ne.s32.totalorder %s291, %s293
      %p300 = scmp.eq.s32.totalorder %s47, 1
      %p301 = por %p299, %p300
      %p302 = scmp.ne.s32.totalorder %s293, %s294
      %p303 = scmp.eq.s32.totalorder %s47, 0
      %p304 = por %p302, %p303
      %p305 = scmp.ne.s32.totalorder %s293, %s294
      %p306 = scmp.eq.s32.totalorder %s48, 1
      %p307 = por %p305, %p306
      %p309 = scmp.ne.s32.totalorder %s294, %s308
      %p310 = scmp.eq.s32.totalorder %s48, 0
      %p311 = por %p309, %p310
      %s313 = sadd.s32 %s312, 1
      %p316 = scmp.eq.s32.totalorder %s42, 1
      %p317 = scmp.ne.s32.totalorder %s312, %s314
      %p318 = scmp.eq.s32.totalorder %s42, 0
      %p319 = por %p317, %p318
      %p320 = scmp.ne.s32.totalorder %s312, %s314
      %p321 = scmp.eq.s32.totalorder %s47, 1
      %p322 = por %p320, %p321
      %p323 = scmp.ne.s32.totalorder %s314, %s315
      %p324 = scmp.eq.s32.totalorder %s47, 0
      %p325 = por %p323, %p324
      %p326 = scmp.ne.s32.totalorder %s314, %s315
      %p327 = scmp.eq.s32.totalorder %s48, 1
      %p328 = por %p326, %p327
      %p330 = scmp.ne.s32.totalorder %s315, %s329
      %p331 = scmp.eq.s32.totalorder %s48, 0
      %p332 = por %p330, %p331
      %s334 = sadd.s32 %s333, 1
      %p337 = scmp.eq.s32.totalorder %s42, 1
      %p338 = scmp.ne.s32.totalorder %s333, %s335
      %p339 = scmp.eq.s32.totalorder %s42, 0
      %p340 = por %p338, %p339
      %p341 = scmp.ne.s32.totalorder %s333, %s335
      %p342 = scmp.eq.s32.totalorder %s47, 1
      %p343 = por %p341, %p342
      %p344 = scmp.ne.s32.totalorder %s335, %s336
      %p345 = scmp.eq.s32.totalorder %s47, 0
      %p346 = por %p344, %p345
      %p347 = scmp.ne.s32.totalorder %s335, %s336
      %p348 = scmp.eq.s32.totalorder %s48, 1
      %p349 = por %p347, %p348
      %p351 = scmp.ne.s32.totalorder %s336, %s350
      %p352 = scmp.eq.s32.totalorder %s48, 0
      %p353 = por %p351, %p352
      %s355 = sadd.s32 %s354, 1
      %p358 = scmp.eq.s32.totalorder %s42, 1
      %p359 = scmp.ne.s32.totalorder %s354, %s356
      %p360 = scmp.eq.s32.totalorder %s42, 0
      %p361 = por %p359, %p360
      %p362 = scmp.ne.s32.totalorder %s354, %s356
      %p363 = scmp.eq.s32.totalorder %s47, 1
      %p364 = por %p362, %p363
      %p365 = scmp.ne.s32.totalorder %s356, %s357
      %p366 = scmp.eq.s32.totalorder %s47, 0
      %p367 = por %p365, %p366
      %p368 = scmp.ne.s32.totalorder %s356, %s357
      %p369 = scmp.eq.s32.totalorder %s48, 1
      %p370 = por %p368, %p369
      %p372 = scmp.ne.s32.totalorder %s357, %s371
      %p373 = scmp.eq.s32.totalorder %s48, 0
      %p374 = por %p372, %p373
      %s376 = sadd.s32 %s375, 1
      %p379 = scmp.eq.s32.totalorder %s42, 1
      %p380 = scmp.ne.s32.totalorder %s375, %s377
      %p381 = scmp.eq.s32.totalorder %s42, 0
      %p382 = por %p380, %p381
      %p383 = scmp.ne.s32.totalorder %s375, %s377
      %p384 = scmp.eq.s32.totalorder %s47, 1
      %p385 = por %p383, %p384
      %p386 = scmp.ne.s32.totalorder %s377, %s378
      %p387 = scmp.eq.s32.totalorder %s47, 0
      %p388 = por %p386, %p387
      %p389 = scmp.ne.s32.totalorder %s377, %s378
      %p390 = scmp.eq.s32.totalorder %s48, 1
      %p391 = por %p389, %p390
      %p393 = scmp.ne.s32.totalorder %s378, %s392
      %p394 = scmp.eq.s32.totalorder %s48, 0
      %p395 = por %p393, %p394
      %s397 = sadd.s32 %s396, 1
      %p400 = scmp.eq.s32.totalorder %s42, 1
      %p401 = scmp.ne.s32.totalorder %s396, %s398
      %p402 = scmp.eq.s32.totalorder %s42, 0
      %p403 = por %p401, %p402
      %p404 = scmp.ne.s32.totalorder %s396, %s398
      %p405 = scmp.eq.s32.totalorder %s47, 1
      %p406 = por %p404, %p405
      %p407 = scmp.ne.s32.totalorder %s398, %s399
      %p408 = scmp.eq.s32.totalorder %s47, 0
      %p409 = por %p407, %p408
      %p410 = scmp.ne.s32.totalorder %s398, %s399
      %p411 = scmp.eq.s32.totalorder %s48, 1
      %p412 = por %p410, %p411
      %p414 = scmp.ne.s32.totalorder %s399, %s413
      %p415 = scmp.eq.s32.totalorder %s48, 0
      %p416 = por %p414, %p415
      %s418 = sadd.s32 %s417, 1
      %p421 = scmp.eq.s32.totalorder %s42, 1
      %p422 = scmp.ne.s32.totalorder %s417, %s419
      %p423 = scmp.eq.s32.totalorder %s42, 0
      %p424 = por %p422, %p423
      %p425 = scmp.ne.s32.totalorder %s417, %s419
      %p426 = scmp.eq.s32.totalorder %s47, 1
      %p427 = por %p425, %p426
      %p428 = scmp.ne.s32.totalorder %s419, %s420
      %p429 = scmp.eq.s32.totalorder %s47, 0
      %p430 = por %p428, %p429
      %p431 = scmp.ne.s32.totalorder %s419, %s420
      %p432 = scmp.eq.s32.totalorder %s48, 1
      %p433 = por %p431, %p432
      %p435 = scmp.ne.s32.totalorder %s420, %s434
      %p436 = scmp.eq.s32.totalorder %s48, 0
      %p437 = por %p435, %p436
      %s439 = sadd.s32 %s438, 1
      %p442 = scmp.eq.s32.totalorder %s42, 1
      %p443 = scmp.ne.s32.totalorder %s438, %s440
      %p444 = scmp.eq.s32.totalorder %s42, 0
      %p445 = por %p443, %p444
      %p446 = scmp.ne.s32.totalorder %s438, %s440
      %p447 = scmp.eq.s32.totalorder %s47, 1
      %p448 = por %p446, %p447
      %p449 = scmp.ne.s32.totalorder %s440, %s441
      %p450 = scmp.eq.s32.totalorder %s47, 0
      %p451 = por %p449, %p450
      %p452 = scmp.ne.s32.totalorder %s440, %s441
      %p453 = scmp.eq.s32.totalorder %s48, 1
      %p454 = por %p452, %p453
      %p456 = scmp.ne.s32.totalorder %s441, %s455
      %p457 = scmp.eq.s32.totalorder %s48, 0
      %p458 = por %p456, %p457
      %s459 = ssub.s32 %s42, %s49
      %p460 = scmp.eq.s32.totalorder %s459, 0
      %s462 = sadd.s32 %s461, 1
      %s463 = scalar_select %p460, %s461, %s462
      %p466 = pneg %p460
      %p467 = scmp.eq.s32.totalorder %s42, 1
      %p468 = por %p466, %p467
      %p469 = scmp.ne.s32.totalorder %s461, %s464
      %p470 = scmp.eq.s32.totalorder %s42, 0
      %p471 = por %p469, %p470
      %p472 = scmp.ne.s32.totalorder %s461, %s464
      %p473 = scmp.eq.s32.totalorder %s47, 1
      %p474 = por %p472, %p473
      %p475 = scmp.ne.s32.totalorder %s464, %s465
      %p476 = scmp.eq.s32.totalorder %s47, 0
      %p477 = por %p475, %p476
      %p478 = scmp.ne.s32.totalorder %s464, %s465
      %p479 = scmp.eq.s32.totalorder %s48, 1
      %p480 = por %p478, %p479
      %p482 = scmp.ne.s32.totalorder %s465, %s481
      %p483 = scmp.eq.s32.totalorder %s48, 0
      %p484 = por %p482, %p483
      %s485 = ssub.s32 %s42, %s49
      %p486 = scmp.eq.s32.totalorder %s485, 0
      %s488 = sadd.s32 %s487, 1
      %s489 = scalar_select %p486, %s487, %s488
      %p492 = pneg %p486
      %p493 = scmp.eq.s32.totalorder %s42, 1
      %p494 = por %p492, %p493
      %p495 = scmp.ne.s32.totalorder %s487, %s490
      %p496 = scmp.eq.s32.totalorder %s42, 0
      %p497 = por %p495, %p496
      %p498 = scmp.ne.s32.totalorder %s487, %s490
      %p499 = scmp.eq.s32.totalorder %s47, 1
      %p500 = por %p498, %p499
      %p501 = scmp.ne.s32.totalorder %s490, %s491
      %p502 = scmp.eq.s32.totalorder %s47, 0
      %p503 = por %p501, %p502
      %p504 = scmp.ne.s32.totalorder %s490, %s491
      %p505 = scmp.eq.s32.totalorder %s48, 1
      %p506 = por %p504, %p505
      %p508 = scmp.ne.s32.totalorder %s491, %s507
      %p509 = scmp.eq.s32.totalorder %s48, 0
      %p510 = por %p508, %p509
      %p511 = scmp.le.s32.totalorder 1, %s42
      %p512 = scmp.lt.s32.totalorder %s42, 3
      %p513 = pnand %p511, %p512
      %p514 = pneg %p513
      // Predicated region
      $region9: #{tpu_custom_call.1} parent=5 // pred_check
        _
      $region10: #{tpu_custom_call.1} parent=5 // pred_check_branch
        %516 = sbr.rel (%p513) target = $region12
      $region11: #{tpu_custom_call.1} parent=5 // pred_region
        %s517 = ssub.s32 %s42, 1
        // Predicated region
        $region13: #{tpu_custom_call.1} parent=11 // pred_check
          %p518 = pneg %p115
        $region14: #{tpu_custom_call.1} parent=11 // pred_check_branch
          %520 = sbr.rel (%p518) target = $region16
        $region15: #{tpu_custom_call.1} parent=11 // pred_region
          %522 = vsyncadd [#allocation6], 0
          %s524 = sshll.u32 %s2, 4
          %s525 = int_to_ptr.hbm [resolvable:$true] %s524
          %s526 = sshll.u32 [#allocation5], 4
          %s527 = int_to_ptr.vmem [resolvable:$true] %s526
          %529 = dma.hbm_to_vmem [thread:$0]  %s525, 16, %s527, [#allocation6]
        $region16: #{tpu_custom_call.1} parent=11 // pred_fallthru
          _
        // Predicated region
        $region17: #{tpu_custom_call.1} parent=11 // pred_check
          %p530 = pneg %p136
        $region18: #{tpu_custom_call.1} parent=11 // pred_check_branch
          %532 = sbr.rel (%p530) target = $region20
        $region19: #{tpu_custom_call.1} parent=11 // pred_region
          %534 = vsyncadd [#allocation6], 0
          %s536 = sshll.u32 %s3, 4
          %s537 = int_to_ptr.hbm [resolvable:$true] %s536
          %s538 = sshll.u32 [#allocation7], 4
          %s539 = int_to_ptr.vmem [resolvable:$true] %s538
          %541 = dma.hbm_to_vmem [thread:$0]  %s537, 16, %s539, [#allocation6]
        $region20: #{tpu_custom_call.1} parent=11 // pred_fallthru
          _
        // Predicated region
        $region21: #{tpu_custom_call.1} parent=11 // pred_check
          %p542 = pneg %p157
        $region22: #{tpu_custom_call.1} parent=11 // pred_check_branch
          %544 = sbr.rel (%p542) target = $region24
        $region23: #{tpu_custom_call.1} parent=11 // pred_region
          %546 = vsyncadd [#allocation9], 0
          %s548 = sshll.u32 %s4, 4
          %s549 = int_to_ptr.hbm [resolvable:$true] %s548
          %s550 = sshll.u32 [#allocation8], 4
          %s551 = int_to_ptr.vmem [resolvable:$true] %s550
          %553 = dma.hbm_to_vmem [thread:$0]  %s549, 128, %s551, [#allocation9]
        $region24: #{tpu_custom_call.1} parent=11 // pred_fallthru
          _
        // Predicated region
        $region25: #{tpu_custom_call.1} parent=11 // pred_check
          %p554 = pneg %p178
        $region26: #{tpu_custom_call.1} parent=11 // pred_check_branch
          %556 = sbr.rel (%p554) target = $region28
        $region27: #{tpu_custom_call.1} parent=11 // pred_region
          %558 = vsyncadd [#allocation9], 0
          %s560 = sshll.u32 %s5, 4
          %s561 = int_to_ptr.hbm [resolvable:$true] %s560
          %s562 = sshll.u32 [#allocation10], 4
          %s563 = int_to_ptr.vmem [resolvable:$true] %s562
          %565 = dma.hbm_to_vmem [thread:$0]  %s561, 128, %s563, [#allocation9]
        $region28: #{tpu_custom_call.1} parent=11 // pred_fallthru
          _
        // Predicated region
        $region29: #{tpu_custom_call.1} parent=11 // pred_check
          %p566 = pneg %p199
        $region30: #{tpu_custom_call.1} parent=11 // pred_check_branch
          %568 = sbr.rel (%p566) target = $region32
        $region31: #{tpu_custom_call.1} parent=11 // pred_region
          %570 = vsyncadd [#allocation12], 0
          %s572 = sshll.u32 %s6, 4
          %s573 = int_to_ptr.hbm [resolvable:$true] %s572
          %s574 = sshll.u32 [#allocation11], 4
          %s575 = int_to_ptr.vmem [resolvable:$true] %s574
          %577 = dma.hbm_to_vmem [thread:$0]  %s573, 128, %s575, [#allocation12]
        $region32: #{tpu_custom_call.1} parent=11 // pred_fallthru
          _
        // Predicated region
        $region33: #{tpu_custom_call.1} parent=11 // pred_check
          %p578 = pneg %p220
        $region34: #{tpu_custom_call.1} parent=11 // pred_check_branch
          %580 = sbr.rel (%p578) target = $region36
        $region35: #{tpu_custom_call.1} parent=11 // pred_region
          %582 = vsyncadd [#allocation12], 0
          %s584 = sshll.u32 %s7, 4
          %s585 = int_to_ptr.hbm [resolvable:$true] %s584
          %s586 = sshll.u32 [#allocation13], 4
          %s587 = int_to_ptr.vmem [resolvable:$true] %s586
          %589 = dma.hbm_to_vmem [thread:$0]  %s585, 128, %s587, [#allocation12]
        $region36: #{tpu_custom_call.1} parent=11 // pred_fallthru
          _
        // Predicated region
        $region37: #{tpu_custom_call.1} parent=11 // pred_check
          %p590 = pneg %p241
        $region38: #{tpu_custom_call.1} parent=11 // pred_check_branch
          %592 = sbr.rel (%p590) target = $region40
        $region39: #{tpu_custom_call.1} parent=11 // pred_region
          %594 = vsyncadd [#allocation15], 0
          %s596 = sshll.u32 %s8, 4
          %s597 = int_to_ptr.hbm [resolvable:$true] %s596
          %s598 = sshll.u32 [#allocation14], 4
          %s599 = int_to_ptr.vmem [resolvable:$true] %s598
          %601 = dma.hbm_to_vmem [thread:$0]  %s597, 128, %s599, [#allocation15]
        $region40: #{tpu_custom_call.1} parent=11 // pred_fallthru
          _
        // Predicated region
        $region41: #{tpu_custom_call.1} parent=11 // pred_check
          %p602 = pneg %p262
        $region42: #{tpu_custom_call.1} parent=11 // pred_check_branch
          %604 = sbr.rel (%p602) target = $region44
        $region43: #{tpu_custom_call.1} parent=11 // pred_region
          _
        $region44: #{tpu_custom_call.1} parent=11 // pred_fallthru
          _
        // Predicated region
        $region45: #{tpu_custom_call.1} parent=11 // pred_check
          %p605 = pneg %p283
        $region46: #{tpu_custom_call.1} parent=11 // pred_check_branch
          %607 = sbr.rel (%p605) target = $region48
        $region47: #{tpu_custom_call.1} parent=11 // pred_region
          %609 = vsyncadd [#allocation15], 0
          %s610 = sshll.u32 %s10, 4
          %s611 = int_to_ptr.hbm [resolvable:$true] %s610
          %s612 = sshll.u32 [#allocation16], 4
          %s613 = int_to_ptr.vmem [resolvable:$true] %s612
          %618 = dma.hbm_to_vmem [thread:$0]  %s611, 512, %s613, [#allocation15], 128, 128, 8
        $region48: #{tpu_custom_call.1} parent=11 // pred_fallthru
          _
        // Predicated region
        $region49: #{tpu_custom_call.1} parent=11 // pred_check
          %p619 = pneg %p304
        $region50: #{tpu_custom_call.1} parent=11 // pred_check_branch
          %621 = sbr.rel (%p619) target = $region52
        $region51: #{tpu_custom_call.1} parent=11 // pred_region
          %623 = vsyncadd [#allocation18], 0
          %s624 = sshll.u32 %s11, 4
          %s625 = int_to_ptr.hbm [resolvable:$true] %s624
          %s626 = sshll.u32 [#allocation17], 4
          %s627 = int_to_ptr.vmem [resolvable:$true] %s626
          %632 = dma.hbm_to_vmem [thread:$0]  %s625, 512, %s627, [#allocation18], 128, 128, 8
        $region52: #{tpu_custom_call.1} parent=11 // pred_fallthru
          _
        // Predicated region
        $region53: #{tpu_custom_call.1} parent=11 // pred_check
          %p633 = pneg %p325
        $region54: #{tpu_custom_call.1} parent=11 // pred_check_branch
          %635 = sbr.rel (%p633) target = $region56
        $region55: #{tpu_custom_call.1} parent=11 // pred_region
          %637 = vsyncadd [#allocation18], 0
          %s638 = sshll.u32 %s12, 4
          %s639 = int_to_ptr.hbm [resolvable:$true] %s638
          %s640 = sshll.u32 [#allocation19], 4
          %s641 = int_to_ptr.vmem [resolvable:$true] %s640
          %646 = dma.hbm_to_vmem [thread:$0]  %s639, 512, %s641, [#allocation18], 128, 128, 8
        $region56: #{tpu_custom_call.1} parent=11 // pred_fallthru
          _
        // Predicated region
        $region57: #{tpu_custom_call.1} parent=11 // pred_check
          %p647 = pneg %p346
        $region58: #{tpu_custom_call.1} parent=11 // pred_check_branch
          %649 = sbr.rel (%p647) target = $region60
        $region59: #{tpu_custom_call.1} parent=11 // pred_region
          %651 = vsyncadd [#allocation21], 0
          %s652 = sshll.u32 %s13, 4
          %s653 = int_to_ptr.hbm [resolvable:$true] %s652
          %s654 = sshll.u32 [#allocation20], 4
          %s655 = int_to_ptr.vmem [resolvable:$true] %s654
          %660 = dma.hbm_to_vmem [thread:$0]  %s653, 512, %s655, [#allocation21], 128, 128, 8
        $region60: #{tpu_custom_call.1} parent=11 // pred_fallthru
          _
        // Predicated region
        $region61: #{tpu_custom_call.1} parent=11 // pred_check
          %p661 = pneg %p367
        $region62: #{tpu_custom_call.1} parent=11 // pred_check_branch
          %663 = sbr.rel (%p661) target = $region64
        $region63: #{tpu_custom_call.1} parent=11 // pred_region
          _
        $region64: #{tpu_custom_call.1} parent=11 // pred_fallthru
          _
        // Predicated region
        $region65: #{tpu_custom_call.1} parent=11 // pred_check
          %p664 = pneg %p388
        $region66: #{tpu_custom_call.1} parent=11 // pred_check_branch
          %666 = sbr.rel (%p664) target = $region68
        $region67: #{tpu_custom_call.1} parent=11 // pred_region
          _
        $region68: #{tpu_custom_call.1} parent=11 // pred_fallthru
          _
        // Predicated region
        $region69: #{tpu_custom_call.1} parent=11 // pred_check
          %p667 = pneg %p409
        $region70: #{tpu_custom_call.1} parent=11 // pred_check_branch
          %669 = sbr.rel (%p667) target = $region72
        $region71: #{tpu_custom_call.1} parent=11 // pred_region
          _
        $region72: #{tpu_custom_call.1} parent=11 // pred_fallthru
          _
        // Predicated region
        $region73: #{tpu_custom_call.1} parent=11 // pred_check
          %p670 = pneg %p430
        $region74: #{tpu_custom_call.1} parent=11 // pred_check_branch
          %672 = sbr.rel (%p670) target = $region76
        $region75: #{tpu_custom_call.1} parent=11 // pred_region
          _
        $region76: #{tpu_custom_call.1} parent=11 // pred_fallthru
          _
        // Predicated region
        $region77: #{tpu_custom_call.1} parent=11 // pred_check
          %p673 = pneg %p451
        $region78: #{tpu_custom_call.1} parent=11 // pred_check_branch
          %675 = sbr.rel (%p673) target = $region80
        $region79: #{tpu_custom_call.1} parent=11 // pred_region
          _
        $region80: #{tpu_custom_call.1} parent=11 // pred_fallthru
          _
      $region12: #{tpu_custom_call.1} parent=5 // pred_fallthru
        _
      %p676 = scmp.lt.s32.totalorder %s42, 2
      // Predicated region
      $region81: #{tpu_custom_call.1} parent=5 // pred_check
        %p677 = pneg %p676
      $region82: #{tpu_custom_call.1} parent=5 // pred_check_branch
        %679 = sbr.rel (%p677) target = $region84
      $region83: #{tpu_custom_call.1} parent=5 // pred_region
        // Predicated region
        $region85: #{tpu_custom_call.1} parent=83 // pred_check
          %p680 = pneg %p62
        $region86: #{tpu_custom_call.1} parent=83 // pred_check_branch
          %682 = sbr.rel (%p680) target = $region88
        $region87: #{tpu_custom_call.1} parent=83 // pred_region
          %p683 = scmp.lt.s32.totalorder %s42, 1
          %s684 = scalar_select %p683, %s42, 1
          %s685 = smul.addr %s684, 8
          %s686 = scalar_lea.vmem %s0, %s685
        $region88: #{tpu_custom_call.1} parent=83 // pred_fallthru
          _
        // Predicated region
        $region89: #{tpu_custom_call.1} parent=83 // pred_check
          %p687 = pneg %p88
        $region90: #{tpu_custom_call.1} parent=83 // pred_check_branch
          %689 = sbr.rel (%p687) target = $region92
        $region91: #{tpu_custom_call.1} parent=83 // pred_region
          %s690 = sand.u32 %s78, 1
          %s691 = scalar_lea.sflag [#allocation3], %s690
          %s692 = sand.u32 %s78, 1
          %s693 = smul.addr %s692, 8
          %s694 = scalar_lea.vmem [#allocation2], %s693
          %696 = vsyncadd %s691, 0
          %s697 = smul.addr %s42, 8
          %s698 = scalar_lea.hbm %s1, %s697
          %s700 = sshll.u32 %s698, 4
          %s701 = int_to_ptr.hbm [resolvable:$true] %s700
          %s702 = sshll.u32 %s694, 4
          %s703 = int_to_ptr.vmem [resolvable:$true] %s702
          %705 = dma.hbm_to_vmem [thread:$0]  %s701, 128, %s703, %s691
        $region92: #{tpu_custom_call.1} parent=83 // pred_fallthru
          _
      $region84: #{tpu_custom_call.1} parent=5 // pred_fallthru
        _
      %p706 = scmp.le.s32.totalorder 1, %s42
      %p707 = scmp.lt.s32.totalorder %s42, 3
      %p708 = pnand %p706, %p707
      %p709 = pneg %p708
      // Predicated region
      $region93: #{tpu_custom_call.1} parent=5 // pred_check
        _
      $region94: #{tpu_custom_call.1} parent=5 // pred_check_branch
        %711 = sbr.rel (%p708) target = $region96
      $region95: #{tpu_custom_call.1} parent=5 // pred_region
        %s712 = ssub.s32 %s42, 1
        %s713 = sand.u32 %s81, 1
        %s714 = scalar_lea.sflag [#allocation3], %s713
        %s715 = sand.u32 %s81, 1
        %s716 = smul.addr %s715, 8
        %s717 = scalar_lea.vmem [#allocation2], %s716
        // Predicated region
        $region97: #{tpu_custom_call.1} parent=95 // pred_check
          %p718 = pneg %p94
        $region98: #{tpu_custom_call.1} parent=95 // pred_check_branch
          %720 = sbr.rel (%p718) target = $region100
        $region99: #{tpu_custom_call.1} parent=95 // pred_region
          %722 = dma.done %s714, 128
        $region100: #{tpu_custom_call.1} parent=95 // pred_fallthru
          _
        // Predicated region
        $region101: #{tpu_custom_call.1} parent=95 // pred_check
          %p723 = pneg %p115
        $region102: #{tpu_custom_call.1} parent=95 // pred_check_branch
          %725 = sbr.rel (%p723) target = $region104
        $region103: #{tpu_custom_call.1} parent=95 // pred_region
          %727 = dma.done [#allocation6], 16
        $region104: #{tpu_custom_call.1} parent=95 // pred_fallthru
          _
        // Predicated region
        $region105: #{tpu_custom_call.1} parent=95 // pred_check
          %p728 = pneg %p136
        $region106: #{tpu_custom_call.1} parent=95 // pred_check_branch
          %730 = sbr.rel (%p728) target = $region108
        $region107: #{tpu_custom_call.1} parent=95 // pred_region
          %732 = dma.done [#allocation6], 16
        $region108: #{tpu_custom_call.1} parent=95 // pred_fallthru
          _
        // Predicated region
        $region109: #{tpu_custom_call.1} parent=95 // pred_check
          %p733 = pneg %p157
        $region110: #{tpu_custom_call.1} parent=95 // pred_check_branch
          %735 = sbr.rel (%p733) target = $region112
        $region111: #{tpu_custom_call.1} parent=95 // pred_region
          %737 = dma.done [#allocation9], 128
        $region112: #{tpu_custom_call.1} parent=95 // pred_fallthru
          _
        // Predicated region
        $region113: #{tpu_custom_call.1} parent=95 // pred_check
          %p738 = pneg %p178
        $region114: #{tpu_custom_call.1} parent=95 // pred_check_branch
          %740 = sbr.rel (%p738) target = $region116
        $region115: #{tpu_custom_call.1} parent=95 // pred_region
          %742 = dma.done [#allocation9], 128
        $region116: #{tpu_custom_call.1} parent=95 // pred_fallthru
          _
        // Predicated region
        $region117: #{tpu_custom_call.1} parent=95 // pred_check
          %p743 = pneg %p199
        $region118: #{tpu_custom_call.1} parent=95 // pred_check_branch
          %745 = sbr.rel (%p743) target = $region120
        $region119: #{tpu_custom_call.1} parent=95 // pred_region
          %747 = dma.done [#allocation12], 128
        $region120: #{tpu_custom_call.1} parent=95 // pred_fallthru
          _
        // Predicated region
        $region121: #{tpu_custom_call.1} parent=95 // pred_check
          %p748 = pneg %p220
        $region122: #{tpu_custom_call.1} parent=95 // pred_check_branch
          %750 = sbr.rel (%p748) target = $region124
        $region123: #{tpu_custom_call.1} parent=95 // pred_region
          %752 = dma.done [#allocation12], 128
        $region124: #{tpu_custom_call.1} parent=95 // pred_fallthru
          _
        // Predicated region
        $region125: #{tpu_custom_call.1} parent=95 // pred_check
          %p753 = pneg %p241
        $region126: #{tpu_custom_call.1} parent=95 // pred_check_branch
          %755 = sbr.rel (%p753) target = $region128
        $region127: #{tpu_custom_call.1} parent=95 // pred_region
          %757 = dma.done [#allocation15], 128
        $region128: #{tpu_custom_call.1} parent=95 // pred_fallthru
          _
        // Predicated region
        $region129: #{tpu_custom_call.1} parent=95 // pred_check
          %p758 = pneg %p283
        $region130: #{tpu_custom_call.1} parent=95 // pred_check_branch
          %760 = sbr.rel (%p758) target = $region132
        $region131: #{tpu_custom_call.1} parent=95 // pred_region
          %762 = dma.done [#allocation15], 512
        $region132: #{tpu_custom_call.1} parent=95 // pred_fallthru
          _
        // Predicated region
        $region133: #{tpu_custom_call.1} parent=95 // pred_check
          %p763 = pneg %p304
        $region134: #{tpu_custom_call.1} parent=95 // pred_check_branch
          %765 = sbr.rel (%p763) target = $region136
        $region135: #{tpu_custom_call.1} parent=95 // pred_region
          %767 = dma.done [#allocation18], 512
        $region136: #{tpu_custom_call.1} parent=95 // pred_fallthru
          _
        // Predicated region
        $region137: #{tpu_custom_call.1} parent=95 // pred_check
          %p768 = pneg %p325
        $region138: #{tpu_custom_call.1} parent=95 // pred_check_branch
          %770 = sbr.rel (%p768) target = $region140
        $region139: #{tpu_custom_call.1} parent=95 // pred_region
          %772 = dma.done [#allocation18], 512
        $region140: #{tpu_custom_call.1} parent=95 // pred_fallthru
          _
        // Predicated region
        $region141: #{tpu_custom_call.1} parent=95 // pred_check
          %p773 = pneg %p346
        $region142: #{tpu_custom_call.1} parent=95 // pred_check_branch
          %775 = sbr.rel (%p773) target = $region144
        $region143: #{tpu_custom_call.1} parent=95 // pred_region
          %777 = dma.done [#allocation21], 512
        $region144: #{tpu_custom_call.1} parent=95 // pred_fallthru
          _
        %p778 = scmp.lt.s32.totalorder %s47, 1
        %s779 = scalar_select %p778, %s47, 1
        %s780 = smul.addr %s779, 8
        %s781 = scalar_lea.vmem %s0, %s780
        %p782 = pneg %p68
        %p783 = pneg %p65
        %s784 = sand.u32 %s81, 1
        %s785 = scalar_lea.sflag [#allocation3], %s784
        %s786 = sand.u32 %s81, 1
        %s787 = smul.addr %s786, 8
        %s788 = scalar_lea.vmem [#allocation2], %s787
        %p789 = pneg %p94
        %p790 = pneg %p91
        %p791 = pneg %p115
        %p792 = pneg %p112
        %p793 = pneg %p136
        %p794 = pneg %p133
        %p795 = pneg %p157
        %p796 = pneg %p154
        %p797 = pneg %p178
        %p798 = pneg %p175
        %p799 = pneg %p199
        %p800 = pneg %p196
        %p801 = pneg %p220
        %p802 = pneg %p217
        %p803 = pneg %p241
        %p804 = pneg %p238
        %p805 = pneg %p262
        %p806 = pneg %p259
        %p807 = pneg %p283
        %p808 = pneg %p280
        %p809 = pneg %p304
        %p810 = pneg %p301
        %p811 = pneg %p325
        %p812 = pneg %p322
        %p813 = pneg %p346
        %p814 = pneg %p343
        %p815 = pneg %p367
        %p816 = pneg %p364
        %p817 = pneg %p388
        %p818 = pneg %p385
        %p819 = pneg %p409
        %p820 = pneg %p406
        %p821 = pneg %p430
        %p822 = pneg %p427
        %p823 = pneg %p451
        %p824 = pneg %p448
        %p825 = pneg %p477
        %p826 = pneg %p474
        %s827 = sand.u32 %s464, 1
        %s828 = scalar_lea.sflag [#allocation4], %s827
        %s829 = sand.u32 %s464, 1
        %s830 = smul.addr %s829, 8
        %s831 = scalar_lea.vmem [#allocation22], %s830
        %p832 = pneg %p503
        %p833 = pneg %p500
        %s834 = sand.u32 %s490, 1
        %s835 = scalar_lea.sflag [#allocation24], %s834
        %s836 = sand.u32 %s490, 1
        %s837 = smul.addr %s836, 8
        %s838 = scalar_lea.vmem [#allocation23], %s837
        %p839 = scmp.lt.s32.totalorder %s47, 1
        %s840 = scalar_select %p839, %s47, 1
        %s841 = smul.addr %s840, 8
        %s842 = scalar_lea.vmem %s0, %s841
        %v843 = vld [vmem:[%s9] sm:$0xff]
        %v844 = vld [vmem:[%s9 + $0x8] sm:$0xff]
        %v845 = vld [vmem:[%s9 + $0x10] sm:$0xff]
        %v846 = vld [vmem:[%s9 + $0x18] sm:$0xff]
        %v847 = vld [vmem:[#allocation20] sm:$0xff]
        %v848 = vld [vmem:[#allocation20 + $0x8] sm:$0xff]
        %v849 = vld [vmem:[#allocation20 + $0x10] sm:$0xff]
        %v850 = vld [vmem:[#allocation20 + $0x18] sm:$0xff]
        %v851 = vmul.f32 %v843, %v847
        %v852 = vmul.f32 %v844, %v848
        %v853 = vmul.f32 %v845, %v849
        %v854 = vmul.f32 %v846, %v850
        %v855 = vld [vmem:[#allocation19] sm:$0xff]
        %v856 = vld [vmem:[#allocation19 + $0x8] sm:$0xff]
        %v857 = vld [vmem:[#allocation19 + $0x10] sm:$0xff]
        %v858 = vld [vmem:[#allocation19 + $0x18] sm:$0xff]
        %v859 = vmul.f32 %v851, %v855
        %v860 = vmul.f32 %v852, %v856
        %v861 = vmul.f32 %v853, %v857
        %v862 = vmul.f32 %v854, %v858
        %v863 = vld [vmem:[#allocation8] sm:$0xff]
        %v864 = vld [vmem:[#allocation14] sm:$0xff]
        %v865 = vmul.f32 %v863, %v864
        %v866 = vld [vmem:[#allocation13] sm:$0xff]
        %v867 = vmul.f32 %v865, %v866
        %v868 = vld [vmem:[%s842] sm:$0xff]
        %v869 = vld [vmem:[#allocation5] sm:$0x1]
        %v871 = vperm.slane %v869, 0
        %v873 = vmul.f32 %v868, %v871
        %v874 = vld [vmem:[#allocation7] sm:$0x1]
        %v876 = vperm.slane %v874, 0
        %v878 = vadd.f32 %v873, %v876
        %v879 = vperm.slane %v878, 0
        %v880 = vlaneseq
        %v881 = vshrl.u32 %v880, 7
        %883 = vset.pattern.permute.xlu0 %v881
        %884 = vperm.xlu0 %883, %v879
        %v885 = vpop.permute.xlu0 %884
        %v886 = vperm.slane %v878, 1
        %v887 = vlaneseq
        %v888 = vshrl.u32 %v887, 7
        %890 = vset.pattern.permute.xlu0 %v888
        %891 = vperm.xlu0 %890, %v886
        %v892 = vpop.permute.xlu0 %891
        %v893 = vperm.slane %v878, 2
        %v894 = vlaneseq
        %v895 = vshrl.u32 %v894, 7
        %897 = vset.pattern.permute.xlu0 %v895
        %898 = vperm.xlu0 %897, %v893
        %v899 = vpop.permute.xlu0 %898
        %v900 = vperm.slane %v878, 3
        %v901 = vlaneseq
        %v902 = vshrl.u32 %v901, 7
        %904 = vset.pattern.permute.xlu0 %v902
        %905 = vperm.xlu0 %904, %v900
        %v906 = vpop.permute.xlu0 %905
        %v907 = vperm.slane %v878, 4
        %v908 = vlaneseq
        %v909 = vshrl.u32 %v908, 7
        %911 = vset.pattern.permute.xlu0 %v909
        %912 = vperm.xlu0 %911, %v907
        %v913 = vpop.permute.xlu0 %912
        %v914 = vperm.slane %v878, 5
        %v915 = vlaneseq
        %v916 = vshrl.u32 %v915, 7
        %918 = vset.pattern.permute.xlu0 %v916
        %919 = vperm.xlu0 %918, %v914
        %v920 = vpop.permute.xlu0 %919
        %v921 = vperm.slane %v878, 6
        %v922 = vlaneseq
        %v923 = vshrl.u32 %v922, 7
        %925 = vset.pattern.permute.xlu0 %v923
        %926 = vperm.xlu0 %925, %v921
        %v927 = vpop.permute.xlu0 %926
        %v928 = vperm.slane %v878, 7
        %v929 = vlaneseq
        %v930 = vshrl.u32 %v929, 7
        %932 = vset.pattern.permute.xlu0 %v930
        %933 = vperm.xlu0 %932, %v928
        %v934 = vpop.permute.xlu0 %933
        %v935 = vld [vmem:[#allocation10] sm:$0xff]
        %v936 = vsub.f32 %v885, %v935
        %v937 = vsub.f32 %v892, %v935
        %v938 = vsub.f32 %v899, %v935
        %v939 = vsub.f32 %v906, %v935
        %v940 = vsub.f32 %v913, %v935
        %v941 = vsub.f32 %v920, %v935
        %v942 = vsub.f32 %v927, %v935
        %v943 = vsub.f32 %v934, %v935
        %v944 = vld [vmem:[#allocation11] sm:$0xff]
        %v945 = vmul.f32 %v936, %v944
        %v946 = vmul.f32 %v937, %v944
        %v947 = vmul.f32 %v938, %v944
        %v948 = vmul.f32 %v939, %v944
        %v949 = vmul.f32 %v940, %v944
        %v950 = vmul.f32 %v941, %v944
        %v951 = vmul.f32 %v942, %v944
        %v952 = vmul.f32 %v943, %v944
        %v953 = vxor.u32 %v945, 2147483648
        %v954 = vxor.u32 %v946, 2147483648
        %v955 = vxor.u32 %v947, 2147483648
        %v956 = vxor.u32 %v948, 2147483648
        %v957 = vxor.u32 %v949, 2147483648
        %v958 = vxor.u32 %v950, 2147483648
        %v959 = vxor.u32 %v951, 2147483648
        %v960 = vxor.u32 %v952, 2147483648
        %v961 = vmul.f32 %v953, 1.442695
        %v962 = vpow.pop %v961
        %v963 = vmul.f32 %v954, 1.442695
        %v964 = vpow.pop %v963
        %v965 = vmul.f32 %v955, 1.442695
        %v966 = vpow.pop %v965
        %v967 = vmul.f32 %v956, 1.442695
        %v968 = vpow.pop %v967
        %v969 = vmul.f32 %v957, 1.442695
        %v970 = vpow.pop %v969
        %v971 = vmul.f32 %v958, 1.442695
        %v972 = vpow.pop %v971
        %v973 = vmul.f32 %v959, 1.442695
        %v974 = vpow.pop %v973
        %v975 = vmul.f32 %v960, 1.442695
        %v976 = vpow.pop %v975
        %v977 = vadd.f32 %v962, 1.0
        %v978 = vadd.f32 %v964, 1.0
        %v979 = vadd.f32 %v966, 1.0
        %v980 = vadd.f32 %v968, 1.0
        %v981 = vadd.f32 %v970, 1.0
        %v982 = vadd.f32 %v972, 1.0
        %v983 = vadd.f32 %v974, 1.0
        %v984 = vadd.f32 %v976, 1.0
        %v985 = vrcp.pop %v977
        %v986 = vmul.f32 %v977, %v985
        %v987 = vsub.f32 1.0, %v986
        %v988 = vmul.f32 %v985, %v987
        %v989 = vadd.f32 %v985, %v988
        %vm990 = vweird.f32 %v977
        %vm991 = vweird.f32 %v985
        %vm992 = vmor %vm990, %vm991
        %v993 = vsel %vm992, %v985, %v989
        %v994 = vand.u32 2147483647, %v977
        %vm995 = vcmp.eq.f32.partialorder %v994, 8.507059e+37
        %v996 = vand.u32 %v977, 2147483648
        %v997 = vor.u32 1.1754944e-38, %v996
        %v998 = vsel %vm995, %v997, %v993
        %v999 = vmul.f32 1.0, %v998
        %v1000 = vrcp.pop %v978
        %v1001 = vmul.f32 %v978, %v1000
        %v1002 = vsub.f32 1.0, %v1001
        %v1003 = vmul.f32 %v1000, %v1002
        %v1004 = vadd.f32 %v1000, %v1003
        %vm1005 = vweird.f32 %v978
        %vm1006 = vweird.f32 %v1000
        %vm1007 = vmor %vm1005, %vm1006
        %v1008 = vsel %vm1007, %v1000, %v1004
        %v1009 = vand.u32 2147483647, %v978
        %vm1010 = vcmp.eq.f32.partialorder %v1009, 8.507059e+37
        %v1011 = vand.u32 %v978, 2147483648
        %v1012 = vor.u32 1.1754944e-38, %v1011
        %v1013 = vsel %vm1010, %v1012, %v1008
        %v1014 = vmul.f32 1.0, %v1013
        %v1015 = vrcp.pop %v979
        %v1016 = vmul.f32 %v979, %v1015
        %v1017 = vsub.f32 1.0, %v1016
        %v1018 = vmul.f32 %v1015, %v1017
        %v1019 = vadd.f32 %v1015, %v1018
        %vm1020 = vweird.f32 %v979
        %vm1021 = vweird.f32 %v1015
        %vm1022 = vmor %vm1020, %vm1021
        %v1023 = vsel %vm1022, %v1015, %v1019
        %v1024 = vand.u32 2147483647, %v979
        %vm1025 = vcmp.eq.f32.partialorder %v1024, 8.507059e+37
        %v1026 = vand.u32 %v979, 2147483648
        %v1027 = vor.u32 1.1754944e-38, %v1026
        %v1028 = vsel %vm1025, %v1027, %v1023
        %v1029 = vmul.f32 1.0, %v1028
        %v1030 = vrcp.pop %v980
        %v1031 = vmul.f32 %v980, %v1030
        %v1032 = vsub.f32 1.0, %v1031
        %v1033 = vmul.f32 %v1030, %v1032
        %v1034 = vadd.f32 %v1030, %v1033
        %vm1035 = vweird.f32 %v980
        %vm1036 = vweird.f32 %v1030
        %vm1037 = vmor %vm1035, %vm1036
        %v1038 = vsel %vm1037, %v1030, %v1034
        %v1039 = vand.u32 2147483647, %v980
        %vm1040 = vcmp.eq.f32.partialorder %v1039, 8.507059e+37
        %v1041 = vand.u32 %v980, 2147483648
        %v1042 = vor.u32 1.1754944e-38, %v1041
        %v1043 = vsel %vm1040, %v1042, %v1038
        %v1044 = vmul.f32 1.0, %v1043
        %v1045 = vrcp.pop %v981
        %v1046 = vmul.f32 %v981, %v1045
        %v1047 = vsub.f32 1.0, %v1046
        %v1048 = vmul.f32 %v1045, %v1047
        %v1049 = vadd.f32 %v1045, %v1048
        %vm1050 = vweird.f32 %v981
        %vm1051 = vweird.f32 %v1045
        %vm1052 = vmor %vm1050, %vm1051
        %v1053 = vsel %vm1052, %v1045, %v1049
        %v1054 = vand.u32 2147483647, %v981
        %vm1055 = vcmp.eq.f32.partialorder %v1054, 8.507059e+37
        %v1056 = vand.u32 %v981, 2147483648
        %v1057 = vor.u32 1.1754944e-38, %v1056
        %v1058 = vsel %vm1055, %v1057, %v1053
        %v1059 = vmul.f32 1.0, %v1058
        %v1060 = vrcp.pop %v982
        %v1061 = vmul.f32 %v982, %v1060
        %v1062 = vsub.f32 1.0, %v1061
        %v1063 = vmul.f32 %v1060, %v1062
        %v1064 = vadd.f32 %v1060, %v1063
        %vm1065 = vweird.f32 %v982
        %vm1066 = vweird.f32 %v1060
        %vm1067 = vmor %vm1065, %vm1066
        %v1068 = vsel %vm1067, %v1060, %v1064
        %v1069 = vand.u32 2147483647, %v982
        %vm1070 = vcmp.eq.f32.partialorder %v1069, 8.507059e+37
        %v1071 = vand.u32 %v982, 2147483648
        %v1072 = vor.u32 1.1754944e-38, %v1071
        %v1073 = vsel %vm1070, %v1072, %v1068
        %v1074 = vmul.f32 1.0, %v1073
        %v1075 = vrcp.pop %v983
        %v1076 = vmul.f32 %v983, %v1075
        %v1077 = vsub.f32 1.0, %v1076
        %v1078 = vmul.f32 %v1075, %v1077
        %v1079 = vadd.f32 %v1075, %v1078
        %vm1080 = vweird.f32 %v983
        %vm1081 = vweird.f32 %v1075
        %vm1082 = vmor %vm1080, %vm1081
        %v1083 = vsel %vm1082, %v1075, %v1079
        %v1084 = vand.u32 2147483647, %v983
        %vm1085 = vcmp.eq.f32.partialorder %v1084, 8.507059e+37
        %v1086 = vand.u32 %v983, 2147483648
        %v1087 = vor.u32 1.1754944e-38, %v1086
        %v1088 = vsel %vm1085, %v1087, %v1083
        %v1089 = vmul.f32 1.0, %v1088
        %v1090 = vrcp.pop %v984
        %v1091 = vmul.f32 %v984, %v1090
        %v1092 = vsub.f32 1.0, %v1091
        %v1093 = vmul.f32 %v1090, %v1092
        %v1094 = vadd.f32 %v1090, %v1093
        %vm1095 = vweird.f32 %v984
        %vm1096 = vweird.f32 %v1090
        %vm1097 = vmor %vm1095, %vm1096
        %v1098 = vsel %vm1097, %v1090, %v1094
        %v1099 = vand.u32 2147483647, %v984
        %vm1100 = vcmp.eq.f32.partialorder %v1099, 8.507059e+37
        %v1101 = vand.u32 %v984, 2147483648
        %v1102 = vor.u32 1.1754944e-38, %v1101
        %v1103 = vsel %vm1100, %v1102, %v1098
        %v1104 = vmul.f32 1.0, %v1103
        %v1105 = vmul.f32 %v867, %v999
        %v1106 = vmul.f32 %v867, %v1014
        %v1107 = vmul.f32 %v867, %v1029
        %v1108 = vmul.f32 %v867, %v1044
        %v1109 = vmul.f32 %v867, %v1059
        %v1110 = vmul.f32 %v867, %v1074
        %v1111 = vmul.f32 %v867, %v1089
        %v1112 = vmul.f32 %v867, %v1104
        %v1113 = vrot.slane %v1105, 4
        %v1114 = vadd.f32 %v1105, %v1113
        %v1115 = vrot.slane %v1114, 2
        %v1116 = vadd.f32 %v1114, %v1115
        %v1117 = vrot.slane %v1116, 1
        %v1118 = vadd.f32 %v1116, %v1117
        %v1119 = vrot.slane %v1106, 4
        %v1120 = vadd.f32 %v1106, %v1119
        %v1121 = vrot.slane %v1120, 2
        %v1122 = vadd.f32 %v1120, %v1121
        %v1123 = vrot.slane %v1122, 1
        %v1124 = vadd.f32 %v1122, %v1123
        %v1125 = vrot.slane %v1107, 4
        %v1126 = vadd.f32 %v1107, %v1125
        %v1127 = vrot.slane %v1126, 2
        %v1128 = vadd.f32 %v1126, %v1127
        %v1129 = vrot.slane %v1128, 1
        %v1130 = vadd.f32 %v1128, %v1129
        %v1131 = vrot.slane %v1108, 4
        %v1132 = vadd.f32 %v1108, %v1131
        %v1133 = vrot.slane %v1132, 2
        %v1134 = vadd.f32 %v1132, %v1133
        %v1135 = vrot.slane %v1134, 1
        %v1136 = vadd.f32 %v1134, %v1135
        %v1137 = vrot.slane %v1109, 4
        %v1138 = vadd.f32 %v1109, %v1137
        %v1139 = vrot.slane %v1138, 2
        %v1140 = vadd.f32 %v1138, %v1139
        %v1141 = vrot.slane %v1140, 1
        %v1142 = vadd.f32 %v1140, %v1141
        %v1143 = vrot.slane %v1110, 4
        %v1144 = vadd.f32 %v1110, %v1143
        %v1145 = vrot.slane %v1144, 2
        %v1146 = vadd.f32 %v1144, %v1145
        %v1147 = vrot.slane %v1146, 1
        %v1148 = vadd.f32 %v1146, %v1147
        %v1149 = vrot.slane %v1111, 4
        %v1150 = vadd.f32 %v1111, %v1149
        %v1151 = vrot.slane %v1150, 2
        %v1152 = vadd.f32 %v1150, %v1151
        %v1153 = vrot.slane %v1152, 1
        %v1154 = vadd.f32 %v1152, %v1153
        %v1155 = vrot.slane %v1112, 4
        %v1156 = vadd.f32 %v1112, %v1155
        %v1157 = vrot.slane %v1156, 2
        %v1158 = vadd.f32 %v1156, %v1157
        %v1159 = vrot.slane %v1158, 1
        %v1160 = vadd.f32 %v1158, %v1159
        %v1161 = vmul.f32 %v865, %v999
        %v1162 = vmul.f32 %v865, %v1014
        %v1163 = vmul.f32 %v865, %v1029
        %v1164 = vmul.f32 %v865, %v1044
        %v1165 = vmul.f32 %v865, %v1059
        %v1166 = vmul.f32 %v865, %v1074
        %v1167 = vmul.f32 %v865, %v1089
        %v1168 = vmul.f32 %v865, %v1104
        %v1169 = vrot.slane %v1161, 4
        %v1170 = vadd.f32 %v1161, %v1169
        %v1171 = vrot.slane %v1170, 2
        %v1172 = vadd.f32 %v1170, %v1171
        %v1173 = vrot.slane %v1172, 1
        %v1174 = vadd.f32 %v1172, %v1173
        %v1175 = vrot.slane %v1162, 4
        %v1176 = vadd.f32 %v1162, %v1175
        %v1177 = vrot.slane %v1176, 2
        %v1178 = vadd.f32 %v1176, %v1177
        %v1179 = vrot.slane %v1178, 1
        %v1180 = vadd.f32 %v1178, %v1179
        %v1181 = vrot.slane %v1163, 4
        %v1182 = vadd.f32 %v1163, %v1181
        %v1183 = vrot.slane %v1182, 2
        %v1184 = vadd.f32 %v1182, %v1183
        %v1185 = vrot.slane %v1184, 1
        %v1186 = vadd.f32 %v1184, %v1185
        %v1187 = vrot.slane %v1164, 4
        %v1188 = vadd.f32 %v1164, %v1187
        %v1189 = vrot.slane %v1188, 2
        %v1190 = vadd.f32 %v1188, %v1189
        %v1191 = vrot.slane %v1190, 1
        %v1192 = vadd.f32 %v1190, %v1191
        %v1193 = vrot.slane %v1165, 4
        %v1194 = vadd.f32 %v1165, %v1193
        %v1195 = vrot.slane %v1194, 2
        %v1196 = vadd.f32 %v1194, %v1195
        %v1197 = vrot.slane %v1196, 1
        %v1198 = vadd.f32 %v1196, %v1197
        %v1199 = vrot.slane %v1166, 4
        %v1200 = vadd.f32 %v1166, %v1199
        %v1201 = vrot.slane %v1200, 2
        %v1202 = vadd.f32 %v1200, %v1201
        %v1203 = vrot.slane %v1202, 1
        %v1204 = vadd.f32 %v1202, %v1203
        %v1205 = vrot.slane %v1167, 4
        %v1206 = vadd.f32 %v1167, %v1205
        %v1207 = vrot.slane %v1206, 2
        %v1208 = vadd.f32 %v1206, %v1207
        %v1209 = vrot.slane %v1208, 1
        %v1210 = vadd.f32 %v1208, %v1209
        %v1211 = vrot.slane %v1168, 4
        %v1212 = vadd.f32 %v1168, %v1211
        %v1213 = vrot.slane %v1212, 2
        %v1214 = vadd.f32 %v1212, %v1213
        %v1215 = vrot.slane %v1214, 1
        %v1216 = vadd.f32 %v1214, %v1215
        %v1217 = vld [vmem:[%s16] sm:$0x1]
        %v1218 = vrcp.pop 0.16666667
        %v1219 = vmul.f32 0.16666667, %v1218
        %v1220 = vsub.f32 1.0, %v1219
        %v1221 = vmul.f32 %v1218, %v1220
        %v1222 = vadd.f32 %v1218, %v1221
        %vm1223 = vweird.f32 %v1218
        %v1224 = vsel %vm1223, %v1218, %v1222
        %v1225 = vmul.f32 %v1217, %v1224
        %v1226 = vld [vmem:[%s14] sm:$0x1]
        %v1228 = vperm.slane %v1225, 0
        %v1230 = vld [vmem:[%s15] sm:$0x1]
        %v1231 = vmul.f32 %v1226, %v1230
        %v1233 = vperm.slane %v1231, 0
        %vm1243 = vcmask 1041409
        %v1244 = vsel %vm1243, %v1124, %v1118
        %vm1245 = vcmask 1042434
        %v1246 = vsel %vm1245, %v1130, %v1244
        %vm1247 = vcmask 1043459
        %v1248 = vsel %vm1247, %v1136, %v1246
        %vm1249 = vcmask 1044484
        %v1250 = vsel %vm1249, %v1142, %v1248
        %vm1251 = vcmask 1045509
        %v1252 = vsel %vm1251, %v1148, %v1250
        %vm1253 = vcmask 1046534
        %v1254 = vsel %vm1253, %v1154, %v1252
        %vm1255 = vcmask 1047559
        %v1256 = vsel %vm1255, %v1160, %v1254
        %v1258 = vadd.f32 %v1233, %v1256
        %v1259 = vadd.f32 %v1225, %v1226
        %v1261 = vperm.slane %v1259, 0
        %v1271 = vsel %vm1243, %v1180, %v1174
        %v1272 = vsel %vm1245, %v1186, %v1271
        %v1273 = vsel %vm1247, %v1192, %v1272
        %v1274 = vsel %vm1249, %v1198, %v1273
        %v1275 = vsel %vm1251, %v1204, %v1274
        %v1276 = vsel %vm1253, %v1210, %v1275
        %v1277 = vsel %vm1255, %v1216, %v1276
        %v1279 = vadd.f32 %v1261, %v1277
        %v1280 = vadd.f32 %v1279, 1e-08
        %v1281 = vld [vmem:[#allocation16] sm:$0xff]
        %v1282 = vld [vmem:[#allocation16 + $0x8] sm:$0xff]
        %v1283 = vld [vmem:[#allocation16 + $0x10] sm:$0xff]
        %v1284 = vld [vmem:[#allocation16 + $0x18] sm:$0xff]
        %v1285 = vld [vmem:[#allocation17] sm:$0xff]
        %v1286 = vld [vmem:[#allocation17 + $0x8] sm:$0xff]
        %v1287 = vld [vmem:[#allocation17 + $0x10] sm:$0xff]
        %v1288 = vld [vmem:[#allocation17 + $0x18] sm:$0xff]
        %v1289 = vld [vmem:[%s717] sm:$0xff]
        %v1290 = vperm.slane %v1289, 0
        %v1291 = vlaneseq
        %v1292 = vshrl.u32 %v1291, 7
        %1294 = vset.pattern.permute.xlu0 %v1292
        %1295 = vperm.xlu0 %1294, %v1290
        %v1296 = vpop.permute.xlu0 %1295
        %v1297 = vlaneseq
        %v1298 = vshrl.u32 %v1297, 7
        %v1299 = vadd.s32 %v1298, 8
        %1300 = vset.pattern.permute.xlu0 %v1299
        %1301 = vperm.xlu0 %1300, %v1290
        %v1302 = vpop.permute.xlu0 %1301
        %v1303 = vlaneseq
        %v1304 = vshrl.u32 %v1303, 7
        %v1305 = vadd.s32 %v1304, 16
        %1306 = vset.pattern.permute.xlu0 %v1305
        %1307 = vperm.xlu0 %1306, %v1290
        %v1308 = vpop.permute.xlu0 %1307
        %v1309 = vlaneseq
        %v1310 = vshrl.u32 %v1309, 7
        %v1311 = vadd.s32 %v1310, 24
        %1312 = vset.pattern.permute.xlu0 %v1311
        %1313 = vperm.xlu0 %1312, %v1290
        %v1314 = vpop.permute.xlu0 %1313
        %v1315 = vperm.slane %v1289, 1
        %v1316 = vlaneseq
        %v1317 = vshrl.u32 %v1316, 7
        %1319 = vset.pattern.permute.xlu0 %v1317
        %1320 = vperm.xlu0 %1319, %v1315
        %v1321 = vpop.permute.xlu0 %1320
        %v1322 = vlaneseq
        %v1323 = vshrl.u32 %v1322, 7
        %v1324 = vadd.s32 %v1323, 8
        %1325 = vset.pattern.permute.xlu0 %v1324
        %1326 = vperm.xlu0 %1325, %v1315
        %v1327 = vpop.permute.xlu0 %1326
        %v1328 = vlaneseq
        %v1329 = vshrl.u32 %v1328, 7
        %v1330 = vadd.s32 %v1329, 16
        %1331 = vset.pattern.permute.xlu0 %v1330
        %1332 = vperm.xlu0 %1331, %v1315
        %v1333 = vpop.permute.xlu0 %1332
        %v1334 = vlaneseq
        %v1335 = vshrl.u32 %v1334, 7
        %v1336 = vadd.s32 %v1335, 24
        %1337 = vset.pattern.permute.xlu0 %v1336
        %1338 = vperm.xlu0 %1337, %v1315
        %v1339 = vpop.permute.xlu0 %1338
        %v1340 = vperm.slane %v1289, 2
        %v1341 = vlaneseq
        %v1342 = vshrl.u32 %v1341, 7
        %1344 = vset.pattern.permute.xlu0 %v1342
        %1345 = vperm.xlu0 %1344, %v1340
        %v1346 = vpop.permute.xlu0 %1345
        %v1347 = vlaneseq
        %v1348 = vshrl.u32 %v1347, 7
        %v1349 = vadd.s32 %v1348, 8
        %1350 = vset.pattern.permute.xlu0 %v1349
        %1351 = vperm.xlu0 %1350, %v1340
        %v1352 = vpop.permute.xlu0 %1351
        %v1353 = vlaneseq
        %v1354 = vshrl.u32 %v1353, 7
        %v1355 = vadd.s32 %v1354, 16
        %1356 = vset.pattern.permute.xlu0 %v1355
        %1357 = vperm.xlu0 %1356, %v1340
        %v1358 = vpop.permute.xlu0 %1357
        %v1359 = vlaneseq
        %v1360 = vshrl.u32 %v1359, 7
        %v1361 = vadd.s32 %v1360, 24
        %1362 = vset.pattern.permute.xlu0 %v1361
        %1363 = vperm.xlu0 %1362, %v1340
        %v1364 = vpop.permute.xlu0 %1363
        %v1365 = vperm.slane %v1289, 3
        %v1366 = vlaneseq
        %v1367 = vshrl.u32 %v1366, 7
        %1369 = vset.pattern.permute.xlu0 %v1367
        %1370 = vperm.xlu0 %1369, %v1365
        %v1371 = vpop.permute.xlu0 %1370
        %v1372 = vlaneseq
        %v1373 = vshrl.u32 %v1372, 7
        %v1374 = vadd.s32 %v1373, 8
        %1375 = vset.pattern.permute.xlu0 %v1374
        %1376 = vperm.xlu0 %1375, %v1365
        %v1377 = vpop.permute.xlu0 %1376
        %v1378 = vlaneseq
        %v1379 = vshrl.u32 %v1378, 7
        %v1380 = vadd.s32 %v1379, 16
        %1381 = vset.pattern.permute.xlu0 %v1380
        %1382 = vperm.xlu0 %1381, %v1365
        %v1383 = vpop.permute.xlu0 %1382
        %v1384 = vlaneseq
        %v1385 = vshrl.u32 %v1384, 7
        %v1386 = vadd.s32 %v1385, 24
        %1387 = vset.pattern.permute.xlu0 %v1386
        %1388 = vperm.xlu0 %1387, %v1365
        %v1389 = vpop.permute.xlu0 %1388
        %v1390 = vperm.slane %v1289, 4
        %v1391 = vlaneseq
        %v1392 = vshrl.u32 %v1391, 7
        %1394 = vset.pattern.permute.xlu0 %v1392
        %1395 = vperm.xlu0 %1394, %v1390
        %v1396 = vpop.permute.xlu0 %1395
        %v1397 = vlaneseq
        %v1398 = vshrl.u32 %v1397, 7
        %v1399 = vadd.s32 %v1398, 8
        %1400 = vset.pattern.permute.xlu0 %v1399
        %1401 = vperm.xlu0 %1400, %v1390
        %v1402 = vpop.permute.xlu0 %1401
        %v1403 = vlaneseq
        %v1404 = vshrl.u32 %v1403, 7
        %v1405 = vadd.s32 %v1404, 16
        %1406 = vset.pattern.permute.xlu0 %v1405
        %1407 = vperm.xlu0 %1406, %v1390
        %v1408 = vpop.permute.xlu0 %1407
        %v1409 = vlaneseq
        %v1410 = vshrl.u32 %v1409, 7
        %v1411 = vadd.s32 %v1410, 24
        %1412 = vset.pattern.permute.xlu0 %v1411
        %1413 = vperm.xlu0 %1412, %v1390
        %v1414 = vpop.permute.xlu0 %1413
        %v1415 = vperm.slane %v1289, 5
        %v1416 = vlaneseq
        %v1417 = vshrl.u32 %v1416, 7
        %1419 = vset.pattern.permute.xlu0 %v1417
        %1420 = vperm.xlu0 %1419, %v1415
        %v1421 = vpop.permute.xlu0 %1420
        %v1422 = vlaneseq
        %v1423 = vshrl.u32 %v1422, 7
        %v1424 = vadd.s32 %v1423, 8
        %1425 = vset.pattern.permute.xlu0 %v1424
        %1426 = vperm.xlu0 %1425, %v1415
        %v1427 = vpop.permute.xlu0 %1426
        %v1428 = vlaneseq
        %v1429 = vshrl.u32 %v1428, 7
        %v1430 = vadd.s32 %v1429, 16
        %1431 = vset.pattern.permute.xlu0 %v1430
        %1432 = vperm.xlu0 %1431, %v1415
        %v1433 = vpop.permute.xlu0 %1432
        %v1434 = vlaneseq
        %v1435 = vshrl.u32 %v1434, 7
        %v1436 = vadd.s32 %v1435, 24
        %1437 = vset.pattern.permute.xlu0 %v1436
        %1438 = vperm.xlu0 %1437, %v1415
        %v1439 = vpop.permute.xlu0 %1438
        %v1440 = vperm.slane %v1289, 6
        %v1441 = vlaneseq
        %v1442 = vshrl.u32 %v1441, 7
        %1444 = vset.pattern.permute.xlu0 %v1442
        %1445 = vperm.xlu0 %1444, %v1440
        %v1446 = vpop.permute.xlu0 %1445
        %v1447 = vlaneseq
        %v1448 = vshrl.u32 %v1447, 7
        %v1449 = vadd.s32 %v1448, 8
        %1450 = vset.pattern.permute.xlu0 %v1449
        %1451 = vperm.xlu0 %1450, %v1440
        %v1452 = vpop.permute.xlu0 %1451
        %v1453 = vlaneseq
        %v1454 = vshrl.u32 %v1453, 7
        %v1455 = vadd.s32 %v1454, 16
        %1456 = vset.pattern.permute.xlu0 %v1455
        %1457 = vperm.xlu0 %1456, %v1440
        %v1458 = vpop.permute.xlu0 %1457
        %v1459 = vlaneseq
        %v1460 = vshrl.u32 %v1459, 7
        %v1461 = vadd.s32 %v1460, 24
        %1462 = vset.pattern.permute.xlu0 %v1461
        %1463 = vperm.xlu0 %1462, %v1440
        %v1464 = vpop.permute.xlu0 %1463
        %v1465 = vperm.slane %v1289, 7
        %v1466 = vlaneseq
        %v1467 = vshrl.u32 %v1466, 7
        %1469 = vset.pattern.permute.xlu0 %v1467
        %1470 = vperm.xlu0 %1469, %v1465
        %v1471 = vpop.permute.xlu0 %1470
        %v1472 = vlaneseq
        %v1473 = vshrl.u32 %v1472, 7
        %v1474 = vadd.s32 %v1473, 8
        %1475 = vset.pattern.permute.xlu0 %v1474
        %1476 = vperm.xlu0 %1475, %v1465
        %v1477 = vpop.permute.xlu0 %1476
        %v1478 = vlaneseq
        %v1479 = vshrl.u32 %v1478, 7
        %v1480 = vadd.s32 %v1479, 16
        %1481 = vset.pattern.permute.xlu0 %v1480
        %1482 = vperm.xlu0 %1481, %v1465
        %v1483 = vpop.permute.xlu0 %1482
        %v1484 = vlaneseq
        %v1485 = vshrl.u32 %v1484, 7
        %v1486 = vadd.s32 %v1485, 24
        %1487 = vset.pattern.permute.xlu0 %v1486
        %1488 = vperm.xlu0 %1487, %v1465
        %v1489 = vpop.permute.xlu0 %1488
        %v1490 = vsub.f32 %v1296, %v1281
        %v1491 = vsub.f32 %v1302, %v1282
        %v1492 = vsub.f32 %v1308, %v1283
        %v1493 = vsub.f32 %v1314, %v1284
        %v1494 = vsub.f32 %v1321, %v1281
        %v1495 = vsub.f32 %v1327, %v1282
        %v1496 = vsub.f32 %v1333, %v1283
        %v1497 = vsub.f32 %v1339, %v1284
        %v1498 = vsub.f32 %v1346, %v1281
        %v1499 = vsub.f32 %v1352, %v1282
        %v1500 = vsub.f32 %v1358, %v1283
        %v1501 = vsub.f32 %v1364, %v1284
        %v1502 = vsub.f32 %v1371, %v1281
        %v1503 = vsub.f32 %v1377, %v1282
        %v1504 = vsub.f32 %v1383, %v1283
        %v1505 = vsub.f32 %v1389, %v1284
        %v1506 = vsub.f32 %v1396, %v1281
        %v1507 = vsub.f32 %v1402, %v1282
        %v1508 = vsub.f32 %v1408, %v1283
        %v1509 = vsub.f32 %v1414, %v1284
        %v1510 = vsub.f32 %v1421, %v1281
        %v1511 = vsub.f32 %v1427, %v1282
        %v1512 = vsub.f32 %v1433, %v1283
        %v1513 = vsub.f32 %v1439, %v1284
        %v1514 = vsub.f32 %v1446, %v1281
        %v1515 = vsub.f32 %v1452, %v1282
        %v1516 = vsub.f32 %v1458, %v1283
        %v1517 = vsub.f32 %v1464, %v1284
        %v1518 = vsub.f32 %v1471, %v1281
        %v1519 = vsub.f32 %v1477, %v1282
        %v1520 = vsub.f32 %v1483, %v1283
        %v1521 = vsub.f32 %v1489, %v1284
        %v1522 = vmul.f32 %v1490, %v1285
        %v1523 = vmul.f32 %v1491, %v1286
        %v1524 = vmul.f32 %v1492, %v1287
        %v1525 = vmul.f32 %v1493, %v1288
        %v1526 = vmul.f32 %v1494, %v1285
        %v1527 = vmul.f32 %v1495, %v1286
        %v1528 = vmul.f32 %v1496, %v1287
        %v1529 = vmul.f32 %v1497, %v1288
        %v1530 = vmul.f32 %v1498, %v1285
        %v1531 = vmul.f32 %v1499, %v1286
        %v1532 = vmul.f32 %v1500, %v1287
        %v1533 = vmul.f32 %v1501, %v1288
        %v1534 = vmul.f32 %v1502, %v1285
        %v1535 = vmul.f32 %v1503, %v1286
        %v1536 = vmul.f32 %v1504, %v1287
        %v1537 = vmul.f32 %v1505, %v1288
        %v1538 = vmul.f32 %v1506, %v1285
        %v1539 = vmul.f32 %v1507, %v1286
        %v1540 = vmul.f32 %v1508, %v1287
        %v1541 = vmul.f32 %v1509, %v1288
        %v1542 = vmul.f32 %v1510, %v1285
        %v1543 = vmul.f32 %v1511, %v1286
        %v1544 = vmul.f32 %v1512, %v1287
        %v1545 = vmul.f32 %v1513, %v1288
        %v1546 = vmul.f32 %v1514, %v1285
        %v1547 = vmul.f32 %v1515, %v1286
        %v1548 = vmul.f32 %v1516, %v1287
        %v1549 = vmul.f32 %v1517, %v1288
        %v1550 = vmul.f32 %v1518, %v1285
        %v1551 = vmul.f32 %v1519, %v1286
        %v1552 = vmul.f32 %v1520, %v1287
        %v1553 = vmul.f32 %v1521, %v1288
        %v1554 = vxor.u32 %v1522, 2147483648
        %v1555 = vxor.u32 %v1523, 2147483648
        %v1556 = vxor.u32 %v1524, 2147483648
        %v1557 = vxor.u32 %v1525, 2147483648
        %v1558 = vxor.u32 %v1526, 2147483648
        %v1559 = vxor.u32 %v1527, 2147483648
        %v1560 = vxor.u32 %v1528, 2147483648
        %v1561 = vxor.u32 %v1529, 2147483648
        %v1562 = vxor.u32 %v1530, 2147483648
        %v1563 = vxor.u32 %v1531, 2147483648
        %v1564 = vxor.u32 %v1532, 2147483648
        %v1565 = vxor.u32 %v1533, 2147483648
        %v1566 = vxor.u32 %v1534, 2147483648
        %v1567 = vxor.u32 %v1535, 2147483648
        %v1568 = vxor.u32 %v1536, 2147483648
        %v1569 = vxor.u32 %v1537, 2147483648
        %v1570 = vxor.u32 %v1538, 2147483648
        %v1571 = vxor.u32 %v1539, 2147483648
        %v1572 = vxor.u32 %v1540, 2147483648
        %v1573 = vxor.u32 %v1541, 2147483648
        %v1574 = vxor.u32 %v1542, 2147483648
        %v1575 = vxor.u32 %v1543, 2147483648
        %v1576 = vxor.u32 %v1544, 2147483648
        %v1577 = vxor.u32 %v1545, 2147483648
        %v1578 = vxor.u32 %v1546, 2147483648
        %v1579 = vxor.u32 %v1547, 2147483648
        %v1580 = vxor.u32 %v1548, 2147483648
        %v1581 = vxor.u32 %v1549, 2147483648
        %v1582 = vxor.u32 %v1550, 2147483648
        %v1583 = vxor.u32 %v1551, 2147483648
        %v1584 = vxor.u32 %v1552, 2147483648
        %v1585 = vxor.u32 %v1553, 2147483648
        %v1586 = vmul.f32 %v1554, 1.442695
        %v1587 = vpow.pop %v1586
        %v1588 = vmul.f32 %v1555, 1.442695
        %v1589 = vpow.pop %v1588
        %v1590 = vmul.f32 %v1556, 1.442695
        %v1591 = vpow.pop %v1590
        %v1592 = vmul.f32 %v1557, 1.442695
        %v1593 = vpow.pop %v1592
        %v1594 = vmul.f32 %v1558, 1.442695
        %v1595 = vpow.pop %v1594
        %v1596 = vmul.f32 %v1559, 1.442695
        %v1597 = vpow.pop %v1596
        %v1598 = vmul.f32 %v1560, 1.442695
        %v1599 = vpow.pop %v1598
        %v1600 = vmul.f32 %v1561, 1.442695
        %v1601 = vpow.pop %v1600
        %v1602 = vmul.f32 %v1562, 1.442695
        %v1603 = vpow.pop %v1602
        %v1604 = vmul.f32 %v1563, 1.442695
        %v1605 = vpow.pop %v1604
        %v1606 = vmul.f32 %v1564, 1.442695
        %v1607 = vpow.pop %v1606
        %v1608 = vmul.f32 %v1565, 1.442695
        %v1609 = vpow.pop %v1608
        %v1610 = vmul.f32 %v1566, 1.442695
        %v1611 = vpow.pop %v1610
        %v1612 = vmul.f32 %v1567, 1.442695
        %v1613 = vpow.pop %v1612
        %v1614 = vmul.f32 %v1568, 1.442695
        %v1615 = vpow.pop %v1614
        %v1616 = vmul.f32 %v1569, 1.442695
        %v1617 = vpow.pop %v1616
        %v1618 = vmul.f32 %v1570, 1.442695
        %v1619 = vpow.pop %v1618
        %v1620 = vmul.f32 %v1571, 1.442695
        %v1621 = vpow.pop %v1620
        %v1622 = vmul.f32 %v1572, 1.442695
        %v1623 = vpow.pop %v1622
        %v1624 = vmul.f32 %v1573, 1.442695
        %v1625 = vpow.pop %v1624
        %v1626 = vmul.f32 %v1574, 1.442695
        %v1627 = vpow.pop %v1626
        %v1628 = vmul.f32 %v1575, 1.442695
        %v1629 = vpow.pop %v1628
        %v1630 = vmul.f32 %v1576, 1.442695
        %v1631 = vpow.pop %v1630
        %v1632 = vmul.f32 %v1577, 1.442695
        %v1633 = vpow.pop %v1632
        %v1634 = vmul.f32 %v1578, 1.442695
        %v1635 = vpow.pop %v1634
        %v1636 = vmul.f32 %v1579, 1.442695
        %v1637 = vpow.pop %v1636
        %v1638 = vmul.f32 %v1580, 1.442695
        %v1639 = vpow.pop %v1638
        %v1640 = vmul.f32 %v1581, 1.442695
        %v1641 = vpow.pop %v1640
        %v1642 = vmul.f32 %v1582, 1.442695
        %v1643 = vpow.pop %v1642
        %v1644 = vmul.f32 %v1583, 1.442695
        %v1645 = vpow.pop %v1644
        %v1646 = vmul.f32 %v1584, 1.442695
        %v1647 = vpow.pop %v1646
        %v1648 = vmul.f32 %v1585, 1.442695
        %v1649 = vpow.pop %v1648
        %v1650 = vadd.f32 %v1587, 1.0
        %v1651 = vadd.f32 %v1589, 1.0
        %v1652 = vadd.f32 %v1591, 1.0
        %v1653 = vadd.f32 %v1593, 1.0
        %v1654 = vadd.f32 %v1595, 1.0
        %v1655 = vadd.f32 %v1597, 1.0
        %v1656 = vadd.f32 %v1599, 1.0
        %v1657 = vadd.f32 %v1601, 1.0
        %v1658 = vadd.f32 %v1603, 1.0
        %v1659 = vadd.f32 %v1605, 1.0
        %v1660 = vadd.f32 %v1607, 1.0
        %v1661 = vadd.f32 %v1609, 1.0
        %v1662 = vadd.f32 %v1611, 1.0
        %v1663 = vadd.f32 %v1613, 1.0
        %v1664 = vadd.f32 %v1615, 1.0
        %v1665 = vadd.f32 %v1617, 1.0
        %v1666 = vadd.f32 %v1619, 1.0
        %v1667 = vadd.f32 %v1621, 1.0
        %v1668 = vadd.f32 %v1623, 1.0
        %v1669 = vadd.f32 %v1625, 1.0
        %v1670 = vadd.f32 %v1627, 1.0
        %v1671 = vadd.f32 %v1629, 1.0
        %v1672 = vadd.f32 %v1631, 1.0
        %v1673 = vadd.f32 %v1633, 1.0
        %v1674 = vadd.f32 %v1635, 1.0
        %v1675 = vadd.f32 %v1637, 1.0
        %v1676 = vadd.f32 %v1639, 1.0
        %v1677 = vadd.f32 %v1641, 1.0
        %v1678 = vadd.f32 %v1643, 1.0
        %v1679 = vadd.f32 %v1645, 1.0
        %v1680 = vadd.f32 %v1647, 1.0
        %v1681 = vadd.f32 %v1649, 1.0
        %v1682 = vrcp.pop %v1650
        %v1683 = vmul.f32 %v1650, %v1682
        %v1684 = vsub.f32 1.0, %v1683
        %v1685 = vmul.f32 %v1682, %v1684
        %v1686 = vadd.f32 %v1682, %v1685
        %vm1687 = vweird.f32 %v1650
        %vm1688 = vweird.f32 %v1682
        %vm1689 = vmor %vm1687, %vm1688
        %v1690 = vsel %vm1689, %v1682, %v1686
        %v1691 = vand.u32 2147483647, %v1650
        %vm1692 = vcmp.eq.f32.partialorder %v1691, 8.507059e+37
        %v1693 = vand.u32 %v1650, 2147483648
        %v1694 = vor.u32 1.1754944e-38, %v1693
        %v1695 = vsel %vm1692, %v1694, %v1690
        %v1696 = vmul.f32 1.0, %v1695
        %v1697 = vrcp.pop %v1651
        %v1698 = vmul.f32 %v1651, %v1697
        %v1699 = vsub.f32 1.0, %v1698
        %v1700 = vmul.f32 %v1697, %v1699
        %v1701 = vadd.f32 %v1697, %v1700
        %vm1702 = vweird.f32 %v1651
        %vm1703 = vweird.f32 %v1697
        %vm1704 = vmor %vm1702, %vm1703
        %v1705 = vsel %vm1704, %v1697, %v1701
        %v1706 = vand.u32 2147483647, %v1651
        %vm1707 = vcmp.eq.f32.partialorder %v1706, 8.507059e+37
        %v1708 = vand.u32 %v1651, 2147483648
        %v1709 = vor.u32 1.1754944e-38, %v1708
        %v1710 = vsel %vm1707, %v1709, %v1705
        %v1711 = vmul.f32 1.0, %v1710
        %v1712 = vrcp.pop %v1652
        %v1713 = vmul.f32 %v1652, %v1712
        %v1714 = vsub.f32 1.0, %v1713
        %v1715 = vmul.f32 %v1712, %v1714
        %v1716 = vadd.f32 %v1712, %v1715
        %vm1717 = vweird.f32 %v1652
        %vm1718 = vweird.f32 %v1712
        %vm1719 = vmor %vm1717, %vm1718
        %v1720 = vsel %vm1719, %v1712, %v1716
        %v1721 = vand.u32 2147483647, %v1652
        %vm1722 = vcmp.eq.f32.partialorder %v1721, 8.507059e+37
        %v1723 = vand.u32 %v1652, 2147483648
        %v1724 = vor.u32 1.1754944e-38, %v1723
        %v1725 = vsel %vm1722, %v1724, %v1720
        %v1726 = vmul.f32 1.0, %v1725
        %v1727 = vrcp.pop %v1653
        %v1728 = vmul.f32 %v1653, %v1727
        %v1729 = vsub.f32 1.0, %v1728
        %v1730 = vmul.f32 %v1727, %v1729
        %v1731 = vadd.f32 %v1727, %v1730
        %vm1732 = vweird.f32 %v1653
        %vm1733 = vweird.f32 %v1727
        %vm1734 = vmor %vm1732, %vm1733
        %v1735 = vsel %vm1734, %v1727, %v1731
        %v1736 = vand.u32 2147483647, %v1653
        %vm1737 = vcmp.eq.f32.partialorder %v1736, 8.507059e+37
        %v1738 = vand.u32 %v1653, 2147483648
        %v1739 = vor.u32 1.1754944e-38, %v1738
        %v1740 = vsel %vm1737, %v1739, %v1735
        %v1741 = vmul.f32 1.0, %v1740
        %v1742 = vrcp.pop %v1654
        %v1743 = vmul.f32 %v1654, %v1742
        %v1744 = vsub.f32 1.0, %v1743
        %v1745 = vmul.f32 %v1742, %v1744
        %v1746 = vadd.f32 %v1742, %v1745
        %vm1747 = vweird.f32 %v1654
        %vm1748 = vweird.f32 %v1742
        %vm1749 = vmor %vm1747, %vm1748
        %v1750 = vsel %vm1749, %v1742, %v1746
        %v1751 = vand.u32 2147483647, %v1654
        %vm1752 = vcmp.eq.f32.partialorder %v1751, 8.507059e+37
        %v1753 = vand.u32 %v1654, 2147483648
        %v1754 = vor.u32 1.1754944e-38, %v1753
        %v1755 = vsel %vm1752, %v1754, %v1750
        %v1756 = vmul.f32 1.0, %v1755
        %v1757 = vrcp.pop %v1655
        %v1758 = vmul.f32 %v1655, %v1757
        %v1759 = vsub.f32 1.0, %v1758
        %v1760 = vmul.f32 %v1757, %v1759
        %v1761 = vadd.f32 %v1757, %v1760
        %vm1762 = vweird.f32 %v1655
        %vm1763 = vweird.f32 %v1757
        %vm1764 = vmor %vm1762, %vm1763
        %v1765 = vsel %vm1764, %v1757, %v1761
        %v1766 = vand.u32 2147483647, %v1655
        %vm1767 = vcmp.eq.f32.partialorder %v1766, 8.507059e+37
        %v1768 = vand.u32 %v1655, 2147483648
        %v1769 = vor.u32 1.1754944e-38, %v1768
        %v1770 = vsel %vm1767, %v1769, %v1765
        %v1771 = vmul.f32 1.0, %v1770
        %v1772 = vrcp.pop %v1656
        %v1773 = vmul.f32 %v1656, %v1772
        %v1774 = vsub.f32 1.0, %v1773
        %v1775 = vmul.f32 %v1772, %v1774
        %v1776 = vadd.f32 %v1772, %v1775
        %vm1777 = vweird.f32 %v1656
        %vm1778 = vweird.f32 %v1772
        %vm1779 = vmor %vm1777, %vm1778
        %v1780 = vsel %vm1779, %v1772, %v1776
        %v1781 = vand.u32 2147483647, %v1656
        %vm1782 = vcmp.eq.f32.partialorder %v1781, 8.507059e+37
        %v1783 = vand.u32 %v1656, 2147483648
        %v1784 = vor.u32 1.1754944e-38, %v1783
        %v1785 = vsel %vm1782, %v1784, %v1780
        %v1786 = vmul.f32 1.0, %v1785
        %v1787 = vrcp.pop %v1657
        %v1788 = vmul.f32 %v1657, %v1787
        %v1789 = vsub.f32 1.0, %v1788
        %v1790 = vmul.f32 %v1787, %v1789
        %v1791 = vadd.f32 %v1787, %v1790
        %vm1792 = vweird.f32 %v1657
        %vm1793 = vweird.f32 %v1787
        %vm1794 = vmor %vm1792, %vm1793
        %v1795 = vsel %vm1794, %v1787, %v1791
        %v1796 = vand.u32 2147483647, %v1657
        %vm1797 = vcmp.eq.f32.partialorder %v1796, 8.507059e+37
        %v1798 = vand.u32 %v1657, 2147483648
        %v1799 = vor.u32 1.1754944e-38, %v1798
        %v1800 = vsel %vm1797, %v1799, %v1795
        %v1801 = vmul.f32 1.0, %v1800
        %v1802 = vrcp.pop %v1658
        %v1803 = vmul.f32 %v1658, %v1802
        %v1804 = vsub.f32 1.0, %v1803
        %v1805 = vmul.f32 %v1802, %v1804
        %v1806 = vadd.f32 %v1802, %v1805
        %vm1807 = vweird.f32 %v1658
        %vm1808 = vweird.f32 %v1802
        %vm1809 = vmor %vm1807, %vm1808
        %v1810 = vsel %vm1809, %v1802, %v1806
        %v1811 = vand.u32 2147483647, %v1658
        %vm1812 = vcmp.eq.f32.partialorder %v1811, 8.507059e+37
        %v1813 = vand.u32 %v1658, 2147483648
        %v1814 = vor.u32 1.1754944e-38, %v1813
        %v1815 = vsel %vm1812, %v1814, %v1810
        %v1816 = vmul.f32 1.0, %v1815
        %v1817 = vrcp.pop %v1659
        %v1818 = vmul.f32 %v1659, %v1817
        %v1819 = vsub.f32 1.0, %v1818
        %v1820 = vmul.f32 %v1817, %v1819
        %v1821 = vadd.f32 %v1817, %v1820
        %vm1822 = vweird.f32 %v1659
        %vm1823 = vweird.f32 %v1817
        %vm1824 = vmor %vm1822, %vm1823
        %v1825 = vsel %vm1824, %v1817, %v1821
        %v1826 = vand.u32 2147483647, %v1659
        %vm1827 = vcmp.eq.f32.partialorder %v1826, 8.507059e+37
        %v1828 = vand.u32 %v1659, 2147483648
        %v1829 = vor.u32 1.1754944e-38, %v1828
        %v1830 = vsel %vm1827, %v1829, %v1825
        %v1831 = vmul.f32 1.0, %v1830
        %v1832 = vrcp.pop %v1660
        %v1833 = vmul.f32 %v1660, %v1832
        %v1834 = vsub.f32 1.0, %v1833
        %v1835 = vmul.f32 %v1832, %v1834
        %v1836 = vadd.f32 %v1832, %v1835
        %vm1837 = vweird.f32 %v1660
        %vm1838 = vweird.f32 %v1832
        %vm1839 = vmor %vm1837, %vm1838
        %v1840 = vsel %vm1839, %v1832, %v1836
        %v1841 = vand.u32 2147483647, %v1660
        %vm1842 = vcmp.eq.f32.partialorder %v1841, 8.507059e+37
        %v1843 = vand.u32 %v1660, 2147483648
        %v1844 = vor.u32 1.1754944e-38, %v1843
        %v1845 = vsel %vm1842, %v1844, %v1840
        %v1846 = vmul.f32 1.0, %v1845
        %v1847 = vrcp.pop %v1661
        %v1848 = vmul.f32 %v1661, %v1847
        %v1849 = vsub.f32 1.0, %v1848
        %v1850 = vmul.f32 %v1847, %v1849
        %v1851 = vadd.f32 %v1847, %v1850
        %vm1852 = vweird.f32 %v1661
        %vm1853 = vweird.f32 %v1847
        %vm1854 = vmor %vm1852, %vm1853
        %v1855 = vsel %vm1854, %v1847, %v1851
        %v1856 = vand.u32 2147483647, %v1661
        %vm1857 = vcmp.eq.f32.partialorder %v1856, 8.507059e+37
        %v1858 = vand.u32 %v1661, 2147483648
        %v1859 = vor.u32 1.1754944e-38, %v1858
        %v1860 = vsel %vm1857, %v1859, %v1855
        %v1861 = vmul.f32 1.0, %v1860
        %v1862 = vrcp.pop %v1662
        %v1863 = vmul.f32 %v1662, %v1862
        %v1864 = vsub.f32 1.0, %v1863
        %v1865 = vmul.f32 %v1862, %v1864
        %v1866 = vadd.f32 %v1862, %v1865
        %vm1867 = vweird.f32 %v1662
        %vm1868 = vweird.f32 %v1862
        %vm1869 = vmor %vm1867, %vm1868
        %v1870 = vsel %vm1869, %v1862, %v1866
        %v1871 = vand.u32 2147483647, %v1662
        %vm1872 = vcmp.eq.f32.partialorder %v1871, 8.507059e+37
        %v1873 = vand.u32 %v1662, 2147483648
        %v1874 = vor.u32 1.1754944e-38, %v1873
        %v1875 = vsel %vm1872, %v1874, %v1870
        %v1876 = vmul.f32 1.0, %v1875
        %v1877 = vrcp.pop %v1663
        %v1878 = vmul.f32 %v1663, %v1877
        %v1879 = vsub.f32 1.0, %v1878
        %v1880 = vmul.f32 %v1877, %v1879
        %v1881 = vadd.f32 %v1877, %v1880
        %vm1882 = vweird.f32 %v1663
        %vm1883 = vweird.f32 %v1877
        %vm1884 = vmor %vm1882, %vm1883
        %v1885 = vsel %vm1884, %v1877, %v1881
        %v1886 = vand.u32 2147483647, %v1663
        %vm1887 = vcmp.eq.f32.partialorder %v1886, 8.507059e+37
        %v1888 = vand.u32 %v1663, 2147483648
        %v1889 = vor.u32 1.1754944e-38, %v1888
        %v1890 = vsel %vm1887, %v1889, %v1885
        %v1891 = vmul.f32 1.0, %v1890
        %v1892 = vrcp.pop %v1664
        %v1893 = vmul.f32 %v1664, %v1892
        %v1894 = vsub.f32 1.0, %v1893
        %v1895 = vmul.f32 %v1892, %v1894
        %v1896 = vadd.f32 %v1892, %v1895
        %vm1897 = vweird.f32 %v1664
        %vm1898 = vweird.f32 %v1892
        %vm1899 = vmor %vm1897, %vm1898
        %v1900 = vsel %vm1899, %v1892, %v1896
        %v1901 = vand.u32 2147483647, %v1664
        %vm1902 = vcmp.eq.f32.partialorder %v1901, 8.507059e+37
        %v1903 = vand.u32 %v1664, 2147483648
        %v1904 = vor.u32 1.1754944e-38, %v1903
        %v1905 = vsel %vm1902, %v1904, %v1900
        %v1906 = vmul.f32 1.0, %v1905
        %v1907 = vrcp.pop %v1665
        %v1908 = vmul.f32 %v1665, %v1907
        %v1909 = vsub.f32 1.0, %v1908
        %v1910 = vmul.f32 %v1907, %v1909
        %v1911 = vadd.f32 %v1907, %v1910
        %vm1912 = vweird.f32 %v1665
        %vm1913 = vweird.f32 %v1907
        %vm1914 = vmor %vm1912, %vm1913
        %v1915 = vsel %vm1914, %v1907, %v1911
        %v1916 = vand.u32 2147483647, %v1665
        %vm1917 = vcmp.eq.f32.partialorder %v1916, 8.507059e+37
        %v1918 = vand.u32 %v1665, 2147483648
        %v1919 = vor.u32 1.1754944e-38, %v1918
        %v1920 = vsel %vm1917, %v1919, %v1915
        %v1921 = vmul.f32 1.0, %v1920
        %v1922 = vrcp.pop %v1666
        %v1923 = vmul.f32 %v1666, %v1922
        %v1924 = vsub.f32 1.0, %v1923
        %v1925 = vmul.f32 %v1922, %v1924
        %v1926 = vadd.f32 %v1922, %v1925
        %vm1927 = vweird.f32 %v1666
        %vm1928 = vweird.f32 %v1922
        %vm1929 = vmor %vm1927, %vm1928
        %v1930 = vsel %vm1929, %v1922, %v1926
        %v1931 = vand.u32 2147483647, %v1666
        %vm1932 = vcmp.eq.f32.partialorder %v1931, 8.507059e+37
        %v1933 = vand.u32 %v1666, 2147483648
        %v1934 = vor.u32 1.1754944e-38, %v1933
        %v1935 = vsel %vm1932, %v1934, %v1930
        %v1936 = vmul.f32 1.0, %v1935
        %v1937 = vrcp.pop %v1667
        %v1938 = vmul.f32 %v1667, %v1937
        %v1939 = vsub.f32 1.0, %v1938
        %v1940 = vmul.f32 %v1937, %v1939
        %v1941 = vadd.f32 %v1937, %v1940
        %vm1942 = vweird.f32 %v1667
        %vm1943 = vweird.f32 %v1937
        %vm1944 = vmor %vm1942, %vm1943
        %v1945 = vsel %vm1944, %v1937, %v1941
        %v1946 = vand.u32 2147483647, %v1667
        %vm1947 = vcmp.eq.f32.partialorder %v1946, 8.507059e+37
        %v1948 = vand.u32 %v1667, 2147483648
        %v1949 = vor.u32 1.1754944e-38, %v1948
        %v1950 = vsel %vm1947, %v1949, %v1945
        %v1951 = vmul.f32 1.0, %v1950
        %v1952 = vrcp.pop %v1668
        %v1953 = vmul.f32 %v1668, %v1952
        %v1954 = vsub.f32 1.0, %v1953
        %v1955 = vmul.f32 %v1952, %v1954
        %v1956 = vadd.f32 %v1952, %v1955
        %vm1957 = vweird.f32 %v1668
        %vm1958 = vweird.f32 %v1952
        %vm1959 = vmor %vm1957, %vm1958
        %v1960 = vsel %vm1959, %v1952, %v1956
        %v1961 = vand.u32 2147483647, %v1668
        %vm1962 = vcmp.eq.f32.partialorder %v1961, 8.507059e+37
        %v1963 = vand.u32 %v1668, 2147483648
        %v1964 = vor.u32 1.1754944e-38, %v1963
        %v1965 = vsel %vm1962, %v1964, %v1960
        %v1966 = vmul.f32 1.0, %v1965
        %v1967 = vrcp.pop %v1669
        %v1968 = vmul.f32 %v1669, %v1967
        %v1969 = vsub.f32 1.0, %v1968
        %v1970 = vmul.f32 %v1967, %v1969
        %v1971 = vadd.f32 %v1967, %v1970
        %vm1972 = vweird.f32 %v1669
        %vm1973 = vweird.f32 %v1967
        %vm1974 = vmor %vm1972, %vm1973
        %v1975 = vsel %vm1974, %v1967, %v1971
        %v1976 = vand.u32 2147483647, %v1669
        %vm1977 = vcmp.eq.f32.partialorder %v1976, 8.507059e+37
        %v1978 = vand.u32 %v1669, 2147483648
        %v1979 = vor.u32 1.1754944e-38, %v1978
        %v1980 = vsel %vm1977, %v1979, %v1975
        %v1981 = vmul.f32 1.0, %v1980
        %v1982 = vrcp.pop %v1670
        %v1983 = vmul.f32 %v1670, %v1982
        %v1984 = vsub.f32 1.0, %v1983
        %v1985 = vmul.f32 %v1982, %v1984
        %v1986 = vadd.f32 %v1982, %v1985
        %vm1987 = vweird.f32 %v1670
        %vm1988 = vweird.f32 %v1982
        %vm1989 = vmor %vm1987, %vm1988
        %v1990 = vsel %vm1989, %v1982, %v1986
        %v1991 = vand.u32 2147483647, %v1670
        %vm1992 = vcmp.eq.f32.partialorder %v1991, 8.507059e+37
        %v1993 = vand.u32 %v1670, 2147483648
        %v1994 = vor.u32 1.1754944e-38, %v1993
        %v1995 = vsel %vm1992, %v1994, %v1990
        %v1996 = vmul.f32 1.0, %v1995
        %v1997 = vrcp.pop %v1671
        %v1998 = vmul.f32 %v1671, %v1997
        %v1999 = vsub.f32 1.0, %v1998
        %v2000 = vmul.f32 %v1997, %v1999
        %v2001 = vadd.f32 %v1997, %v2000
        %vm2002 = vweird.f32 %v1671
        %vm2003 = vweird.f32 %v1997
        %vm2004 = vmor %vm2002, %vm2003
        %v2005 = vsel %vm2004, %v1997, %v2001
        %v2006 = vand.u32 2147483647, %v1671
        %vm2007 = vcmp.eq.f32.partialorder %v2006, 8.507059e+37
        %v2008 = vand.u32 %v1671, 2147483648
        %v2009 = vor.u32 1.1754944e-38, %v2008
        %v2010 = vsel %vm2007, %v2009, %v2005
        %v2011 = vmul.f32 1.0, %v2010
        %v2012 = vrcp.pop %v1672
        %v2013 = vmul.f32 %v1672, %v2012
        %v2014 = vsub.f32 1.0, %v2013
        %v2015 = vmul.f32 %v2012, %v2014
        %v2016 = vadd.f32 %v2012, %v2015
        %vm2017 = vweird.f32 %v1672
        %vm2018 = vweird.f32 %v2012
        %vm2019 = vmor %vm2017, %vm2018
        %v2020 = vsel %vm2019, %v2012, %v2016
        %v2021 = vand.u32 2147483647, %v1672
        %vm2022 = vcmp.eq.f32.partialorder %v2021, 8.507059e+37
        %v2023 = vand.u32 %v1672, 2147483648
        %v2024 = vor.u32 1.1754944e-38, %v2023
        %v2025 = vsel %vm2022, %v2024, %v2020
        %v2026 = vmul.f32 1.0, %v2025
        %v2027 = vrcp.pop %v1673
        %v2028 = vmul.f32 %v1673, %v2027
        %v2029 = vsub.f32 1.0, %v2028
        %v2030 = vmul.f32 %v2027, %v2029
        %v2031 = vadd.f32 %v2027, %v2030
        %vm2032 = vweird.f32 %v1673
        %vm2033 = vweird.f32 %v2027
        %vm2034 = vmor %vm2032, %vm2033
        %v2035 = vsel %vm2034, %v2027, %v2031
        %v2036 = vand.u32 2147483647, %v1673
        %vm2037 = vcmp.eq.f32.partialorder %v2036, 8.507059e+37
        %v2038 = vand.u32 %v1673, 2147483648
        %v2039 = vor.u32 1.1754944e-38, %v2038
        %v2040 = vsel %vm2037, %v2039, %v2035
        %v2041 = vmul.f32 1.0, %v2040
        %v2042 = vrcp.pop %v1674
        %v2043 = vmul.f32 %v1674, %v2042
        %v2044 = vsub.f32 1.0, %v2043
        %v2045 = vmul.f32 %v2042, %v2044
        %v2046 = vadd.f32 %v2042, %v2045
        %vm2047 = vweird.f32 %v1674
        %vm2048 = vweird.f32 %v2042
        %vm2049 = vmor %vm2047, %vm2048
        %v2050 = vsel %vm2049, %v2042, %v2046
        %v2051 = vand.u32 2147483647, %v1674
        %vm2052 = vcmp.eq.f32.partialorder %v2051, 8.507059e+37
        %v2053 = vand.u32 %v1674, 2147483648
        %v2054 = vor.u32 1.1754944e-38, %v2053
        %v2055 = vsel %vm2052, %v2054, %v2050
        %v2056 = vmul.f32 1.0, %v2055
        %v2057 = vrcp.pop %v1675
        %v2058 = vmul.f32 %v1675, %v2057
        %v2059 = vsub.f32 1.0, %v2058
        %v2060 = vmul.f32 %v2057, %v2059
        %v2061 = vadd.f32 %v2057, %v2060
        %vm2062 = vweird.f32 %v1675
        %vm2063 = vweird.f32 %v2057
        %vm2064 = vmor %vm2062, %vm2063
        %v2065 = vsel %vm2064, %v2057, %v2061
        %v2066 = vand.u32 2147483647, %v1675
        %vm2067 = vcmp.eq.f32.partialorder %v2066, 8.507059e+37
        %v2068 = vand.u32 %v1675, 2147483648
        %v2069 = vor.u32 1.1754944e-38, %v2068
        %v2070 = vsel %vm2067, %v2069, %v2065
        %v2071 = vmul.f32 1.0, %v2070
        %v2072 = vrcp.pop %v1676
        %v2073 = vmul.f32 %v1676, %v2072
        %v2074 = vsub.f32 1.0, %v2073
        %v2075 = vmul.f32 %v2072, %v2074
        %v2076 = vadd.f32 %v2072, %v2075
        %vm2077 = vweird.f32 %v1676
        %vm2078 = vweird.f32 %v2072
        %vm2079 = vmor %vm2077, %vm2078
        %v2080 = vsel %vm2079, %v2072, %v2076
        %v2081 = vand.u32 2147483647, %v1676
        %vm2082 = vcmp.eq.f32.partialorder %v2081, 8.507059e+37
        %v2083 = vand.u32 %v1676, 2147483648
        %v2084 = vor.u32 1.1754944e-38, %v2083
        %v2085 = vsel %vm2082, %v2084, %v2080
        %v2086 = vmul.f32 1.0, %v2085
        %v2087 = vrcp.pop %v1677
        %v2088 = vmul.f32 %v1677, %v2087
        %v2089 = vsub.f32 1.0, %v2088
        %v2090 = vmul.f32 %v2087, %v2089
        %v2091 = vadd.f32 %v2087, %v2090
        %vm2092 = vweird.f32 %v1677
        %vm2093 = vweird.f32 %v2087
        %vm2094 = vmor %vm2092, %vm2093
        %v2095 = vsel %vm2094, %v2087, %v2091
        %v2096 = vand.u32 2147483647, %v1677
        %vm2097 = vcmp.eq.f32.partialorder %v2096, 8.507059e+37
        %v2098 = vand.u32 %v1677, 2147483648
        %v2099 = vor.u32 1.1754944e-38, %v2098
        %v2100 = vsel %vm2097, %v2099, %v2095
        %v2101 = vmul.f32 1.0, %v2100
        %v2102 = vrcp.pop %v1678
        %v2103 = vmul.f32 %v1678, %v2102
        %v2104 = vsub.f32 1.0, %v2103
        %v2105 = vmul.f32 %v2102, %v2104
        %v2106 = vadd.f32 %v2102, %v2105
        %vm2107 = vweird.f32 %v1678
        %vm2108 = vweird.f32 %v2102
        %vm2109 = vmor %vm2107, %vm2108
        %v2110 = vsel %vm2109, %v2102, %v2106
        %v2111 = vand.u32 2147483647, %v1678
        %vm2112 = vcmp.eq.f32.partialorder %v2111, 8.507059e+37
        %v2113 = vand.u32 %v1678, 2147483648
        %v2114 = vor.u32 1.1754944e-38, %v2113
        %v2115 = vsel %vm2112, %v2114, %v2110
        %v2116 = vmul.f32 1.0, %v2115
        %v2117 = vrcp.pop %v1679
        %v2118 = vmul.f32 %v1679, %v2117
        %v2119 = vsub.f32 1.0, %v2118
        %v2120 = vmul.f32 %v2117, %v2119
        %v2121 = vadd.f32 %v2117, %v2120
        %vm2122 = vweird.f32 %v1679
        %vm2123 = vweird.f32 %v2117
        %vm2124 = vmor %vm2122, %vm2123
        %v2125 = vsel %vm2124, %v2117, %v2121
        %v2126 = vand.u32 2147483647, %v1679
        %vm2127 = vcmp.eq.f32.partialorder %v2126, 8.507059e+37
        %v2128 = vand.u32 %v1679, 2147483648
        %v2129 = vor.u32 1.1754944e-38, %v2128
        %v2130 = vsel %vm2127, %v2129, %v2125
        %v2131 = vmul.f32 1.0, %v2130
        %v2132 = vrcp.pop %v1680
        %v2133 = vmul.f32 %v1680, %v2132
        %v2134 = vsub.f32 1.0, %v2133
        %v2135 = vmul.f32 %v2132, %v2134
        %v2136 = vadd.f32 %v2132, %v2135
        %vm2137 = vweird.f32 %v1680
        %vm2138 = vweird.f32 %v2132
        %vm2139 = vmor %vm2137, %vm2138
        %v2140 = vsel %vm2139, %v2132, %v2136
        %v2141 = vand.u32 2147483647, %v1680
        %vm2142 = vcmp.eq.f32.partialorder %v2141, 8.507059e+37
        %v2143 = vand.u32 %v1680, 2147483648
        %v2144 = vor.u32 1.1754944e-38, %v2143
        %v2145 = vsel %vm2142, %v2144, %v2140
        %v2146 = vmul.f32 1.0, %v2145
        %v2147 = vrcp.pop %v1681
        %v2148 = vmul.f32 %v1681, %v2147
        %v2149 = vsub.f32 1.0, %v2148
        %v2150 = vmul.f32 %v2147, %v2149
        %v2151 = vadd.f32 %v2147, %v2150
        %vm2152 = vweird.f32 %v1681
        %vm2153 = vweird.f32 %v2147
        %vm2154 = vmor %vm2152, %vm2153
        %v2155 = vsel %vm2154, %v2147, %v2151
        %v2156 = vand.u32 2147483647, %v1681
        %vm2157 = vcmp.eq.f32.partialorder %v2156, 8.507059e+37
        %v2158 = vand.u32 %v1681, 2147483648
        %v2159 = vor.u32 1.1754944e-38, %v2158
        %v2160 = vsel %vm2157, %v2159, %v2155
        %v2161 = vmul.f32 1.0, %v2160
        %v2162 = vmul.f32 %v859, %v1696
        %v2163 = vmul.f32 %v860, %v1711
        %v2164 = vmul.f32 %v861, %v1726
        %v2165 = vmul.f32 %v862, %v1741
        %v2166 = vmul.f32 %v859, %v1756
        %v2167 = vmul.f32 %v860, %v1771
        %v2168 = vmul.f32 %v861, %v1786
        %v2169 = vmul.f32 %v862, %v1801
        %v2170 = vmul.f32 %v859, %v1816
        %v2171 = vmul.f32 %v860, %v1831
        %v2172 = vmul.f32 %v861, %v1846
        %v2173 = vmul.f32 %v862, %v1861
        %v2174 = vmul.f32 %v859, %v1876
        %v2175 = vmul.f32 %v860, %v1891
        %v2176 = vmul.f32 %v861, %v1906
        %v2177 = vmul.f32 %v862, %v1921
        %v2178 = vmul.f32 %v859, %v1936
        %v2179 = vmul.f32 %v860, %v1951
        %v2180 = vmul.f32 %v861, %v1966
        %v2181 = vmul.f32 %v862, %v1981
        %v2182 = vmul.f32 %v859, %v1996
        %v2183 = vmul.f32 %v860, %v2011
        %v2184 = vmul.f32 %v861, %v2026
        %v2185 = vmul.f32 %v862, %v2041
        %v2186 = vmul.f32 %v859, %v2056
        %v2187 = vmul.f32 %v860, %v2071
        %v2188 = vmul.f32 %v861, %v2086
        %v2189 = vmul.f32 %v862, %v2101
        %v2190 = vmul.f32 %v859, %v2116
        %v2191 = vmul.f32 %v860, %v2131
        %v2192 = vmul.f32 %v861, %v2146
        %v2193 = vmul.f32 %v862, %v2161
        %v2194 = vadd.f32 %v2162, %v2163
        %v2195 = vadd.f32 %v2194, %v2164
        %v2196 = vadd.f32 %v2195, %v2165
        %v2197 = vrot.slane %v2196, 4
        %v2198 = vadd.f32 %v2196, %v2197
        %v2199 = vrot.slane %v2198, 2
        %v2200 = vadd.f32 %v2198, %v2199
        %v2201 = vrot.slane %v2200, 1
        %v2202 = vadd.f32 %v2200, %v2201
        %v2203 = vadd.f32 %v2166, %v2167
        %v2204 = vadd.f32 %v2203, %v2168
        %v2205 = vadd.f32 %v2204, %v2169
        %v2206 = vrot.slane %v2205, 4
        %v2207 = vadd.f32 %v2205, %v2206
        %v2208 = vrot.slane %v2207, 2
        %v2209 = vadd.f32 %v2207, %v2208
        %v2210 = vrot.slane %v2209, 1
        %v2211 = vadd.f32 %v2209, %v2210
        %v2212 = vadd.f32 %v2170, %v2171
        %v2213 = vadd.f32 %v2212, %v2172
        %v2214 = vadd.f32 %v2213, %v2173
        %v2215 = vrot.slane %v2214, 4
        %v2216 = vadd.f32 %v2214, %v2215
        %v2217 = vrot.slane %v2216, 2
        %v2218 = vadd.f32 %v2216, %v2217
        %v2219 = vrot.slane %v2218, 1
        %v2220 = vadd.f32 %v2218, %v2219
        %v2221 = vadd.f32 %v2174, %v2175
        %v2222 = vadd.f32 %v2221, %v2176
        %v2223 = vadd.f32 %v2222, %v2177
        %v2224 = vrot.slane %v2223, 4
        %v2225 = vadd.f32 %v2223, %v2224
        %v2226 = vrot.slane %v2225, 2
        %v2227 = vadd.f32 %v2225, %v2226
        %v2228 = vrot.slane %v2227, 1
        %v2229 = vadd.f32 %v2227, %v2228
        %v2230 = vadd.f32 %v2178, %v2179
        %v2231 = vadd.f32 %v2230, %v2180
        %v2232 = vadd.f32 %v2231, %v2181
        %v2233 = vrot.slane %v2232, 4
        %v2234 = vadd.f32 %v2232, %v2233
        %v2235 = vrot.slane %v2234, 2
        %v2236 = vadd.f32 %v2234, %v2235
        %v2237 = vrot.slane %v2236, 1
        %v2238 = vadd.f32 %v2236, %v2237
        %v2239 = vadd.f32 %v2182, %v2183
        %v2240 = vadd.f32 %v2239, %v2184
        %v2241 = vadd.f32 %v2240, %v2185
        %v2242 = vrot.slane %v2241, 4
        %v2243 = vadd.f32 %v2241, %v2242
        %v2244 = vrot.slane %v2243, 2
        %v2245 = vadd.f32 %v2243, %v2244
        %v2246 = vrot.slane %v2245, 1
        %v2247 = vadd.f32 %v2245, %v2246
        %v2248 = vadd.f32 %v2186, %v2187
        %v2249 = vadd.f32 %v2248, %v2188
        %v2250 = vadd.f32 %v2249, %v2189
        %v2251 = vrot.slane %v2250, 4
        %v2252 = vadd.f32 %v2250, %v2251
        %v2253 = vrot.slane %v2252, 2
        %v2254 = vadd.f32 %v2252, %v2253
        %v2255 = vrot.slane %v2254, 1
        %v2256 = vadd.f32 %v2254, %v2255
        %v2257 = vadd.f32 %v2190, %v2191
        %v2258 = vadd.f32 %v2257, %v2192
        %v2259 = vadd.f32 %v2258, %v2193
        %v2260 = vrot.slane %v2259, 4
        %v2261 = vadd.f32 %v2259, %v2260
        %v2262 = vrot.slane %v2261, 2
        %v2263 = vadd.f32 %v2261, %v2262
        %v2264 = vrot.slane %v2263, 1
        %v2265 = vadd.f32 %v2263, %v2264
        %v2266 = vmul.f32 %v851, %v1696
        %v2267 = vmul.f32 %v852, %v1711
        %v2268 = vmul.f32 %v853, %v1726
        %v2269 = vmul.f32 %v854, %v1741
        %v2270 = vmul.f32 %v851, %v1756
        %v2271 = vmul.f32 %v852, %v1771
        %v2272 = vmul.f32 %v853, %v1786
        %v2273 = vmul.f32 %v854, %v1801
        %v2274 = vmul.f32 %v851, %v1816
        %v2275 = vmul.f32 %v852, %v1831
        %v2276 = vmul.f32 %v853, %v1846
        %v2277 = vmul.f32 %v854, %v1861
        %v2278 = vmul.f32 %v851, %v1876
        %v2279 = vmul.f32 %v852, %v1891
        %v2280 = vmul.f32 %v853, %v1906
        %v2281 = vmul.f32 %v854, %v1921
        %v2282 = vmul.f32 %v851, %v1936
        %v2283 = vmul.f32 %v852, %v1951
        %v2284 = vmul.f32 %v853, %v1966
        %v2285 = vmul.f32 %v854, %v1981
        %v2286 = vmul.f32 %v851, %v1996
        %v2287 = vmul.f32 %v852, %v2011
        %v2288 = vmul.f32 %v853, %v2026
        %v2289 = vmul.f32 %v854, %v2041
        %v2290 = vmul.f32 %v851, %v2056
        %v2291 = vmul.f32 %v852, %v2071
        %v2292 = vmul.f32 %v853, %v2086
        %v2293 = vmul.f32 %v854, %v2101
        %v2294 = vmul.f32 %v851, %v2116
        %v2295 = vmul.f32 %v852, %v2131
        %v2296 = vmul.f32 %v853, %v2146
        %v2297 = vmul.f32 %v854, %v2161
        %v2298 = vadd.f32 %v2266, %v2267
        %v2299 = vadd.f32 %v2298, %v2268
        %v2300 = vadd.f32 %v2299, %v2269
        %v2301 = vrot.slane %v2300, 4
        %v2302 = vadd.f32 %v2300, %v2301
        %v2303 = vrot.slane %v2302, 2
        %v2304 = vadd.f32 %v2302, %v2303
        %v2305 = vrot.slane %v2304, 1
        %v2306 = vadd.f32 %v2304, %v2305
        %v2307 = vadd.f32 %v2270, %v2271
        %v2308 = vadd.f32 %v2307, %v2272
        %v2309 = vadd.f32 %v2308, %v2273
        %v2310 = vrot.slane %v2309, 4
        %v2311 = vadd.f32 %v2309, %v2310
        %v2312 = vrot.slane %v2311, 2
        %v2313 = vadd.f32 %v2311, %v2312
        %v2314 = vrot.slane %v2313, 1
        %v2315 = vadd.f32 %v2313, %v2314
        %v2316 = vadd.f32 %v2274, %v2275
        %v2317 = vadd.f32 %v2316, %v2276
        %v2318 = vadd.f32 %v2317, %v2277
        %v2319 = vrot.slane %v2318, 4
        %v2320 = vadd.f32 %v2318, %v2319
        %v2321 = vrot.slane %v2320, 2
        %v2322 = vadd.f32 %v2320, %v2321
        %v2323 = vrot.slane %v2322, 1
        %v2324 = vadd.f32 %v2322, %v2323
        %v2325 = vadd.f32 %v2278, %v2279
        %v2326 = vadd.f32 %v2325, %v2280
        %v2327 = vadd.f32 %v2326, %v2281
        %v2328 = vrot.slane %v2327, 4
        %v2329 = vadd.f32 %v2327, %v2328
        %v2330 = vrot.slane %v2329, 2
        %v2331 = vadd.f32 %v2329, %v2330
        %v2332 = vrot.slane %v2331, 1
        %v2333 = vadd.f32 %v2331, %v2332
        %v2334 = vadd.f32 %v2282, %v2283
        %v2335 = vadd.f32 %v2334, %v2284
        %v2336 = vadd.f32 %v2335, %v2285
        %v2337 = vrot.slane %v2336, 4
        %v2338 = vadd.f32 %v2336, %v2337
        %v2339 = vrot.slane %v2338, 2
        %v2340 = vadd.f32 %v2338, %v2339
        %v2341 = vrot.slane %v2340, 1
        %v2342 = vadd.f32 %v2340, %v2341
        %v2343 = vadd.f32 %v2286, %v2287
        %v2344 = vadd.f32 %v2343, %v2288
        %v2345 = vadd.f32 %v2344, %v2289
        %v2346 = vrot.slane %v2345, 4
        %v2347 = vadd.f32 %v2345, %v2346
        %v2348 = vrot.slane %v2347, 2
        %v2349 = vadd.f32 %v2347, %v2348
        %v2350 = vrot.slane %v2349, 1
        %v2351 = vadd.f32 %v2349, %v2350
        %v2352 = vadd.f32 %v2290, %v2291
        %v2353 = vadd.f32 %v2352, %v2292
        %v2354 = vadd.f32 %v2353, %v2293
        %v2355 = vrot.slane %v2354, 4
        %v2356 = vadd.f32 %v2354, %v2355
        %v2357 = vrot.slane %v2356, 2
        %v2358 = vadd.f32 %v2356, %v2357
        %v2359 = vrot.slane %v2358, 1
        %v2360 = vadd.f32 %v2358, %v2359
        %v2361 = vadd.f32 %v2294, %v2295
        %v2362 = vadd.f32 %v2361, %v2296
        %v2363 = vadd.f32 %v2362, %v2297
        %v2364 = vrot.slane %v2363, 4
        %v2365 = vadd.f32 %v2363, %v2364
        %v2366 = vrot.slane %v2365, 2
        %v2367 = vadd.f32 %v2365, %v2366
        %v2368 = vrot.slane %v2367, 1
        %v2369 = vadd.f32 %v2367, %v2368
        %v2370 = vmul.f32 %v1228, %v1289
        %v2371 = vadd.f32 %v2370, %v1258
        %v2380 = vsel %vm1243, %v2211, %v2202
        %v2381 = vsel %vm1245, %v2220, %v2380
        %v2382 = vsel %vm1247, %v2229, %v2381
        %v2383 = vsel %vm1249, %v2238, %v2382
        %v2384 = vsel %vm1251, %v2247, %v2383
        %v2385 = vsel %vm1253, %v2256, %v2384
        %v2386 = vsel %vm1255, %v2265, %v2385
        %v2388 = vadd.f32 %v2371, %v2386
        %v2397 = vsel %vm1243, %v2315, %v2306
        %v2398 = vsel %vm1245, %v2324, %v2397
        %v2399 = vsel %vm1247, %v2333, %v2398
        %v2400 = vsel %vm1249, %v2342, %v2399
        %v2401 = vsel %vm1251, %v2351, %v2400
        %v2402 = vsel %vm1253, %v2360, %v2401
        %v2403 = vsel %vm1255, %v2369, %v2402
        %v2405 = vadd.f32 %v1280, %v2403
        %v2406 = vrcp.pop %v2405
        %v2407 = vmul.f32 %v2405, %v2406
        %v2408 = vsub.f32 1.0, %v2407
        %v2409 = vmul.f32 %v2406, %v2408
        %v2410 = vadd.f32 %v2406, %v2409
        %vm2411 = vweird.f32 %v2405
        %vm2412 = vweird.f32 %v2406
        %vm2413 = vmor %vm2411, %vm2412
        %v2414 = vsel %vm2413, %v2406, %v2410
        %v2415 = vand.u32 2147483647, %v2405
        %vm2416 = vcmp.eq.f32.partialorder %v2415, 8.507059e+37
        %v2417 = vand.u32 %v2405, 2147483648
        %v2418 = vor.u32 1.1754944e-38, %v2417
        %v2419 = vsel %vm2416, %v2418, %v2414
        %v2420 = vmul.f32 %v2388, %v2419
        %v2421 = vperm.slane %v2420, 0
        %v2422 = vlaneseq
        %v2423 = vshrl.u32 %v2422, 7
        %2425 = vset.pattern.permute.xlu0 %v2423
        %2426 = vperm.xlu0 %2425, %v2421
        %v2427 = vpop.permute.xlu0 %2426
        %v2428 = vlaneseq
        %v2429 = vshrl.u32 %v2428, 7
        %v2430 = vadd.s32 %v2429, 8
        %2431 = vset.pattern.permute.xlu0 %v2430
        %2432 = vperm.xlu0 %2431, %v2421
        %v2433 = vpop.permute.xlu0 %2432
        %v2434 = vlaneseq
        %v2435 = vshrl.u32 %v2434, 7
        %v2436 = vadd.s32 %v2435, 16
        %2437 = vset.pattern.permute.xlu0 %v2436
        %2438 = vperm.xlu0 %2437, %v2421
        %v2439 = vpop.permute.xlu0 %2438
        %v2440 = vlaneseq
        %v2441 = vshrl.u32 %v2440, 7
        %v2442 = vadd.s32 %v2441, 24
        %2443 = vset.pattern.permute.xlu0 %v2442
        %2444 = vperm.xlu0 %2443, %v2421
        %v2445 = vpop.permute.xlu0 %2444
        %v2446 = vperm.slane %v2420, 1
        %v2447 = vlaneseq
        %v2448 = vshrl.u32 %v2447, 7
        %2450 = vset.pattern.permute.xlu0 %v2448
        %2451 = vperm.xlu0 %2450, %v2446
        %v2452 = vpop.permute.xlu0 %2451
        %v2453 = vlaneseq
        %v2454 = vshrl.u32 %v2453, 7
        %v2455 = vadd.s32 %v2454, 8
        %2456 = vset.pattern.permute.xlu0 %v2455
        %2457 = vperm.xlu0 %2456, %v2446
        %v2458 = vpop.permute.xlu0 %2457
        %v2459 = vlaneseq
        %v2460 = vshrl.u32 %v2459, 7
        %v2461 = vadd.s32 %v2460, 16
        %2462 = vset.pattern.permute.xlu0 %v2461
        %2463 = vperm.xlu0 %2462, %v2446
        %v2464 = vpop.permute.xlu0 %2463
        %v2465 = vlaneseq
        %v2466 = vshrl.u32 %v2465, 7
        %v2467 = vadd.s32 %v2466, 24
        %2468 = vset.pattern.permute.xlu0 %v2467
        %2469 = vperm.xlu0 %2468, %v2446
        %v2470 = vpop.permute.xlu0 %2469
        %v2471 = vperm.slane %v2420, 2
        %v2472 = vlaneseq
        %v2473 = vshrl.u32 %v2472, 7
        %2475 = vset.pattern.permute.xlu0 %v2473
        %2476 = vperm.xlu0 %2475, %v2471
        %v2477 = vpop.permute.xlu0 %2476
        %v2478 = vlaneseq
        %v2479 = vshrl.u32 %v2478, 7
        %v2480 = vadd.s32 %v2479, 8
        %2481 = vset.pattern.permute.xlu0 %v2480
        %2482 = vperm.xlu0 %2481, %v2471
        %v2483 = vpop.permute.xlu0 %2482
        %v2484 = vlaneseq
        %v2485 = vshrl.u32 %v2484, 7
        %v2486 = vadd.s32 %v2485, 16
        %2487 = vset.pattern.permute.xlu0 %v2486
        %2488 = vperm.xlu0 %2487, %v2471
        %v2489 = vpop.permute.xlu0 %2488
        %v2490 = vlaneseq
        %v2491 = vshrl.u32 %v2490, 7
        %v2492 = vadd.s32 %v2491, 24
        %2493 = vset.pattern.permute.xlu0 %v2492
        %2494 = vperm.xlu0 %2493, %v2471
        %v2495 = vpop.permute.xlu0 %2494
        %v2496 = vperm.slane %v2420, 3
        %v2497 = vlaneseq
        %v2498 = vshrl.u32 %v2497, 7
        %2500 = vset.pattern.permute.xlu0 %v2498
        %2501 = vperm.xlu0 %2500, %v2496
        %v2502 = vpop.permute.xlu0 %2501
        %v2503 = vlaneseq
        %v2504 = vshrl.u32 %v2503, 7
        %v2505 = vadd.s32 %v2504, 8
        %2506 = vset.pattern.permute.xlu0 %v2505
        %2507 = vperm.xlu0 %2506, %v2496
        %v2508 = vpop.permute.xlu0 %2507
        %v2509 = vlaneseq
        %v2510 = vshrl.u32 %v2509, 7
        %v2511 = vadd.s32 %v2510, 16
        %2512 = vset.pattern.permute.xlu0 %v2511
        %2513 = vperm.xlu0 %2512, %v2496
        %v2514 = vpop.permute.xlu0 %2513
        %v2515 = vlaneseq
        %v2516 = vshrl.u32 %v2515, 7
        %v2517 = vadd.s32 %v2516, 24
        %2518 = vset.pattern.permute.xlu0 %v2517
        %2519 = vperm.xlu0 %2518, %v2496
        %v2520 = vpop.permute.xlu0 %2519
        %v2521 = vperm.slane %v2420, 4
        %v2522 = vlaneseq
        %v2523 = vshrl.u32 %v2522, 7
        %2525 = vset.pattern.permute.xlu0 %v2523
        %2526 = vperm.xlu0 %2525, %v2521
        %v2527 = vpop.permute.xlu0 %2526
        %v2528 = vlaneseq
        %v2529 = vshrl.u32 %v2528, 7
        %v2530 = vadd.s32 %v2529, 8
        %2531 = vset.pattern.permute.xlu0 %v2530
        %2532 = vperm.xlu0 %2531, %v2521
        %v2533 = vpop.permute.xlu0 %2532
        %v2534 = vlaneseq
        %v2535 = vshrl.u32 %v2534, 7
        %v2536 = vadd.s32 %v2535, 16
        %2537 = vset.pattern.permute.xlu0 %v2536
        %2538 = vperm.xlu0 %2537, %v2521
        %v2539 = vpop.permute.xlu0 %2538
        %v2540 = vlaneseq
        %v2541 = vshrl.u32 %v2540, 7
        %v2542 = vadd.s32 %v2541, 24
        %2543 = vset.pattern.permute.xlu0 %v2542
        %2544 = vperm.xlu0 %2543, %v2521
        %v2545 = vpop.permute.xlu0 %2544
        %v2546 = vperm.slane %v2420, 5
        %v2547 = vlaneseq
        %v2548 = vshrl.u32 %v2547, 7
        %2550 = vset.pattern.permute.xlu0 %v2548
        %2551 = vperm.xlu0 %2550, %v2546
        %v2552 = vpop.permute.xlu0 %2551
        %v2553 = vlaneseq
        %v2554 = vshrl.u32 %v2553, 7
        %v2555 = vadd.s32 %v2554, 8
        %2556 = vset.pattern.permute.xlu0 %v2555
        %2557 = vperm.xlu0 %2556, %v2546
        %v2558 = vpop.permute.xlu0 %2557
        %v2559 = vlaneseq
        %v2560 = vshrl.u32 %v2559, 7
        %v2561 = vadd.s32 %v2560, 16
        %2562 = vset.pattern.permute.xlu0 %v2561
        %2563 = vperm.xlu0 %2562, %v2546
        %v2564 = vpop.permute.xlu0 %2563
        %v2565 = vlaneseq
        %v2566 = vshrl.u32 %v2565, 7
        %v2567 = vadd.s32 %v2566, 24
        %2568 = vset.pattern.permute.xlu0 %v2567
        %2569 = vperm.xlu0 %2568, %v2546
        %v2570 = vpop.permute.xlu0 %2569
        %v2571 = vperm.slane %v2420, 6
        %v2572 = vlaneseq
        %v2573 = vshrl.u32 %v2572, 7
        %2575 = vset.pattern.permute.xlu0 %v2573
        %2576 = vperm.xlu0 %2575, %v2571
        %v2577 = vpop.permute.xlu0 %2576
        %v2578 = vlaneseq
        %v2579 = vshrl.u32 %v2578, 7
        %v2580 = vadd.s32 %v2579, 8
        %2581 = vset.pattern.permute.xlu0 %v2580
        %2582 = vperm.xlu0 %2581, %v2571
        %v2583 = vpop.permute.xlu0 %2582
        %v2584 = vlaneseq
        %v2585 = vshrl.u32 %v2584, 7
        %v2586 = vadd.s32 %v2585, 16
        %2587 = vset.pattern.permute.xlu0 %v2586
        %2588 = vperm.xlu0 %2587, %v2571
        %v2589 = vpop.permute.xlu0 %2588
        %v2590 = vlaneseq
        %v2591 = vshrl.u32 %v2590, 7
        %v2592 = vadd.s32 %v2591, 24
        %2593 = vset.pattern.permute.xlu0 %v2592
        %2594 = vperm.xlu0 %2593, %v2571
        %v2595 = vpop.permute.xlu0 %2594
        %v2596 = vperm.slane %v2420, 7
        %v2597 = vlaneseq
        %v2598 = vshrl.u32 %v2597, 7
        %2600 = vset.pattern.permute.xlu0 %v2598
        %2601 = vperm.xlu0 %2600, %v2596
        %v2602 = vpop.permute.xlu0 %2601
        %v2603 = vlaneseq
        %v2604 = vshrl.u32 %v2603, 7
        %v2605 = vadd.s32 %v2604, 8
        %2606 = vset.pattern.permute.xlu0 %v2605
        %2607 = vperm.xlu0 %2606, %v2596
        %v2608 = vpop.permute.xlu0 %2607
        %v2609 = vlaneseq
        %v2610 = vshrl.u32 %v2609, 7
        %v2611 = vadd.s32 %v2610, 16
        %2612 = vset.pattern.permute.xlu0 %v2611
        %2613 = vperm.xlu0 %2612, %v2596
        %v2614 = vpop.permute.xlu0 %2613
        %v2615 = vlaneseq
        %v2616 = vshrl.u32 %v2615, 7
        %v2617 = vadd.s32 %v2616, 24
        %2618 = vset.pattern.permute.xlu0 %v2617
        %2619 = vperm.xlu0 %2618, %v2596
        %v2620 = vpop.permute.xlu0 %2619
        %v2621 = vsub.f32 %v2427, %v1281
        %v2622 = vsub.f32 %v2433, %v1282
        %v2623 = vsub.f32 %v2439, %v1283
        %v2624 = vsub.f32 %v2445, %v1284
        %v2625 = vsub.f32 %v2452, %v1281
        %v2626 = vsub.f32 %v2458, %v1282
        %v2627 = vsub.f32 %v2464, %v1283
        %v2628 = vsub.f32 %v2470, %v1284
        %v2629 = vsub.f32 %v2477, %v1281
        %v2630 = vsub.f32 %v2483, %v1282
        %v2631 = vsub.f32 %v2489, %v1283
        %v2632 = vsub.f32 %v2495, %v1284
        %v2633 = vsub.f32 %v2502, %v1281
        %v2634 = vsub.f32 %v2508, %v1282
        %v2635 = vsub.f32 %v2514, %v1283
        %v2636 = vsub.f32 %v2520, %v1284
        %v2637 = vsub.f32 %v2527, %v1281
        %v2638 = vsub.f32 %v2533, %v1282
        %v2639 = vsub.f32 %v2539, %v1283
        %v2640 = vsub.f32 %v2545, %v1284
        %v2641 = vsub.f32 %v2552, %v1281
        %v2642 = vsub.f32 %v2558, %v1282
        %v2643 = vsub.f32 %v2564, %v1283
        %v2644 = vsub.f32 %v2570, %v1284
        %v2645 = vsub.f32 %v2577, %v1281
        %v2646 = vsub.f32 %v2583, %v1282
        %v2647 = vsub.f32 %v2589, %v1283
        %v2648 = vsub.f32 %v2595, %v1284
        %v2649 = vsub.f32 %v2602, %v1281
        %v2650 = vsub.f32 %v2608, %v1282
        %v2651 = vsub.f32 %v2614, %v1283
        %v2652 = vsub.f32 %v2620, %v1284
        %v2653 = vmul.f32 %v2621, %v1285
        %v2654 = vmul.f32 %v2622, %v1286
        %v2655 = vmul.f32 %v2623, %v1287
        %v2656 = vmul.f32 %v2624, %v1288
        %v2657 = vmul.f32 %v2625, %v1285
        %v2658 = vmul.f32 %v2626, %v1286
        %v2659 = vmul.f32 %v2627, %v1287
        %v2660 = vmul.f32 %v2628, %v1288
        %v2661 = vmul.f32 %v2629, %v1285
        %v2662 = vmul.f32 %v2630, %v1286
        %v2663 = vmul.f32 %v2631, %v1287
        %v2664 = vmul.f32 %v2632, %v1288
        %v2665 = vmul.f32 %v2633, %v1285
        %v2666 = vmul.f32 %v2634, %v1286
        %v2667 = vmul.f32 %v2635, %v1287
        %v2668 = vmul.f32 %v2636, %v1288
        %v2669 = vmul.f32 %v2637, %v1285
        %v2670 = vmul.f32 %v2638, %v1286
        %v2671 = vmul.f32 %v2639, %v1287
        %v2672 = vmul.f32 %v2640, %v1288
        %v2673 = vmul.f32 %v2641, %v1285
        %v2674 = vmul.f32 %v2642, %v1286
        %v2675 = vmul.f32 %v2643, %v1287
        %v2676 = vmul.f32 %v2644, %v1288
        %v2677 = vmul.f32 %v2645, %v1285
        %v2678 = vmul.f32 %v2646, %v1286
        %v2679 = vmul.f32 %v2647, %v1287
        %v2680 = vmul.f32 %v2648, %v1288
        %v2681 = vmul.f32 %v2649, %v1285
        %v2682 = vmul.f32 %v2650, %v1286
        %v2683 = vmul.f32 %v2651, %v1287
        %v2684 = vmul.f32 %v2652, %v1288
        %v2685 = vxor.u32 %v2653, 2147483648
        %v2686 = vxor.u32 %v2654, 2147483648
        %v2687 = vxor.u32 %v2655, 2147483648
        %v2688 = vxor.u32 %v2656, 2147483648
        %v2689 = vxor.u32 %v2657, 2147483648
        %v2690 = vxor.u32 %v2658, 2147483648
        %v2691 = vxor.u32 %v2659, 2147483648
        %v2692 = vxor.u32 %v2660, 2147483648
        %v2693 = vxor.u32 %v2661, 2147483648
        %v2694 = vxor.u32 %v2662, 2147483648
        %v2695 = vxor.u32 %v2663, 2147483648
        %v2696 = vxor.u32 %v2664, 2147483648
        %v2697 = vxor.u32 %v2665, 2147483648
        %v2698 = vxor.u32 %v2666, 2147483648
        %v2699 = vxor.u32 %v2667, 2147483648
        %v2700 = vxor.u32 %v2668, 2147483648
        %v2701 = vxor.u32 %v2669, 2147483648
        %v2702 = vxor.u32 %v2670, 2147483648
        %v2703 = vxor.u32 %v2671, 2147483648
        %v2704 = vxor.u32 %v2672, 2147483648
        %v2705 = vxor.u32 %v2673, 2147483648
        %v2706 = vxor.u32 %v2674, 2147483648
        %v2707 = vxor.u32 %v2675, 2147483648
        %v2708 = vxor.u32 %v2676, 2147483648
        %v2709 = vxor.u32 %v2677, 2147483648
        %v2710 = vxor.u32 %v2678, 2147483648
        %v2711 = vxor.u32 %v2679, 2147483648
        %v2712 = vxor.u32 %v2680, 2147483648
        %v2713 = vxor.u32 %v2681, 2147483648
        %v2714 = vxor.u32 %v2682, 2147483648
        %v2715 = vxor.u32 %v2683, 2147483648
        %v2716 = vxor.u32 %v2684, 2147483648
        %v2717 = vmul.f32 %v2685, 1.442695
        %v2718 = vpow.pop %v2717
        %v2719 = vmul.f32 %v2686, 1.442695
        %v2720 = vpow.pop %v2719
        %v2721 = vmul.f32 %v2687, 1.442695
        %v2722 = vpow.pop %v2721
        %v2723 = vmul.f32 %v2688, 1.442695
        %v2724 = vpow.pop %v2723
        %v2725 = vmul.f32 %v2689, 1.442695
        %v2726 = vpow.pop %v2725
        %v2727 = vmul.f32 %v2690, 1.442695
        %v2728 = vpow.pop %v2727
        %v2729 = vmul.f32 %v2691, 1.442695
        %v2730 = vpow.pop %v2729
        %v2731 = vmul.f32 %v2692, 1.442695
        %v2732 = vpow.pop %v2731
        %v2733 = vmul.f32 %v2693, 1.442695
        %v2734 = vpow.pop %v2733
        %v2735 = vmul.f32 %v2694, 1.442695
        %v2736 = vpow.pop %v2735
        %v2737 = vmul.f32 %v2695, 1.442695
        %v2738 = vpow.pop %v2737
        %v2739 = vmul.f32 %v2696, 1.442695
        %v2740 = vpow.pop %v2739
        %v2741 = vmul.f32 %v2697, 1.442695
        %v2742 = vpow.pop %v2741
        %v2743 = vmul.f32 %v2698, 1.442695
        %v2744 = vpow.pop %v2743
        %v2745 = vmul.f32 %v2699, 1.442695
        %v2746 = vpow.pop %v2745
        %v2747 = vmul.f32 %v2700, 1.442695
        %v2748 = vpow.pop %v2747
        %v2749 = vmul.f32 %v2701, 1.442695
        %v2750 = vpow.pop %v2749
        %v2751 = vmul.f32 %v2702, 1.442695
        %v2752 = vpow.pop %v2751
        %v2753 = vmul.f32 %v2703, 1.442695
        %v2754 = vpow.pop %v2753
        %v2755 = vmul.f32 %v2704, 1.442695
        %v2756 = vpow.pop %v2755
        %v2757 = vmul.f32 %v2705, 1.442695
        %v2758 = vpow.pop %v2757
        %v2759 = vmul.f32 %v2706, 1.442695
        %v2760 = vpow.pop %v2759
        %v2761 = vmul.f32 %v2707, 1.442695
        %v2762 = vpow.pop %v2761
        %v2763 = vmul.f32 %v2708, 1.442695
        %v2764 = vpow.pop %v2763
        %v2765 = vmul.f32 %v2709, 1.442695
        %v2766 = vpow.pop %v2765
        %v2767 = vmul.f32 %v2710, 1.442695
        %v2768 = vpow.pop %v2767
        %v2769 = vmul.f32 %v2711, 1.442695
        %v2770 = vpow.pop %v2769
        %v2771 = vmul.f32 %v2712, 1.442695
        %v2772 = vpow.pop %v2771
        %v2773 = vmul.f32 %v2713, 1.442695
        %v2774 = vpow.pop %v2773
        %v2775 = vmul.f32 %v2714, 1.442695
        %v2776 = vpow.pop %v2775
        %v2777 = vmul.f32 %v2715, 1.442695
        %v2778 = vpow.pop %v2777
        %v2779 = vmul.f32 %v2716, 1.442695
        %v2780 = vpow.pop %v2779
        %v2781 = vadd.f32 %v2718, 1.0
        %v2782 = vadd.f32 %v2720, 1.0
        %v2783 = vadd.f32 %v2722, 1.0
        %v2784 = vadd.f32 %v2724, 1.0
        %v2785 = vadd.f32 %v2726, 1.0
        %v2786 = vadd.f32 %v2728, 1.0
        %v2787 = vadd.f32 %v2730, 1.0
        %v2788 = vadd.f32 %v2732, 1.0
        %v2789 = vadd.f32 %v2734, 1.0
        %v2790 = vadd.f32 %v2736, 1.0
        %v2791 = vadd.f32 %v2738, 1.0
        %v2792 = vadd.f32 %v2740, 1.0
        %v2793 = vadd.f32 %v2742, 1.0
        %v2794 = vadd.f32 %v2744, 1.0
        %v2795 = vadd.f32 %v2746, 1.0
        %v2796 = vadd.f32 %v2748, 1.0
        %v2797 = vadd.f32 %v2750, 1.0
        %v2798 = vadd.f32 %v2752, 1.0
        %v2799 = vadd.f32 %v2754, 1.0
        %v2800 = vadd.f32 %v2756, 1.0
        %v2801 = vadd.f32 %v2758, 1.0
        %v2802 = vadd.f32 %v2760, 1.0
        %v2803 = vadd.f32 %v2762, 1.0
        %v2804 = vadd.f32 %v2764, 1.0
        %v2805 = vadd.f32 %v2766, 1.0
        %v2806 = vadd.f32 %v2768, 1.0
        %v2807 = vadd.f32 %v2770, 1.0
        %v2808 = vadd.f32 %v2772, 1.0
        %v2809 = vadd.f32 %v2774, 1.0
        %v2810 = vadd.f32 %v2776, 1.0
        %v2811 = vadd.f32 %v2778, 1.0
        %v2812 = vadd.f32 %v2780, 1.0
        %v2813 = vrcp.pop %v2781
        %v2814 = vmul.f32 %v2781, %v2813
        %v2815 = vsub.f32 1.0, %v2814
        %v2816 = vmul.f32 %v2813, %v2815
        %v2817 = vadd.f32 %v2813, %v2816
        %vm2818 = vweird.f32 %v2781
        %vm2819 = vweird.f32 %v2813
        %vm2820 = vmor %vm2818, %vm2819
        %v2821 = vsel %vm2820, %v2813, %v2817
        %v2822 = vand.u32 2147483647, %v2781
        %vm2823 = vcmp.eq.f32.partialorder %v2822, 8.507059e+37
        %v2824 = vand.u32 %v2781, 2147483648
        %v2825 = vor.u32 1.1754944e-38, %v2824
        %v2826 = vsel %vm2823, %v2825, %v2821
        %v2827 = vmul.f32 1.0, %v2826
        %v2828 = vrcp.pop %v2782
        %v2829 = vmul.f32 %v2782, %v2828
        %v2830 = vsub.f32 1.0, %v2829
        %v2831 = vmul.f32 %v2828, %v2830
        %v2832 = vadd.f32 %v2828, %v2831
        %vm2833 = vweird.f32 %v2782
        %vm2834 = vweird.f32 %v2828
        %vm2835 = vmor %vm2833, %vm2834
        %v2836 = vsel %vm2835, %v2828, %v2832
        %v2837 = vand.u32 2147483647, %v2782
        %vm2838 = vcmp.eq.f32.partialorder %v2837, 8.507059e+37
        %v2839 = vand.u32 %v2782, 2147483648
        %v2840 = vor.u32 1.1754944e-38, %v2839
        %v2841 = vsel %vm2838, %v2840, %v2836
        %v2842 = vmul.f32 1.0, %v2841
        %v2843 = vrcp.pop %v2783
        %v2844 = vmul.f32 %v2783, %v2843
        %v2845 = vsub.f32 1.0, %v2844
        %v2846 = vmul.f32 %v2843, %v2845
        %v2847 = vadd.f32 %v2843, %v2846
        %vm2848 = vweird.f32 %v2783
        %vm2849 = vweird.f32 %v2843
        %vm2850 = vmor %vm2848, %vm2849
        %v2851 = vsel %vm2850, %v2843, %v2847
        %v2852 = vand.u32 2147483647, %v2783
        %vm2853 = vcmp.eq.f32.partialorder %v2852, 8.507059e+37
        %v2854 = vand.u32 %v2783, 2147483648
        %v2855 = vor.u32 1.1754944e-38, %v2854
        %v2856 = vsel %vm2853, %v2855, %v2851
        %v2857 = vmul.f32 1.0, %v2856
        %v2858 = vrcp.pop %v2784
        %v2859 = vmul.f32 %v2784, %v2858
        %v2860 = vsub.f32 1.0, %v2859
        %v2861 = vmul.f32 %v2858, %v2860
        %v2862 = vadd.f32 %v2858, %v2861
        %vm2863 = vweird.f32 %v2784
        %vm2864 = vweird.f32 %v2858
        %vm2865 = vmor %vm2863, %vm2864
        %v2866 = vsel %vm2865, %v2858, %v2862
        %v2867 = vand.u32 2147483647, %v2784
        %vm2868 = vcmp.eq.f32.partialorder %v2867, 8.507059e+37
        %v2869 = vand.u32 %v2784, 2147483648
        %v2870 = vor.u32 1.1754944e-38, %v2869
        %v2871 = vsel %vm2868, %v2870, %v2866
        %v2872 = vmul.f32 1.0, %v2871
        %v2873 = vrcp.pop %v2785
        %v2874 = vmul.f32 %v2785, %v2873
        %v2875 = vsub.f32 1.0, %v2874
        %v2876 = vmul.f32 %v2873, %v2875
        %v2877 = vadd.f32 %v2873, %v2876
        %vm2878 = vweird.f32 %v2785
        %vm2879 = vweird.f32 %v2873
        %vm2880 = vmor %vm2878, %vm2879
        %v2881 = vsel %vm2880, %v2873, %v2877
        %v2882 = vand.u32 2147483647, %v2785
        %vm2883 = vcmp.eq.f32.partialorder %v2882, 8.507059e+37
        %v2884 = vand.u32 %v2785, 2147483648
        %v2885 = vor.u32 1.1754944e-38, %v2884
        %v2886 = vsel %vm2883, %v2885, %v2881
        %v2887 = vmul.f32 1.0, %v2886
        %v2888 = vrcp.pop %v2786
        %v2889 = vmul.f32 %v2786, %v2888
        %v2890 = vsub.f32 1.0, %v2889
        %v2891 = vmul.f32 %v2888, %v2890
        %v2892 = vadd.f32 %v2888, %v2891
        %vm2893 = vweird.f32 %v2786
        %vm2894 = vweird.f32 %v2888
        %vm2895 = vmor %vm2893, %vm2894
        %v2896 = vsel %vm2895, %v2888, %v2892
        %v2897 = vand.u32 2147483647, %v2786
        %vm2898 = vcmp.eq.f32.partialorder %v2897, 8.507059e+37
        %v2899 = vand.u32 %v2786, 2147483648
        %v2900 = vor.u32 1.1754944e-38, %v2899
        %v2901 = vsel %vm2898, %v2900, %v2896
        %v2902 = vmul.f32 1.0, %v2901
        %v2903 = vrcp.pop %v2787
        %v2904 = vmul.f32 %v2787, %v2903
        %v2905 = vsub.f32 1.0, %v2904
        %v2906 = vmul.f32 %v2903, %v2905
        %v2907 = vadd.f32 %v2903, %v2906
        %vm2908 = vweird.f32 %v2787
        %vm2909 = vweird.f32 %v2903
        %vm2910 = vmor %vm2908, %vm2909
        %v2911 = vsel %vm2910, %v2903, %v2907
        %v2912 = vand.u32 2147483647, %v2787
        %vm2913 = vcmp.eq.f32.partialorder %v2912, 8.507059e+37
        %v2914 = vand.u32 %v2787, 2147483648
        %v2915 = vor.u32 1.1754944e-38, %v2914
        %v2916 = vsel %vm2913, %v2915, %v2911
        %v2917 = vmul.f32 1.0, %v2916
        %v2918 = vrcp.pop %v2788
        %v2919 = vmul.f32 %v2788, %v2918
        %v2920 = vsub.f32 1.0, %v2919
        %v2921 = vmul.f32 %v2918, %v2920
        %v2922 = vadd.f32 %v2918, %v2921
        %vm2923 = vweird.f32 %v2788
        %vm2924 = vweird.f32 %v2918
        %vm2925 = vmor %vm2923, %vm2924
        %v2926 = vsel %vm2925, %v2918, %v2922
        %v2927 = vand.u32 2147483647, %v2788
        %vm2928 = vcmp.eq.f32.partialorder %v2927, 8.507059e+37
        %v2929 = vand.u32 %v2788, 2147483648
        %v2930 = vor.u32 1.1754944e-38, %v2929
        %v2931 = vsel %vm2928, %v2930, %v2926
        %v2932 = vmul.f32 1.0, %v2931
        %v2933 = vrcp.pop %v2789
        %v2934 = vmul.f32 %v2789, %v2933
        %v2935 = vsub.f32 1.0, %v2934
        %v2936 = vmul.f32 %v2933, %v2935
        %v2937 = vadd.f32 %v2933, %v2936
        %vm2938 = vweird.f32 %v2789
        %vm2939 = vweird.f32 %v2933
        %vm2940 = vmor %vm2938, %vm2939
        %v2941 = vsel %vm2940, %v2933, %v2937
        %v2942 = vand.u32 2147483647, %v2789
        %vm2943 = vcmp.eq.f32.partialorder %v2942, 8.507059e+37
        %v2944 = vand.u32 %v2789, 2147483648
        %v2945 = vor.u32 1.1754944e-38, %v2944
        %v2946 = vsel %vm2943, %v2945, %v2941
        %v2947 = vmul.f32 1.0, %v2946
        %v2948 = vrcp.pop %v2790
        %v2949 = vmul.f32 %v2790, %v2948
        %v2950 = vsub.f32 1.0, %v2949
        %v2951 = vmul.f32 %v2948, %v2950
        %v2952 = vadd.f32 %v2948, %v2951
        %vm2953 = vweird.f32 %v2790
        %vm2954 = vweird.f32 %v2948
        %vm2955 = vmor %vm2953, %vm2954
        %v2956 = vsel %vm2955, %v2948, %v2952
        %v2957 = vand.u32 2147483647, %v2790
        %vm2958 = vcmp.eq.f32.partialorder %v2957, 8.507059e+37
        %v2959 = vand.u32 %v2790, 2147483648
        %v2960 = vor.u32 1.1754944e-38, %v2959
        %v2961 = vsel %vm2958, %v2960, %v2956
        %v2962 = vmul.f32 1.0, %v2961
        %v2963 = vrcp.pop %v2791
        %v2964 = vmul.f32 %v2791, %v2963
        %v2965 = vsub.f32 1.0, %v2964
        %v2966 = vmul.f32 %v2963, %v2965
        %v2967 = vadd.f32 %v2963, %v2966
        %vm2968 = vweird.f32 %v2791
        %vm2969 = vweird.f32 %v2963
        %vm2970 = vmor %vm2968, %vm2969
        %v2971 = vsel %vm2970, %v2963, %v2967
        %v2972 = vand.u32 2147483647, %v2791
        %vm2973 = vcmp.eq.f32.partialorder %v2972, 8.507059e+37
        %v2974 = vand.u32 %v2791, 2147483648
        %v2975 = vor.u32 1.1754944e-38, %v2974
        %v2976 = vsel %vm2973, %v2975, %v2971
        %v2977 = vmul.f32 1.0, %v2976
        %v2978 = vrcp.pop %v2792
        %v2979 = vmul.f32 %v2792, %v2978
        %v2980 = vsub.f32 1.0, %v2979
        %v2981 = vmul.f32 %v2978, %v2980
        %v2982 = vadd.f32 %v2978, %v2981
        %vm2983 = vweird.f32 %v2792
        %vm2984 = vweird.f32 %v2978
        %vm2985 = vmor %vm2983, %vm2984
        %v2986 = vsel %vm2985, %v2978, %v2982
        %v2987 = vand.u32 2147483647, %v2792
        %vm2988 = vcmp.eq.f32.partialorder %v2987, 8.507059e+37
        %v2989 = vand.u32 %v2792, 2147483648
        %v2990 = vor.u32 1.1754944e-38, %v2989
        %v2991 = vsel %vm2988, %v2990, %v2986
        %v2992 = vmul.f32 1.0, %v2991
        %v2993 = vrcp.pop %v2793
        %v2994 = vmul.f32 %v2793, %v2993
        %v2995 = vsub.f32 1.0, %v2994
        %v2996 = vmul.f32 %v2993, %v2995
        %v2997 = vadd.f32 %v2993, %v2996
        %vm2998 = vweird.f32 %v2793
        %vm2999 = vweird.f32 %v2993
        %vm3000 = vmor %vm2998, %vm2999
        %v3001 = vsel %vm3000, %v2993, %v2997
        %v3002 = vand.u32 2147483647, %v2793
        %vm3003 = vcmp.eq.f32.partialorder %v3002, 8.507059e+37
        %v3004 = vand.u32 %v2793, 2147483648
        %v3005 = vor.u32 1.1754944e-38, %v3004
        %v3006 = vsel %vm3003, %v3005, %v3001
        %v3007 = vmul.f32 1.0, %v3006
        %v3008 = vrcp.pop %v2794
        %v3009 = vmul.f32 %v2794, %v3008
        %v3010 = vsub.f32 1.0, %v3009
        %v3011 = vmul.f32 %v3008, %v3010
        %v3012 = vadd.f32 %v3008, %v3011
        %vm3013 = vweird.f32 %v2794
        %vm3014 = vweird.f32 %v3008
        %vm3015 = vmor %vm3013, %vm3014
        %v3016 = vsel %vm3015, %v3008, %v3012
        %v3017 = vand.u32 2147483647, %v2794
        %vm3018 = vcmp.eq.f32.partialorder %v3017, 8.507059e+37
        %v3019 = vand.u32 %v2794, 2147483648
        %v3020 = vor.u32 1.1754944e-38, %v3019
        %v3021 = vsel %vm3018, %v3020, %v3016
        %v3022 = vmul.f32 1.0, %v3021
        %v3023 = vrcp.pop %v2795
        %v3024 = vmul.f32 %v2795, %v3023
        %v3025 = vsub.f32 1.0, %v3024
        %v3026 = vmul.f32 %v3023, %v3025
        %v3027 = vadd.f32 %v3023, %v3026
        %vm3028 = vweird.f32 %v2795
        %vm3029 = vweird.f32 %v3023
        %vm3030 = vmor %vm3028, %vm3029
        %v3031 = vsel %vm3030, %v3023, %v3027
        %v3032 = vand.u32 2147483647, %v2795
        %vm3033 = vcmp.eq.f32.partialorder %v3032, 8.507059e+37
        %v3034 = vand.u32 %v2795, 2147483648
        %v3035 = vor.u32 1.1754944e-38, %v3034
        %v3036 = vsel %vm3033, %v3035, %v3031
        %v3037 = vmul.f32 1.0, %v3036
        %v3038 = vrcp.pop %v2796
        %v3039 = vmul.f32 %v2796, %v3038
        %v3040 = vsub.f32 1.0, %v3039
        %v3041 = vmul.f32 %v3038, %v3040
        %v3042 = vadd.f32 %v3038, %v3041
        %vm3043 = vweird.f32 %v2796
        %vm3044 = vweird.f32 %v3038
        %vm3045 = vmor %vm3043, %vm3044
        %v3046 = vsel %vm3045, %v3038, %v3042
        %v3047 = vand.u32 2147483647, %v2796
        %vm3048 = vcmp.eq.f32.partialorder %v3047, 8.507059e+37
        %v3049 = vand.u32 %v2796, 2147483648
        %v3050 = vor.u32 1.1754944e-38, %v3049
        %v3051 = vsel %vm3048, %v3050, %v3046
        %v3052 = vmul.f32 1.0, %v3051
        %v3053 = vrcp.pop %v2797
        %v3054 = vmul.f32 %v2797, %v3053
        %v3055 = vsub.f32 1.0, %v3054
        %v3056 = vmul.f32 %v3053, %v3055
        %v3057 = vadd.f32 %v3053, %v3056
        %vm3058 = vweird.f32 %v2797
        %vm3059 = vweird.f32 %v3053
        %vm3060 = vmor %vm3058, %vm3059
        %v3061 = vsel %vm3060, %v3053, %v3057
        %v3062 = vand.u32 2147483647, %v2797
        %vm3063 = vcmp.eq.f32.partialorder %v3062, 8.507059e+37
        %v3064 = vand.u32 %v2797, 2147483648
        %v3065 = vor.u32 1.1754944e-38, %v3064
        %v3066 = vsel %vm3063, %v3065, %v3061
        %v3067 = vmul.f32 1.0, %v3066
        %v3068 = vrcp.pop %v2798
        %v3069 = vmul.f32 %v2798, %v3068
        %v3070 = vsub.f32 1.0, %v3069
        %v3071 = vmul.f32 %v3068, %v3070
        %v3072 = vadd.f32 %v3068, %v3071
        %vm3073 = vweird.f32 %v2798
        %vm3074 = vweird.f32 %v3068
        %vm3075 = vmor %vm3073, %vm3074
        %v3076 = vsel %vm3075, %v3068, %v3072
        %v3077 = vand.u32 2147483647, %v2798
        %vm3078 = vcmp.eq.f32.partialorder %v3077, 8.507059e+37
        %v3079 = vand.u32 %v2798, 2147483648
        %v3080 = vor.u32 1.1754944e-38, %v3079
        %v3081 = vsel %vm3078, %v3080, %v3076
        %v3082 = vmul.f32 1.0, %v3081
        %v3083 = vrcp.pop %v2799
        %v3084 = vmul.f32 %v2799, %v3083
        %v3085 = vsub.f32 1.0, %v3084
        %v3086 = vmul.f32 %v3083, %v3085
        %v3087 = vadd.f32 %v3083, %v3086
        %vm3088 = vweird.f32 %v2799
        %vm3089 = vweird.f32 %v3083
        %vm3090 = vmor %vm3088, %vm3089
        %v3091 = vsel %vm3090, %v3083, %v3087
        %v3092 = vand.u32 2147483647, %v2799
        %vm3093 = vcmp.eq.f32.partialorder %v3092, 8.507059e+37
        %v3094 = vand.u32 %v2799, 2147483648
        %v3095 = vor.u32 1.1754944e-38, %v3094
        %v3096 = vsel %vm3093, %v3095, %v3091
        %v3097 = vmul.f32 1.0, %v3096
        %v3098 = vrcp.pop %v2800
        %v3099 = vmul.f32 %v2800, %v3098
        %v3100 = vsub.f32 1.0, %v3099
        %v3101 = vmul.f32 %v3098, %v3100
        %v3102 = vadd.f32 %v3098, %v3101
        %vm3103 = vweird.f32 %v2800
        %vm3104 = vweird.f32 %v3098
        %vm3105 = vmor %vm3103, %vm3104
        %v3106 = vsel %vm3105, %v3098, %v3102
        %v3107 = vand.u32 2147483647, %v2800
        %vm3108 = vcmp.eq.f32.partialorder %v3107, 8.507059e+37
        %v3109 = vand.u32 %v2800, 2147483648
        %v3110 = vor.u32 1.1754944e-38, %v3109
        %v3111 = vsel %vm3108, %v3110, %v3106
        %v3112 = vmul.f32 1.0, %v3111
        %v3113 = vrcp.pop %v2801
        %v3114 = vmul.f32 %v2801, %v3113
        %v3115 = vsub.f32 1.0, %v3114
        %v3116 = vmul.f32 %v3113, %v3115
        %v3117 = vadd.f32 %v3113, %v3116
        %vm3118 = vweird.f32 %v2801
        %vm3119 = vweird.f32 %v3113
        %vm3120 = vmor %vm3118, %vm3119
        %v3121 = vsel %vm3120, %v3113, %v3117
        %v3122 = vand.u32 2147483647, %v2801
        %vm3123 = vcmp.eq.f32.partialorder %v3122, 8.507059e+37
        %v3124 = vand.u32 %v2801, 2147483648
        %v3125 = vor.u32 1.1754944e-38, %v3124
        %v3126 = vsel %vm3123, %v3125, %v3121
        %v3127 = vmul.f32 1.0, %v3126
        %v3128 = vrcp.pop %v2802
        %v3129 = vmul.f32 %v2802, %v3128
        %v3130 = vsub.f32 1.0, %v3129
        %v3131 = vmul.f32 %v3128, %v3130
        %v3132 = vadd.f32 %v3128, %v3131
        %vm3133 = vweird.f32 %v2802
        %vm3134 = vweird.f32 %v3128
        %vm3135 = vmor %vm3133, %vm3134
        %v3136 = vsel %vm3135, %v3128, %v3132
        %v3137 = vand.u32 2147483647, %v2802
        %vm3138 = vcmp.eq.f32.partialorder %v3137, 8.507059e+37
        %v3139 = vand.u32 %v2802, 2147483648
        %v3140 = vor.u32 1.1754944e-38, %v3139
        %v3141 = vsel %vm3138, %v3140, %v3136
        %v3142 = vmul.f32 1.0, %v3141
        %v3143 = vrcp.pop %v2803
        %v3144 = vmul.f32 %v2803, %v3143
        %v3145 = vsub.f32 1.0, %v3144
        %v3146 = vmul.f32 %v3143, %v3145
        %v3147 = vadd.f32 %v3143, %v3146
        %vm3148 = vweird.f32 %v2803
        %vm3149 = vweird.f32 %v3143
        %vm3150 = vmor %vm3148, %vm3149
        %v3151 = vsel %vm3150, %v3143, %v3147
        %v3152 = vand.u32 2147483647, %v2803
        %vm3153 = vcmp.eq.f32.partialorder %v3152, 8.507059e+37
        %v3154 = vand.u32 %v2803, 2147483648
        %v3155 = vor.u32 1.1754944e-38, %v3154
        %v3156 = vsel %vm3153, %v3155, %v3151
        %v3157 = vmul.f32 1.0, %v3156
        %v3158 = vrcp.pop %v2804
        %v3159 = vmul.f32 %v2804, %v3158
        %v3160 = vsub.f32 1.0, %v3159
        %v3161 = vmul.f32 %v3158, %v3160
        %v3162 = vadd.f32 %v3158, %v3161
        %vm3163 = vweird.f32 %v2804
        %vm3164 = vweird.f32 %v3158
        %vm3165 = vmor %vm3163, %vm3164
        %v3166 = vsel %vm3165, %v3158, %v3162
        %v3167 = vand.u32 2147483647, %v2804
        %vm3168 = vcmp.eq.f32.partialorder %v3167, 8.507059e+37
        %v3169 = vand.u32 %v2804, 2147483648
        %v3170 = vor.u32 1.1754944e-38, %v3169
        %v3171 = vsel %vm3168, %v3170, %v3166
        %v3172 = vmul.f32 1.0, %v3171
        %v3173 = vrcp.pop %v2805
        %v3174 = vmul.f32 %v2805, %v3173
        %v3175 = vsub.f32 1.0, %v3174
        %v3176 = vmul.f32 %v3173, %v3175
        %v3177 = vadd.f32 %v3173, %v3176
        %vm3178 = vweird.f32 %v2805
        %vm3179 = vweird.f32 %v3173
        %vm3180 = vmor %vm3178, %vm3179
        %v3181 = vsel %vm3180, %v3173, %v3177
        %v3182 = vand.u32 2147483647, %v2805
        %vm3183 = vcmp.eq.f32.partialorder %v3182, 8.507059e+37
        %v3184 = vand.u32 %v2805, 2147483648
        %v3185 = vor.u32 1.1754944e-38, %v3184
        %v3186 = vsel %vm3183, %v3185, %v3181
        %v3187 = vmul.f32 1.0, %v3186
        %v3188 = vrcp.pop %v2806
        %v3189 = vmul.f32 %v2806, %v3188
        %v3190 = vsub.f32 1.0, %v3189
        %v3191 = vmul.f32 %v3188, %v3190
        %v3192 = vadd.f32 %v3188, %v3191
        %vm3193 = vweird.f32 %v2806
        %vm3194 = vweird.f32 %v3188
        %vm3195 = vmor %vm3193, %vm3194
        %v3196 = vsel %vm3195, %v3188, %v3192
        %v3197 = vand.u32 2147483647, %v2806
        %vm3198 = vcmp.eq.f32.partialorder %v3197, 8.507059e+37
        %v3199 = vand.u32 %v2806, 2147483648
        %v3200 = vor.u32 1.1754944e-38, %v3199
        %v3201 = vsel %vm3198, %v3200, %v3196
        %v3202 = vmul.f32 1.0, %v3201
        %v3203 = vrcp.pop %v2807
        %v3204 = vmul.f32 %v2807, %v3203
        %v3205 = vsub.f32 1.0, %v3204
        %v3206 = vmul.f32 %v3203, %v3205
        %v3207 = vadd.f32 %v3203, %v3206
        %vm3208 = vweird.f32 %v2807
        %vm3209 = vweird.f32 %v3203
        %vm3210 = vmor %vm3208, %vm3209
        %v3211 = vsel %vm3210, %v3203, %v3207
        %v3212 = vand.u32 2147483647, %v2807
        %vm3213 = vcmp.eq.f32.partialorder %v3212, 8.507059e+37
        %v3214 = vand.u32 %v2807, 2147483648
        %v3215 = vor.u32 1.1754944e-38, %v3214
        %v3216 = vsel %vm3213, %v3215, %v3211
        %v3217 = vmul.f32 1.0, %v3216
        %v3218 = vrcp.pop %v2808
        %v3219 = vmul.f32 %v2808, %v3218
        %v3220 = vsub.f32 1.0, %v3219
        %v3221 = vmul.f32 %v3218, %v3220
        %v3222 = vadd.f32 %v3218, %v3221
        %vm3223 = vweird.f32 %v2808
        %vm3224 = vweird.f32 %v3218
        %vm3225 = vmor %vm3223, %vm3224
        %v3226 = vsel %vm3225, %v3218, %v3222
        %v3227 = vand.u32 2147483647, %v2808
        %vm3228 = vcmp.eq.f32.partialorder %v3227, 8.507059e+37
        %v3229 = vand.u32 %v2808, 2147483648
        %v3230 = vor.u32 1.1754944e-38, %v3229
        %v3231 = vsel %vm3228, %v3230, %v3226
        %v3232 = vmul.f32 1.0, %v3231
        %v3233 = vrcp.pop %v2809
        %v3234 = vmul.f32 %v2809, %v3233
        %v3235 = vsub.f32 1.0, %v3234
        %v3236 = vmul.f32 %v3233, %v3235
        %v3237 = vadd.f32 %v3233, %v3236
        %vm3238 = vweird.f32 %v2809
        %vm3239 = vweird.f32 %v3233
        %vm3240 = vmor %vm3238, %vm3239
        %v3241 = vsel %vm3240, %v3233, %v3237
        %v3242 = vand.u32 2147483647, %v2809
        %vm3243 = vcmp.eq.f32.partialorder %v3242, 8.507059e+37
        %v3244 = vand.u32 %v2809, 2147483648
        %v3245 = vor.u32 1.1754944e-38, %v3244
        %v3246 = vsel %vm3243, %v3245, %v3241
        %v3247 = vmul.f32 1.0, %v3246
        %v3248 = vrcp.pop %v2810
        %v3249 = vmul.f32 %v2810, %v3248
        %v3250 = vsub.f32 1.0, %v3249
        %v3251 = vmul.f32 %v3248, %v3250
        %v3252 = vadd.f32 %v3248, %v3251
        %vm3253 = vweird.f32 %v2810
        %vm3254 = vweird.f32 %v3248
        %vm3255 = vmor %vm3253, %vm3254
        %v3256 = vsel %vm3255, %v3248, %v3252
        %v3257 = vand.u32 2147483647, %v2810
        %vm3258 = vcmp.eq.f32.partialorder %v3257, 8.507059e+37
        %v3259 = vand.u32 %v2810, 2147483648
        %v3260 = vor.u32 1.1754944e-38, %v3259
        %v3261 = vsel %vm3258, %v3260, %v3256
        %v3262 = vmul.f32 1.0, %v3261
        %v3263 = vrcp.pop %v2811
        %v3264 = vmul.f32 %v2811, %v3263
        %v3265 = vsub.f32 1.0, %v3264
        %v3266 = vmul.f32 %v3263, %v3265
        %v3267 = vadd.f32 %v3263, %v3266
        %vm3268 = vweird.f32 %v2811
        %vm3269 = vweird.f32 %v3263
        %vm3270 = vmor %vm3268, %vm3269
        %v3271 = vsel %vm3270, %v3263, %v3267
        %v3272 = vand.u32 2147483647, %v2811
        %vm3273 = vcmp.eq.f32.partialorder %v3272, 8.507059e+37
        %v3274 = vand.u32 %v2811, 2147483648
        %v3275 = vor.u32 1.1754944e-38, %v3274
        %v3276 = vsel %vm3273, %v3275, %v3271
        %v3277 = vmul.f32 1.0, %v3276
        %v3278 = vrcp.pop %v2812
        %v3279 = vmul.f32 %v2812, %v3278
        %v3280 = vsub.f32 1.0, %v3279
        %v3281 = vmul.f32 %v3278, %v3280
        %v3282 = vadd.f32 %v3278, %v3281
        %vm3283 = vweird.f32 %v2812
        %vm3284 = vweird.f32 %v3278
        %vm3285 = vmor %vm3283, %vm3284
        %v3286 = vsel %vm3285, %v3278, %v3282
        %v3287 = vand.u32 2147483647, %v2812
        %vm3288 = vcmp.eq.f32.partialorder %v3287, 8.507059e+37
        %v3289 = vand.u32 %v2812, 2147483648
        %v3290 = vor.u32 1.1754944e-38, %v3289
        %v3291 = vsel %vm3288, %v3290, %v3286
        %v3292 = vmul.f32 1.0, %v3291
        %v3293 = vmul.f32 %v859, %v2827
        %v3294 = vmul.f32 %v860, %v2842
        %v3295 = vmul.f32 %v861, %v2857
        %v3296 = vmul.f32 %v862, %v2872
        %v3297 = vmul.f32 %v859, %v2887
        %v3298 = vmul.f32 %v860, %v2902
        %v3299 = vmul.f32 %v861, %v2917
        %v3300 = vmul.f32 %v862, %v2932
        %v3301 = vmul.f32 %v859, %v2947
        %v3302 = vmul.f32 %v860, %v2962
        %v3303 = vmul.f32 %v861, %v2977
        %v3304 = vmul.f32 %v862, %v2992
        %v3305 = vmul.f32 %v859, %v3007
        %v3306 = vmul.f32 %v860, %v3022
        %v3307 = vmul.f32 %v861, %v3037
        %v3308 = vmul.f32 %v862, %v3052
        %v3309 = vmul.f32 %v859, %v3067
        %v3310 = vmul.f32 %v860, %v3082
        %v3311 = vmul.f32 %v861, %v3097
        %v3312 = vmul.f32 %v862, %v3112
        %v3313 = vmul.f32 %v859, %v3127
        %v3314 = vmul.f32 %v860, %v3142
        %v3315 = vmul.f32 %v861, %v3157
        %v3316 = vmul.f32 %v862, %v3172
        %v3317 = vmul.f32 %v859, %v3187
        %v3318 = vmul.f32 %v860, %v3202
        %v3319 = vmul.f32 %v861, %v3217
        %v3320 = vmul.f32 %v862, %v3232
        %v3321 = vmul.f32 %v859, %v3247
        %v3322 = vmul.f32 %v860, %v3262
        %v3323 = vmul.f32 %v861, %v3277
        %v3324 = vmul.f32 %v862, %v3292
        %v3325 = vadd.f32 %v3293, %v3294
        %v3326 = vadd.f32 %v3325, %v3295
        %v3327 = vadd.f32 %v3326, %v3296
        %v3328 = vrot.slane %v3327, 4
        %v3329 = vadd.f32 %v3327, %v3328
        %v3330 = vrot.slane %v3329, 2
        %v3331 = vadd.f32 %v3329, %v3330
        %v3332 = vrot.slane %v3331, 1
        %v3333 = vadd.f32 %v3331, %v3332
        %v3334 = vadd.f32 %v3297, %v3298
        %v3335 = vadd.f32 %v3334, %v3299
        %v3336 = vadd.f32 %v3335, %v3300
        %v3337 = vrot.slane %v3336, 4
        %v3338 = vadd.f32 %v3336, %v3337
        %v3339 = vrot.slane %v3338, 2
        %v3340 = vadd.f32 %v3338, %v3339
        %v3341 = vrot.slane %v3340, 1
        %v3342 = vadd.f32 %v3340, %v3341
        %v3343 = vadd.f32 %v3301, %v3302
        %v3344 = vadd.f32 %v3343, %v3303
        %v3345 = vadd.f32 %v3344, %v3304
        %v3346 = vrot.slane %v3345, 4
        %v3347 = vadd.f32 %v3345, %v3346
        %v3348 = vrot.slane %v3347, 2
        %v3349 = vadd.f32 %v3347, %v3348
        %v3350 = vrot.slane %v3349, 1
        %v3351 = vadd.f32 %v3349, %v3350
        %v3352 = vadd.f32 %v3305, %v3306
        %v3353 = vadd.f32 %v3352, %v3307
        %v3354 = vadd.f32 %v3353, %v3308
        %v3355 = vrot.slane %v3354, 4
        %v3356 = vadd.f32 %v3354, %v3355
        %v3357 = vrot.slane %v3356, 2
        %v3358 = vadd.f32 %v3356, %v3357
        %v3359 = vrot.slane %v3358, 1
        %v3360 = vadd.f32 %v3358, %v3359
        %v3361 = vadd.f32 %v3309, %v3310
        %v3362 = vadd.f32 %v3361, %v3311
        %v3363 = vadd.f32 %v3362, %v3312
        %v3364 = vrot.slane %v3363, 4
        %v3365 = vadd.f32 %v3363, %v3364
        %v3366 = vrot.slane %v3365, 2
        %v3367 = vadd.f32 %v3365, %v3366
        %v3368 = vrot.slane %v3367, 1
        %v3369 = vadd.f32 %v3367, %v3368
        %v3370 = vadd.f32 %v3313, %v3314
        %v3371 = vadd.f32 %v3370, %v3315
        %v3372 = vadd.f32 %v3371, %v3316
        %v3373 = vrot.slane %v3372, 4
        %v3374 = vadd.f32 %v3372, %v3373
        %v3375 = vrot.slane %v3374, 2
        %v3376 = vadd.f32 %v3374, %v3375
        %v3377 = vrot.slane %v3376, 1
        %v3378 = vadd.f32 %v3376, %v3377
        %v3379 = vadd.f32 %v3317, %v3318
        %v3380 = vadd.f32 %v3379, %v3319
        %v3381 = vadd.f32 %v3380, %v3320
        %v3382 = vrot.slane %v3381, 4
        %v3383 = vadd.f32 %v3381, %v3382
        %v3384 = vrot.slane %v3383, 2
        %v3385 = vadd.f32 %v3383, %v3384
        %v3386 = vrot.slane %v3385, 1
        %v3387 = vadd.f32 %v3385, %v3386
        %v3388 = vadd.f32 %v3321, %v3322
        %v3389 = vadd.f32 %v3388, %v3323
        %v3390 = vadd.f32 %v3389, %v3324
        %v3391 = vrot.slane %v3390, 4
        %v3392 = vadd.f32 %v3390, %v3391
        %v3393 = vrot.slane %v3392, 2
        %v3394 = vadd.f32 %v3392, %v3393
        %v3395 = vrot.slane %v3394, 1
        %v3396 = vadd.f32 %v3394, %v3395
        %v3397 = vmul.f32 %v851, %v2827
        %v3398 = vmul.f32 %v852, %v2842
        %v3399 = vmul.f32 %v853, %v2857
        %v3400 = vmul.f32 %v854, %v2872
        %v3401 = vmul.f32 %v851, %v2887
        %v3402 = vmul.f32 %v852, %v2902
        %v3403 = vmul.f32 %v853, %v2917
        %v3404 = vmul.f32 %v854, %v2932
        %v3405 = vmul.f32 %v851, %v2947
        %v3406 = vmul.f32 %v852, %v2962
        %v3407 = vmul.f32 %v853, %v2977
        %v3408 = vmul.f32 %v854, %v2992
        %v3409 = vmul.f32 %v851, %v3007
        %v3410 = vmul.f32 %v852, %v3022
        %v3411 = vmul.f32 %v853, %v3037
        %v3412 = vmul.f32 %v854, %v3052
        %v3413 = vmul.f32 %v851, %v3067
        %v3414 = vmul.f32 %v852, %v3082
        %v3415 = vmul.f32 %v853, %v3097
        %v3416 = vmul.f32 %v854, %v3112
        %v3417 = vmul.f32 %v851, %v3127
        %v3418 = vmul.f32 %v852, %v3142
        %v3419 = vmul.f32 %v853, %v3157
        %v3420 = vmul.f32 %v854, %v3172
        %v3421 = vmul.f32 %v851, %v3187
        %v3422 = vmul.f32 %v852, %v3202
        %v3423 = vmul.f32 %v853, %v3217
        %v3424 = vmul.f32 %v854, %v3232
        %v3425 = vmul.f32 %v851, %v3247
        %v3426 = vmul.f32 %v852, %v3262
        %v3427 = vmul.f32 %v853, %v3277
        %v3428 = vmul.f32 %v854, %v3292
        %v3429 = vadd.f32 %v3397, %v3398
        %v3430 = vadd.f32 %v3429, %v3399
        %v3431 = vadd.f32 %v3430, %v3400
        %v3432 = vrot.slane %v3431, 4
        %v3433 = vadd.f32 %v3431, %v3432
        %v3434 = vrot.slane %v3433, 2
        %v3435 = vadd.f32 %v3433, %v3434
        %v3436 = vrot.slane %v3435, 1
        %v3437 = vadd.f32 %v3435, %v3436
        %v3438 = vadd.f32 %v3401, %v3402
        %v3439 = vadd.f32 %v3438, %v3403
        %v3440 = vadd.f32 %v3439, %v3404
        %v3441 = vrot.slane %v3440, 4
        %v3442 = vadd.f32 %v3440, %v3441
        %v3443 = vrot.slane %v3442, 2
        %v3444 = vadd.f32 %v3442, %v3443
        %v3445 = vrot.slane %v3444, 1
        %v3446 = vadd.f32 %v3444, %v3445
        %v3447 = vadd.f32 %v3405, %v3406
        %v3448 = vadd.f32 %v3447, %v3407
        %v3449 = vadd.f32 %v3448, %v3408
        %v3450 = vrot.slane %v3449, 4
        %v3451 = vadd.f32 %v3449, %v3450
        %v3452 = vrot.slane %v3451, 2
        %v3453 = vadd.f32 %v3451, %v3452
        %v3454 = vrot.slane %v3453, 1
        %v3455 = vadd.f32 %v3453, %v3454
        %v3456 = vadd.f32 %v3409, %v3410
        %v3457 = vadd.f32 %v3456, %v3411
        %v3458 = vadd.f32 %v3457, %v3412
        %v3459 = vrot.slane %v3458, 4
        %v3460 = vadd.f32 %v3458, %v3459
        %v3461 = vrot.slane %v3460, 2
        %v3462 = vadd.f32 %v3460, %v3461
        %v3463 = vrot.slane %v3462, 1
        %v3464 = vadd.f32 %v3462, %v3463
        %v3465 = vadd.f32 %v3413, %v3414
        %v3466 = vadd.f32 %v3465, %v3415
        %v3467 = vadd.f32 %v3466, %v3416
        %v3468 = vrot.slane %v3467, 4
        %v3469 = vadd.f32 %v3467, %v3468
        %v3470 = vrot.slane %v3469, 2
        %v3471 = vadd.f32 %v3469, %v3470
        %v3472 = vrot.slane %v3471, 1
        %v3473 = vadd.f32 %v3471, %v3472
        %v3474 = vadd.f32 %v3417, %v3418
        %v3475 = vadd.f32 %v3474, %v3419
        %v3476 = vadd.f32 %v3475, %v3420
        %v3477 = vrot.slane %v3476, 4
        %v3478 = vadd.f32 %v3476, %v3477
        %v3479 = vrot.slane %v3478, 2
        %v3480 = vadd.f32 %v3478, %v3479
        %v3481 = vrot.slane %v3480, 1
        %v3482 = vadd.f32 %v3480, %v3481
        %v3483 = vadd.f32 %v3421, %v3422
        %v3484 = vadd.f32 %v3483, %v3423
        %v3485 = vadd.f32 %v3484, %v3424
        %v3486 = vrot.slane %v3485, 4
        %v3487 = vadd.f32 %v3485, %v3486
        %v3488 = vrot.slane %v3487, 2
        %v3489 = vadd.f32 %v3487, %v3488
        %v3490 = vrot.slane %v3489, 1
        %v3491 = vadd.f32 %v3489, %v3490
        %v3492 = vadd.f32 %v3425, %v3426
        %v3493 = vadd.f32 %v3492, %v3427
        %v3494 = vadd.f32 %v3493, %v3428
        %v3495 = vrot.slane %v3494, 4
        %v3496 = vadd.f32 %v3494, %v3495
        %v3497 = vrot.slane %v3496, 2
        %v3498 = vadd.f32 %v3496, %v3497
        %v3499 = vrot.slane %v3498, 1
        %v3500 = vadd.f32 %v3498, %v3499
        %v3501 = vmul.f32 %v1228, %v2420
        %v3502 = vadd.f32 %v3501, %v1258
        %v3511 = vsel %vm1243, %v3342, %v3333
        %v3512 = vsel %vm1245, %v3351, %v3511
        %v3513 = vsel %vm1247, %v3360, %v3512
        %v3514 = vsel %vm1249, %v3369, %v3513
        %v3515 = vsel %vm1251, %v3378, %v3514
        %v3516 = vsel %vm1253, %v3387, %v3515
        %v3517 = vsel %vm1255, %v3396, %v3516
        %v3519 = vadd.f32 %v3502, %v3517
        %v3528 = vsel %vm1243, %v3446, %v3437
        %v3529 = vsel %vm1245, %v3455, %v3528
        %v3530 = vsel %vm1247, %v3464, %v3529
        %v3531 = vsel %vm1249, %v3473, %v3530
        %v3532 = vsel %vm1251, %v3482, %v3531
        %v3533 = vsel %vm1253, %v3491, %v3532
        %v3534 = vsel %vm1255, %v3500, %v3533
        %v3536 = vadd.f32 %v1280, %v3534
        %v3537 = vrcp.pop %v3536
        %v3538 = vmul.f32 %v3536, %v3537
        %v3539 = vsub.f32 1.0, %v3538
        %v3540 = vmul.f32 %v3537, %v3539
        %v3541 = vadd.f32 %v3537, %v3540
        %vm3542 = vweird.f32 %v3536
        %vm3543 = vweird.f32 %v3537
        %vm3544 = vmor %vm3542, %vm3543
        %v3545 = vsel %vm3544, %v3537, %v3541
        %v3546 = vand.u32 2147483647, %v3536
        %vm3547 = vcmp.eq.f32.partialorder %v3546, 8.507059e+37
        %v3548 = vand.u32 %v3536, 2147483648
        %v3549 = vor.u32 1.1754944e-38, %v3548
        %v3550 = vsel %vm3547, %v3549, %v3545
        %v3551 = vmul.f32 %v3519, %v3550
        %v3552 = vperm.slane %v3551, 0
        %v3553 = vlaneseq
        %v3554 = vshrl.u32 %v3553, 7
        %3556 = vset.pattern.permute.xlu0 %v3554
        %3557 = vperm.xlu0 %3556, %v3552
        %v3558 = vpop.permute.xlu0 %3557
        %v3559 = vlaneseq
        %v3560 = vshrl.u32 %v3559, 7
        %v3561 = vadd.s32 %v3560, 8
        %3562 = vset.pattern.permute.xlu0 %v3561
        %3563 = vperm.xlu0 %3562, %v3552
        %v3564 = vpop.permute.xlu0 %3563
        %v3565 = vlaneseq
        %v3566 = vshrl.u32 %v3565, 7
        %v3567 = vadd.s32 %v3566, 16
        %3568 = vset.pattern.permute.xlu0 %v3567
        %3569 = vperm.xlu0 %3568, %v3552
        %v3570 = vpop.permute.xlu0 %3569
        %v3571 = vlaneseq
        %v3572 = vshrl.u32 %v3571, 7
        %v3573 = vadd.s32 %v3572, 24
        %3574 = vset.pattern.permute.xlu0 %v3573
        %3575 = vperm.xlu0 %3574, %v3552
        %v3576 = vpop.permute.xlu0 %3575
        %v3577 = vperm.slane %v3551, 1
        %v3578 = vlaneseq
        %v3579 = vshrl.u32 %v3578, 7
        %3581 = vset.pattern.permute.xlu0 %v3579
        %3582 = vperm.xlu0 %3581, %v3577
        %v3583 = vpop.permute.xlu0 %3582
        %v3584 = vlaneseq
        %v3585 = vshrl.u32 %v3584, 7
        %v3586 = vadd.s32 %v3585, 8
        %3587 = vset.pattern.permute.xlu0 %v3586
        %3588 = vperm.xlu0 %3587, %v3577
        %v3589 = vpop.permute.xlu0 %3588
        %v3590 = vlaneseq
        %v3591 = vshrl.u32 %v3590, 7
        %v3592 = vadd.s32 %v3591, 16
        %3593 = vset.pattern.permute.xlu0 %v3592
        %3594 = vperm.xlu0 %3593, %v3577
        %v3595 = vpop.permute.xlu0 %3594
        %v3596 = vlaneseq
        %v3597 = vshrl.u32 %v3596, 7
        %v3598 = vadd.s32 %v3597, 24
        %3599 = vset.pattern.permute.xlu0 %v3598
        %3600 = vperm.xlu0 %3599, %v3577
        %v3601 = vpop.permute.xlu0 %3600
        %v3602 = vperm.slane %v3551, 2
        %v3603 = vlaneseq
        %v3604 = vshrl.u32 %v3603, 7
        %3606 = vset.pattern.permute.xlu0 %v3604
        %3607 = vperm.xlu0 %3606, %v3602
        %v3608 = vpop.permute.xlu0 %3607
        %v3609 = vlaneseq
        %v3610 = vshrl.u32 %v3609, 7
        %v3611 = vadd.s32 %v3610, 8
        %3612 = vset.pattern.permute.xlu0 %v3611
        %3613 = vperm.xlu0 %3612, %v3602
        %v3614 = vpop.permute.xlu0 %3613
        %v3615 = vlaneseq
        %v3616 = vshrl.u32 %v3615, 7
        %v3617 = vadd.s32 %v3616, 16
        %3618 = vset.pattern.permute.xlu0 %v3617
        %3619 = vperm.xlu0 %3618, %v3602
        %v3620 = vpop.permute.xlu0 %3619
        %v3621 = vlaneseq
        %v3622 = vshrl.u32 %v3621, 7
        %v3623 = vadd.s32 %v3622, 24
        %3624 = vset.pattern.permute.xlu0 %v3623
        %3625 = vperm.xlu0 %3624, %v3602
        %v3626 = vpop.permute.xlu0 %3625
        %v3627 = vperm.slane %v3551, 3
        %v3628 = vlaneseq
        %v3629 = vshrl.u32 %v3628, 7
        %3631 = vset.pattern.permute.xlu0 %v3629
        %3632 = vperm.xlu0 %3631, %v3627
        %v3633 = vpop.permute.xlu0 %3632
        %v3634 = vlaneseq
        %v3635 = vshrl.u32 %v3634, 7
        %v3636 = vadd.s32 %v3635, 8
        %3637 = vset.pattern.permute.xlu0 %v3636
        %3638 = vperm.xlu0 %3637, %v3627
        %v3639 = vpop.permute.xlu0 %3638
        %v3640 = vlaneseq
        %v3641 = vshrl.u32 %v3640, 7
        %v3642 = vadd.s32 %v3641, 16
        %3643 = vset.pattern.permute.xlu0 %v3642
        %3644 = vperm.xlu0 %3643, %v3627
        %v3645 = vpop.permute.xlu0 %3644
        %v3646 = vlaneseq
        %v3647 = vshrl.u32 %v3646, 7
        %v3648 = vadd.s32 %v3647, 24
        %3649 = vset.pattern.permute.xlu0 %v3648
        %3650 = vperm.xlu0 %3649, %v3627
        %v3651 = vpop.permute.xlu0 %3650
        %v3652 = vperm.slane %v3551, 4
        %v3653 = vlaneseq
        %v3654 = vshrl.u32 %v3653, 7
        %3656 = vset.pattern.permute.xlu0 %v3654
        %3657 = vperm.xlu0 %3656, %v3652
        %v3658 = vpop.permute.xlu0 %3657
        %v3659 = vlaneseq
        %v3660 = vshrl.u32 %v3659, 7
        %v3661 = vadd.s32 %v3660, 8
        %3662 = vset.pattern.permute.xlu0 %v3661
        %3663 = vperm.xlu0 %3662, %v3652
        %v3664 = vpop.permute.xlu0 %3663
        %v3665 = vlaneseq
        %v3666 = vshrl.u32 %v3665, 7
        %v3667 = vadd.s32 %v3666, 16
        %3668 = vset.pattern.permute.xlu0 %v3667
        %3669 = vperm.xlu0 %3668, %v3652
        %v3670 = vpop.permute.xlu0 %3669
        %v3671 = vlaneseq
        %v3672 = vshrl.u32 %v3671, 7
        %v3673 = vadd.s32 %v3672, 24
        %3674 = vset.pattern.permute.xlu0 %v3673
        %3675 = vperm.xlu0 %3674, %v3652
        %v3676 = vpop.permute.xlu0 %3675
        %v3677 = vperm.slane %v3551, 5
        %v3678 = vlaneseq
        %v3679 = vshrl.u32 %v3678, 7
        %3681 = vset.pattern.permute.xlu0 %v3679
        %3682 = vperm.xlu0 %3681, %v3677
        %v3683 = vpop.permute.xlu0 %3682
        %v3684 = vlaneseq
        %v3685 = vshrl.u32 %v3684, 7
        %v3686 = vadd.s32 %v3685, 8
        %3687 = vset.pattern.permute.xlu0 %v3686
        %3688 = vperm.xlu0 %3687, %v3677
        %v3689 = vpop.permute.xlu0 %3688
        %v3690 = vlaneseq
        %v3691 = vshrl.u32 %v3690, 7
        %v3692 = vadd.s32 %v3691, 16
        %3693 = vset.pattern.permute.xlu0 %v3692
        %3694 = vperm.xlu0 %3693, %v3677
        %v3695 = vpop.permute.xlu0 %3694
        %v3696 = vlaneseq
        %v3697 = vshrl.u32 %v3696, 7
        %v3698 = vadd.s32 %v3697, 24
        %3699 = vset.pattern.permute.xlu0 %v3698
        %3700 = vperm.xlu0 %3699, %v3677
        %v3701 = vpop.permute.xlu0 %3700
        %v3702 = vperm.slane %v3551, 6
        %v3703 = vlaneseq
        %v3704 = vshrl.u32 %v3703, 7
        %3706 = vset.pattern.permute.xlu0 %v3704
        %3707 = vperm.xlu0 %3706, %v3702
        %v3708 = vpop.permute.xlu0 %3707
        %v3709 = vlaneseq
        %v3710 = vshrl.u32 %v3709, 7
        %v3711 = vadd.s32 %v3710, 8
        %3712 = vset.pattern.permute.xlu0 %v3711
        %3713 = vperm.xlu0 %3712, %v3702
        %v3714 = vpop.permute.xlu0 %3713
        %v3715 = vlaneseq
        %v3716 = vshrl.u32 %v3715, 7
        %v3717 = vadd.s32 %v3716, 16
        %3718 = vset.pattern.permute.xlu0 %v3717
        %3719 = vperm.xlu0 %3718, %v3702
        %v3720 = vpop.permute.xlu0 %3719
        %v3721 = vlaneseq
        %v3722 = vshrl.u32 %v3721, 7
        %v3723 = vadd.s32 %v3722, 24
        %3724 = vset.pattern.permute.xlu0 %v3723
        %3725 = vperm.xlu0 %3724, %v3702
        %v3726 = vpop.permute.xlu0 %3725
        %v3727 = vperm.slane %v3551, 7
        %v3728 = vlaneseq
        %v3729 = vshrl.u32 %v3728, 7
        %3731 = vset.pattern.permute.xlu0 %v3729
        %3732 = vperm.xlu0 %3731, %v3727
        %v3733 = vpop.permute.xlu0 %3732
        %v3734 = vlaneseq
        %v3735 = vshrl.u32 %v3734, 7
        %v3736 = vadd.s32 %v3735, 8
        %3737 = vset.pattern.permute.xlu0 %v3736
        %3738 = vperm.xlu0 %3737, %v3727
        %v3739 = vpop.permute.xlu0 %3738
        %v3740 = vlaneseq
        %v3741 = vshrl.u32 %v3740, 7
        %v3742 = vadd.s32 %v3741, 16
        %3743 = vset.pattern.permute.xlu0 %v3742
        %3744 = vperm.xlu0 %3743, %v3727
        %v3745 = vpop.permute.xlu0 %3744
        %v3746 = vlaneseq
        %v3747 = vshrl.u32 %v3746, 7
        %v3748 = vadd.s32 %v3747, 24
        %3749 = vset.pattern.permute.xlu0 %v3748
        %3750 = vperm.xlu0 %3749, %v3727
        %v3751 = vpop.permute.xlu0 %3750
        %v3752 = vsub.f32 %v3558, %v1281
        %v3753 = vsub.f32 %v3564, %v1282
        %v3754 = vsub.f32 %v3570, %v1283
        %v3755 = vsub.f32 %v3576, %v1284
        %v3756 = vsub.f32 %v3583, %v1281
        %v3757 = vsub.f32 %v3589, %v1282
        %v3758 = vsub.f32 %v3595, %v1283
        %v3759 = vsub.f32 %v3601, %v1284
        %v3760 = vsub.f32 %v3608, %v1281
        %v3761 = vsub.f32 %v3614, %v1282
        %v3762 = vsub.f32 %v3620, %v1283
        %v3763 = vsub.f32 %v3626, %v1284
        %v3764 = vsub.f32 %v3633, %v1281
        %v3765 = vsub.f32 %v3639, %v1282
        %v3766 = vsub.f32 %v3645, %v1283
        %v3767 = vsub.f32 %v3651, %v1284
        %v3768 = vsub.f32 %v3658, %v1281
        %v3769 = vsub.f32 %v3664, %v1282
        %v3770 = vsub.f32 %v3670, %v1283
        %v3771 = vsub.f32 %v3676, %v1284
        %v3772 = vsub.f32 %v3683, %v1281
        %v3773 = vsub.f32 %v3689, %v1282
        %v3774 = vsub.f32 %v3695, %v1283
        %v3775 = vsub.f32 %v3701, %v1284
        %v3776 = vsub.f32 %v3708, %v1281
        %v3777 = vsub.f32 %v3714, %v1282
        %v3778 = vsub.f32 %v3720, %v1283
        %v3779 = vsub.f32 %v3726, %v1284
        %v3780 = vsub.f32 %v3733, %v1281
        %v3781 = vsub.f32 %v3739, %v1282
        %v3782 = vsub.f32 %v3745, %v1283
        %v3783 = vsub.f32 %v3751, %v1284
        %v3784 = vmul.f32 %v3752, %v1285
        %v3785 = vmul.f32 %v3753, %v1286
        %v3786 = vmul.f32 %v3754, %v1287
        %v3787 = vmul.f32 %v3755, %v1288
        %v3788 = vmul.f32 %v3756, %v1285
        %v3789 = vmul.f32 %v3757, %v1286
        %v3790 = vmul.f32 %v3758, %v1287
        %v3791 = vmul.f32 %v3759, %v1288
        %v3792 = vmul.f32 %v3760, %v1285
        %v3793 = vmul.f32 %v3761, %v1286
        %v3794 = vmul.f32 %v3762, %v1287
        %v3795 = vmul.f32 %v3763, %v1288
        %v3796 = vmul.f32 %v3764, %v1285
        %v3797 = vmul.f32 %v3765, %v1286
        %v3798 = vmul.f32 %v3766, %v1287
        %v3799 = vmul.f32 %v3767, %v1288
        %v3800 = vmul.f32 %v3768, %v1285
        %v3801 = vmul.f32 %v3769, %v1286
        %v3802 = vmul.f32 %v3770, %v1287
        %v3803 = vmul.f32 %v3771, %v1288
        %v3804 = vmul.f32 %v3772, %v1285
        %v3805 = vmul.f32 %v3773, %v1286
        %v3806 = vmul.f32 %v3774, %v1287
        %v3807 = vmul.f32 %v3775, %v1288
        %v3808 = vmul.f32 %v3776, %v1285
        %v3809 = vmul.f32 %v3777, %v1286
        %v3810 = vmul.f32 %v3778, %v1287
        %v3811 = vmul.f32 %v3779, %v1288
        %v3812 = vmul.f32 %v3780, %v1285
        %v3813 = vmul.f32 %v3781, %v1286
        %v3814 = vmul.f32 %v3782, %v1287
        %v3815 = vmul.f32 %v3783, %v1288
        %v3816 = vxor.u32 %v3784, 2147483648
        %v3817 = vxor.u32 %v3785, 2147483648
        %v3818 = vxor.u32 %v3786, 2147483648
        %v3819 = vxor.u32 %v3787, 2147483648
        %v3820 = vxor.u32 %v3788, 2147483648
        %v3821 = vxor.u32 %v3789, 2147483648
        %v3822 = vxor.u32 %v3790, 2147483648
        %v3823 = vxor.u32 %v3791, 2147483648
        %v3824 = vxor.u32 %v3792, 2147483648
        %v3825 = vxor.u32 %v3793, 2147483648
        %v3826 = vxor.u32 %v3794, 2147483648
        %v3827 = vxor.u32 %v3795, 2147483648
        %v3828 = vxor.u32 %v3796, 2147483648
        %v3829 = vxor.u32 %v3797, 2147483648
        %v3830 = vxor.u32 %v3798, 2147483648
        %v3831 = vxor.u32 %v3799, 2147483648
        %v3832 = vxor.u32 %v3800, 2147483648
        %v3833 = vxor.u32 %v3801, 2147483648
        %v3834 = vxor.u32 %v3802, 2147483648
        %v3835 = vxor.u32 %v3803, 2147483648
        %v3836 = vxor.u32 %v3804, 2147483648
        %v3837 = vxor.u32 %v3805, 2147483648
        %v3838 = vxor.u32 %v3806, 2147483648
        %v3839 = vxor.u32 %v3807, 2147483648
        %v3840 = vxor.u32 %v3808, 2147483648
        %v3841 = vxor.u32 %v3809, 2147483648
        %v3842 = vxor.u32 %v3810, 2147483648
        %v3843 = vxor.u32 %v3811, 2147483648
        %v3844 = vxor.u32 %v3812, 2147483648
        %v3845 = vxor.u32 %v3813, 2147483648
        %v3846 = vxor.u32 %v3814, 2147483648
        %v3847 = vxor.u32 %v3815, 2147483648
        %v3848 = vmul.f32 %v3816, 1.442695
        %v3849 = vpow.pop %v3848
        %v3850 = vmul.f32 %v3817, 1.442695
        %v3851 = vpow.pop %v3850
        %v3852 = vmul.f32 %v3818, 1.442695
        %v3853 = vpow.pop %v3852
        %v3854 = vmul.f32 %v3819, 1.442695
        %v3855 = vpow.pop %v3854
        %v3856 = vmul.f32 %v3820, 1.442695
        %v3857 = vpow.pop %v3856
        %v3858 = vmul.f32 %v3821, 1.442695
        %v3859 = vpow.pop %v3858
        %v3860 = vmul.f32 %v3822, 1.442695
        %v3861 = vpow.pop %v3860
        %v3862 = vmul.f32 %v3823, 1.442695
        %v3863 = vpow.pop %v3862
        %v3864 = vmul.f32 %v3824, 1.442695
        %v3865 = vpow.pop %v3864
        %v3866 = vmul.f32 %v3825, 1.442695
        %v3867 = vpow.pop %v3866
        %v3868 = vmul.f32 %v3826, 1.442695
        %v3869 = vpow.pop %v3868
        %v3870 = vmul.f32 %v3827, 1.442695
        %v3871 = vpow.pop %v3870
        %v3872 = vmul.f32 %v3828, 1.442695
        %v3873 = vpow.pop %v3872
        %v3874 = vmul.f32 %v3829, 1.442695
        %v3875 = vpow.pop %v3874
        %v3876 = vmul.f32 %v3830, 1.442695
        %v3877 = vpow.pop %v3876
        %v3878 = vmul.f32 %v3831, 1.442695
        %v3879 = vpow.pop %v3878
        %v3880 = vmul.f32 %v3832, 1.442695
        %v3881 = vpow.pop %v3880
        %v3882 = vmul.f32 %v3833, 1.442695
        %v3883 = vpow.pop %v3882
        %v3884 = vmul.f32 %v3834, 1.442695
        %v3885 = vpow.pop %v3884
        %v3886 = vmul.f32 %v3835, 1.442695
        %v3887 = vpow.pop %v3886
        %v3888 = vmul.f32 %v3836, 1.442695
        %v3889 = vpow.pop %v3888
        %v3890 = vmul.f32 %v3837, 1.442695
        %v3891 = vpow.pop %v3890
        %v3892 = vmul.f32 %v3838, 1.442695
        %v3893 = vpow.pop %v3892
        %v3894 = vmul.f32 %v3839, 1.442695
        %v3895 = vpow.pop %v3894
        %v3896 = vmul.f32 %v3840, 1.442695
        %v3897 = vpow.pop %v3896
        %v3898 = vmul.f32 %v3841, 1.442695
        %v3899 = vpow.pop %v3898
        %v3900 = vmul.f32 %v3842, 1.442695
        %v3901 = vpow.pop %v3900
        %v3902 = vmul.f32 %v3843, 1.442695
        %v3903 = vpow.pop %v3902
        %v3904 = vmul.f32 %v3844, 1.442695
        %v3905 = vpow.pop %v3904
        %v3906 = vmul.f32 %v3845, 1.442695
        %v3907 = vpow.pop %v3906
        %v3908 = vmul.f32 %v3846, 1.442695
        %v3909 = vpow.pop %v3908
        %v3910 = vmul.f32 %v3847, 1.442695
        %v3911 = vpow.pop %v3910
        %v3912 = vadd.f32 %v3849, 1.0
        %v3913 = vadd.f32 %v3851, 1.0
        %v3914 = vadd.f32 %v3853, 1.0
        %v3915 = vadd.f32 %v3855, 1.0
        %v3916 = vadd.f32 %v3857, 1.0
        %v3917 = vadd.f32 %v3859, 1.0
        %v3918 = vadd.f32 %v3861, 1.0
        %v3919 = vadd.f32 %v3863, 1.0
        %v3920 = vadd.f32 %v3865, 1.0
        %v3921 = vadd.f32 %v3867, 1.0
        %v3922 = vadd.f32 %v3869, 1.0
        %v3923 = vadd.f32 %v3871, 1.0
        %v3924 = vadd.f32 %v3873, 1.0
        %v3925 = vadd.f32 %v3875, 1.0
        %v3926 = vadd.f32 %v3877, 1.0
        %v3927 = vadd.f32 %v3879, 1.0
        %v3928 = vadd.f32 %v3881, 1.0
        %v3929 = vadd.f32 %v3883, 1.0
        %v3930 = vadd.f32 %v3885, 1.0
        %v3931 = vadd.f32 %v3887, 1.0
        %v3932 = vadd.f32 %v3889, 1.0
        %v3933 = vadd.f32 %v3891, 1.0
        %v3934 = vadd.f32 %v3893, 1.0
        %v3935 = vadd.f32 %v3895, 1.0
        %v3936 = vadd.f32 %v3897, 1.0
        %v3937 = vadd.f32 %v3899, 1.0
        %v3938 = vadd.f32 %v3901, 1.0
        %v3939 = vadd.f32 %v3903, 1.0
        %v3940 = vadd.f32 %v3905, 1.0
        %v3941 = vadd.f32 %v3907, 1.0
        %v3942 = vadd.f32 %v3909, 1.0
        %v3943 = vadd.f32 %v3911, 1.0
        %v3944 = vrcp.pop %v3912
        %v3945 = vmul.f32 %v3912, %v3944
        %v3946 = vsub.f32 1.0, %v3945
        %v3947 = vmul.f32 %v3944, %v3946
        %v3948 = vadd.f32 %v3944, %v3947
        %vm3949 = vweird.f32 %v3912
        %vm3950 = vweird.f32 %v3944
        %vm3951 = vmor %vm3949, %vm3950
        %v3952 = vsel %vm3951, %v3944, %v3948
        %v3953 = vand.u32 2147483647, %v3912
        %vm3954 = vcmp.eq.f32.partialorder %v3953, 8.507059e+37
        %v3955 = vand.u32 %v3912, 2147483648
        %v3956 = vor.u32 1.1754944e-38, %v3955
        %v3957 = vsel %vm3954, %v3956, %v3952
        %v3958 = vmul.f32 1.0, %v3957
        %v3959 = vrcp.pop %v3913
        %v3960 = vmul.f32 %v3913, %v3959
        %v3961 = vsub.f32 1.0, %v3960
        %v3962 = vmul.f32 %v3959, %v3961
        %v3963 = vadd.f32 %v3959, %v3962
        %vm3964 = vweird.f32 %v3913
        %vm3965 = vweird.f32 %v3959
        %vm3966 = vmor %vm3964, %vm3965
        %v3967 = vsel %vm3966, %v3959, %v3963
        %v3968 = vand.u32 2147483647, %v3913
        %vm3969 = vcmp.eq.f32.partialorder %v3968, 8.507059e+37
        %v3970 = vand.u32 %v3913, 2147483648
        %v3971 = vor.u32 1.1754944e-38, %v3970
        %v3972 = vsel %vm3969, %v3971, %v3967
        %v3973 = vmul.f32 1.0, %v3972
        %v3974 = vrcp.pop %v3914
        %v3975 = vmul.f32 %v3914, %v3974
        %v3976 = vsub.f32 1.0, %v3975
        %v3977 = vmul.f32 %v3974, %v3976
        %v3978 = vadd.f32 %v3974, %v3977
        %vm3979 = vweird.f32 %v3914
        %vm3980 = vweird.f32 %v3974
        %vm3981 = vmor %vm3979, %vm3980
        %v3982 = vsel %vm3981, %v3974, %v3978
        %v3983 = vand.u32 2147483647, %v3914
        %vm3984 = vcmp.eq.f32.partialorder %v3983, 8.507059e+37
        %v3985 = vand.u32 %v3914, 2147483648
        %v3986 = vor.u32 1.1754944e-38, %v3985
        %v3987 = vsel %vm3984, %v3986, %v3982
        %v3988 = vmul.f32 1.0, %v3987
        %v3989 = vrcp.pop %v3915
        %v3990 = vmul.f32 %v3915, %v3989
        %v3991 = vsub.f32 1.0, %v3990
        %v3992 = vmul.f32 %v3989, %v3991
        %v3993 = vadd.f32 %v3989, %v3992
        %vm3994 = vweird.f32 %v3915
        %vm3995 = vweird.f32 %v3989
        %vm3996 = vmor %vm3994, %vm3995
        %v3997 = vsel %vm3996, %v3989, %v3993
        %v3998 = vand.u32 2147483647, %v3915
        %vm3999 = vcmp.eq.f32.partialorder %v3998, 8.507059e+37
        %v4000 = vand.u32 %v3915, 2147483648
        %v4001 = vor.u32 1.1754944e-38, %v4000
        %v4002 = vsel %vm3999, %v4001, %v3997
        %v4003 = vmul.f32 1.0, %v4002
        %v4004 = vrcp.pop %v3916
        %v4005 = vmul.f32 %v3916, %v4004
        %v4006 = vsub.f32 1.0, %v4005
        %v4007 = vmul.f32 %v4004, %v4006
        %v4008 = vadd.f32 %v4004, %v4007
        %vm4009 = vweird.f32 %v3916
        %vm4010 = vweird.f32 %v4004
        %vm4011 = vmor %vm4009, %vm4010
        %v4012 = vsel %vm4011, %v4004, %v4008
        %v4013 = vand.u32 2147483647, %v3916
        %vm4014 = vcmp.eq.f32.partialorder %v4013, 8.507059e+37
        %v4015 = vand.u32 %v3916, 2147483648
        %v4016 = vor.u32 1.1754944e-38, %v4015
        %v4017 = vsel %vm4014, %v4016, %v4012
        %v4018 = vmul.f32 1.0, %v4017
        %v4019 = vrcp.pop %v3917
        %v4020 = vmul.f32 %v3917, %v4019
        %v4021 = vsub.f32 1.0, %v4020
        %v4022 = vmul.f32 %v4019, %v4021
        %v4023 = vadd.f32 %v4019, %v4022
        %vm4024 = vweird.f32 %v3917
        %vm4025 = vweird.f32 %v4019
        %vm4026 = vmor %vm4024, %vm4025
        %v4027 = vsel %vm4026, %v4019, %v4023
        %v4028 = vand.u32 2147483647, %v3917
        %vm4029 = vcmp.eq.f32.partialorder %v4028, 8.507059e+37
        %v4030 = vand.u32 %v3917, 2147483648
        %v4031 = vor.u32 1.1754944e-38, %v4030
        %v4032 = vsel %vm4029, %v4031, %v4027
        %v4033 = vmul.f32 1.0, %v4032
        %v4034 = vrcp.pop %v3918
        %v4035 = vmul.f32 %v3918, %v4034
        %v4036 = vsub.f32 1.0, %v4035
        %v4037 = vmul.f32 %v4034, %v4036
        %v4038 = vadd.f32 %v4034, %v4037
        %vm4039 = vweird.f32 %v3918
        %vm4040 = vweird.f32 %v4034
        %vm4041 = vmor %vm4039, %vm4040
        %v4042 = vsel %vm4041, %v4034, %v4038
        %v4043 = vand.u32 2147483647, %v3918
        %vm4044 = vcmp.eq.f32.partialorder %v4043, 8.507059e+37
        %v4045 = vand.u32 %v3918, 2147483648
        %v4046 = vor.u32 1.1754944e-38, %v4045
        %v4047 = vsel %vm4044, %v4046, %v4042
        %v4048 = vmul.f32 1.0, %v4047
        %v4049 = vrcp.pop %v3919
        %v4050 = vmul.f32 %v3919, %v4049
        %v4051 = vsub.f32 1.0, %v4050
        %v4052 = vmul.f32 %v4049, %v4051
        %v4053 = vadd.f32 %v4049, %v4052
        %vm4054 = vweird.f32 %v3919
        %vm4055 = vweird.f32 %v4049
        %vm4056 = vmor %vm4054, %vm4055
        %v4057 = vsel %vm4056, %v4049, %v4053
        %v4058 = vand.u32 2147483647, %v3919
        %vm4059 = vcmp.eq.f32.partialorder %v4058, 8.507059e+37
        %v4060 = vand.u32 %v3919, 2147483648
        %v4061 = vor.u32 1.1754944e-38, %v4060
        %v4062 = vsel %vm4059, %v4061, %v4057
        %v4063 = vmul.f32 1.0, %v4062
        %v4064 = vrcp.pop %v3920
        %v4065 = vmul.f32 %v3920, %v4064
        %v4066 = vsub.f32 1.0, %v4065
        %v4067 = vmul.f32 %v4064, %v4066
        %v4068 = vadd.f32 %v4064, %v4067
        %vm4069 = vweird.f32 %v3920
        %vm4070 = vweird.f32 %v4064
        %vm4071 = vmor %vm4069, %vm4070
        %v4072 = vsel %vm4071, %v4064, %v4068
        %v4073 = vand.u32 2147483647, %v3920
        %vm4074 = vcmp.eq.f32.partialorder %v4073, 8.507059e+37
        %v4075 = vand.u32 %v3920, 2147483648
        %v4076 = vor.u32 1.1754944e-38, %v4075
        %v4077 = vsel %vm4074, %v4076, %v4072
        %v4078 = vmul.f32 1.0, %v4077
        %v4079 = vrcp.pop %v3921
        %v4080 = vmul.f32 %v3921, %v4079
        %v4081 = vsub.f32 1.0, %v4080
        %v4082 = vmul.f32 %v4079, %v4081
        %v4083 = vadd.f32 %v4079, %v4082
        %vm4084 = vweird.f32 %v3921
        %vm4085 = vweird.f32 %v4079
        %vm4086 = vmor %vm4084, %vm4085
        %v4087 = vsel %vm4086, %v4079, %v4083
        %v4088 = vand.u32 2147483647, %v3921
        %vm4089 = vcmp.eq.f32.partialorder %v4088, 8.507059e+37
        %v4090 = vand.u32 %v3921, 2147483648
        %v4091 = vor.u32 1.1754944e-38, %v4090
        %v4092 = vsel %vm4089, %v4091, %v4087
        %v4093 = vmul.f32 1.0, %v4092
        %v4094 = vrcp.pop %v3922
        %v4095 = vmul.f32 %v3922, %v4094
        %v4096 = vsub.f32 1.0, %v4095
        %v4097 = vmul.f32 %v4094, %v4096
        %v4098 = vadd.f32 %v4094, %v4097
        %vm4099 = vweird.f32 %v3922
        %vm4100 = vweird.f32 %v4094
        %vm4101 = vmor %vm4099, %vm4100
        %v4102 = vsel %vm4101, %v4094, %v4098
        %v4103 = vand.u32 2147483647, %v3922
        %vm4104 = vcmp.eq.f32.partialorder %v4103, 8.507059e+37
        %v4105 = vand.u32 %v3922, 2147483648
        %v4106 = vor.u32 1.1754944e-38, %v4105
        %v4107 = vsel %vm4104, %v4106, %v4102
        %v4108 = vmul.f32 1.0, %v4107
        %v4109 = vrcp.pop %v3923
        %v4110 = vmul.f32 %v3923, %v4109
        %v4111 = vsub.f32 1.0, %v4110
        %v4112 = vmul.f32 %v4109, %v4111
        %v4113 = vadd.f32 %v4109, %v4112
        %vm4114 = vweird.f32 %v3923
        %vm4115 = vweird.f32 %v4109
        %vm4116 = vmor %vm4114, %vm4115
        %v4117 = vsel %vm4116, %v4109, %v4113
        %v4118 = vand.u32 2147483647, %v3923
        %vm4119 = vcmp.eq.f32.partialorder %v4118, 8.507059e+37
        %v4120 = vand.u32 %v3923, 2147483648
        %v4121 = vor.u32 1.1754944e-38, %v4120
        %v4122 = vsel %vm4119, %v4121, %v4117
        %v4123 = vmul.f32 1.0, %v4122
        %v4124 = vrcp.pop %v3924
        %v4125 = vmul.f32 %v3924, %v4124
        %v4126 = vsub.f32 1.0, %v4125
        %v4127 = vmul.f32 %v4124, %v4126
        %v4128 = vadd.f32 %v4124, %v4127
        %vm4129 = vweird.f32 %v3924
        %vm4130 = vweird.f32 %v4124
        %vm4131 = vmor %vm4129, %vm4130
        %v4132 = vsel %vm4131, %v4124, %v4128
        %v4133 = vand.u32 2147483647, %v3924
        %vm4134 = vcmp.eq.f32.partialorder %v4133, 8.507059e+37
        %v4135 = vand.u32 %v3924, 2147483648
        %v4136 = vor.u32 1.1754944e-38, %v4135
        %v4137 = vsel %vm4134, %v4136, %v4132
        %v4138 = vmul.f32 1.0, %v4137
        %v4139 = vrcp.pop %v3925
        %v4140 = vmul.f32 %v3925, %v4139
        %v4141 = vsub.f32 1.0, %v4140
        %v4142 = vmul.f32 %v4139, %v4141
        %v4143 = vadd.f32 %v4139, %v4142
        %vm4144 = vweird.f32 %v3925
        %vm4145 = vweird.f32 %v4139
        %vm4146 = vmor %vm4144, %vm4145
        %v4147 = vsel %vm4146, %v4139, %v4143
        %v4148 = vand.u32 2147483647, %v3925
        %vm4149 = vcmp.eq.f32.partialorder %v4148, 8.507059e+37
        %v4150 = vand.u32 %v3925, 2147483648
        %v4151 = vor.u32 1.1754944e-38, %v4150
        %v4152 = vsel %vm4149, %v4151, %v4147
        %v4153 = vmul.f32 1.0, %v4152
        %v4154 = vrcp.pop %v3926
        %v4155 = vmul.f32 %v3926, %v4154
        %v4156 = vsub.f32 1.0, %v4155
        %v4157 = vmul.f32 %v4154, %v4156
        %v4158 = vadd.f32 %v4154, %v4157
        %vm4159 = vweird.f32 %v3926
        %vm4160 = vweird.f32 %v4154
        %vm4161 = vmor %vm4159, %vm4160
        %v4162 = vsel %vm4161, %v4154, %v4158
        %v4163 = vand.u32 2147483647, %v3926
        %vm4164 = vcmp.eq.f32.partialorder %v4163, 8.507059e+37
        %v4165 = vand.u32 %v3926, 2147483648
        %v4166 = vor.u32 1.1754944e-38, %v4165
        %v4167 = vsel %vm4164, %v4166, %v4162
        %v4168 = vmul.f32 1.0, %v4167
        %v4169 = vrcp.pop %v3927
        %v4170 = vmul.f32 %v3927, %v4169
        %v4171 = vsub.f32 1.0, %v4170
        %v4172 = vmul.f32 %v4169, %v4171
        %v4173 = vadd.f32 %v4169, %v4172
        %vm4174 = vweird.f32 %v3927
        %vm4175 = vweird.f32 %v4169
        %vm4176 = vmor %vm4174, %vm4175
        %v4177 = vsel %vm4176, %v4169, %v4173
        %v4178 = vand.u32 2147483647, %v3927
        %vm4179 = vcmp.eq.f32.partialorder %v4178, 8.507059e+37
        %v4180 = vand.u32 %v3927, 2147483648
        %v4181 = vor.u32 1.1754944e-38, %v4180
        %v4182 = vsel %vm4179, %v4181, %v4177
        %v4183 = vmul.f32 1.0, %v4182
        %v4184 = vrcp.pop %v3928
        %v4185 = vmul.f32 %v3928, %v4184
        %v4186 = vsub.f32 1.0, %v4185
        %v4187 = vmul.f32 %v4184, %v4186
        %v4188 = vadd.f32 %v4184, %v4187
        %vm4189 = vweird.f32 %v3928
        %vm4190 = vweird.f32 %v4184
        %vm4191 = vmor %vm4189, %vm4190
        %v4192 = vsel %vm4191, %v4184, %v4188
        %v4193 = vand.u32 2147483647, %v3928
        %vm4194 = vcmp.eq.f32.partialorder %v4193, 8.507059e+37
        %v4195 = vand.u32 %v3928, 2147483648
        %v4196 = vor.u32 1.1754944e-38, %v4195
        %v4197 = vsel %vm4194, %v4196, %v4192
        %v4198 = vmul.f32 1.0, %v4197
        %v4199 = vrcp.pop %v3929
        %v4200 = vmul.f32 %v3929, %v4199
        %v4201 = vsub.f32 1.0, %v4200
        %v4202 = vmul.f32 %v4199, %v4201
        %v4203 = vadd.f32 %v4199, %v4202
        %vm4204 = vweird.f32 %v3929
        %vm4205 = vweird.f32 %v4199
        %vm4206 = vmor %vm4204, %vm4205
        %v4207 = vsel %vm4206, %v4199, %v4203
        %v4208 = vand.u32 2147483647, %v3929
        %vm4209 = vcmp.eq.f32.partialorder %v4208, 8.507059e+37
        %v4210 = vand.u32 %v3929, 2147483648
        %v4211 = vor.u32 1.1754944e-38, %v4210
        %v4212 = vsel %vm4209, %v4211, %v4207
        %v4213 = vmul.f32 1.0, %v4212
        %v4214 = vrcp.pop %v3930
        %v4215 = vmul.f32 %v3930, %v4214
        %v4216 = vsub.f32 1.0, %v4215
        %v4217 = vmul.f32 %v4214, %v4216
        %v4218 = vadd.f32 %v4214, %v4217
        %vm4219 = vweird.f32 %v3930
        %vm4220 = vweird.f32 %v4214
        %vm4221 = vmor %vm4219, %vm4220
        %v4222 = vsel %vm4221, %v4214, %v4218
        %v4223 = vand.u32 2147483647, %v3930
        %vm4224 = vcmp.eq.f32.partialorder %v4223, 8.507059e+37
        %v4225 = vand.u32 %v3930, 2147483648
        %v4226 = vor.u32 1.1754944e-38, %v4225
        %v4227 = vsel %vm4224, %v4226, %v4222
        %v4228 = vmul.f32 1.0, %v4227
        %v4229 = vrcp.pop %v3931
        %v4230 = vmul.f32 %v3931, %v4229
        %v4231 = vsub.f32 1.0, %v4230
        %v4232 = vmul.f32 %v4229, %v4231
        %v4233 = vadd.f32 %v4229, %v4232
        %vm4234 = vweird.f32 %v3931
        %vm4235 = vweird.f32 %v4229
        %vm4236 = vmor %vm4234, %vm4235
        %v4237 = vsel %vm4236, %v4229, %v4233
        %v4238 = vand.u32 2147483647, %v3931
        %vm4239 = vcmp.eq.f32.partialorder %v4238, 8.507059e+37
        %v4240 = vand.u32 %v3931, 2147483648
        %v4241 = vor.u32 1.1754944e-38, %v4240
        %v4242 = vsel %vm4239, %v4241, %v4237
        %v4243 = vmul.f32 1.0, %v4242
        %v4244 = vrcp.pop %v3932
        %v4245 = vmul.f32 %v3932, %v4244
        %v4246 = vsub.f32 1.0, %v4245
        %v4247 = vmul.f32 %v4244, %v4246
        %v4248 = vadd.f32 %v4244, %v4247
        %vm4249 = vweird.f32 %v3932
        %vm4250 = vweird.f32 %v4244
        %vm4251 = vmor %vm4249, %vm4250
        %v4252 = vsel %vm4251, %v4244, %v4248
        %v4253 = vand.u32 2147483647, %v3932
        %vm4254 = vcmp.eq.f32.partialorder %v4253, 8.507059e+37
        %v4255 = vand.u32 %v3932, 2147483648
        %v4256 = vor.u32 1.1754944e-38, %v4255
        %v4257 = vsel %vm4254, %v4256, %v4252
        %v4258 = vmul.f32 1.0, %v4257
        %v4259 = vrcp.pop %v3933
        %v4260 = vmul.f32 %v3933, %v4259
        %v4261 = vsub.f32 1.0, %v4260
        %v4262 = vmul.f32 %v4259, %v4261
        %v4263 = vadd.f32 %v4259, %v4262
        %vm4264 = vweird.f32 %v3933
        %vm4265 = vweird.f32 %v4259
        %vm4266 = vmor %vm4264, %vm4265
        %v4267 = vsel %vm4266, %v4259, %v4263
        %v4268 = vand.u32 2147483647, %v3933
        %vm4269 = vcmp.eq.f32.partialorder %v4268, 8.507059e+37
        %v4270 = vand.u32 %v3933, 2147483648
        %v4271 = vor.u32 1.1754944e-38, %v4270
        %v4272 = vsel %vm4269, %v4271, %v4267
        %v4273 = vmul.f32 1.0, %v4272
        %v4274 = vrcp.pop %v3934
        %v4275 = vmul.f32 %v3934, %v4274
        %v4276 = vsub.f32 1.0, %v4275
        %v4277 = vmul.f32 %v4274, %v4276
        %v4278 = vadd.f32 %v4274, %v4277
        %vm4279 = vweird.f32 %v3934
        %vm4280 = vweird.f32 %v4274
        %vm4281 = vmor %vm4279, %vm4280
        %v4282 = vsel %vm4281, %v4274, %v4278
        %v4283 = vand.u32 2147483647, %v3934
        %vm4284 = vcmp.eq.f32.partialorder %v4283, 8.507059e+37
        %v4285 = vand.u32 %v3934, 2147483648
        %v4286 = vor.u32 1.1754944e-38, %v4285
        %v4287 = vsel %vm4284, %v4286, %v4282
        %v4288 = vmul.f32 1.0, %v4287
        %v4289 = vrcp.pop %v3935
        %v4290 = vmul.f32 %v3935, %v4289
        %v4291 = vsub.f32 1.0, %v4290
        %v4292 = vmul.f32 %v4289, %v4291
        %v4293 = vadd.f32 %v4289, %v4292
        %vm4294 = vweird.f32 %v3935
        %vm4295 = vweird.f32 %v4289
        %vm4296 = vmor %vm4294, %vm4295
        %v4297 = vsel %vm4296, %v4289, %v4293
        %v4298 = vand.u32 2147483647, %v3935
        %vm4299 = vcmp.eq.f32.partialorder %v4298, 8.507059e+37
        %v4300 = vand.u32 %v3935, 2147483648
        %v4301 = vor.u32 1.1754944e-38, %v4300
        %v4302 = vsel %vm4299, %v4301, %v4297
        %v4303 = vmul.f32 1.0, %v4302
        %v4304 = vrcp.pop %v3936
        %v4305 = vmul.f32 %v3936, %v4304
        %v4306 = vsub.f32 1.0, %v4305
        %v4307 = vmul.f32 %v4304, %v4306
        %v4308 = vadd.f32 %v4304, %v4307
        %vm4309 = vweird.f32 %v3936
        %vm4310 = vweird.f32 %v4304
        %vm4311 = vmor %vm4309, %vm4310
        %v4312 = vsel %vm4311, %v4304, %v4308
        %v4313 = vand.u32 2147483647, %v3936
        %vm4314 = vcmp.eq.f32.partialorder %v4313, 8.507059e+37
        %v4315 = vand.u32 %v3936, 2147483648
        %v4316 = vor.u32 1.1754944e-38, %v4315
        %v4317 = vsel %vm4314, %v4316, %v4312
        %v4318 = vmul.f32 1.0, %v4317
        %v4319 = vrcp.pop %v3937
        %v4320 = vmul.f32 %v3937, %v4319
        %v4321 = vsub.f32 1.0, %v4320
        %v4322 = vmul.f32 %v4319, %v4321
        %v4323 = vadd.f32 %v4319, %v4322
        %vm4324 = vweird.f32 %v3937
        %vm4325 = vweird.f32 %v4319
        %vm4326 = vmor %vm4324, %vm4325
        %v4327 = vsel %vm4326, %v4319, %v4323
        %v4328 = vand.u32 2147483647, %v3937
        %vm4329 = vcmp.eq.f32.partialorder %v4328, 8.507059e+37
        %v4330 = vand.u32 %v3937, 2147483648
        %v4331 = vor.u32 1.1754944e-38, %v4330
        %v4332 = vsel %vm4329, %v4331, %v4327
        %v4333 = vmul.f32 1.0, %v4332
        %v4334 = vrcp.pop %v3938
        %v4335 = vmul.f32 %v3938, %v4334
        %v4336 = vsub.f32 1.0, %v4335
        %v4337 = vmul.f32 %v4334, %v4336
        %v4338 = vadd.f32 %v4334, %v4337
        %vm4339 = vweird.f32 %v3938
        %vm4340 = vweird.f32 %v4334
        %vm4341 = vmor %vm4339, %vm4340
        %v4342 = vsel %vm4341, %v4334, %v4338
        %v4343 = vand.u32 2147483647, %v3938
        %vm4344 = vcmp.eq.f32.partialorder %v4343, 8.507059e+37
        %v4345 = vand.u32 %v3938, 2147483648
        %v4346 = vor.u32 1.1754944e-38, %v4345
        %v4347 = vsel %vm4344, %v4346, %v4342
        %v4348 = vmul.f32 1.0, %v4347
        %v4349 = vrcp.pop %v3939
        %v4350 = vmul.f32 %v3939, %v4349
        %v4351 = vsub.f32 1.0, %v4350
        %v4352 = vmul.f32 %v4349, %v4351
        %v4353 = vadd.f32 %v4349, %v4352
        %vm4354 = vweird.f32 %v3939
        %vm4355 = vweird.f32 %v4349
        %vm4356 = vmor %vm4354, %vm4355
        %v4357 = vsel %vm4356, %v4349, %v4353
        %v4358 = vand.u32 2147483647, %v3939
        %vm4359 = vcmp.eq.f32.partialorder %v4358, 8.507059e+37
        %v4360 = vand.u32 %v3939, 2147483648
        %v4361 = vor.u32 1.1754944e-38, %v4360
        %v4362 = vsel %vm4359, %v4361, %v4357
        %v4363 = vmul.f32 1.0, %v4362
        %v4364 = vrcp.pop %v3940
        %v4365 = vmul.f32 %v3940, %v4364
        %v4366 = vsub.f32 1.0, %v4365
        %v4367 = vmul.f32 %v4364, %v4366
        %v4368 = vadd.f32 %v4364, %v4367
        %vm4369 = vweird.f32 %v3940
        %vm4370 = vweird.f32 %v4364
        %vm4371 = vmor %vm4369, %vm4370
        %v4372 = vsel %vm4371, %v4364, %v4368
        %v4373 = vand.u32 2147483647, %v3940
        %vm4374 = vcmp.eq.f32.partialorder %v4373, 8.507059e+37
        %v4375 = vand.u32 %v3940, 2147483648
        %v4376 = vor.u32 1.1754944e-38, %v4375
        %v4377 = vsel %vm4374, %v4376, %v4372
        %v4378 = vmul.f32 1.0, %v4377
        %v4379 = vrcp.pop %v3941
        %v4380 = vmul.f32 %v3941, %v4379
        %v4381 = vsub.f32 1.0, %v4380
        %v4382 = vmul.f32 %v4379, %v4381
        %v4383 = vadd.f32 %v4379, %v4382
        %vm4384 = vweird.f32 %v3941
        %vm4385 = vweird.f32 %v4379
        %vm4386 = vmor %vm4384, %vm4385
        %v4387 = vsel %vm4386, %v4379, %v4383
        %v4388 = vand.u32 2147483647, %v3941
        %vm4389 = vcmp.eq.f32.partialorder %v4388, 8.507059e+37
        %v4390 = vand.u32 %v3941, 2147483648
        %v4391 = vor.u32 1.1754944e-38, %v4390
        %v4392 = vsel %vm4389, %v4391, %v4387
        %v4393 = vmul.f32 1.0, %v4392
        %v4394 = vrcp.pop %v3942
        %v4395 = vmul.f32 %v3942, %v4394
        %v4396 = vsub.f32 1.0, %v4395
        %v4397 = vmul.f32 %v4394, %v4396
        %v4398 = vadd.f32 %v4394, %v4397
        %vm4399 = vweird.f32 %v3942
        %vm4400 = vweird.f32 %v4394
        %vm4401 = vmor %vm4399, %vm4400
        %v4402 = vsel %vm4401, %v4394, %v4398
        %v4403 = vand.u32 2147483647, %v3942
        %vm4404 = vcmp.eq.f32.partialorder %v4403, 8.507059e+37
        %v4405 = vand.u32 %v3942, 2147483648
        %v4406 = vor.u32 1.1754944e-38, %v4405
        %v4407 = vsel %vm4404, %v4406, %v4402
        %v4408 = vmul.f32 1.0, %v4407
        %v4409 = vrcp.pop %v3943
        %v4410 = vmul.f32 %v3943, %v4409
        %v4411 = vsub.f32 1.0, %v4410
        %v4412 = vmul.f32 %v4409, %v4411
        %v4413 = vadd.f32 %v4409, %v4412
        %vm4414 = vweird.f32 %v3943
        %vm4415 = vweird.f32 %v4409
        %vm4416 = vmor %vm4414, %vm4415
        %v4417 = vsel %vm4416, %v4409, %v4413
        %v4418 = vand.u32 2147483647, %v3943
        %vm4419 = vcmp.eq.f32.partialorder %v4418, 8.507059e+37
        %v4420 = vand.u32 %v3943, 2147483648
        %v4421 = vor.u32 1.1754944e-38, %v4420
        %v4422 = vsel %vm4419, %v4421, %v4417
        %v4423 = vmul.f32 1.0, %v4422
        %v4424 = vmul.f32 %v859, %v3958
        %v4425 = vmul.f32 %v860, %v3973
        %v4426 = vmul.f32 %v861, %v3988
        %v4427 = vmul.f32 %v862, %v4003
        %v4428 = vmul.f32 %v859, %v4018
        %v4429 = vmul.f32 %v860, %v4033
        %v4430 = vmul.f32 %v861, %v4048
        %v4431 = vmul.f32 %v862, %v4063
        %v4432 = vmul.f32 %v859, %v4078
        %v4433 = vmul.f32 %v860, %v4093
        %v4434 = vmul.f32 %v861, %v4108
        %v4435 = vmul.f32 %v862, %v4123
        %v4436 = vmul.f32 %v859, %v4138
        %v4437 = vmul.f32 %v860, %v4153
        %v4438 = vmul.f32 %v861, %v4168
        %v4439 = vmul.f32 %v862, %v4183
        %v4440 = vmul.f32 %v859, %v4198
        %v4441 = vmul.f32 %v860, %v4213
        %v4442 = vmul.f32 %v861, %v4228
        %v4443 = vmul.f32 %v862, %v4243
        %v4444 = vmul.f32 %v859, %v4258
        %v4445 = vmul.f32 %v860, %v4273
        %v4446 = vmul.f32 %v861, %v4288
        %v4447 = vmul.f32 %v862, %v4303
        %v4448 = vmul.f32 %v859, %v4318
        %v4449 = vmul.f32 %v860, %v4333
        %v4450 = vmul.f32 %v861, %v4348
        %v4451 = vmul.f32 %v862, %v4363
        %v4452 = vmul.f32 %v859, %v4378
        %v4453 = vmul.f32 %v860, %v4393
        %v4454 = vmul.f32 %v861, %v4408
        %v4455 = vmul.f32 %v862, %v4423
        %v4456 = vadd.f32 %v4424, %v4425
        %v4457 = vadd.f32 %v4456, %v4426
        %v4458 = vadd.f32 %v4457, %v4427
        %v4459 = vrot.slane %v4458, 4
        %v4460 = vadd.f32 %v4458, %v4459
        %v4461 = vrot.slane %v4460, 2
        %v4462 = vadd.f32 %v4460, %v4461
        %v4463 = vrot.slane %v4462, 1
        %v4464 = vadd.f32 %v4462, %v4463
        %v4465 = vadd.f32 %v4428, %v4429
        %v4466 = vadd.f32 %v4465, %v4430
        %v4467 = vadd.f32 %v4466, %v4431
        %v4468 = vrot.slane %v4467, 4
        %v4469 = vadd.f32 %v4467, %v4468
        %v4470 = vrot.slane %v4469, 2
        %v4471 = vadd.f32 %v4469, %v4470
        %v4472 = vrot.slane %v4471, 1
        %v4473 = vadd.f32 %v4471, %v4472
        %v4474 = vadd.f32 %v4432, %v4433
        %v4475 = vadd.f32 %v4474, %v4434
        %v4476 = vadd.f32 %v4475, %v4435
        %v4477 = vrot.slane %v4476, 4
        %v4478 = vadd.f32 %v4476, %v4477
        %v4479 = vrot.slane %v4478, 2
        %v4480 = vadd.f32 %v4478, %v4479
        %v4481 = vrot.slane %v4480, 1
        %v4482 = vadd.f32 %v4480, %v4481
        %v4483 = vadd.f32 %v4436, %v4437
        %v4484 = vadd.f32 %v4483, %v4438
        %v4485 = vadd.f32 %v4484, %v4439
        %v4486 = vrot.slane %v4485, 4
        %v4487 = vadd.f32 %v4485, %v4486
        %v4488 = vrot.slane %v4487, 2
        %v4489 = vadd.f32 %v4487, %v4488
        %v4490 = vrot.slane %v4489, 1
        %v4491 = vadd.f32 %v4489, %v4490
        %v4492 = vadd.f32 %v4440, %v4441
        %v4493 = vadd.f32 %v4492, %v4442
        %v4494 = vadd.f32 %v4493, %v4443
        %v4495 = vrot.slane %v4494, 4
        %v4496 = vadd.f32 %v4494, %v4495
        %v4497 = vrot.slane %v4496, 2
        %v4498 = vadd.f32 %v4496, %v4497
        %v4499 = vrot.slane %v4498, 1
        %v4500 = vadd.f32 %v4498, %v4499
        %v4501 = vadd.f32 %v4444, %v4445
        %v4502 = vadd.f32 %v4501, %v4446
        %v4503 = vadd.f32 %v4502, %v4447
        %v4504 = vrot.slane %v4503, 4
        %v4505 = vadd.f32 %v4503, %v4504
        %v4506 = vrot.slane %v4505, 2
        %v4507 = vadd.f32 %v4505, %v4506
        %v4508 = vrot.slane %v4507, 1
        %v4509 = vadd.f32 %v4507, %v4508
        %v4510 = vadd.f32 %v4448, %v4449
        %v4511 = vadd.f32 %v4510, %v4450
        %v4512 = vadd.f32 %v4511, %v4451
        %v4513 = vrot.slane %v4512, 4
        %v4514 = vadd.f32 %v4512, %v4513
        %v4515 = vrot.slane %v4514, 2
        %v4516 = vadd.f32 %v4514, %v4515
        %v4517 = vrot.slane %v4516, 1
        %v4518 = vadd.f32 %v4516, %v4517
        %v4519 = vadd.f32 %v4452, %v4453
        %v4520 = vadd.f32 %v4519, %v4454
        %v4521 = vadd.f32 %v4520, %v4455
        %v4522 = vrot.slane %v4521, 4
        %v4523 = vadd.f32 %v4521, %v4522
        %v4524 = vrot.slane %v4523, 2
        %v4525 = vadd.f32 %v4523, %v4524
        %v4526 = vrot.slane %v4525, 1
        %v4527 = vadd.f32 %v4525, %v4526
        %v4528 = vmul.f32 %v851, %v3958
        %v4529 = vmul.f32 %v852, %v3973
        %v4530 = vmul.f32 %v853, %v3988
        %v4531 = vmul.f32 %v854, %v4003
        %v4532 = vmul.f32 %v851, %v4018
        %v4533 = vmul.f32 %v852, %v4033
        %v4534 = vmul.f32 %v853, %v4048
        %v4535 = vmul.f32 %v854, %v4063
        %v4536 = vmul.f32 %v851, %v4078
        %v4537 = vmul.f32 %v852, %v4093
        %v4538 = vmul.f32 %v853, %v4108
        %v4539 = vmul.f32 %v854, %v4123
        %v4540 = vmul.f32 %v851, %v4138
        %v4541 = vmul.f32 %v852, %v4153
        %v4542 = vmul.f32 %v853, %v4168
        %v4543 = vmul.f32 %v854, %v4183
        %v4544 = vmul.f32 %v851, %v4198
        %v4545 = vmul.f32 %v852, %v4213
        %v4546 = vmul.f32 %v853, %v4228
        %v4547 = vmul.f32 %v854, %v4243
        %v4548 = vmul.f32 %v851, %v4258
        %v4549 = vmul.f32 %v852, %v4273
        %v4550 = vmul.f32 %v853, %v4288
        %v4551 = vmul.f32 %v854, %v4303
        %v4552 = vmul.f32 %v851, %v4318
        %v4553 = vmul.f32 %v852, %v4333
        %v4554 = vmul.f32 %v853, %v4348
        %v4555 = vmul.f32 %v854, %v4363
        %v4556 = vmul.f32 %v851, %v4378
        %v4557 = vmul.f32 %v852, %v4393
        %v4558 = vmul.f32 %v853, %v4408
        %v4559 = vmul.f32 %v854, %v4423
        %v4560 = vadd.f32 %v4528, %v4529
        %v4561 = vadd.f32 %v4560, %v4530
        %v4562 = vadd.f32 %v4561, %v4531
        %v4563 = vrot.slane %v4562, 4
        %v4564 = vadd.f32 %v4562, %v4563
        %v4565 = vrot.slane %v4564, 2
        %v4566 = vadd.f32 %v4564, %v4565
        %v4567 = vrot.slane %v4566, 1
        %v4568 = vadd.f32 %v4566, %v4567
        %v4569 = vadd.f32 %v4532, %v4533
        %v4570 = vadd.f32 %v4569, %v4534
        %v4571 = vadd.f32 %v4570, %v4535
        %v4572 = vrot.slane %v4571, 4
        %v4573 = vadd.f32 %v4571, %v4572
        %v4574 = vrot.slane %v4573, 2
        %v4575 = vadd.f32 %v4573, %v4574
        %v4576 = vrot.slane %v4575, 1
        %v4577 = vadd.f32 %v4575, %v4576
        %v4578 = vadd.f32 %v4536, %v4537
        %v4579 = vadd.f32 %v4578, %v4538
        %v4580 = vadd.f32 %v4579, %v4539
        %v4581 = vrot.slane %v4580, 4
        %v4582 = vadd.f32 %v4580, %v4581
        %v4583 = vrot.slane %v4582, 2
        %v4584 = vadd.f32 %v4582, %v4583
        %v4585 = vrot.slane %v4584, 1
        %v4586 = vadd.f32 %v4584, %v4585
        %v4587 = vadd.f32 %v4540, %v4541
        %v4588 = vadd.f32 %v4587, %v4542
        %v4589 = vadd.f32 %v4588, %v4543
        %v4590 = vrot.slane %v4589, 4
        %v4591 = vadd.f32 %v4589, %v4590
        %v4592 = vrot.slane %v4591, 2
        %v4593 = vadd.f32 %v4591, %v4592
        %v4594 = vrot.slane %v4593, 1
        %v4595 = vadd.f32 %v4593, %v4594
        %v4596 = vadd.f32 %v4544, %v4545
        %v4597 = vadd.f32 %v4596, %v4546
        %v4598 = vadd.f32 %v4597, %v4547
        %v4599 = vrot.slane %v4598, 4
        %v4600 = vadd.f32 %v4598, %v4599
        %v4601 = vrot.slane %v4600, 2
        %v4602 = vadd.f32 %v4600, %v4601
        %v4603 = vrot.slane %v4602, 1
        %v4604 = vadd.f32 %v4602, %v4603
        %v4605 = vadd.f32 %v4548, %v4549
        %v4606 = vadd.f32 %v4605, %v4550
        %v4607 = vadd.f32 %v4606, %v4551
        %v4608 = vrot.slane %v4607, 4
        %v4609 = vadd.f32 %v4607, %v4608
        %v4610 = vrot.slane %v4609, 2
        %v4611 = vadd.f32 %v4609, %v4610
        %v4612 = vrot.slane %v4611, 1
        %v4613 = vadd.f32 %v4611, %v4612
        %v4614 = vadd.f32 %v4552, %v4553
        %v4615 = vadd.f32 %v4614, %v4554
        %v4616 = vadd.f32 %v4615, %v4555
        %v4617 = vrot.slane %v4616, 4
        %v4618 = vadd.f32 %v4616, %v4617
        %v4619 = vrot.slane %v4618, 2
        %v4620 = vadd.f32 %v4618, %v4619
        %v4621 = vrot.slane %v4620, 1
        %v4622 = vadd.f32 %v4620, %v4621
        %v4623 = vadd.f32 %v4556, %v4557
        %v4624 = vadd.f32 %v4623, %v4558
        %v4625 = vadd.f32 %v4624, %v4559
        %v4626 = vrot.slane %v4625, 4
        %v4627 = vadd.f32 %v4625, %v4626
        %v4628 = vrot.slane %v4627, 2
        %v4629 = vadd.f32 %v4627, %v4628
        %v4630 = vrot.slane %v4629, 1
        %v4631 = vadd.f32 %v4629, %v4630
        %v4632 = vmul.f32 %v1228, %v3551
        %v4633 = vadd.f32 %v4632, %v1258
        %v4642 = vsel %vm1243, %v4473, %v4464
        %v4643 = vsel %vm1245, %v4482, %v4642
        %v4644 = vsel %vm1247, %v4491, %v4643
        %v4645 = vsel %vm1249, %v4500, %v4644
        %v4646 = vsel %vm1251, %v4509, %v4645
        %v4647 = vsel %vm1253, %v4518, %v4646
        %v4648 = vsel %vm1255, %v4527, %v4647
        %v4650 = vadd.f32 %v4633, %v4648
        %v4659 = vsel %vm1243, %v4577, %v4568
        %v4660 = vsel %vm1245, %v4586, %v4659
        %v4661 = vsel %vm1247, %v4595, %v4660
        %v4662 = vsel %vm1249, %v4604, %v4661
        %v4663 = vsel %vm1251, %v4613, %v4662
        %v4664 = vsel %vm1253, %v4622, %v4663
        %v4665 = vsel %vm1255, %v4631, %v4664
        %v4667 = vadd.f32 %v1280, %v4665
        %v4668 = vrcp.pop %v4667
        %v4669 = vmul.f32 %v4667, %v4668
        %v4670 = vsub.f32 1.0, %v4669
        %v4671 = vmul.f32 %v4668, %v4670
        %v4672 = vadd.f32 %v4668, %v4671
        %vm4673 = vweird.f32 %v4667
        %vm4674 = vweird.f32 %v4668
        %vm4675 = vmor %vm4673, %vm4674
        %v4676 = vsel %vm4675, %v4668, %v4672
        %v4677 = vand.u32 2147483647, %v4667
        %vm4678 = vcmp.eq.f32.partialorder %v4677, 8.507059e+37
        %v4679 = vand.u32 %v4667, 2147483648
        %v4680 = vor.u32 1.1754944e-38, %v4679
        %v4681 = vsel %vm4678, %v4680, %v4676
        %v4682 = vmul.f32 %v4650, %v4681
        %v4683 = vperm.slane %v4682, 0
        %v4684 = vlaneseq
        %v4685 = vshrl.u32 %v4684, 7
        %4687 = vset.pattern.permute.xlu0 %v4685
        %4688 = vperm.xlu0 %4687, %v4683
        %v4689 = vpop.permute.xlu0 %4688
        %v4690 = vlaneseq
        %v4691 = vshrl.u32 %v4690, 7
        %v4692 = vadd.s32 %v4691, 8
        %4693 = vset.pattern.permute.xlu0 %v4692
        %4694 = vperm.xlu0 %4693, %v4683
        %v4695 = vpop.permute.xlu0 %4694
        %v4696 = vlaneseq
        %v4697 = vshrl.u32 %v4696, 7
        %v4698 = vadd.s32 %v4697, 16
        %4699 = vset.pattern.permute.xlu0 %v4698
        %4700 = vperm.xlu0 %4699, %v4683
        %v4701 = vpop.permute.xlu0 %4700
        %v4702 = vlaneseq
        %v4703 = vshrl.u32 %v4702, 7
        %v4704 = vadd.s32 %v4703, 24
        %4705 = vset.pattern.permute.xlu0 %v4704
        %4706 = vperm.xlu0 %4705, %v4683
        %v4707 = vpop.permute.xlu0 %4706
        %v4708 = vperm.slane %v4682, 1
        %v4709 = vlaneseq
        %v4710 = vshrl.u32 %v4709, 7
        %4712 = vset.pattern.permute.xlu0 %v4710
        %4713 = vperm.xlu0 %4712, %v4708
        %v4714 = vpop.permute.xlu0 %4713
        %v4715 = vlaneseq
        %v4716 = vshrl.u32 %v4715, 7
        %v4717 = vadd.s32 %v4716, 8
        %4718 = vset.pattern.permute.xlu0 %v4717
        %4719 = vperm.xlu0 %4718, %v4708
        %v4720 = vpop.permute.xlu0 %4719
        %v4721 = vlaneseq
        %v4722 = vshrl.u32 %v4721, 7
        %v4723 = vadd.s32 %v4722, 16
        %4724 = vset.pattern.permute.xlu0 %v4723
        %4725 = vperm.xlu0 %4724, %v4708
        %v4726 = vpop.permute.xlu0 %4725
        %v4727 = vlaneseq
        %v4728 = vshrl.u32 %v4727, 7
        %v4729 = vadd.s32 %v4728, 24
        %4730 = vset.pattern.permute.xlu0 %v4729
        %4731 = vperm.xlu0 %4730, %v4708
        %v4732 = vpop.permute.xlu0 %4731
        %v4733 = vperm.slane %v4682, 2
        %v4734 = vlaneseq
        %v4735 = vshrl.u32 %v4734, 7
        %4737 = vset.pattern.permute.xlu0 %v4735
        %4738 = vperm.xlu0 %4737, %v4733
        %v4739 = vpop.permute.xlu0 %4738
        %v4740 = vlaneseq
        %v4741 = vshrl.u32 %v4740, 7
        %v4742 = vadd.s32 %v4741, 8
        %4743 = vset.pattern.permute.xlu0 %v4742
        %4744 = vperm.xlu0 %4743, %v4733
        %v4745 = vpop.permute.xlu0 %4744
        %v4746 = vlaneseq
        %v4747 = vshrl.u32 %v4746, 7
        %v4748 = vadd.s32 %v4747, 16
        %4749 = vset.pattern.permute.xlu0 %v4748
        %4750 = vperm.xlu0 %4749, %v4733
        %v4751 = vpop.permute.xlu0 %4750
        %v4752 = vlaneseq
        %v4753 = vshrl.u32 %v4752, 7
        %v4754 = vadd.s32 %v4753, 24
        %4755 = vset.pattern.permute.xlu0 %v4754
        %4756 = vperm.xlu0 %4755, %v4733
        %v4757 = vpop.permute.xlu0 %4756
        %v4758 = vperm.slane %v4682, 3
        %v4759 = vlaneseq
        %v4760 = vshrl.u32 %v4759, 7
        %4762 = vset.pattern.permute.xlu0 %v4760
        %4763 = vperm.xlu0 %4762, %v4758
        %v4764 = vpop.permute.xlu0 %4763
        %v4765 = vlaneseq
        %v4766 = vshrl.u32 %v4765, 7
        %v4767 = vadd.s32 %v4766, 8
        %4768 = vset.pattern.permute.xlu0 %v4767
        %4769 = vperm.xlu0 %4768, %v4758
        %v4770 = vpop.permute.xlu0 %4769
        %v4771 = vlaneseq
        %v4772 = vshrl.u32 %v4771, 7
        %v4773 = vadd.s32 %v4772, 16
        %4774 = vset.pattern.permute.xlu0 %v4773
        %4775 = vperm.xlu0 %4774, %v4758
        %v4776 = vpop.permute.xlu0 %4775
        %v4777 = vlaneseq
        %v4778 = vshrl.u32 %v4777, 7
        %v4779 = vadd.s32 %v4778, 24
        %4780 = vset.pattern.permute.xlu0 %v4779
        %4781 = vperm.xlu0 %4780, %v4758
        %v4782 = vpop.permute.xlu0 %4781
        %v4783 = vperm.slane %v4682, 4
        %v4784 = vlaneseq
        %v4785 = vshrl.u32 %v4784, 7
        %4787 = vset.pattern.permute.xlu0 %v4785
        %4788 = vperm.xlu0 %4787, %v4783
        %v4789 = vpop.permute.xlu0 %4788
        %v4790 = vlaneseq
        %v4791 = vshrl.u32 %v4790, 7
        %v4792 = vadd.s32 %v4791, 8
        %4793 = vset.pattern.permute.xlu0 %v4792
        %4794 = vperm.xlu0 %4793, %v4783
        %v4795 = vpop.permute.xlu0 %4794
        %v4796 = vlaneseq
        %v4797 = vshrl.u32 %v4796, 7
        %v4798 = vadd.s32 %v4797, 16
        %4799 = vset.pattern.permute.xlu0 %v4798
        %4800 = vperm.xlu0 %4799, %v4783
        %v4801 = vpop.permute.xlu0 %4800
        %v4802 = vlaneseq
        %v4803 = vshrl.u32 %v4802, 7
        %v4804 = vadd.s32 %v4803, 24
        %4805 = vset.pattern.permute.xlu0 %v4804
        %4806 = vperm.xlu0 %4805, %v4783
        %v4807 = vpop.permute.xlu0 %4806
        %v4808 = vperm.slane %v4682, 5
        %v4809 = vlaneseq
        %v4810 = vshrl.u32 %v4809, 7
        %4812 = vset.pattern.permute.xlu0 %v4810
        %4813 = vperm.xlu0 %4812, %v4808
        %v4814 = vpop.permute.xlu0 %4813
        %v4815 = vlaneseq
        %v4816 = vshrl.u32 %v4815, 7
        %v4817 = vadd.s32 %v4816, 8
        %4818 = vset.pattern.permute.xlu0 %v4817
        %4819 = vperm.xlu0 %4818, %v4808
        %v4820 = vpop.permute.xlu0 %4819
        %v4821 = vlaneseq
        %v4822 = vshrl.u32 %v4821, 7
        %v4823 = vadd.s32 %v4822, 16
        %4824 = vset.pattern.permute.xlu0 %v4823
        %4825 = vperm.xlu0 %4824, %v4808
        %v4826 = vpop.permute.xlu0 %4825
        %v4827 = vlaneseq
        %v4828 = vshrl.u32 %v4827, 7
        %v4829 = vadd.s32 %v4828, 24
        %4830 = vset.pattern.permute.xlu0 %v4829
        %4831 = vperm.xlu0 %4830, %v4808
        %v4832 = vpop.permute.xlu0 %4831
        %v4833 = vperm.slane %v4682, 6
        %v4834 = vlaneseq
        %v4835 = vshrl.u32 %v4834, 7
        %4837 = vset.pattern.permute.xlu0 %v4835
        %4838 = vperm.xlu0 %4837, %v4833
        %v4839 = vpop.permute.xlu0 %4838
        %v4840 = vlaneseq
        %v4841 = vshrl.u32 %v4840, 7
        %v4842 = vadd.s32 %v4841, 8
        %4843 = vset.pattern.permute.xlu0 %v4842
        %4844 = vperm.xlu0 %4843, %v4833
        %v4845 = vpop.permute.xlu0 %4844
        %v4846 = vlaneseq
        %v4847 = vshrl.u32 %v4846, 7
        %v4848 = vadd.s32 %v4847, 16
        %4849 = vset.pattern.permute.xlu0 %v4848
        %4850 = vperm.xlu0 %4849, %v4833
        %v4851 = vpop.permute.xlu0 %4850
        %v4852 = vlaneseq
        %v4853 = vshrl.u32 %v4852, 7
        %v4854 = vadd.s32 %v4853, 24
        %4855 = vset.pattern.permute.xlu0 %v4854
        %4856 = vperm.xlu0 %4855, %v4833
        %v4857 = vpop.permute.xlu0 %4856
        %v4858 = vperm.slane %v4682, 7
        %v4859 = vlaneseq
        %v4860 = vshrl.u32 %v4859, 7
        %4862 = vset.pattern.permute.xlu0 %v4860
        %4863 = vperm.xlu0 %4862, %v4858
        %v4864 = vpop.permute.xlu0 %4863
        %v4865 = vlaneseq
        %v4866 = vshrl.u32 %v4865, 7
        %v4867 = vadd.s32 %v4866, 8
        %4868 = vset.pattern.permute.xlu0 %v4867
        %4869 = vperm.xlu0 %4868, %v4858
        %v4870 = vpop.permute.xlu0 %4869
        %v4871 = vlaneseq
        %v4872 = vshrl.u32 %v4871, 7
        %v4873 = vadd.s32 %v4872, 16
        %4874 = vset.pattern.permute.xlu0 %v4873
        %4875 = vperm.xlu0 %4874, %v4858
        %v4876 = vpop.permute.xlu0 %4875
        %v4877 = vlaneseq
        %v4878 = vshrl.u32 %v4877, 7
        %v4879 = vadd.s32 %v4878, 24
        %4880 = vset.pattern.permute.xlu0 %v4879
        %4881 = vperm.xlu0 %4880, %v4858
        %v4882 = vpop.permute.xlu0 %4881
        %v4883 = vsub.f32 %v4689, %v1281
        %v4884 = vsub.f32 %v4695, %v1282
        %v4885 = vsub.f32 %v4701, %v1283
        %v4886 = vsub.f32 %v4707, %v1284
        %v4887 = vsub.f32 %v4714, %v1281
        %v4888 = vsub.f32 %v4720, %v1282
        %v4889 = vsub.f32 %v4726, %v1283
        %v4890 = vsub.f32 %v4732, %v1284
        %v4891 = vsub.f32 %v4739, %v1281
        %v4892 = vsub.f32 %v4745, %v1282
        %v4893 = vsub.f32 %v4751, %v1283
        %v4894 = vsub.f32 %v4757, %v1284
        %v4895 = vsub.f32 %v4764, %v1281
        %v4896 = vsub.f32 %v4770, %v1282
        %v4897 = vsub.f32 %v4776, %v1283
        %v4898 = vsub.f32 %v4782, %v1284
        %v4899 = vsub.f32 %v4789, %v1281
        %v4900 = vsub.f32 %v4795, %v1282
        %v4901 = vsub.f32 %v4801, %v1283
        %v4902 = vsub.f32 %v4807, %v1284
        %v4903 = vsub.f32 %v4814, %v1281
        %v4904 = vsub.f32 %v4820, %v1282
        %v4905 = vsub.f32 %v4826, %v1283
        %v4906 = vsub.f32 %v4832, %v1284
        %v4907 = vsub.f32 %v4839, %v1281
        %v4908 = vsub.f32 %v4845, %v1282
        %v4909 = vsub.f32 %v4851, %v1283
        %v4910 = vsub.f32 %v4857, %v1284
        %v4911 = vsub.f32 %v4864, %v1281
        %v4912 = vsub.f32 %v4870, %v1282
        %v4913 = vsub.f32 %v4876, %v1283
        %v4914 = vsub.f32 %v4882, %v1284
        %v4915 = vmul.f32 %v4883, %v1285
        %v4916 = vmul.f32 %v4884, %v1286
        %v4917 = vmul.f32 %v4885, %v1287
        %v4918 = vmul.f32 %v4886, %v1288
        %v4919 = vmul.f32 %v4887, %v1285
        %v4920 = vmul.f32 %v4888, %v1286
        %v4921 = vmul.f32 %v4889, %v1287
        %v4922 = vmul.f32 %v4890, %v1288
        %v4923 = vmul.f32 %v4891, %v1285
        %v4924 = vmul.f32 %v4892, %v1286
        %v4925 = vmul.f32 %v4893, %v1287
        %v4926 = vmul.f32 %v4894, %v1288
        %v4927 = vmul.f32 %v4895, %v1285
        %v4928 = vmul.f32 %v4896, %v1286
        %v4929 = vmul.f32 %v4897, %v1287
        %v4930 = vmul.f32 %v4898, %v1288
        %v4931 = vmul.f32 %v4899, %v1285
        %v4932 = vmul.f32 %v4900, %v1286
        %v4933 = vmul.f32 %v4901, %v1287
        %v4934 = vmul.f32 %v4902, %v1288
        %v4935 = vmul.f32 %v4903, %v1285
        %v4936 = vmul.f32 %v4904, %v1286
        %v4937 = vmul.f32 %v4905, %v1287
        %v4938 = vmul.f32 %v4906, %v1288
        %v4939 = vmul.f32 %v4907, %v1285
        %v4940 = vmul.f32 %v4908, %v1286
        %v4941 = vmul.f32 %v4909, %v1287
        %v4942 = vmul.f32 %v4910, %v1288
        %v4943 = vmul.f32 %v4911, %v1285
        %v4944 = vmul.f32 %v4912, %v1286
        %v4945 = vmul.f32 %v4913, %v1287
        %v4946 = vmul.f32 %v4914, %v1288
        %v4947 = vxor.u32 %v4915, 2147483648
        %v4948 = vxor.u32 %v4916, 2147483648
        %v4949 = vxor.u32 %v4917, 2147483648
        %v4950 = vxor.u32 %v4918, 2147483648
        %v4951 = vxor.u32 %v4919, 2147483648
        %v4952 = vxor.u32 %v4920, 2147483648
        %v4953 = vxor.u32 %v4921, 2147483648
        %v4954 = vxor.u32 %v4922, 2147483648
        %v4955 = vxor.u32 %v4923, 2147483648
        %v4956 = vxor.u32 %v4924, 2147483648
        %v4957 = vxor.u32 %v4925, 2147483648
        %v4958 = vxor.u32 %v4926, 2147483648
        %v4959 = vxor.u32 %v4927, 2147483648
        %v4960 = vxor.u32 %v4928, 2147483648
        %v4961 = vxor.u32 %v4929, 2147483648
        %v4962 = vxor.u32 %v4930, 2147483648
        %v4963 = vxor.u32 %v4931, 2147483648
        %v4964 = vxor.u32 %v4932, 2147483648
        %v4965 = vxor.u32 %v4933, 2147483648
        %v4966 = vxor.u32 %v4934, 2147483648
        %v4967 = vxor.u32 %v4935, 2147483648
        %v4968 = vxor.u32 %v4936, 2147483648
        %v4969 = vxor.u32 %v4937, 2147483648
        %v4970 = vxor.u32 %v4938, 2147483648
        %v4971 = vxor.u32 %v4939, 2147483648
        %v4972 = vxor.u32 %v4940, 2147483648
        %v4973 = vxor.u32 %v4941, 2147483648
        %v4974 = vxor.u32 %v4942, 2147483648
        %v4975 = vxor.u32 %v4943, 2147483648
        %v4976 = vxor.u32 %v4944, 2147483648
        %v4977 = vxor.u32 %v4945, 2147483648
        %v4978 = vxor.u32 %v4946, 2147483648
        %v4979 = vmul.f32 %v4947, 1.442695
        %v4980 = vpow.pop %v4979
        %v4981 = vmul.f32 %v4948, 1.442695
        %v4982 = vpow.pop %v4981
        %v4983 = vmul.f32 %v4949, 1.442695
        %v4984 = vpow.pop %v4983
        %v4985 = vmul.f32 %v4950, 1.442695
        %v4986 = vpow.pop %v4985
        %v4987 = vmul.f32 %v4951, 1.442695
        %v4988 = vpow.pop %v4987
        %v4989 = vmul.f32 %v4952, 1.442695
        %v4990 = vpow.pop %v4989
        %v4991 = vmul.f32 %v4953, 1.442695
        %v4992 = vpow.pop %v4991
        %v4993 = vmul.f32 %v4954, 1.442695
        %v4994 = vpow.pop %v4993
        %v4995 = vmul.f32 %v4955, 1.442695
        %v4996 = vpow.pop %v4995
        %v4997 = vmul.f32 %v4956, 1.442695
        %v4998 = vpow.pop %v4997
        %v4999 = vmul.f32 %v4957, 1.442695
        %v5000 = vpow.pop %v4999
        %v5001 = vmul.f32 %v4958, 1.442695
        %v5002 = vpow.pop %v5001
        %v5003 = vmul.f32 %v4959, 1.442695
        %v5004 = vpow.pop %v5003
        %v5005 = vmul.f32 %v4960, 1.442695
        %v5006 = vpow.pop %v5005
        %v5007 = vmul.f32 %v4961, 1.442695
        %v5008 = vpow.pop %v5007
        %v5009 = vmul.f32 %v4962, 1.442695
        %v5010 = vpow.pop %v5009
        %v5011 = vmul.f32 %v4963, 1.442695
        %v5012 = vpow.pop %v5011
        %v5013 = vmul.f32 %v4964, 1.442695
        %v5014 = vpow.pop %v5013
        %v5015 = vmul.f32 %v4965, 1.442695
        %v5016 = vpow.pop %v5015
        %v5017 = vmul.f32 %v4966, 1.442695
        %v5018 = vpow.pop %v5017
        %v5019 = vmul.f32 %v4967, 1.442695
        %v5020 = vpow.pop %v5019
        %v5021 = vmul.f32 %v4968, 1.442695
        %v5022 = vpow.pop %v5021
        %v5023 = vmul.f32 %v4969, 1.442695
        %v5024 = vpow.pop %v5023
        %v5025 = vmul.f32 %v4970, 1.442695
        %v5026 = vpow.pop %v5025
        %v5027 = vmul.f32 %v4971, 1.442695
        %v5028 = vpow.pop %v5027
        %v5029 = vmul.f32 %v4972, 1.442695
        %v5030 = vpow.pop %v5029
        %v5031 = vmul.f32 %v4973, 1.442695
        %v5032 = vpow.pop %v5031
        %v5033 = vmul.f32 %v4974, 1.442695
        %v5034 = vpow.pop %v5033
        %v5035 = vmul.f32 %v4975, 1.442695
        %v5036 = vpow.pop %v5035
        %v5037 = vmul.f32 %v4976, 1.442695
        %v5038 = vpow.pop %v5037
        %v5039 = vmul.f32 %v4977, 1.442695
        %v5040 = vpow.pop %v5039
        %v5041 = vmul.f32 %v4978, 1.442695
        %v5042 = vpow.pop %v5041
        %v5043 = vadd.f32 %v4980, 1.0
        %v5044 = vadd.f32 %v4982, 1.0
        %v5045 = vadd.f32 %v4984, 1.0
        %v5046 = vadd.f32 %v4986, 1.0
        %v5047 = vadd.f32 %v4988, 1.0
        %v5048 = vadd.f32 %v4990, 1.0
        %v5049 = vadd.f32 %v4992, 1.0
        %v5050 = vadd.f32 %v4994, 1.0
        %v5051 = vadd.f32 %v4996, 1.0
        %v5052 = vadd.f32 %v4998, 1.0
        %v5053 = vadd.f32 %v5000, 1.0
        %v5054 = vadd.f32 %v5002, 1.0
        %v5055 = vadd.f32 %v5004, 1.0
        %v5056 = vadd.f32 %v5006, 1.0
        %v5057 = vadd.f32 %v5008, 1.0
        %v5058 = vadd.f32 %v5010, 1.0
        %v5059 = vadd.f32 %v5012, 1.0
        %v5060 = vadd.f32 %v5014, 1.0
        %v5061 = vadd.f32 %v5016, 1.0
        %v5062 = vadd.f32 %v5018, 1.0
        %v5063 = vadd.f32 %v5020, 1.0
        %v5064 = vadd.f32 %v5022, 1.0
        %v5065 = vadd.f32 %v5024, 1.0
        %v5066 = vadd.f32 %v5026, 1.0
        %v5067 = vadd.f32 %v5028, 1.0
        %v5068 = vadd.f32 %v5030, 1.0
        %v5069 = vadd.f32 %v5032, 1.0
        %v5070 = vadd.f32 %v5034, 1.0
        %v5071 = vadd.f32 %v5036, 1.0
        %v5072 = vadd.f32 %v5038, 1.0
        %v5073 = vadd.f32 %v5040, 1.0
        %v5074 = vadd.f32 %v5042, 1.0
        %v5075 = vrcp.pop %v5043
        %v5076 = vmul.f32 %v5043, %v5075
        %v5077 = vsub.f32 1.0, %v5076
        %v5078 = vmul.f32 %v5075, %v5077
        %v5079 = vadd.f32 %v5075, %v5078
        %vm5080 = vweird.f32 %v5043
        %vm5081 = vweird.f32 %v5075
        %vm5082 = vmor %vm5080, %vm5081
        %v5083 = vsel %vm5082, %v5075, %v5079
        %v5084 = vand.u32 2147483647, %v5043
        %vm5085 = vcmp.eq.f32.partialorder %v5084, 8.507059e+37
        %v5086 = vand.u32 %v5043, 2147483648
        %v5087 = vor.u32 1.1754944e-38, %v5086
        %v5088 = vsel %vm5085, %v5087, %v5083
        %v5089 = vmul.f32 1.0, %v5088
        %v5090 = vrcp.pop %v5044
        %v5091 = vmul.f32 %v5044, %v5090
        %v5092 = vsub.f32 1.0, %v5091
        %v5093 = vmul.f32 %v5090, %v5092
        %v5094 = vadd.f32 %v5090, %v5093
        %vm5095 = vweird.f32 %v5044
        %vm5096 = vweird.f32 %v5090
        %vm5097 = vmor %vm5095, %vm5096
        %v5098 = vsel %vm5097, %v5090, %v5094
        %v5099 = vand.u32 2147483647, %v5044
        %vm5100 = vcmp.eq.f32.partialorder %v5099, 8.507059e+37
        %v5101 = vand.u32 %v5044, 2147483648
        %v5102 = vor.u32 1.1754944e-38, %v5101
        %v5103 = vsel %vm5100, %v5102, %v5098
        %v5104 = vmul.f32 1.0, %v5103
        %v5105 = vrcp.pop %v5045
        %v5106 = vmul.f32 %v5045, %v5105
        %v5107 = vsub.f32 1.0, %v5106
        %v5108 = vmul.f32 %v5105, %v5107
        %v5109 = vadd.f32 %v5105, %v5108
        %vm5110 = vweird.f32 %v5045
        %vm5111 = vweird.f32 %v5105
        %vm5112 = vmor %vm5110, %vm5111
        %v5113 = vsel %vm5112, %v5105, %v5109
        %v5114 = vand.u32 2147483647, %v5045
        %vm5115 = vcmp.eq.f32.partialorder %v5114, 8.507059e+37
        %v5116 = vand.u32 %v5045, 2147483648
        %v5117 = vor.u32 1.1754944e-38, %v5116
        %v5118 = vsel %vm5115, %v5117, %v5113
        %v5119 = vmul.f32 1.0, %v5118
        %v5120 = vrcp.pop %v5046
        %v5121 = vmul.f32 %v5046, %v5120
        %v5122 = vsub.f32 1.0, %v5121
        %v5123 = vmul.f32 %v5120, %v5122
        %v5124 = vadd.f32 %v5120, %v5123
        %vm5125 = vweird.f32 %v5046
        %vm5126 = vweird.f32 %v5120
        %vm5127 = vmor %vm5125, %vm5126
        %v5128 = vsel %vm5127, %v5120, %v5124
        %v5129 = vand.u32 2147483647, %v5046
        %vm5130 = vcmp.eq.f32.partialorder %v5129, 8.507059e+37
        %v5131 = vand.u32 %v5046, 2147483648
        %v5132 = vor.u32 1.1754944e-38, %v5131
        %v5133 = vsel %vm5130, %v5132, %v5128
        %v5134 = vmul.f32 1.0, %v5133
        %v5135 = vrcp.pop %v5047
        %v5136 = vmul.f32 %v5047, %v5135
        %v5137 = vsub.f32 1.0, %v5136
        %v5138 = vmul.f32 %v5135, %v5137
        %v5139 = vadd.f32 %v5135, %v5138
        %vm5140 = vweird.f32 %v5047
        %vm5141 = vweird.f32 %v5135
        %vm5142 = vmor %vm5140, %vm5141
        %v5143 = vsel %vm5142, %v5135, %v5139
        %v5144 = vand.u32 2147483647, %v5047
        %vm5145 = vcmp.eq.f32.partialorder %v5144, 8.507059e+37
        %v5146 = vand.u32 %v5047, 2147483648
        %v5147 = vor.u32 1.1754944e-38, %v5146
        %v5148 = vsel %vm5145, %v5147, %v5143
        %v5149 = vmul.f32 1.0, %v5148
        %v5150 = vrcp.pop %v5048
        %v5151 = vmul.f32 %v5048, %v5150
        %v5152 = vsub.f32 1.0, %v5151
        %v5153 = vmul.f32 %v5150, %v5152
        %v5154 = vadd.f32 %v5150, %v5153
        %vm5155 = vweird.f32 %v5048
        %vm5156 = vweird.f32 %v5150
        %vm5157 = vmor %vm5155, %vm5156
        %v5158 = vsel %vm5157, %v5150, %v5154
        %v5159 = vand.u32 2147483647, %v5048
        %vm5160 = vcmp.eq.f32.partialorder %v5159, 8.507059e+37
        %v5161 = vand.u32 %v5048, 2147483648
        %v5162 = vor.u32 1.1754944e-38, %v5161
        %v5163 = vsel %vm5160, %v5162, %v5158
        %v5164 = vmul.f32 1.0, %v5163
        %v5165 = vrcp.pop %v5049
        %v5166 = vmul.f32 %v5049, %v5165
        %v5167 = vsub.f32 1.0, %v5166
        %v5168 = vmul.f32 %v5165, %v5167
        %v5169 = vadd.f32 %v5165, %v5168
        %vm5170 = vweird.f32 %v5049
        %vm5171 = vweird.f32 %v5165
        %vm5172 = vmor %vm5170, %vm5171
        %v5173 = vsel %vm5172, %v5165, %v5169
        %v5174 = vand.u32 2147483647, %v5049
        %vm5175 = vcmp.eq.f32.partialorder %v5174, 8.507059e+37
        %v5176 = vand.u32 %v5049, 2147483648
        %v5177 = vor.u32 1.1754944e-38, %v5176
        %v5178 = vsel %vm5175, %v5177, %v5173
        %v5179 = vmul.f32 1.0, %v5178
        %v5180 = vrcp.pop %v5050
        %v5181 = vmul.f32 %v5050, %v5180
        %v5182 = vsub.f32 1.0, %v5181
        %v5183 = vmul.f32 %v5180, %v5182
        %v5184 = vadd.f32 %v5180, %v5183
        %vm5185 = vweird.f32 %v5050
        %vm5186 = vweird.f32 %v5180
        %vm5187 = vmor %vm5185, %vm5186
        %v5188 = vsel %vm5187, %v5180, %v5184
        %v5189 = vand.u32 2147483647, %v5050
        %vm5190 = vcmp.eq.f32.partialorder %v5189, 8.507059e+37
        %v5191 = vand.u32 %v5050, 2147483648
        %v5192 = vor.u32 1.1754944e-38, %v5191
        %v5193 = vsel %vm5190, %v5192, %v5188
        %v5194 = vmul.f32 1.0, %v5193
        %v5195 = vrcp.pop %v5051
        %v5196 = vmul.f32 %v5051, %v5195
        %v5197 = vsub.f32 1.0, %v5196
        %v5198 = vmul.f32 %v5195, %v5197
        %v5199 = vadd.f32 %v5195, %v5198
        %vm5200 = vweird.f32 %v5051
        %vm5201 = vweird.f32 %v5195
        %vm5202 = vmor %vm5200, %vm5201
        %v5203 = vsel %vm5202, %v5195, %v5199
        %v5204 = vand.u32 2147483647, %v5051
        %vm5205 = vcmp.eq.f32.partialorder %v5204, 8.507059e+37
        %v5206 = vand.u32 %v5051, 2147483648
        %v5207 = vor.u32 1.1754944e-38, %v5206
        %v5208 = vsel %vm5205, %v5207, %v5203
        %v5209 = vmul.f32 1.0, %v5208
        %v5210 = vrcp.pop %v5052
        %v5211 = vmul.f32 %v5052, %v5210
        %v5212 = vsub.f32 1.0, %v5211
        %v5213 = vmul.f32 %v5210, %v5212
        %v5214 = vadd.f32 %v5210, %v5213
        %vm5215 = vweird.f32 %v5052
        %vm5216 = vweird.f32 %v5210
        %vm5217 = vmor %vm5215, %vm5216
        %v5218 = vsel %vm5217, %v5210, %v5214
        %v5219 = vand.u32 2147483647, %v5052
        %vm5220 = vcmp.eq.f32.partialorder %v5219, 8.507059e+37
        %v5221 = vand.u32 %v5052, 2147483648
        %v5222 = vor.u32 1.1754944e-38, %v5221
        %v5223 = vsel %vm5220, %v5222, %v5218
        %v5224 = vmul.f32 1.0, %v5223
        %v5225 = vrcp.pop %v5053
        %v5226 = vmul.f32 %v5053, %v5225
        %v5227 = vsub.f32 1.0, %v5226
        %v5228 = vmul.f32 %v5225, %v5227
        %v5229 = vadd.f32 %v5225, %v5228
        %vm5230 = vweird.f32 %v5053
        %vm5231 = vweird.f32 %v5225
        %vm5232 = vmor %vm5230, %vm5231
        %v5233 = vsel %vm5232, %v5225, %v5229
        %v5234 = vand.u32 2147483647, %v5053
        %vm5235 = vcmp.eq.f32.partialorder %v5234, 8.507059e+37
        %v5236 = vand.u32 %v5053, 2147483648
        %v5237 = vor.u32 1.1754944e-38, %v5236
        %v5238 = vsel %vm5235, %v5237, %v5233
        %v5239 = vmul.f32 1.0, %v5238
        %v5240 = vrcp.pop %v5054
        %v5241 = vmul.f32 %v5054, %v5240
        %v5242 = vsub.f32 1.0, %v5241
        %v5243 = vmul.f32 %v5240, %v5242
        %v5244 = vadd.f32 %v5240, %v5243
        %vm5245 = vweird.f32 %v5054
        %vm5246 = vweird.f32 %v5240
        %vm5247 = vmor %vm5245, %vm5246
        %v5248 = vsel %vm5247, %v5240, %v5244
        %v5249 = vand.u32 2147483647, %v5054
        %vm5250 = vcmp.eq.f32.partialorder %v5249, 8.507059e+37
        %v5251 = vand.u32 %v5054, 2147483648
        %v5252 = vor.u32 1.1754944e-38, %v5251
        %v5253 = vsel %vm5250, %v5252, %v5248
        %v5254 = vmul.f32 1.0, %v5253
        %v5255 = vrcp.pop %v5055
        %v5256 = vmul.f32 %v5055, %v5255
        %v5257 = vsub.f32 1.0, %v5256
        %v5258 = vmul.f32 %v5255, %v5257
        %v5259 = vadd.f32 %v5255, %v5258
        %vm5260 = vweird.f32 %v5055
        %vm5261 = vweird.f32 %v5255
        %vm5262 = vmor %vm5260, %vm5261
        %v5263 = vsel %vm5262, %v5255, %v5259
        %v5264 = vand.u32 2147483647, %v5055
        %vm5265 = vcmp.eq.f32.partialorder %v5264, 8.507059e+37
        %v5266 = vand.u32 %v5055, 2147483648
        %v5267 = vor.u32 1.1754944e-38, %v5266
        %v5268 = vsel %vm5265, %v5267, %v5263
        %v5269 = vmul.f32 1.0, %v5268
        %v5270 = vrcp.pop %v5056
        %v5271 = vmul.f32 %v5056, %v5270
        %v5272 = vsub.f32 1.0, %v5271
        %v5273 = vmul.f32 %v5270, %v5272
        %v5274 = vadd.f32 %v5270, %v5273
        %vm5275 = vweird.f32 %v5056
        %vm5276 = vweird.f32 %v5270
        %vm5277 = vmor %vm5275, %vm5276
        %v5278 = vsel %vm5277, %v5270, %v5274
        %v5279 = vand.u32 2147483647, %v5056
        %vm5280 = vcmp.eq.f32.partialorder %v5279, 8.507059e+37
        %v5281 = vand.u32 %v5056, 2147483648
        %v5282 = vor.u32 1.1754944e-38, %v5281
        %v5283 = vsel %vm5280, %v5282, %v5278
        %v5284 = vmul.f32 1.0, %v5283
        %v5285 = vrcp.pop %v5057
        %v5286 = vmul.f32 %v5057, %v5285
        %v5287 = vsub.f32 1.0, %v5286
        %v5288 = vmul.f32 %v5285, %v5287
        %v5289 = vadd.f32 %v5285, %v5288
        %vm5290 = vweird.f32 %v5057
        %vm5291 = vweird.f32 %v5285
        %vm5292 = vmor %vm5290, %vm5291
        %v5293 = vsel %vm5292, %v5285, %v5289
        %v5294 = vand.u32 2147483647, %v5057
        %vm5295 = vcmp.eq.f32.partialorder %v5294, 8.507059e+37
        %v5296 = vand.u32 %v5057, 2147483648
        %v5297 = vor.u32 1.1754944e-38, %v5296
        %v5298 = vsel %vm5295, %v5297, %v5293
        %v5299 = vmul.f32 1.0, %v5298
        %v5300 = vrcp.pop %v5058
        %v5301 = vmul.f32 %v5058, %v5300
        %v5302 = vsub.f32 1.0, %v5301
        %v5303 = vmul.f32 %v5300, %v5302
        %v5304 = vadd.f32 %v5300, %v5303
        %vm5305 = vweird.f32 %v5058
        %vm5306 = vweird.f32 %v5300
        %vm5307 = vmor %vm5305, %vm5306
        %v5308 = vsel %vm5307, %v5300, %v5304
        %v5309 = vand.u32 2147483647, %v5058
        %vm5310 = vcmp.eq.f32.partialorder %v5309, 8.507059e+37
        %v5311 = vand.u32 %v5058, 2147483648
        %v5312 = vor.u32 1.1754944e-38, %v5311
        %v5313 = vsel %vm5310, %v5312, %v5308
        %v5314 = vmul.f32 1.0, %v5313
        %v5315 = vrcp.pop %v5059
        %v5316 = vmul.f32 %v5059, %v5315
        %v5317 = vsub.f32 1.0, %v5316
        %v5318 = vmul.f32 %v5315, %v5317
        %v5319 = vadd.f32 %v5315, %v5318
        %vm5320 = vweird.f32 %v5059
        %vm5321 = vweird.f32 %v5315
        %vm5322 = vmor %vm5320, %vm5321
        %v5323 = vsel %vm5322, %v5315, %v5319
        %v5324 = vand.u32 2147483647, %v5059
        %vm5325 = vcmp.eq.f32.partialorder %v5324, 8.507059e+37
        %v5326 = vand.u32 %v5059, 2147483648
        %v5327 = vor.u32 1.1754944e-38, %v5326
        %v5328 = vsel %vm5325, %v5327, %v5323
        %v5329 = vmul.f32 1.0, %v5328
        %v5330 = vrcp.pop %v5060
        %v5331 = vmul.f32 %v5060, %v5330
        %v5332 = vsub.f32 1.0, %v5331
        %v5333 = vmul.f32 %v5330, %v5332
        %v5334 = vadd.f32 %v5330, %v5333
        %vm5335 = vweird.f32 %v5060
        %vm5336 = vweird.f32 %v5330
        %vm5337 = vmor %vm5335, %vm5336
        %v5338 = vsel %vm5337, %v5330, %v5334
        %v5339 = vand.u32 2147483647, %v5060
        %vm5340 = vcmp.eq.f32.partialorder %v5339, 8.507059e+37
        %v5341 = vand.u32 %v5060, 2147483648
        %v5342 = vor.u32 1.1754944e-38, %v5341
        %v5343 = vsel %vm5340, %v5342, %v5338
        %v5344 = vmul.f32 1.0, %v5343
        %v5345 = vrcp.pop %v5061
        %v5346 = vmul.f32 %v5061, %v5345
        %v5347 = vsub.f32 1.0, %v5346
        %v5348 = vmul.f32 %v5345, %v5347
        %v5349 = vadd.f32 %v5345, %v5348
        %vm5350 = vweird.f32 %v5061
        %vm5351 = vweird.f32 %v5345
        %vm5352 = vmor %vm5350, %vm5351
        %v5353 = vsel %vm5352, %v5345, %v5349
        %v5354 = vand.u32 2147483647, %v5061
        %vm5355 = vcmp.eq.f32.partialorder %v5354, 8.507059e+37
        %v5356 = vand.u32 %v5061, 2147483648
        %v5357 = vor.u32 1.1754944e-38, %v5356
        %v5358 = vsel %vm5355, %v5357, %v5353
        %v5359 = vmul.f32 1.0, %v5358
        %v5360 = vrcp.pop %v5062
        %v5361 = vmul.f32 %v5062, %v5360
        %v5362 = vsub.f32 1.0, %v5361
        %v5363 = vmul.f32 %v5360, %v5362
        %v5364 = vadd.f32 %v5360, %v5363
        %vm5365 = vweird.f32 %v5062
        %vm5366 = vweird.f32 %v5360
        %vm5367 = vmor %vm5365, %vm5366
        %v5368 = vsel %vm5367, %v5360, %v5364
        %v5369 = vand.u32 2147483647, %v5062
        %vm5370 = vcmp.eq.f32.partialorder %v5369, 8.507059e+37
        %v5371 = vand.u32 %v5062, 2147483648
        %v5372 = vor.u32 1.1754944e-38, %v5371
        %v5373 = vsel %vm5370, %v5372, %v5368
        %v5374 = vmul.f32 1.0, %v5373
        %v5375 = vrcp.pop %v5063
        %v5376 = vmul.f32 %v5063, %v5375
        %v5377 = vsub.f32 1.0, %v5376
        %v5378 = vmul.f32 %v5375, %v5377
        %v5379 = vadd.f32 %v5375, %v5378
        %vm5380 = vweird.f32 %v5063
        %vm5381 = vweird.f32 %v5375
        %vm5382 = vmor %vm5380, %vm5381
        %v5383 = vsel %vm5382, %v5375, %v5379
        %v5384 = vand.u32 2147483647, %v5063
        %vm5385 = vcmp.eq.f32.partialorder %v5384, 8.507059e+37
        %v5386 = vand.u32 %v5063, 2147483648
        %v5387 = vor.u32 1.1754944e-38, %v5386
        %v5388 = vsel %vm5385, %v5387, %v5383
        %v5389 = vmul.f32 1.0, %v5388
        %v5390 = vrcp.pop %v5064
        %v5391 = vmul.f32 %v5064, %v5390
        %v5392 = vsub.f32 1.0, %v5391
        %v5393 = vmul.f32 %v5390, %v5392
        %v5394 = vadd.f32 %v5390, %v5393
        %vm5395 = vweird.f32 %v5064
        %vm5396 = vweird.f32 %v5390
        %vm5397 = vmor %vm5395, %vm5396
        %v5398 = vsel %vm5397, %v5390, %v5394
        %v5399 = vand.u32 2147483647, %v5064
        %vm5400 = vcmp.eq.f32.partialorder %v5399, 8.507059e+37
        %v5401 = vand.u32 %v5064, 2147483648
        %v5402 = vor.u32 1.1754944e-38, %v5401
        %v5403 = vsel %vm5400, %v5402, %v5398
        %v5404 = vmul.f32 1.0, %v5403
        %v5405 = vrcp.pop %v5065
        %v5406 = vmul.f32 %v5065, %v5405
        %v5407 = vsub.f32 1.0, %v5406
        %v5408 = vmul.f32 %v5405, %v5407
        %v5409 = vadd.f32 %v5405, %v5408
        %vm5410 = vweird.f32 %v5065
        %vm5411 = vweird.f32 %v5405
        %vm5412 = vmor %vm5410, %vm5411
        %v5413 = vsel %vm5412, %v5405, %v5409
        %v5414 = vand.u32 2147483647, %v5065
        %vm5415 = vcmp.eq.f32.partialorder %v5414, 8.507059e+37
        %v5416 = vand.u32 %v5065, 2147483648
        %v5417 = vor.u32 1.1754944e-38, %v5416
        %v5418 = vsel %vm5415, %v5417, %v5413
        %v5419 = vmul.f32 1.0, %v5418
        %v5420 = vrcp.pop %v5066
        %v5421 = vmul.f32 %v5066, %v5420
        %v5422 = vsub.f32 1.0, %v5421
        %v5423 = vmul.f32 %v5420, %v5422
        %v5424 = vadd.f32 %v5420, %v5423
        %vm5425 = vweird.f32 %v5066
        %vm5426 = vweird.f32 %v5420
        %vm5427 = vmor %vm5425, %vm5426
        %v5428 = vsel %vm5427, %v5420, %v5424
        %v5429 = vand.u32 2147483647, %v5066
        %vm5430 = vcmp.eq.f32.partialorder %v5429, 8.507059e+37
        %v5431 = vand.u32 %v5066, 2147483648
        %v5432 = vor.u32 1.1754944e-38, %v5431
        %v5433 = vsel %vm5430, %v5432, %v5428
        %v5434 = vmul.f32 1.0, %v5433
        %v5435 = vrcp.pop %v5067
        %v5436 = vmul.f32 %v5067, %v5435
        %v5437 = vsub.f32 1.0, %v5436
        %v5438 = vmul.f32 %v5435, %v5437
        %v5439 = vadd.f32 %v5435, %v5438
        %vm5440 = vweird.f32 %v5067
        %vm5441 = vweird.f32 %v5435
        %vm5442 = vmor %vm5440, %vm5441
        %v5443 = vsel %vm5442, %v5435, %v5439
        %v5444 = vand.u32 2147483647, %v5067
        %vm5445 = vcmp.eq.f32.partialorder %v5444, 8.507059e+37
        %v5446 = vand.u32 %v5067, 2147483648
        %v5447 = vor.u32 1.1754944e-38, %v5446
        %v5448 = vsel %vm5445, %v5447, %v5443
        %v5449 = vmul.f32 1.0, %v5448
        %v5450 = vrcp.pop %v5068
        %v5451 = vmul.f32 %v5068, %v5450
        %v5452 = vsub.f32 1.0, %v5451
        %v5453 = vmul.f32 %v5450, %v5452
        %v5454 = vadd.f32 %v5450, %v5453
        %vm5455 = vweird.f32 %v5068
        %vm5456 = vweird.f32 %v5450
        %vm5457 = vmor %vm5455, %vm5456
        %v5458 = vsel %vm5457, %v5450, %v5454
        %v5459 = vand.u32 2147483647, %v5068
        %vm5460 = vcmp.eq.f32.partialorder %v5459, 8.507059e+37
        %v5461 = vand.u32 %v5068, 2147483648
        %v5462 = vor.u32 1.1754944e-38, %v5461
        %v5463 = vsel %vm5460, %v5462, %v5458
        %v5464 = vmul.f32 1.0, %v5463
        %v5465 = vrcp.pop %v5069
        %v5466 = vmul.f32 %v5069, %v5465
        %v5467 = vsub.f32 1.0, %v5466
        %v5468 = vmul.f32 %v5465, %v5467
        %v5469 = vadd.f32 %v5465, %v5468
        %vm5470 = vweird.f32 %v5069
        %vm5471 = vweird.f32 %v5465
        %vm5472 = vmor %vm5470, %vm5471
        %v5473 = vsel %vm5472, %v5465, %v5469
        %v5474 = vand.u32 2147483647, %v5069
        %vm5475 = vcmp.eq.f32.partialorder %v5474, 8.507059e+37
        %v5476 = vand.u32 %v5069, 2147483648
        %v5477 = vor.u32 1.1754944e-38, %v5476
        %v5478 = vsel %vm5475, %v5477, %v5473
        %v5479 = vmul.f32 1.0, %v5478
        %v5480 = vrcp.pop %v5070
        %v5481 = vmul.f32 %v5070, %v5480
        %v5482 = vsub.f32 1.0, %v5481
        %v5483 = vmul.f32 %v5480, %v5482
        %v5484 = vadd.f32 %v5480, %v5483
        %vm5485 = vweird.f32 %v5070
        %vm5486 = vweird.f32 %v5480
        %vm5487 = vmor %vm5485, %vm5486
        %v5488 = vsel %vm5487, %v5480, %v5484
        %v5489 = vand.u32 2147483647, %v5070
        %vm5490 = vcmp.eq.f32.partialorder %v5489, 8.507059e+37
        %v5491 = vand.u32 %v5070, 2147483648
        %v5492 = vor.u32 1.1754944e-38, %v5491
        %v5493 = vsel %vm5490, %v5492, %v5488
        %v5494 = vmul.f32 1.0, %v5493
        %v5495 = vrcp.pop %v5071
        %v5496 = vmul.f32 %v5071, %v5495
        %v5497 = vsub.f32 1.0, %v5496
        %v5498 = vmul.f32 %v5495, %v5497
        %v5499 = vadd.f32 %v5495, %v5498
        %vm5500 = vweird.f32 %v5071
        %vm5501 = vweird.f32 %v5495
        %vm5502 = vmor %vm5500, %vm5501
        %v5503 = vsel %vm5502, %v5495, %v5499
        %v5504 = vand.u32 2147483647, %v5071
        %vm5505 = vcmp.eq.f32.partialorder %v5504, 8.507059e+37
        %v5506 = vand.u32 %v5071, 2147483648
        %v5507 = vor.u32 1.1754944e-38, %v5506
        %v5508 = vsel %vm5505, %v5507, %v5503
        %v5509 = vmul.f32 1.0, %v5508
        %v5510 = vrcp.pop %v5072
        %v5511 = vmul.f32 %v5072, %v5510
        %v5512 = vsub.f32 1.0, %v5511
        %v5513 = vmul.f32 %v5510, %v5512
        %v5514 = vadd.f32 %v5510, %v5513
        %vm5515 = vweird.f32 %v5072
        %vm5516 = vweird.f32 %v5510
        %vm5517 = vmor %vm5515, %vm5516
        %v5518 = vsel %vm5517, %v5510, %v5514
        %v5519 = vand.u32 2147483647, %v5072
        %vm5520 = vcmp.eq.f32.partialorder %v5519, 8.507059e+37
        %v5521 = vand.u32 %v5072, 2147483648
        %v5522 = vor.u32 1.1754944e-38, %v5521
        %v5523 = vsel %vm5520, %v5522, %v5518
        %v5524 = vmul.f32 1.0, %v5523
        %v5525 = vrcp.pop %v5073
        %v5526 = vmul.f32 %v5073, %v5525
        %v5527 = vsub.f32 1.0, %v5526
        %v5528 = vmul.f32 %v5525, %v5527
        %v5529 = vadd.f32 %v5525, %v5528
        %vm5530 = vweird.f32 %v5073
        %vm5531 = vweird.f32 %v5525
        %vm5532 = vmor %vm5530, %vm5531
        %v5533 = vsel %vm5532, %v5525, %v5529
        %v5534 = vand.u32 2147483647, %v5073
        %vm5535 = vcmp.eq.f32.partialorder %v5534, 8.507059e+37
        %v5536 = vand.u32 %v5073, 2147483648
        %v5537 = vor.u32 1.1754944e-38, %v5536
        %v5538 = vsel %vm5535, %v5537, %v5533
        %v5539 = vmul.f32 1.0, %v5538
        %v5540 = vrcp.pop %v5074
        %v5541 = vmul.f32 %v5074, %v5540
        %v5542 = vsub.f32 1.0, %v5541
        %v5543 = vmul.f32 %v5540, %v5542
        %v5544 = vadd.f32 %v5540, %v5543
        %vm5545 = vweird.f32 %v5074
        %vm5546 = vweird.f32 %v5540
        %vm5547 = vmor %vm5545, %vm5546
        %v5548 = vsel %vm5547, %v5540, %v5544
        %v5549 = vand.u32 2147483647, %v5074
        %vm5550 = vcmp.eq.f32.partialorder %v5549, 8.507059e+37
        %v5551 = vand.u32 %v5074, 2147483648
        %v5552 = vor.u32 1.1754944e-38, %v5551
        %v5553 = vsel %vm5550, %v5552, %v5548
        %v5554 = vmul.f32 1.0, %v5553
        %v5555 = vmul.f32 %v859, %v5089
        %v5556 = vmul.f32 %v860, %v5104
        %v5557 = vmul.f32 %v861, %v5119
        %v5558 = vmul.f32 %v862, %v5134
        %v5559 = vmul.f32 %v859, %v5149
        %v5560 = vmul.f32 %v860, %v5164
        %v5561 = vmul.f32 %v861, %v5179
        %v5562 = vmul.f32 %v862, %v5194
        %v5563 = vmul.f32 %v859, %v5209
        %v5564 = vmul.f32 %v860, %v5224
        %v5565 = vmul.f32 %v861, %v5239
        %v5566 = vmul.f32 %v862, %v5254
        %v5567 = vmul.f32 %v859, %v5269
        %v5568 = vmul.f32 %v860, %v5284
        %v5569 = vmul.f32 %v861, %v5299
        %v5570 = vmul.f32 %v862, %v5314
        %v5571 = vmul.f32 %v859, %v5329
        %v5572 = vmul.f32 %v860, %v5344
        %v5573 = vmul.f32 %v861, %v5359
        %v5574 = vmul.f32 %v862, %v5374
        %v5575 = vmul.f32 %v859, %v5389
        %v5576 = vmul.f32 %v860, %v5404
        %v5577 = vmul.f32 %v861, %v5419
        %v5578 = vmul.f32 %v862, %v5434
        %v5579 = vmul.f32 %v859, %v5449
        %v5580 = vmul.f32 %v860, %v5464
        %v5581 = vmul.f32 %v861, %v5479
        %v5582 = vmul.f32 %v862, %v5494
        %v5583 = vmul.f32 %v859, %v5509
        %v5584 = vmul.f32 %v860, %v5524
        %v5585 = vmul.f32 %v861, %v5539
        %v5586 = vmul.f32 %v862, %v5554
        %v5587 = vadd.f32 %v5555, %v5556
        %v5588 = vadd.f32 %v5587, %v5557
        %v5589 = vadd.f32 %v5588, %v5558
        %v5590 = vrot.slane %v5589, 4
        %v5591 = vadd.f32 %v5589, %v5590
        %v5592 = vrot.slane %v5591, 2
        %v5593 = vadd.f32 %v5591, %v5592
        %v5594 = vrot.slane %v5593, 1
        %v5595 = vadd.f32 %v5593, %v5594
        %v5596 = vadd.f32 %v5559, %v5560
        %v5597 = vadd.f32 %v5596, %v5561
        %v5598 = vadd.f32 %v5597, %v5562
        %v5599 = vrot.slane %v5598, 4
        %v5600 = vadd.f32 %v5598, %v5599
        %v5601 = vrot.slane %v5600, 2
        %v5602 = vadd.f32 %v5600, %v5601
        %v5603 = vrot.slane %v5602, 1
        %v5604 = vadd.f32 %v5602, %v5603
        %v5605 = vadd.f32 %v5563, %v5564
        %v5606 = vadd.f32 %v5605, %v5565
        %v5607 = vadd.f32 %v5606, %v5566
        %v5608 = vrot.slane %v5607, 4
        %v5609 = vadd.f32 %v5607, %v5608
        %v5610 = vrot.slane %v5609, 2
        %v5611 = vadd.f32 %v5609, %v5610
        %v5612 = vrot.slane %v5611, 1
        %v5613 = vadd.f32 %v5611, %v5612
        %v5614 = vadd.f32 %v5567, %v5568
        %v5615 = vadd.f32 %v5614, %v5569
        %v5616 = vadd.f32 %v5615, %v5570
        %v5617 = vrot.slane %v5616, 4
        %v5618 = vadd.f32 %v5616, %v5617
        %v5619 = vrot.slane %v5618, 2
        %v5620 = vadd.f32 %v5618, %v5619
        %v5621 = vrot.slane %v5620, 1
        %v5622 = vadd.f32 %v5620, %v5621
        %v5623 = vadd.f32 %v5571, %v5572
        %v5624 = vadd.f32 %v5623, %v5573
        %v5625 = vadd.f32 %v5624, %v5574
        %v5626 = vrot.slane %v5625, 4
        %v5627 = vadd.f32 %v5625, %v5626
        %v5628 = vrot.slane %v5627, 2
        %v5629 = vadd.f32 %v5627, %v5628
        %v5630 = vrot.slane %v5629, 1
        %v5631 = vadd.f32 %v5629, %v5630
        %v5632 = vadd.f32 %v5575, %v5576
        %v5633 = vadd.f32 %v5632, %v5577
        %v5634 = vadd.f32 %v5633, %v5578
        %v5635 = vrot.slane %v5634, 4
        %v5636 = vadd.f32 %v5634, %v5635
        %v5637 = vrot.slane %v5636, 2
        %v5638 = vadd.f32 %v5636, %v5637
        %v5639 = vrot.slane %v5638, 1
        %v5640 = vadd.f32 %v5638, %v5639
        %v5641 = vadd.f32 %v5579, %v5580
        %v5642 = vadd.f32 %v5641, %v5581
        %v5643 = vadd.f32 %v5642, %v5582
        %v5644 = vrot.slane %v5643, 4
        %v5645 = vadd.f32 %v5643, %v5644
        %v5646 = vrot.slane %v5645, 2
        %v5647 = vadd.f32 %v5645, %v5646
        %v5648 = vrot.slane %v5647, 1
        %v5649 = vadd.f32 %v5647, %v5648
        %v5650 = vadd.f32 %v5583, %v5584
        %v5651 = vadd.f32 %v5650, %v5585
        %v5652 = vadd.f32 %v5651, %v5586
        %v5653 = vrot.slane %v5652, 4
        %v5654 = vadd.f32 %v5652, %v5653
        %v5655 = vrot.slane %v5654, 2
        %v5656 = vadd.f32 %v5654, %v5655
        %v5657 = vrot.slane %v5656, 1
        %v5658 = vadd.f32 %v5656, %v5657
        %v5659 = vmul.f32 %v851, %v5089
        %v5660 = vmul.f32 %v852, %v5104
        %v5661 = vmul.f32 %v853, %v5119
        %v5662 = vmul.f32 %v854, %v5134
        %v5663 = vmul.f32 %v851, %v5149
        %v5664 = vmul.f32 %v852, %v5164
        %v5665 = vmul.f32 %v853, %v5179
        %v5666 = vmul.f32 %v854, %v5194
        %v5667 = vmul.f32 %v851, %v5209
        %v5668 = vmul.f32 %v852, %v5224
        %v5669 = vmul.f32 %v853, %v5239
        %v5670 = vmul.f32 %v854, %v5254
        %v5671 = vmul.f32 %v851, %v5269
        %v5672 = vmul.f32 %v852, %v5284
        %v5673 = vmul.f32 %v853, %v5299
        %v5674 = vmul.f32 %v854, %v5314
        %v5675 = vmul.f32 %v851, %v5329
        %v5676 = vmul.f32 %v852, %v5344
        %v5677 = vmul.f32 %v853, %v5359
        %v5678 = vmul.f32 %v854, %v5374
        %v5679 = vmul.f32 %v851, %v5389
        %v5680 = vmul.f32 %v852, %v5404
        %v5681 = vmul.f32 %v853, %v5419
        %v5682 = vmul.f32 %v854, %v5434
        %v5683 = vmul.f32 %v851, %v5449
        %v5684 = vmul.f32 %v852, %v5464
        %v5685 = vmul.f32 %v853, %v5479
        %v5686 = vmul.f32 %v854, %v5494
        %v5687 = vmul.f32 %v851, %v5509
        %v5688 = vmul.f32 %v852, %v5524
        %v5689 = vmul.f32 %v853, %v5539
        %v5690 = vmul.f32 %v854, %v5554
        %v5691 = vadd.f32 %v5659, %v5660
        %v5692 = vadd.f32 %v5691, %v5661
        %v5693 = vadd.f32 %v5692, %v5662
        %v5694 = vrot.slane %v5693, 4
        %v5695 = vadd.f32 %v5693, %v5694
        %v5696 = vrot.slane %v5695, 2
        %v5697 = vadd.f32 %v5695, %v5696
        %v5698 = vrot.slane %v5697, 1
        %v5699 = vadd.f32 %v5697, %v5698
        %v5700 = vadd.f32 %v5663, %v5664
        %v5701 = vadd.f32 %v5700, %v5665
        %v5702 = vadd.f32 %v5701, %v5666
        %v5703 = vrot.slane %v5702, 4
        %v5704 = vadd.f32 %v5702, %v5703
        %v5705 = vrot.slane %v5704, 2
        %v5706 = vadd.f32 %v5704, %v5705
        %v5707 = vrot.slane %v5706, 1
        %v5708 = vadd.f32 %v5706, %v5707
        %v5709 = vadd.f32 %v5667, %v5668
        %v5710 = vadd.f32 %v5709, %v5669
        %v5711 = vadd.f32 %v5710, %v5670
        %v5712 = vrot.slane %v5711, 4
        %v5713 = vadd.f32 %v5711, %v5712
        %v5714 = vrot.slane %v5713, 2
        %v5715 = vadd.f32 %v5713, %v5714
        %v5716 = vrot.slane %v5715, 1
        %v5717 = vadd.f32 %v5715, %v5716
        %v5718 = vadd.f32 %v5671, %v5672
        %v5719 = vadd.f32 %v5718, %v5673
        %v5720 = vadd.f32 %v5719, %v5674
        %v5721 = vrot.slane %v5720, 4
        %v5722 = vadd.f32 %v5720, %v5721
        %v5723 = vrot.slane %v5722, 2
        %v5724 = vadd.f32 %v5722, %v5723
        %v5725 = vrot.slane %v5724, 1
        %v5726 = vadd.f32 %v5724, %v5725
        %v5727 = vadd.f32 %v5675, %v5676
        %v5728 = vadd.f32 %v5727, %v5677
        %v5729 = vadd.f32 %v5728, %v5678
        %v5730 = vrot.slane %v5729, 4
        %v5731 = vadd.f32 %v5729, %v5730
        %v5732 = vrot.slane %v5731, 2
        %v5733 = vadd.f32 %v5731, %v5732
        %v5734 = vrot.slane %v5733, 1
        %v5735 = vadd.f32 %v5733, %v5734
        %v5736 = vadd.f32 %v5679, %v5680
        %v5737 = vadd.f32 %v5736, %v5681
        %v5738 = vadd.f32 %v5737, %v5682
        %v5739 = vrot.slane %v5738, 4
        %v5740 = vadd.f32 %v5738, %v5739
        %v5741 = vrot.slane %v5740, 2
        %v5742 = vadd.f32 %v5740, %v5741
        %v5743 = vrot.slane %v5742, 1
        %v5744 = vadd.f32 %v5742, %v5743
        %v5745 = vadd.f32 %v5683, %v5684
        %v5746 = vadd.f32 %v5745, %v5685
        %v5747 = vadd.f32 %v5746, %v5686
        %v5748 = vrot.slane %v5747, 4
        %v5749 = vadd.f32 %v5747, %v5748
        %v5750 = vrot.slane %v5749, 2
        %v5751 = vadd.f32 %v5749, %v5750
        %v5752 = vrot.slane %v5751, 1
        %v5753 = vadd.f32 %v5751, %v5752
        %v5754 = vadd.f32 %v5687, %v5688
        %v5755 = vadd.f32 %v5754, %v5689
        %v5756 = vadd.f32 %v5755, %v5690
        %v5757 = vrot.slane %v5756, 4
        %v5758 = vadd.f32 %v5756, %v5757
        %v5759 = vrot.slane %v5758, 2
        %v5760 = vadd.f32 %v5758, %v5759
        %v5761 = vrot.slane %v5760, 1
        %v5762 = vadd.f32 %v5760, %v5761
        %v5763 = vmul.f32 %v1228, %v4682
        %v5764 = vadd.f32 %v5763, %v1258
        %v5773 = vsel %vm1243, %v5604, %v5595
        %v5774 = vsel %vm1245, %v5613, %v5773
        %v5775 = vsel %vm1247, %v5622, %v5774
        %v5776 = vsel %vm1249, %v5631, %v5775
        %v5777 = vsel %vm1251, %v5640, %v5776
        %v5778 = vsel %vm1253, %v5649, %v5777
        %v5779 = vsel %vm1255, %v5658, %v5778
        %v5781 = vadd.f32 %v5764, %v5779
        %v5790 = vsel %vm1243, %v5708, %v5699
        %v5791 = vsel %vm1245, %v5717, %v5790
        %v5792 = vsel %vm1247, %v5726, %v5791
        %v5793 = vsel %vm1249, %v5735, %v5792
        %v5794 = vsel %vm1251, %v5744, %v5793
        %v5795 = vsel %vm1253, %v5753, %v5794
        %v5796 = vsel %vm1255, %v5762, %v5795
        %v5798 = vadd.f32 %v1280, %v5796
        %v5799 = vrcp.pop %v5798
        %v5800 = vmul.f32 %v5798, %v5799
        %v5801 = vsub.f32 1.0, %v5800
        %v5802 = vmul.f32 %v5799, %v5801
        %v5803 = vadd.f32 %v5799, %v5802
        %vm5804 = vweird.f32 %v5798
        %vm5805 = vweird.f32 %v5799
        %vm5806 = vmor %vm5804, %vm5805
        %v5807 = vsel %vm5806, %v5799, %v5803
        %v5808 = vand.u32 2147483647, %v5798
        %vm5809 = vcmp.eq.f32.partialorder %v5808, 8.507059e+37
        %v5810 = vand.u32 %v5798, 2147483648
        %v5811 = vor.u32 1.1754944e-38, %v5810
        %v5812 = vsel %vm5809, %v5811, %v5807
        %v5813 = vmul.f32 %v5781, %v5812
        %v5814 = vperm.slane %v5813, 0
        %v5815 = vlaneseq
        %v5816 = vshrl.u32 %v5815, 7
        %5818 = vset.pattern.permute.xlu0 %v5816
        %5819 = vperm.xlu0 %5818, %v5814
        %v5820 = vpop.permute.xlu0 %5819
        %v5821 = vlaneseq
        %v5822 = vshrl.u32 %v5821, 7
        %v5823 = vadd.s32 %v5822, 8
        %5824 = vset.pattern.permute.xlu0 %v5823
        %5825 = vperm.xlu0 %5824, %v5814
        %v5826 = vpop.permute.xlu0 %5825
        %v5827 = vlaneseq
        %v5828 = vshrl.u32 %v5827, 7
        %v5829 = vadd.s32 %v5828, 16
        %5830 = vset.pattern.permute.xlu0 %v5829
        %5831 = vperm.xlu0 %5830, %v5814
        %v5832 = vpop.permute.xlu0 %5831
        %v5833 = vlaneseq
        %v5834 = vshrl.u32 %v5833, 7
        %v5835 = vadd.s32 %v5834, 24
        %5836 = vset.pattern.permute.xlu0 %v5835
        %5837 = vperm.xlu0 %5836, %v5814
        %v5838 = vpop.permute.xlu0 %5837
        %v5839 = vperm.slane %v5813, 1
        %v5840 = vlaneseq
        %v5841 = vshrl.u32 %v5840, 7
        %5843 = vset.pattern.permute.xlu0 %v5841
        %5844 = vperm.xlu0 %5843, %v5839
        %v5845 = vpop.permute.xlu0 %5844
        %v5846 = vlaneseq
        %v5847 = vshrl.u32 %v5846, 7
        %v5848 = vadd.s32 %v5847, 8
        %5849 = vset.pattern.permute.xlu0 %v5848
        %5850 = vperm.xlu0 %5849, %v5839
        %v5851 = vpop.permute.xlu0 %5850
        %v5852 = vlaneseq
        %v5853 = vshrl.u32 %v5852, 7
        %v5854 = vadd.s32 %v5853, 16
        %5855 = vset.pattern.permute.xlu0 %v5854
        %5856 = vperm.xlu0 %5855, %v5839
        %v5857 = vpop.permute.xlu0 %5856
        %v5858 = vlaneseq
        %v5859 = vshrl.u32 %v5858, 7
        %v5860 = vadd.s32 %v5859, 24
        %5861 = vset.pattern.permute.xlu0 %v5860
        %5862 = vperm.xlu0 %5861, %v5839
        %v5863 = vpop.permute.xlu0 %5862
        %v5864 = vperm.slane %v5813, 2
        %v5865 = vlaneseq
        %v5866 = vshrl.u32 %v5865, 7
        %5868 = vset.pattern.permute.xlu0 %v5866
        %5869 = vperm.xlu0 %5868, %v5864
        %v5870 = vpop.permute.xlu0 %5869
        %v5871 = vlaneseq
        %v5872 = vshrl.u32 %v5871, 7
        %v5873 = vadd.s32 %v5872, 8
        %5874 = vset.pattern.permute.xlu0 %v5873
        %5875 = vperm.xlu0 %5874, %v5864
        %v5876 = vpop.permute.xlu0 %5875
        %v5877 = vlaneseq
        %v5878 = vshrl.u32 %v5877, 7
        %v5879 = vadd.s32 %v5878, 16
        %5880 = vset.pattern.permute.xlu0 %v5879
        %5881 = vperm.xlu0 %5880, %v5864
        %v5882 = vpop.permute.xlu0 %5881
        %v5883 = vlaneseq
        %v5884 = vshrl.u32 %v5883, 7
        %v5885 = vadd.s32 %v5884, 24
        %5886 = vset.pattern.permute.xlu0 %v5885
        %5887 = vperm.xlu0 %5886, %v5864
        %v5888 = vpop.permute.xlu0 %5887
        %v5889 = vperm.slane %v5813, 3
        %v5890 = vlaneseq
        %v5891 = vshrl.u32 %v5890, 7
        %5893 = vset.pattern.permute.xlu0 %v5891
        %5894 = vperm.xlu0 %5893, %v5889
        %v5895 = vpop.permute.xlu0 %5894
        %v5896 = vlaneseq
        %v5897 = vshrl.u32 %v5896, 7
        %v5898 = vadd.s32 %v5897, 8
        %5899 = vset.pattern.permute.xlu0 %v5898
        %5900 = vperm.xlu0 %5899, %v5889
        %v5901 = vpop.permute.xlu0 %5900
        %v5902 = vlaneseq
        %v5903 = vshrl.u32 %v5902, 7
        %v5904 = vadd.s32 %v5903, 16
        %5905 = vset.pattern.permute.xlu0 %v5904
        %5906 = vperm.xlu0 %5905, %v5889
        %v5907 = vpop.permute.xlu0 %5906
        %v5908 = vlaneseq
        %v5909 = vshrl.u32 %v5908, 7
        %v5910 = vadd.s32 %v5909, 24
        %5911 = vset.pattern.permute.xlu0 %v5910
        %5912 = vperm.xlu0 %5911, %v5889
        %v5913 = vpop.permute.xlu0 %5912
        %v5914 = vperm.slane %v5813, 4
        %v5915 = vlaneseq
        %v5916 = vshrl.u32 %v5915, 7
        %5918 = vset.pattern.permute.xlu0 %v5916
        %5919 = vperm.xlu0 %5918, %v5914
        %v5920 = vpop.permute.xlu0 %5919
        %v5921 = vlaneseq
        %v5922 = vshrl.u32 %v5921, 7
        %v5923 = vadd.s32 %v5922, 8
        %5924 = vset.pattern.permute.xlu0 %v5923
        %5925 = vperm.xlu0 %5924, %v5914
        %v5926 = vpop.permute.xlu0 %5925
        %v5927 = vlaneseq
        %v5928 = vshrl.u32 %v5927, 7
        %v5929 = vadd.s32 %v5928, 16
        %5930 = vset.pattern.permute.xlu0 %v5929
        %5931 = vperm.xlu0 %5930, %v5914
        %v5932 = vpop.permute.xlu0 %5931
        %v5933 = vlaneseq
        %v5934 = vshrl.u32 %v5933, 7
        %v5935 = vadd.s32 %v5934, 24
        %5936 = vset.pattern.permute.xlu0 %v5935
        %5937 = vperm.xlu0 %5936, %v5914
        %v5938 = vpop.permute.xlu0 %5937
        %v5939 = vperm.slane %v5813, 5
        %v5940 = vlaneseq
        %v5941 = vshrl.u32 %v5940, 7
        %5943 = vset.pattern.permute.xlu0 %v5941
        %5944 = vperm.xlu0 %5943, %v5939
        %v5945 = vpop.permute.xlu0 %5944
        %v5946 = vlaneseq
        %v5947 = vshrl.u32 %v5946, 7
        %v5948 = vadd.s32 %v5947, 8
        %5949 = vset.pattern.permute.xlu0 %v5948
        %5950 = vperm.xlu0 %5949, %v5939
        %v5951 = vpop.permute.xlu0 %5950
        %v5952 = vlaneseq
        %v5953 = vshrl.u32 %v5952, 7
        %v5954 = vadd.s32 %v5953, 16
        %5955 = vset.pattern.permute.xlu0 %v5954
        %5956 = vperm.xlu0 %5955, %v5939
        %v5957 = vpop.permute.xlu0 %5956
        %v5958 = vlaneseq
        %v5959 = vshrl.u32 %v5958, 7
        %v5960 = vadd.s32 %v5959, 24
        %5961 = vset.pattern.permute.xlu0 %v5960
        %5962 = vperm.xlu0 %5961, %v5939
        %v5963 = vpop.permute.xlu0 %5962
        %v5964 = vperm.slane %v5813, 6
        %v5965 = vlaneseq
        %v5966 = vshrl.u32 %v5965, 7
        %5968 = vset.pattern.permute.xlu0 %v5966
        %5969 = vperm.xlu0 %5968, %v5964
        %v5970 = vpop.permute.xlu0 %5969
        %v5971 = vlaneseq
        %v5972 = vshrl.u32 %v5971, 7
        %v5973 = vadd.s32 %v5972, 8
        %5974 = vset.pattern.permute.xlu0 %v5973
        %5975 = vperm.xlu0 %5974, %v5964
        %v5976 = vpop.permute.xlu0 %5975
        %v5977 = vlaneseq
        %v5978 = vshrl.u32 %v5977, 7
        %v5979 = vadd.s32 %v5978, 16
        %5980 = vset.pattern.permute.xlu0 %v5979
        %5981 = vperm.xlu0 %5980, %v5964
        %v5982 = vpop.permute.xlu0 %5981
        %v5983 = vlaneseq
        %v5984 = vshrl.u32 %v5983, 7
        %v5985 = vadd.s32 %v5984, 24
        %5986 = vset.pattern.permute.xlu0 %v5985
        %5987 = vperm.xlu0 %5986, %v5964
        %v5988 = vpop.permute.xlu0 %5987
        %v5989 = vperm.slane %v5813, 7
        %v5990 = vlaneseq
        %v5991 = vshrl.u32 %v5990, 7
        %5993 = vset.pattern.permute.xlu0 %v5991
        %5994 = vperm.xlu0 %5993, %v5989
        %v5995 = vpop.permute.xlu0 %5994
        %v5996 = vlaneseq
        %v5997 = vshrl.u32 %v5996, 7
        %v5998 = vadd.s32 %v5997, 8
        %5999 = vset.pattern.permute.xlu0 %v5998
        %6000 = vperm.xlu0 %5999, %v5989
        %v6001 = vpop.permute.xlu0 %6000
        %v6002 = vlaneseq
        %v6003 = vshrl.u32 %v6002, 7
        %v6004 = vadd.s32 %v6003, 16
        %6005 = vset.pattern.permute.xlu0 %v6004
        %6006 = vperm.xlu0 %6005, %v5989
        %v6007 = vpop.permute.xlu0 %6006
        %v6008 = vlaneseq
        %v6009 = vshrl.u32 %v6008, 7
        %v6010 = vadd.s32 %v6009, 24
        %6011 = vset.pattern.permute.xlu0 %v6010
        %6012 = vperm.xlu0 %6011, %v5989
        %v6013 = vpop.permute.xlu0 %6012
        %v6014 = vsub.f32 %v5820, %v1281
        %v6015 = vsub.f32 %v5826, %v1282
        %v6016 = vsub.f32 %v5832, %v1283
        %v6017 = vsub.f32 %v5838, %v1284
        %v6018 = vsub.f32 %v5845, %v1281
        %v6019 = vsub.f32 %v5851, %v1282
        %v6020 = vsub.f32 %v5857, %v1283
        %v6021 = vsub.f32 %v5863, %v1284
        %v6022 = vsub.f32 %v5870, %v1281
        %v6023 = vsub.f32 %v5876, %v1282
        %v6024 = vsub.f32 %v5882, %v1283
        %v6025 = vsub.f32 %v5888, %v1284
        %v6026 = vsub.f32 %v5895, %v1281
        %v6027 = vsub.f32 %v5901, %v1282
        %v6028 = vsub.f32 %v5907, %v1283
        %v6029 = vsub.f32 %v5913, %v1284
        %v6030 = vsub.f32 %v5920, %v1281
        %v6031 = vsub.f32 %v5926, %v1282
        %v6032 = vsub.f32 %v5932, %v1283
        %v6033 = vsub.f32 %v5938, %v1284
        %v6034 = vsub.f32 %v5945, %v1281
        %v6035 = vsub.f32 %v5951, %v1282
        %v6036 = vsub.f32 %v5957, %v1283
        %v6037 = vsub.f32 %v5963, %v1284
        %v6038 = vsub.f32 %v5970, %v1281
        %v6039 = vsub.f32 %v5976, %v1282
        %v6040 = vsub.f32 %v5982, %v1283
        %v6041 = vsub.f32 %v5988, %v1284
        %v6042 = vsub.f32 %v5995, %v1281
        %v6043 = vsub.f32 %v6001, %v1282
        %v6044 = vsub.f32 %v6007, %v1283
        %v6045 = vsub.f32 %v6013, %v1284
        %v6046 = vmul.f32 %v6014, %v1285
        %v6047 = vmul.f32 %v6015, %v1286
        %v6048 = vmul.f32 %v6016, %v1287
        %v6049 = vmul.f32 %v6017, %v1288
        %v6050 = vmul.f32 %v6018, %v1285
        %v6051 = vmul.f32 %v6019, %v1286
        %v6052 = vmul.f32 %v6020, %v1287
        %v6053 = vmul.f32 %v6021, %v1288
        %v6054 = vmul.f32 %v6022, %v1285
        %v6055 = vmul.f32 %v6023, %v1286
        %v6056 = vmul.f32 %v6024, %v1287
        %v6057 = vmul.f32 %v6025, %v1288
        %v6058 = vmul.f32 %v6026, %v1285
        %v6059 = vmul.f32 %v6027, %v1286
        %v6060 = vmul.f32 %v6028, %v1287
        %v6061 = vmul.f32 %v6029, %v1288
        %v6062 = vmul.f32 %v6030, %v1285
        %v6063 = vmul.f32 %v6031, %v1286
        %v6064 = vmul.f32 %v6032, %v1287
        %v6065 = vmul.f32 %v6033, %v1288
        %v6066 = vmul.f32 %v6034, %v1285
        %v6067 = vmul.f32 %v6035, %v1286
        %v6068 = vmul.f32 %v6036, %v1287
        %v6069 = vmul.f32 %v6037, %v1288
        %v6070 = vmul.f32 %v6038, %v1285
        %v6071 = vmul.f32 %v6039, %v1286
        %v6072 = vmul.f32 %v6040, %v1287
        %v6073 = vmul.f32 %v6041, %v1288
        %v6074 = vmul.f32 %v6042, %v1285
        %v6075 = vmul.f32 %v6043, %v1286
        %v6076 = vmul.f32 %v6044, %v1287
        %v6077 = vmul.f32 %v6045, %v1288
        %v6078 = vxor.u32 %v6046, 2147483648
        %v6079 = vxor.u32 %v6047, 2147483648
        %v6080 = vxor.u32 %v6048, 2147483648
        %v6081 = vxor.u32 %v6049, 2147483648
        %v6082 = vxor.u32 %v6050, 2147483648
        %v6083 = vxor.u32 %v6051, 2147483648
        %v6084 = vxor.u32 %v6052, 2147483648
        %v6085 = vxor.u32 %v6053, 2147483648
        %v6086 = vxor.u32 %v6054, 2147483648
        %v6087 = vxor.u32 %v6055, 2147483648
        %v6088 = vxor.u32 %v6056, 2147483648
        %v6089 = vxor.u32 %v6057, 2147483648
        %v6090 = vxor.u32 %v6058, 2147483648
        %v6091 = vxor.u32 %v6059, 2147483648
        %v6092 = vxor.u32 %v6060, 2147483648
        %v6093 = vxor.u32 %v6061, 2147483648
        %v6094 = vxor.u32 %v6062, 2147483648
        %v6095 = vxor.u32 %v6063, 2147483648
        %v6096 = vxor.u32 %v6064, 2147483648
        %v6097 = vxor.u32 %v6065, 2147483648
        %v6098 = vxor.u32 %v6066, 2147483648
        %v6099 = vxor.u32 %v6067, 2147483648
        %v6100 = vxor.u32 %v6068, 2147483648
        %v6101 = vxor.u32 %v6069, 2147483648
        %v6102 = vxor.u32 %v6070, 2147483648
        %v6103 = vxor.u32 %v6071, 2147483648
        %v6104 = vxor.u32 %v6072, 2147483648
        %v6105 = vxor.u32 %v6073, 2147483648
        %v6106 = vxor.u32 %v6074, 2147483648
        %v6107 = vxor.u32 %v6075, 2147483648
        %v6108 = vxor.u32 %v6076, 2147483648
        %v6109 = vxor.u32 %v6077, 2147483648
        %v6110 = vmul.f32 %v6078, 1.442695
        %v6111 = vpow.pop %v6110
        %v6112 = vmul.f32 %v6079, 1.442695
        %v6113 = vpow.pop %v6112
        %v6114 = vmul.f32 %v6080, 1.442695
        %v6115 = vpow.pop %v6114
        %v6116 = vmul.f32 %v6081, 1.442695
        %v6117 = vpow.pop %v6116
        %v6118 = vmul.f32 %v6082, 1.442695
        %v6119 = vpow.pop %v6118
        %v6120 = vmul.f32 %v6083, 1.442695
        %v6121 = vpow.pop %v6120
        %v6122 = vmul.f32 %v6084, 1.442695
        %v6123 = vpow.pop %v6122
        %v6124 = vmul.f32 %v6085, 1.442695
        %v6125 = vpow.pop %v6124
        %v6126 = vmul.f32 %v6086, 1.442695
        %v6127 = vpow.pop %v6126
        %v6128 = vmul.f32 %v6087, 1.442695
        %v6129 = vpow.pop %v6128
        %v6130 = vmul.f32 %v6088, 1.442695
        %v6131 = vpow.pop %v6130
        %v6132 = vmul.f32 %v6089, 1.442695
        %v6133 = vpow.pop %v6132
        %v6134 = vmul.f32 %v6090, 1.442695
        %v6135 = vpow.pop %v6134
        %v6136 = vmul.f32 %v6091, 1.442695
        %v6137 = vpow.pop %v6136
        %v6138 = vmul.f32 %v6092, 1.442695
        %v6139 = vpow.pop %v6138
        %v6140 = vmul.f32 %v6093, 1.442695
        %v6141 = vpow.pop %v6140
        %v6142 = vmul.f32 %v6094, 1.442695
        %v6143 = vpow.pop %v6142
        %v6144 = vmul.f32 %v6095, 1.442695
        %v6145 = vpow.pop %v6144
        %v6146 = vmul.f32 %v6096, 1.442695
        %v6147 = vpow.pop %v6146
        %v6148 = vmul.f32 %v6097, 1.442695
        %v6149 = vpow.pop %v6148
        %v6150 = vmul.f32 %v6098, 1.442695
        %v6151 = vpow.pop %v6150
        %v6152 = vmul.f32 %v6099, 1.442695
        %v6153 = vpow.pop %v6152
        %v6154 = vmul.f32 %v6100, 1.442695
        %v6155 = vpow.pop %v6154
        %v6156 = vmul.f32 %v6101, 1.442695
        %v6157 = vpow.pop %v6156
        %v6158 = vmul.f32 %v6102, 1.442695
        %v6159 = vpow.pop %v6158
        %v6160 = vmul.f32 %v6103, 1.442695
        %v6161 = vpow.pop %v6160
        %v6162 = vmul.f32 %v6104, 1.442695
        %v6163 = vpow.pop %v6162
        %v6164 = vmul.f32 %v6105, 1.442695
        %v6165 = vpow.pop %v6164
        %v6166 = vmul.f32 %v6106, 1.442695
        %v6167 = vpow.pop %v6166
        %v6168 = vmul.f32 %v6107, 1.442695
        %v6169 = vpow.pop %v6168
        %v6170 = vmul.f32 %v6108, 1.442695
        %v6171 = vpow.pop %v6170
        %v6172 = vmul.f32 %v6109, 1.442695
        %v6173 = vpow.pop %v6172
        %v6174 = vadd.f32 %v6111, 1.0
        %v6175 = vadd.f32 %v6113, 1.0
        %v6176 = vadd.f32 %v6115, 1.0
        %v6177 = vadd.f32 %v6117, 1.0
        %v6178 = vadd.f32 %v6119, 1.0
        %v6179 = vadd.f32 %v6121, 1.0
        %v6180 = vadd.f32 %v6123, 1.0
        %v6181 = vadd.f32 %v6125, 1.0
        %v6182 = vadd.f32 %v6127, 1.0
        %v6183 = vadd.f32 %v6129, 1.0
        %v6184 = vadd.f32 %v6131, 1.0
        %v6185 = vadd.f32 %v6133, 1.0
        %v6186 = vadd.f32 %v6135, 1.0
        %v6187 = vadd.f32 %v6137, 1.0
        %v6188 = vadd.f32 %v6139, 1.0
        %v6189 = vadd.f32 %v6141, 1.0
        %v6190 = vadd.f32 %v6143, 1.0
        %v6191 = vadd.f32 %v6145, 1.0
        %v6192 = vadd.f32 %v6147, 1.0
        %v6193 = vadd.f32 %v6149, 1.0
        %v6194 = vadd.f32 %v6151, 1.0
        %v6195 = vadd.f32 %v6153, 1.0
        %v6196 = vadd.f32 %v6155, 1.0
        %v6197 = vadd.f32 %v6157, 1.0
        %v6198 = vadd.f32 %v6159, 1.0
        %v6199 = vadd.f32 %v6161, 1.0
        %v6200 = vadd.f32 %v6163, 1.0
        %v6201 = vadd.f32 %v6165, 1.0
        %v6202 = vadd.f32 %v6167, 1.0
        %v6203 = vadd.f32 %v6169, 1.0
        %v6204 = vadd.f32 %v6171, 1.0
        %v6205 = vadd.f32 %v6173, 1.0
        %v6206 = vrcp.pop %v6174
        %v6207 = vmul.f32 %v6174, %v6206
        %v6208 = vsub.f32 1.0, %v6207
        %v6209 = vmul.f32 %v6206, %v6208
        %v6210 = vadd.f32 %v6206, %v6209
        %vm6211 = vweird.f32 %v6174
        %vm6212 = vweird.f32 %v6206
        %vm6213 = vmor %vm6211, %vm6212
        %v6214 = vsel %vm6213, %v6206, %v6210
        %v6215 = vand.u32 2147483647, %v6174
        %vm6216 = vcmp.eq.f32.partialorder %v6215, 8.507059e+37
        %v6217 = vand.u32 %v6174, 2147483648
        %v6218 = vor.u32 1.1754944e-38, %v6217
        %v6219 = vsel %vm6216, %v6218, %v6214
        %v6220 = vmul.f32 1.0, %v6219
        %v6221 = vrcp.pop %v6175
        %v6222 = vmul.f32 %v6175, %v6221
        %v6223 = vsub.f32 1.0, %v6222
        %v6224 = vmul.f32 %v6221, %v6223
        %v6225 = vadd.f32 %v6221, %v6224
        %vm6226 = vweird.f32 %v6175
        %vm6227 = vweird.f32 %v6221
        %vm6228 = vmor %vm6226, %vm6227
        %v6229 = vsel %vm6228, %v6221, %v6225
        %v6230 = vand.u32 2147483647, %v6175
        %vm6231 = vcmp.eq.f32.partialorder %v6230, 8.507059e+37
        %v6232 = vand.u32 %v6175, 2147483648
        %v6233 = vor.u32 1.1754944e-38, %v6232
        %v6234 = vsel %vm6231, %v6233, %v6229
        %v6235 = vmul.f32 1.0, %v6234
        %v6236 = vrcp.pop %v6176
        %v6237 = vmul.f32 %v6176, %v6236
        %v6238 = vsub.f32 1.0, %v6237
        %v6239 = vmul.f32 %v6236, %v6238
        %v6240 = vadd.f32 %v6236, %v6239
        %vm6241 = vweird.f32 %v6176
        %vm6242 = vweird.f32 %v6236
        %vm6243 = vmor %vm6241, %vm6242
        %v6244 = vsel %vm6243, %v6236, %v6240
        %v6245 = vand.u32 2147483647, %v6176
        %vm6246 = vcmp.eq.f32.partialorder %v6245, 8.507059e+37
        %v6247 = vand.u32 %v6176, 2147483648
        %v6248 = vor.u32 1.1754944e-38, %v6247
        %v6249 = vsel %vm6246, %v6248, %v6244
        %v6250 = vmul.f32 1.0, %v6249
        %v6251 = vrcp.pop %v6177
        %v6252 = vmul.f32 %v6177, %v6251
        %v6253 = vsub.f32 1.0, %v6252
        %v6254 = vmul.f32 %v6251, %v6253
        %v6255 = vadd.f32 %v6251, %v6254
        %vm6256 = vweird.f32 %v6177
        %vm6257 = vweird.f32 %v6251
        %vm6258 = vmor %vm6256, %vm6257
        %v6259 = vsel %vm6258, %v6251, %v6255
        %v6260 = vand.u32 2147483647, %v6177
        %vm6261 = vcmp.eq.f32.partialorder %v6260, 8.507059e+37
        %v6262 = vand.u32 %v6177, 2147483648
        %v6263 = vor.u32 1.1754944e-38, %v6262
        %v6264 = vsel %vm6261, %v6263, %v6259
        %v6265 = vmul.f32 1.0, %v6264
        %v6266 = vrcp.pop %v6178
        %v6267 = vmul.f32 %v6178, %v6266
        %v6268 = vsub.f32 1.0, %v6267
        %v6269 = vmul.f32 %v6266, %v6268
        %v6270 = vadd.f32 %v6266, %v6269
        %vm6271 = vweird.f32 %v6178
        %vm6272 = vweird.f32 %v6266
        %vm6273 = vmor %vm6271, %vm6272
        %v6274 = vsel %vm6273, %v6266, %v6270
        %v6275 = vand.u32 2147483647, %v6178
        %vm6276 = vcmp.eq.f32.partialorder %v6275, 8.507059e+37
        %v6277 = vand.u32 %v6178, 2147483648
        %v6278 = vor.u32 1.1754944e-38, %v6277
        %v6279 = vsel %vm6276, %v6278, %v6274
        %v6280 = vmul.f32 1.0, %v6279
        %v6281 = vrcp.pop %v6179
        %v6282 = vmul.f32 %v6179, %v6281
        %v6283 = vsub.f32 1.0, %v6282
        %v6284 = vmul.f32 %v6281, %v6283
        %v6285 = vadd.f32 %v6281, %v6284
        %vm6286 = vweird.f32 %v6179
        %vm6287 = vweird.f32 %v6281
        %vm6288 = vmor %vm6286, %vm6287
        %v6289 = vsel %vm6288, %v6281, %v6285
        %v6290 = vand.u32 2147483647, %v6179
        %vm6291 = vcmp.eq.f32.partialorder %v6290, 8.507059e+37
        %v6292 = vand.u32 %v6179, 2147483648
        %v6293 = vor.u32 1.1754944e-38, %v6292
        %v6294 = vsel %vm6291, %v6293, %v6289
        %v6295 = vmul.f32 1.0, %v6294
        %v6296 = vrcp.pop %v6180
        %v6297 = vmul.f32 %v6180, %v6296
        %v6298 = vsub.f32 1.0, %v6297
        %v6299 = vmul.f32 %v6296, %v6298
        %v6300 = vadd.f32 %v6296, %v6299
        %vm6301 = vweird.f32 %v6180
        %vm6302 = vweird.f32 %v6296
        %vm6303 = vmor %vm6301, %vm6302
        %v6304 = vsel %vm6303, %v6296, %v6300
        %v6305 = vand.u32 2147483647, %v6180
        %vm6306 = vcmp.eq.f32.partialorder %v6305, 8.507059e+37
        %v6307 = vand.u32 %v6180, 2147483648
        %v6308 = vor.u32 1.1754944e-38, %v6307
        %v6309 = vsel %vm6306, %v6308, %v6304
        %v6310 = vmul.f32 1.0, %v6309
        %v6311 = vrcp.pop %v6181
        %v6312 = vmul.f32 %v6181, %v6311
        %v6313 = vsub.f32 1.0, %v6312
        %v6314 = vmul.f32 %v6311, %v6313
        %v6315 = vadd.f32 %v6311, %v6314
        %vm6316 = vweird.f32 %v6181
        %vm6317 = vweird.f32 %v6311
        %vm6318 = vmor %vm6316, %vm6317
        %v6319 = vsel %vm6318, %v6311, %v6315
        %v6320 = vand.u32 2147483647, %v6181
        %vm6321 = vcmp.eq.f32.partialorder %v6320, 8.507059e+37
        %v6322 = vand.u32 %v6181, 2147483648
        %v6323 = vor.u32 1.1754944e-38, %v6322
        %v6324 = vsel %vm6321, %v6323, %v6319
        %v6325 = vmul.f32 1.0, %v6324
        %v6326 = vrcp.pop %v6182
        %v6327 = vmul.f32 %v6182, %v6326
        %v6328 = vsub.f32 1.0, %v6327
        %v6329 = vmul.f32 %v6326, %v6328
        %v6330 = vadd.f32 %v6326, %v6329
        %vm6331 = vweird.f32 %v6182
        %vm6332 = vweird.f32 %v6326
        %vm6333 = vmor %vm6331, %vm6332
        %v6334 = vsel %vm6333, %v6326, %v6330
        %v6335 = vand.u32 2147483647, %v6182
        %vm6336 = vcmp.eq.f32.partialorder %v6335, 8.507059e+37
        %v6337 = vand.u32 %v6182, 2147483648
        %v6338 = vor.u32 1.1754944e-38, %v6337
        %v6339 = vsel %vm6336, %v6338, %v6334
        %v6340 = vmul.f32 1.0, %v6339
        %v6341 = vrcp.pop %v6183
        %v6342 = vmul.f32 %v6183, %v6341
        %v6343 = vsub.f32 1.0, %v6342
        %v6344 = vmul.f32 %v6341, %v6343
        %v6345 = vadd.f32 %v6341, %v6344
        %vm6346 = vweird.f32 %v6183
        %vm6347 = vweird.f32 %v6341
        %vm6348 = vmor %vm6346, %vm6347
        %v6349 = vsel %vm6348, %v6341, %v6345
        %v6350 = vand.u32 2147483647, %v6183
        %vm6351 = vcmp.eq.f32.partialorder %v6350, 8.507059e+37
        %v6352 = vand.u32 %v6183, 2147483648
        %v6353 = vor.u32 1.1754944e-38, %v6352
        %v6354 = vsel %vm6351, %v6353, %v6349
        %v6355 = vmul.f32 1.0, %v6354
        %v6356 = vrcp.pop %v6184
        %v6357 = vmul.f32 %v6184, %v6356
        %v6358 = vsub.f32 1.0, %v6357
        %v6359 = vmul.f32 %v6356, %v6358
        %v6360 = vadd.f32 %v6356, %v6359
        %vm6361 = vweird.f32 %v6184
        %vm6362 = vweird.f32 %v6356
        %vm6363 = vmor %vm6361, %vm6362
        %v6364 = vsel %vm6363, %v6356, %v6360
        %v6365 = vand.u32 2147483647, %v6184
        %vm6366 = vcmp.eq.f32.partialorder %v6365, 8.507059e+37
        %v6367 = vand.u32 %v6184, 2147483648
        %v6368 = vor.u32 1.1754944e-38, %v6367
        %v6369 = vsel %vm6366, %v6368, %v6364
        %v6370 = vmul.f32 1.0, %v6369
        %v6371 = vrcp.pop %v6185
        %v6372 = vmul.f32 %v6185, %v6371
        %v6373 = vsub.f32 1.0, %v6372
        %v6374 = vmul.f32 %v6371, %v6373
        %v6375 = vadd.f32 %v6371, %v6374
        %vm6376 = vweird.f32 %v6185
        %vm6377 = vweird.f32 %v6371
        %vm6378 = vmor %vm6376, %vm6377
        %v6379 = vsel %vm6378, %v6371, %v6375
        %v6380 = vand.u32 2147483647, %v6185
        %vm6381 = vcmp.eq.f32.partialorder %v6380, 8.507059e+37
        %v6382 = vand.u32 %v6185, 2147483648
        %v6383 = vor.u32 1.1754944e-38, %v6382
        %v6384 = vsel %vm6381, %v6383, %v6379
        %v6385 = vmul.f32 1.0, %v6384
        %v6386 = vrcp.pop %v6186
        %v6387 = vmul.f32 %v6186, %v6386
        %v6388 = vsub.f32 1.0, %v6387
        %v6389 = vmul.f32 %v6386, %v6388
        %v6390 = vadd.f32 %v6386, %v6389
        %vm6391 = vweird.f32 %v6186
        %vm6392 = vweird.f32 %v6386
        %vm6393 = vmor %vm6391, %vm6392
        %v6394 = vsel %vm6393, %v6386, %v6390
        %v6395 = vand.u32 2147483647, %v6186
        %vm6396 = vcmp.eq.f32.partialorder %v6395, 8.507059e+37
        %v6397 = vand.u32 %v6186, 2147483648
        %v6398 = vor.u32 1.1754944e-38, %v6397
        %v6399 = vsel %vm6396, %v6398, %v6394
        %v6400 = vmul.f32 1.0, %v6399
        %v6401 = vrcp.pop %v6187
        %v6402 = vmul.f32 %v6187, %v6401
        %v6403 = vsub.f32 1.0, %v6402
        %v6404 = vmul.f32 %v6401, %v6403
        %v6405 = vadd.f32 %v6401, %v6404
        %vm6406 = vweird.f32 %v6187
        %vm6407 = vweird.f32 %v6401
        %vm6408 = vmor %vm6406, %vm6407
        %v6409 = vsel %vm6408, %v6401, %v6405
        %v6410 = vand.u32 2147483647, %v6187
        %vm6411 = vcmp.eq.f32.partialorder %v6410, 8.507059e+37
        %v6412 = vand.u32 %v6187, 2147483648
        %v6413 = vor.u32 1.1754944e-38, %v6412
        %v6414 = vsel %vm6411, %v6413, %v6409
        %v6415 = vmul.f32 1.0, %v6414
        %v6416 = vrcp.pop %v6188
        %v6417 = vmul.f32 %v6188, %v6416
        %v6418 = vsub.f32 1.0, %v6417
        %v6419 = vmul.f32 %v6416, %v6418
        %v6420 = vadd.f32 %v6416, %v6419
        %vm6421 = vweird.f32 %v6188
        %vm6422 = vweird.f32 %v6416
        %vm6423 = vmor %vm6421, %vm6422
        %v6424 = vsel %vm6423, %v6416, %v6420
        %v6425 = vand.u32 2147483647, %v6188
        %vm6426 = vcmp.eq.f32.partialorder %v6425, 8.507059e+37
        %v6427 = vand.u32 %v6188, 2147483648
        %v6428 = vor.u32 1.1754944e-38, %v6427
        %v6429 = vsel %vm6426, %v6428, %v6424
        %v6430 = vmul.f32 1.0, %v6429
        %v6431 = vrcp.pop %v6189
        %v6432 = vmul.f32 %v6189, %v6431
        %v6433 = vsub.f32 1.0, %v6432
        %v6434 = vmul.f32 %v6431, %v6433
        %v6435 = vadd.f32 %v6431, %v6434
        %vm6436 = vweird.f32 %v6189
        %vm6437 = vweird.f32 %v6431
        %vm6438 = vmor %vm6436, %vm6437
        %v6439 = vsel %vm6438, %v6431, %v6435
        %v6440 = vand.u32 2147483647, %v6189
        %vm6441 = vcmp.eq.f32.partialorder %v6440, 8.507059e+37
        %v6442 = vand.u32 %v6189, 2147483648
        %v6443 = vor.u32 1.1754944e-38, %v6442
        %v6444 = vsel %vm6441, %v6443, %v6439
        %v6445 = vmul.f32 1.0, %v6444
        %v6446 = vrcp.pop %v6190
        %v6447 = vmul.f32 %v6190, %v6446
        %v6448 = vsub.f32 1.0, %v6447
        %v6449 = vmul.f32 %v6446, %v6448
        %v6450 = vadd.f32 %v6446, %v6449
        %vm6451 = vweird.f32 %v6190
        %vm6452 = vweird.f32 %v6446
        %vm6453 = vmor %vm6451, %vm6452
        %v6454 = vsel %vm6453, %v6446, %v6450
        %v6455 = vand.u32 2147483647, %v6190
        %vm6456 = vcmp.eq.f32.partialorder %v6455, 8.507059e+37
        %v6457 = vand.u32 %v6190, 2147483648
        %v6458 = vor.u32 1.1754944e-38, %v6457
        %v6459 = vsel %vm6456, %v6458, %v6454
        %v6460 = vmul.f32 1.0, %v6459
        %v6461 = vrcp.pop %v6191
        %v6462 = vmul.f32 %v6191, %v6461
        %v6463 = vsub.f32 1.0, %v6462
        %v6464 = vmul.f32 %v6461, %v6463
        %v6465 = vadd.f32 %v6461, %v6464
        %vm6466 = vweird.f32 %v6191
        %vm6467 = vweird.f32 %v6461
        %vm6468 = vmor %vm6466, %vm6467
        %v6469 = vsel %vm6468, %v6461, %v6465
        %v6470 = vand.u32 2147483647, %v6191
        %vm6471 = vcmp.eq.f32.partialorder %v6470, 8.507059e+37
        %v6472 = vand.u32 %v6191, 2147483648
        %v6473 = vor.u32 1.1754944e-38, %v6472
        %v6474 = vsel %vm6471, %v6473, %v6469
        %v6475 = vmul.f32 1.0, %v6474
        %v6476 = vrcp.pop %v6192
        %v6477 = vmul.f32 %v6192, %v6476
        %v6478 = vsub.f32 1.0, %v6477
        %v6479 = vmul.f32 %v6476, %v6478
        %v6480 = vadd.f32 %v6476, %v6479
        %vm6481 = vweird.f32 %v6192
        %vm6482 = vweird.f32 %v6476
        %vm6483 = vmor %vm6481, %vm6482
        %v6484 = vsel %vm6483, %v6476, %v6480
        %v6485 = vand.u32 2147483647, %v6192
        %vm6486 = vcmp.eq.f32.partialorder %v6485, 8.507059e+37
        %v6487 = vand.u32 %v6192, 2147483648
        %v6488 = vor.u32 1.1754944e-38, %v6487
        %v6489 = vsel %vm6486, %v6488, %v6484
        %v6490 = vmul.f32 1.0, %v6489
        %v6491 = vrcp.pop %v6193
        %v6492 = vmul.f32 %v6193, %v6491
        %v6493 = vsub.f32 1.0, %v6492
        %v6494 = vmul.f32 %v6491, %v6493
        %v6495 = vadd.f32 %v6491, %v6494
        %vm6496 = vweird.f32 %v6193
        %vm6497 = vweird.f32 %v6491
        %vm6498 = vmor %vm6496, %vm6497
        %v6499 = vsel %vm6498, %v6491, %v6495
        %v6500 = vand.u32 2147483647, %v6193
        %vm6501 = vcmp.eq.f32.partialorder %v6500, 8.507059e+37
        %v6502 = vand.u32 %v6193, 2147483648
        %v6503 = vor.u32 1.1754944e-38, %v6502
        %v6504 = vsel %vm6501, %v6503, %v6499
        %v6505 = vmul.f32 1.0, %v6504
        %v6506 = vrcp.pop %v6194
        %v6507 = vmul.f32 %v6194, %v6506
        %v6508 = vsub.f32 1.0, %v6507
        %v6509 = vmul.f32 %v6506, %v6508
        %v6510 = vadd.f32 %v6506, %v6509
        %vm6511 = vweird.f32 %v6194
        %vm6512 = vweird.f32 %v6506
        %vm6513 = vmor %vm6511, %vm6512
        %v6514 = vsel %vm6513, %v6506, %v6510
        %v6515 = vand.u32 2147483647, %v6194
        %vm6516 = vcmp.eq.f32.partialorder %v6515, 8.507059e+37
        %v6517 = vand.u32 %v6194, 2147483648
        %v6518 = vor.u32 1.1754944e-38, %v6517
        %v6519 = vsel %vm6516, %v6518, %v6514
        %v6520 = vmul.f32 1.0, %v6519
        %v6521 = vrcp.pop %v6195
        %v6522 = vmul.f32 %v6195, %v6521
        %v6523 = vsub.f32 1.0, %v6522
        %v6524 = vmul.f32 %v6521, %v6523
        %v6525 = vadd.f32 %v6521, %v6524
        %vm6526 = vweird.f32 %v6195
        %vm6527 = vweird.f32 %v6521
        %vm6528 = vmor %vm6526, %vm6527
        %v6529 = vsel %vm6528, %v6521, %v6525
        %v6530 = vand.u32 2147483647, %v6195
        %vm6531 = vcmp.eq.f32.partialorder %v6530, 8.507059e+37
        %v6532 = vand.u32 %v6195, 2147483648
        %v6533 = vor.u32 1.1754944e-38, %v6532
        %v6534 = vsel %vm6531, %v6533, %v6529
        %v6535 = vmul.f32 1.0, %v6534
        %v6536 = vrcp.pop %v6196
        %v6537 = vmul.f32 %v6196, %v6536
        %v6538 = vsub.f32 1.0, %v6537
        %v6539 = vmul.f32 %v6536, %v6538
        %v6540 = vadd.f32 %v6536, %v6539
        %vm6541 = vweird.f32 %v6196
        %vm6542 = vweird.f32 %v6536
        %vm6543 = vmor %vm6541, %vm6542
        %v6544 = vsel %vm6543, %v6536, %v6540
        %v6545 = vand.u32 2147483647, %v6196
        %vm6546 = vcmp.eq.f32.partialorder %v6545, 8.507059e+37
        %v6547 = vand.u32 %v6196, 2147483648
        %v6548 = vor.u32 1.1754944e-38, %v6547
        %v6549 = vsel %vm6546, %v6548, %v6544
        %v6550 = vmul.f32 1.0, %v6549
        %v6551 = vrcp.pop %v6197
        %v6552 = vmul.f32 %v6197, %v6551
        %v6553 = vsub.f32 1.0, %v6552
        %v6554 = vmul.f32 %v6551, %v6553
        %v6555 = vadd.f32 %v6551, %v6554
        %vm6556 = vweird.f32 %v6197
        %vm6557 = vweird.f32 %v6551
        %vm6558 = vmor %vm6556, %vm6557
        %v6559 = vsel %vm6558, %v6551, %v6555
        %v6560 = vand.u32 2147483647, %v6197
        %vm6561 = vcmp.eq.f32.partialorder %v6560, 8.507059e+37
        %v6562 = vand.u32 %v6197, 2147483648
        %v6563 = vor.u32 1.1754944e-38, %v6562
        %v6564 = vsel %vm6561, %v6563, %v6559
        %v6565 = vmul.f32 1.0, %v6564
        %v6566 = vrcp.pop %v6198
        %v6567 = vmul.f32 %v6198, %v6566
        %v6568 = vsub.f32 1.0, %v6567
        %v6569 = vmul.f32 %v6566, %v6568
        %v6570 = vadd.f32 %v6566, %v6569
        %vm6571 = vweird.f32 %v6198
        %vm6572 = vweird.f32 %v6566
        %vm6573 = vmor %vm6571, %vm6572
        %v6574 = vsel %vm6573, %v6566, %v6570
        %v6575 = vand.u32 2147483647, %v6198
        %vm6576 = vcmp.eq.f32.partialorder %v6575, 8.507059e+37
        %v6577 = vand.u32 %v6198, 2147483648
        %v6578 = vor.u32 1.1754944e-38, %v6577
        %v6579 = vsel %vm6576, %v6578, %v6574
        %v6580 = vmul.f32 1.0, %v6579
        %v6581 = vrcp.pop %v6199
        %v6582 = vmul.f32 %v6199, %v6581
        %v6583 = vsub.f32 1.0, %v6582
        %v6584 = vmul.f32 %v6581, %v6583
        %v6585 = vadd.f32 %v6581, %v6584
        %vm6586 = vweird.f32 %v6199
        %vm6587 = vweird.f32 %v6581
        %vm6588 = vmor %vm6586, %vm6587
        %v6589 = vsel %vm6588, %v6581, %v6585
        %v6590 = vand.u32 2147483647, %v6199
        %vm6591 = vcmp.eq.f32.partialorder %v6590, 8.507059e+37
        %v6592 = vand.u32 %v6199, 2147483648
        %v6593 = vor.u32 1.1754944e-38, %v6592
        %v6594 = vsel %vm6591, %v6593, %v6589
        %v6595 = vmul.f32 1.0, %v6594
        %v6596 = vrcp.pop %v6200
        %v6597 = vmul.f32 %v6200, %v6596
        %v6598 = vsub.f32 1.0, %v6597
        %v6599 = vmul.f32 %v6596, %v6598
        %v6600 = vadd.f32 %v6596, %v6599
        %vm6601 = vweird.f32 %v6200
        %vm6602 = vweird.f32 %v6596
        %vm6603 = vmor %vm6601, %vm6602
        %v6604 = vsel %vm6603, %v6596, %v6600
        %v6605 = vand.u32 2147483647, %v6200
        %vm6606 = vcmp.eq.f32.partialorder %v6605, 8.507059e+37
        %v6607 = vand.u32 %v6200, 2147483648
        %v6608 = vor.u32 1.1754944e-38, %v6607
        %v6609 = vsel %vm6606, %v6608, %v6604
        %v6610 = vmul.f32 1.0, %v6609
        %v6611 = vrcp.pop %v6201
        %v6612 = vmul.f32 %v6201, %v6611
        %v6613 = vsub.f32 1.0, %v6612
        %v6614 = vmul.f32 %v6611, %v6613
        %v6615 = vadd.f32 %v6611, %v6614
        %vm6616 = vweird.f32 %v6201
        %vm6617 = vweird.f32 %v6611
        %vm6618 = vmor %vm6616, %vm6617
        %v6619 = vsel %vm6618, %v6611, %v6615
        %v6620 = vand.u32 2147483647, %v6201
        %vm6621 = vcmp.eq.f32.partialorder %v6620, 8.507059e+37
        %v6622 = vand.u32 %v6201, 2147483648
        %v6623 = vor.u32 1.1754944e-38, %v6622
        %v6624 = vsel %vm6621, %v6623, %v6619
        %v6625 = vmul.f32 1.0, %v6624
        %v6626 = vrcp.pop %v6202
        %v6627 = vmul.f32 %v6202, %v6626
        %v6628 = vsub.f32 1.0, %v6627
        %v6629 = vmul.f32 %v6626, %v6628
        %v6630 = vadd.f32 %v6626, %v6629
        %vm6631 = vweird.f32 %v6202
        %vm6632 = vweird.f32 %v6626
        %vm6633 = vmor %vm6631, %vm6632
        %v6634 = vsel %vm6633, %v6626, %v6630
        %v6635 = vand.u32 2147483647, %v6202
        %vm6636 = vcmp.eq.f32.partialorder %v6635, 8.507059e+37
        %v6637 = vand.u32 %v6202, 2147483648
        %v6638 = vor.u32 1.1754944e-38, %v6637
        %v6639 = vsel %vm6636, %v6638, %v6634
        %v6640 = vmul.f32 1.0, %v6639
        %v6641 = vrcp.pop %v6203
        %v6642 = vmul.f32 %v6203, %v6641
        %v6643 = vsub.f32 1.0, %v6642
        %v6644 = vmul.f32 %v6641, %v6643
        %v6645 = vadd.f32 %v6641, %v6644
        %vm6646 = vweird.f32 %v6203
        %vm6647 = vweird.f32 %v6641
        %vm6648 = vmor %vm6646, %vm6647
        %v6649 = vsel %vm6648, %v6641, %v6645
        %v6650 = vand.u32 2147483647, %v6203
        %vm6651 = vcmp.eq.f32.partialorder %v6650, 8.507059e+37
        %v6652 = vand.u32 %v6203, 2147483648
        %v6653 = vor.u32 1.1754944e-38, %v6652
        %v6654 = vsel %vm6651, %v6653, %v6649
        %v6655 = vmul.f32 1.0, %v6654
        %v6656 = vrcp.pop %v6204
        %v6657 = vmul.f32 %v6204, %v6656
        %v6658 = vsub.f32 1.0, %v6657
        %v6659 = vmul.f32 %v6656, %v6658
        %v6660 = vadd.f32 %v6656, %v6659
        %vm6661 = vweird.f32 %v6204
        %vm6662 = vweird.f32 %v6656
        %vm6663 = vmor %vm6661, %vm6662
        %v6664 = vsel %vm6663, %v6656, %v6660
        %v6665 = vand.u32 2147483647, %v6204
        %vm6666 = vcmp.eq.f32.partialorder %v6665, 8.507059e+37
        %v6667 = vand.u32 %v6204, 2147483648
        %v6668 = vor.u32 1.1754944e-38, %v6667
        %v6669 = vsel %vm6666, %v6668, %v6664
        %v6670 = vmul.f32 1.0, %v6669
        %v6671 = vrcp.pop %v6205
        %v6672 = vmul.f32 %v6205, %v6671
        %v6673 = vsub.f32 1.0, %v6672
        %v6674 = vmul.f32 %v6671, %v6673
        %v6675 = vadd.f32 %v6671, %v6674
        %vm6676 = vweird.f32 %v6205
        %vm6677 = vweird.f32 %v6671
        %vm6678 = vmor %vm6676, %vm6677
        %v6679 = vsel %vm6678, %v6671, %v6675
        %v6680 = vand.u32 2147483647, %v6205
        %vm6681 = vcmp.eq.f32.partialorder %v6680, 8.507059e+37
        %v6682 = vand.u32 %v6205, 2147483648
        %v6683 = vor.u32 1.1754944e-38, %v6682
        %v6684 = vsel %vm6681, %v6683, %v6679
        %v6685 = vmul.f32 1.0, %v6684
        %v6686 = vmul.f32 %v859, %v6220
        %v6687 = vmul.f32 %v860, %v6235
        %v6688 = vmul.f32 %v861, %v6250
        %v6689 = vmul.f32 %v862, %v6265
        %v6690 = vmul.f32 %v859, %v6280
        %v6691 = vmul.f32 %v860, %v6295
        %v6692 = vmul.f32 %v861, %v6310
        %v6693 = vmul.f32 %v862, %v6325
        %v6694 = vmul.f32 %v859, %v6340
        %v6695 = vmul.f32 %v860, %v6355
        %v6696 = vmul.f32 %v861, %v6370
        %v6697 = vmul.f32 %v862, %v6385
        %v6698 = vmul.f32 %v859, %v6400
        %v6699 = vmul.f32 %v860, %v6415
        %v6700 = vmul.f32 %v861, %v6430
        %v6701 = vmul.f32 %v862, %v6445
        %v6702 = vmul.f32 %v859, %v6460
        %v6703 = vmul.f32 %v860, %v6475
        %v6704 = vmul.f32 %v861, %v6490
        %v6705 = vmul.f32 %v862, %v6505
        %v6706 = vmul.f32 %v859, %v6520
        %v6707 = vmul.f32 %v860, %v6535
        %v6708 = vmul.f32 %v861, %v6550
        %v6709 = vmul.f32 %v862, %v6565
        %v6710 = vmul.f32 %v859, %v6580
        %v6711 = vmul.f32 %v860, %v6595
        %v6712 = vmul.f32 %v861, %v6610
        %v6713 = vmul.f32 %v862, %v6625
        %v6714 = vmul.f32 %v859, %v6640
        %v6715 = vmul.f32 %v860, %v6655
        %v6716 = vmul.f32 %v861, %v6670
        %v6717 = vmul.f32 %v862, %v6685
        %v6718 = vadd.f32 %v6686, %v6687
        %v6719 = vadd.f32 %v6718, %v6688
        %v6720 = vadd.f32 %v6719, %v6689
        %v6721 = vrot.slane %v6720, 4
        %v6722 = vadd.f32 %v6720, %v6721
        %v6723 = vrot.slane %v6722, 2
        %v6724 = vadd.f32 %v6722, %v6723
        %v6725 = vrot.slane %v6724, 1
        %v6726 = vadd.f32 %v6724, %v6725
        %v6727 = vadd.f32 %v6690, %v6691
        %v6728 = vadd.f32 %v6727, %v6692
        %v6729 = vadd.f32 %v6728, %v6693
        %v6730 = vrot.slane %v6729, 4
        %v6731 = vadd.f32 %v6729, %v6730
        %v6732 = vrot.slane %v6731, 2
        %v6733 = vadd.f32 %v6731, %v6732
        %v6734 = vrot.slane %v6733, 1
        %v6735 = vadd.f32 %v6733, %v6734
        %v6736 = vadd.f32 %v6694, %v6695
        %v6737 = vadd.f32 %v6736, %v6696
        %v6738 = vadd.f32 %v6737, %v6697
        %v6739 = vrot.slane %v6738, 4
        %v6740 = vadd.f32 %v6738, %v6739
        %v6741 = vrot.slane %v6740, 2
        %v6742 = vadd.f32 %v6740, %v6741
        %v6743 = vrot.slane %v6742, 1
        %v6744 = vadd.f32 %v6742, %v6743
        %v6745 = vadd.f32 %v6698, %v6699
        %v6746 = vadd.f32 %v6745, %v6700
        %v6747 = vadd.f32 %v6746, %v6701
        %v6748 = vrot.slane %v6747, 4
        %v6749 = vadd.f32 %v6747, %v6748
        %v6750 = vrot.slane %v6749, 2
        %v6751 = vadd.f32 %v6749, %v6750
        %v6752 = vrot.slane %v6751, 1
        %v6753 = vadd.f32 %v6751, %v6752
        %v6754 = vadd.f32 %v6702, %v6703
        %v6755 = vadd.f32 %v6754, %v6704
        %v6756 = vadd.f32 %v6755, %v6705
        %v6757 = vrot.slane %v6756, 4
        %v6758 = vadd.f32 %v6756, %v6757
        %v6759 = vrot.slane %v6758, 2
        %v6760 = vadd.f32 %v6758, %v6759
        %v6761 = vrot.slane %v6760, 1
        %v6762 = vadd.f32 %v6760, %v6761
        %v6763 = vadd.f32 %v6706, %v6707
        %v6764 = vadd.f32 %v6763, %v6708
        %v6765 = vadd.f32 %v6764, %v6709
        %v6766 = vrot.slane %v6765, 4
        %v6767 = vadd.f32 %v6765, %v6766
        %v6768 = vrot.slane %v6767, 2
        %v6769 = vadd.f32 %v6767, %v6768
        %v6770 = vrot.slane %v6769, 1
        %v6771 = vadd.f32 %v6769, %v6770
        %v6772 = vadd.f32 %v6710, %v6711
        %v6773 = vadd.f32 %v6772, %v6712
        %v6774 = vadd.f32 %v6773, %v6713
        %v6775 = vrot.slane %v6774, 4
        %v6776 = vadd.f32 %v6774, %v6775
        %v6777 = vrot.slane %v6776, 2
        %v6778 = vadd.f32 %v6776, %v6777
        %v6779 = vrot.slane %v6778, 1
        %v6780 = vadd.f32 %v6778, %v6779
        %v6781 = vadd.f32 %v6714, %v6715
        %v6782 = vadd.f32 %v6781, %v6716
        %v6783 = vadd.f32 %v6782, %v6717
        %v6784 = vrot.slane %v6783, 4
        %v6785 = vadd.f32 %v6783, %v6784
        %v6786 = vrot.slane %v6785, 2
        %v6787 = vadd.f32 %v6785, %v6786
        %v6788 = vrot.slane %v6787, 1
        %v6789 = vadd.f32 %v6787, %v6788
        %v6790 = vmul.f32 %v851, %v6220
        %v6791 = vmul.f32 %v852, %v6235
        %v6792 = vmul.f32 %v853, %v6250
        %v6793 = vmul.f32 %v854, %v6265
        %v6794 = vmul.f32 %v851, %v6280
        %v6795 = vmul.f32 %v852, %v6295
        %v6796 = vmul.f32 %v853, %v6310
        %v6797 = vmul.f32 %v854, %v6325
        %v6798 = vmul.f32 %v851, %v6340
        %v6799 = vmul.f32 %v852, %v6355
        %v6800 = vmul.f32 %v853, %v6370
        %v6801 = vmul.f32 %v854, %v6385
        %v6802 = vmul.f32 %v851, %v6400
        %v6803 = vmul.f32 %v852, %v6415
        %v6804 = vmul.f32 %v853, %v6430
        %v6805 = vmul.f32 %v854, %v6445
        %v6806 = vmul.f32 %v851, %v6460
        %v6807 = vmul.f32 %v852, %v6475
        %v6808 = vmul.f32 %v853, %v6490
        %v6809 = vmul.f32 %v854, %v6505
        %v6810 = vmul.f32 %v851, %v6520
        %v6811 = vmul.f32 %v852, %v6535
        %v6812 = vmul.f32 %v853, %v6550
        %v6813 = vmul.f32 %v854, %v6565
        %v6814 = vmul.f32 %v851, %v6580
        %v6815 = vmul.f32 %v852, %v6595
        %v6816 = vmul.f32 %v853, %v6610
        %v6817 = vmul.f32 %v854, %v6625
        %v6818 = vmul.f32 %v851, %v6640
        %v6819 = vmul.f32 %v852, %v6655
        %v6820 = vmul.f32 %v853, %v6670
        %v6821 = vmul.f32 %v854, %v6685
        %v6822 = vadd.f32 %v6790, %v6791
        %v6823 = vadd.f32 %v6822, %v6792
        %v6824 = vadd.f32 %v6823, %v6793
        %v6825 = vrot.slane %v6824, 4
        %v6826 = vadd.f32 %v6824, %v6825
        %v6827 = vrot.slane %v6826, 2
        %v6828 = vadd.f32 %v6826, %v6827
        %v6829 = vrot.slane %v6828, 1
        %v6830 = vadd.f32 %v6828, %v6829
        %v6831 = vadd.f32 %v6794, %v6795
        %v6832 = vadd.f32 %v6831, %v6796
        %v6833 = vadd.f32 %v6832, %v6797
        %v6834 = vrot.slane %v6833, 4
        %v6835 = vadd.f32 %v6833, %v6834
        %v6836 = vrot.slane %v6835, 2
        %v6837 = vadd.f32 %v6835, %v6836
        %v6838 = vrot.slane %v6837, 1
        %v6839 = vadd.f32 %v6837, %v6838
        %v6840 = vadd.f32 %v6798, %v6799
        %v6841 = vadd.f32 %v6840, %v6800
        %v6842 = vadd.f32 %v6841, %v6801
        %v6843 = vrot.slane %v6842, 4
        %v6844 = vadd.f32 %v6842, %v6843
        %v6845 = vrot.slane %v6844, 2
        %v6846 = vadd.f32 %v6844, %v6845
        %v6847 = vrot.slane %v6846, 1
        %v6848 = vadd.f32 %v6846, %v6847
        %v6849 = vadd.f32 %v6802, %v6803
        %v6850 = vadd.f32 %v6849, %v6804
        %v6851 = vadd.f32 %v6850, %v6805
        %v6852 = vrot.slane %v6851, 4
        %v6853 = vadd.f32 %v6851, %v6852
        %v6854 = vrot.slane %v6853, 2
        %v6855 = vadd.f32 %v6853, %v6854
        %v6856 = vrot.slane %v6855, 1
        %v6857 = vadd.f32 %v6855, %v6856
        %v6858 = vadd.f32 %v6806, %v6807
        %v6859 = vadd.f32 %v6858, %v6808
        %v6860 = vadd.f32 %v6859, %v6809
        %v6861 = vrot.slane %v6860, 4
        %v6862 = vadd.f32 %v6860, %v6861
        %v6863 = vrot.slane %v6862, 2
        %v6864 = vadd.f32 %v6862, %v6863
        %v6865 = vrot.slane %v6864, 1
        %v6866 = vadd.f32 %v6864, %v6865
        %v6867 = vadd.f32 %v6810, %v6811
        %v6868 = vadd.f32 %v6867, %v6812
        %v6869 = vadd.f32 %v6868, %v6813
        %v6870 = vrot.slane %v6869, 4
        %v6871 = vadd.f32 %v6869, %v6870
        %v6872 = vrot.slane %v6871, 2
        %v6873 = vadd.f32 %v6871, %v6872
        %v6874 = vrot.slane %v6873, 1
        %v6875 = vadd.f32 %v6873, %v6874
        %v6876 = vadd.f32 %v6814, %v6815
        %v6877 = vadd.f32 %v6876, %v6816
        %v6878 = vadd.f32 %v6877, %v6817
        %v6879 = vrot.slane %v6878, 4
        %v6880 = vadd.f32 %v6878, %v6879
        %v6881 = vrot.slane %v6880, 2
        %v6882 = vadd.f32 %v6880, %v6881
        %v6883 = vrot.slane %v6882, 1
        %v6884 = vadd.f32 %v6882, %v6883
        %v6885 = vadd.f32 %v6818, %v6819
        %v6886 = vadd.f32 %v6885, %v6820
        %v6887 = vadd.f32 %v6886, %v6821
        %v6888 = vrot.slane %v6887, 4
        %v6889 = vadd.f32 %v6887, %v6888
        %v6890 = vrot.slane %v6889, 2
        %v6891 = vadd.f32 %v6889, %v6890
        %v6892 = vrot.slane %v6891, 1
        %v6893 = vadd.f32 %v6891, %v6892
        %v6894 = vmul.f32 %v1228, %v5813
        %v6895 = vadd.f32 %v6894, %v1258
        %v6904 = vsel %vm1243, %v6735, %v6726
        %v6905 = vsel %vm1245, %v6744, %v6904
        %v6906 = vsel %vm1247, %v6753, %v6905
        %v6907 = vsel %vm1249, %v6762, %v6906
        %v6908 = vsel %vm1251, %v6771, %v6907
        %v6909 = vsel %vm1253, %v6780, %v6908
        %v6910 = vsel %vm1255, %v6789, %v6909
        %v6912 = vadd.f32 %v6895, %v6910
        %v6921 = vsel %vm1243, %v6839, %v6830
        %v6922 = vsel %vm1245, %v6848, %v6921
        %v6923 = vsel %vm1247, %v6857, %v6922
        %v6924 = vsel %vm1249, %v6866, %v6923
        %v6925 = vsel %vm1251, %v6875, %v6924
        %v6926 = vsel %vm1253, %v6884, %v6925
        %v6927 = vsel %vm1255, %v6893, %v6926
        %v6929 = vadd.f32 %v1280, %v6927
        %v6930 = vrcp.pop %v6929
        %v6931 = vmul.f32 %v6929, %v6930
        %v6932 = vsub.f32 1.0, %v6931
        %v6933 = vmul.f32 %v6930, %v6932
        %v6934 = vadd.f32 %v6930, %v6933
        %vm6935 = vweird.f32 %v6929
        %vm6936 = vweird.f32 %v6930
        %vm6937 = vmor %vm6935, %vm6936
        %v6938 = vsel %vm6937, %v6930, %v6934
        %v6939 = vand.u32 2147483647, %v6929
        %vm6940 = vcmp.eq.f32.partialorder %v6939, 8.507059e+37
        %v6941 = vand.u32 %v6929, 2147483648
        %v6942 = vor.u32 1.1754944e-38, %v6941
        %v6943 = vsel %vm6940, %v6942, %v6938
        %v6944 = vmul.f32 %v6912, %v6943
        %v6945 = vperm.slane %v6944, 0
        %v6946 = vlaneseq
        %v6947 = vshrl.u32 %v6946, 7
        %6949 = vset.pattern.permute.xlu0 %v6947
        %6950 = vperm.xlu0 %6949, %v6945
        %v6951 = vpop.permute.xlu0 %6950
        %v6952 = vlaneseq
        %v6953 = vshrl.u32 %v6952, 7
        %v6954 = vadd.s32 %v6953, 8
        %6955 = vset.pattern.permute.xlu0 %v6954
        %6956 = vperm.xlu0 %6955, %v6945
        %v6957 = vpop.permute.xlu0 %6956
        %v6958 = vlaneseq
        %v6959 = vshrl.u32 %v6958, 7
        %v6960 = vadd.s32 %v6959, 16
        %6961 = vset.pattern.permute.xlu0 %v6960
        %6962 = vperm.xlu0 %6961, %v6945
        %v6963 = vpop.permute.xlu0 %6962
        %v6964 = vlaneseq
        %v6965 = vshrl.u32 %v6964, 7
        %v6966 = vadd.s32 %v6965, 24
        %6967 = vset.pattern.permute.xlu0 %v6966
        %6968 = vperm.xlu0 %6967, %v6945
        %v6969 = vpop.permute.xlu0 %6968
        %v6970 = vperm.slane %v6944, 1
        %v6971 = vlaneseq
        %v6972 = vshrl.u32 %v6971, 7
        %6974 = vset.pattern.permute.xlu0 %v6972
        %6975 = vperm.xlu0 %6974, %v6970
        %v6976 = vpop.permute.xlu0 %6975
        %v6977 = vlaneseq
        %v6978 = vshrl.u32 %v6977, 7
        %v6979 = vadd.s32 %v6978, 8
        %6980 = vset.pattern.permute.xlu0 %v6979
        %6981 = vperm.xlu0 %6980, %v6970
        %v6982 = vpop.permute.xlu0 %6981
        %v6983 = vlaneseq
        %v6984 = vshrl.u32 %v6983, 7
        %v6985 = vadd.s32 %v6984, 16
        %6986 = vset.pattern.permute.xlu0 %v6985
        %6987 = vperm.xlu0 %6986, %v6970
        %v6988 = vpop.permute.xlu0 %6987
        %v6989 = vlaneseq
        %v6990 = vshrl.u32 %v6989, 7
        %v6991 = vadd.s32 %v6990, 24
        %6992 = vset.pattern.permute.xlu0 %v6991
        %6993 = vperm.xlu0 %6992, %v6970
        %v6994 = vpop.permute.xlu0 %6993
        %v6995 = vperm.slane %v6944, 2
        %v6996 = vlaneseq
        %v6997 = vshrl.u32 %v6996, 7
        %6999 = vset.pattern.permute.xlu0 %v6997
        %7000 = vperm.xlu0 %6999, %v6995
        %v7001 = vpop.permute.xlu0 %7000
        %v7002 = vlaneseq
        %v7003 = vshrl.u32 %v7002, 7
        %v7004 = vadd.s32 %v7003, 8
        %7005 = vset.pattern.permute.xlu0 %v7004
        %7006 = vperm.xlu0 %7005, %v6995
        %v7007 = vpop.permute.xlu0 %7006
        %v7008 = vlaneseq
        %v7009 = vshrl.u32 %v7008, 7
        %v7010 = vadd.s32 %v7009, 16
        %7011 = vset.pattern.permute.xlu0 %v7010
        %7012 = vperm.xlu0 %7011, %v6995
        %v7013 = vpop.permute.xlu0 %7012
        %v7014 = vlaneseq
        %v7015 = vshrl.u32 %v7014, 7
        %v7016 = vadd.s32 %v7015, 24
        %7017 = vset.pattern.permute.xlu0 %v7016
        %7018 = vperm.xlu0 %7017, %v6995
        %v7019 = vpop.permute.xlu0 %7018
        %v7020 = vperm.slane %v6944, 3
        %v7021 = vlaneseq
        %v7022 = vshrl.u32 %v7021, 7
        %7024 = vset.pattern.permute.xlu0 %v7022
        %7025 = vperm.xlu0 %7024, %v7020
        %v7026 = vpop.permute.xlu0 %7025
        %v7027 = vlaneseq
        %v7028 = vshrl.u32 %v7027, 7
        %v7029 = vadd.s32 %v7028, 8
        %7030 = vset.pattern.permute.xlu0 %v7029
        %7031 = vperm.xlu0 %7030, %v7020
        %v7032 = vpop.permute.xlu0 %7031
        %v7033 = vlaneseq
        %v7034 = vshrl.u32 %v7033, 7
        %v7035 = vadd.s32 %v7034, 16
        %7036 = vset.pattern.permute.xlu0 %v7035
        %7037 = vperm.xlu0 %7036, %v7020
        %v7038 = vpop.permute.xlu0 %7037
        %v7039 = vlaneseq
        %v7040 = vshrl.u32 %v7039, 7
        %v7041 = vadd.s32 %v7040, 24
        %7042 = vset.pattern.permute.xlu0 %v7041
        %7043 = vperm.xlu0 %7042, %v7020
        %v7044 = vpop.permute.xlu0 %7043
        %v7045 = vperm.slane %v6944, 4
        %v7046 = vlaneseq
        %v7047 = vshrl.u32 %v7046, 7
        %7049 = vset.pattern.permute.xlu0 %v7047
        %7050 = vperm.xlu0 %7049, %v7045
        %v7051 = vpop.permute.xlu0 %7050
        %v7052 = vlaneseq
        %v7053 = vshrl.u32 %v7052, 7
        %v7054 = vadd.s32 %v7053, 8
        %7055 = vset.pattern.permute.xlu0 %v7054
        %7056 = vperm.xlu0 %7055, %v7045
        %v7057 = vpop.permute.xlu0 %7056
        %v7058 = vlaneseq
        %v7059 = vshrl.u32 %v7058, 7
        %v7060 = vadd.s32 %v7059, 16
        %7061 = vset.pattern.permute.xlu0 %v7060
        %7062 = vperm.xlu0 %7061, %v7045
        %v7063 = vpop.permute.xlu0 %7062
        %v7064 = vlaneseq
        %v7065 = vshrl.u32 %v7064, 7
        %v7066 = vadd.s32 %v7065, 24
        %7067 = vset.pattern.permute.xlu0 %v7066
        %7068 = vperm.xlu0 %7067, %v7045
        %v7069 = vpop.permute.xlu0 %7068
        %v7070 = vperm.slane %v6944, 5
        %v7071 = vlaneseq
        %v7072 = vshrl.u32 %v7071, 7
        %7074 = vset.pattern.permute.xlu0 %v7072
        %7075 = vperm.xlu0 %7074, %v7070
        %v7076 = vpop.permute.xlu0 %7075
        %v7077 = vlaneseq
        %v7078 = vshrl.u32 %v7077, 7
        %v7079 = vadd.s32 %v7078, 8
        %7080 = vset.pattern.permute.xlu0 %v7079
        %7081 = vperm.xlu0 %7080, %v7070
        %v7082 = vpop.permute.xlu0 %7081
        %v7083 = vlaneseq
        %v7084 = vshrl.u32 %v7083, 7
        %v7085 = vadd.s32 %v7084, 16
        %7086 = vset.pattern.permute.xlu0 %v7085
        %7087 = vperm.xlu0 %7086, %v7070
        %v7088 = vpop.permute.xlu0 %7087
        %v7089 = vlaneseq
        %v7090 = vshrl.u32 %v7089, 7
        %v7091 = vadd.s32 %v7090, 24
        %7092 = vset.pattern.permute.xlu0 %v7091
        %7093 = vperm.xlu0 %7092, %v7070
        %v7094 = vpop.permute.xlu0 %7093
        %v7095 = vperm.slane %v6944, 6
        %v7096 = vlaneseq
        %v7097 = vshrl.u32 %v7096, 7
        %7099 = vset.pattern.permute.xlu0 %v7097
        %7100 = vperm.xlu0 %7099, %v7095
        %v7101 = vpop.permute.xlu0 %7100
        %v7102 = vlaneseq
        %v7103 = vshrl.u32 %v7102, 7
        %v7104 = vadd.s32 %v7103, 8
        %7105 = vset.pattern.permute.xlu0 %v7104
        %7106 = vperm.xlu0 %7105, %v7095
        %v7107 = vpop.permute.xlu0 %7106
        %v7108 = vlaneseq
        %v7109 = vshrl.u32 %v7108, 7
        %v7110 = vadd.s32 %v7109, 16
        %7111 = vset.pattern.permute.xlu0 %v7110
        %7112 = vperm.xlu0 %7111, %v7095
        %v7113 = vpop.permute.xlu0 %7112
        %v7114 = vlaneseq
        %v7115 = vshrl.u32 %v7114, 7
        %v7116 = vadd.s32 %v7115, 24
        %7117 = vset.pattern.permute.xlu0 %v7116
        %7118 = vperm.xlu0 %7117, %v7095
        %v7119 = vpop.permute.xlu0 %7118
        %v7120 = vperm.slane %v6944, 7
        %v7121 = vlaneseq
        %v7122 = vshrl.u32 %v7121, 7
        %7124 = vset.pattern.permute.xlu0 %v7122
        %7125 = vperm.xlu0 %7124, %v7120
        %v7126 = vpop.permute.xlu0 %7125
        %v7127 = vlaneseq
        %v7128 = vshrl.u32 %v7127, 7
        %v7129 = vadd.s32 %v7128, 8
        %7130 = vset.pattern.permute.xlu0 %v7129
        %7131 = vperm.xlu0 %7130, %v7120
        %v7132 = vpop.permute.xlu0 %7131
        %v7133 = vlaneseq
        %v7134 = vshrl.u32 %v7133, 7
        %v7135 = vadd.s32 %v7134, 16
        %7136 = vset.pattern.permute.xlu0 %v7135
        %7137 = vperm.xlu0 %7136, %v7120
        %v7138 = vpop.permute.xlu0 %7137
        %v7139 = vlaneseq
        %v7140 = vshrl.u32 %v7139, 7
        %v7141 = vadd.s32 %v7140, 24
        %7142 = vset.pattern.permute.xlu0 %v7141
        %7143 = vperm.xlu0 %7142, %v7120
        %v7144 = vpop.permute.xlu0 %7143
        %v7145 = vsub.f32 %v6951, %v1281
        %v7146 = vsub.f32 %v6957, %v1282
        %v7147 = vsub.f32 %v6963, %v1283
        %v7148 = vsub.f32 %v6969, %v1284
        %v7149 = vsub.f32 %v6976, %v1281
        %v7150 = vsub.f32 %v6982, %v1282
        %v7151 = vsub.f32 %v6988, %v1283
        %v7152 = vsub.f32 %v6994, %v1284
        %v7153 = vsub.f32 %v7001, %v1281
        %v7154 = vsub.f32 %v7007, %v1282
        %v7155 = vsub.f32 %v7013, %v1283
        %v7156 = vsub.f32 %v7019, %v1284
        %v7157 = vsub.f32 %v7026, %v1281
        %v7158 = vsub.f32 %v7032, %v1282
        %v7159 = vsub.f32 %v7038, %v1283
        %v7160 = vsub.f32 %v7044, %v1284
        %v7161 = vsub.f32 %v7051, %v1281
        %v7162 = vsub.f32 %v7057, %v1282
        %v7163 = vsub.f32 %v7063, %v1283
        %v7164 = vsub.f32 %v7069, %v1284
        %v7165 = vsub.f32 %v7076, %v1281
        %v7166 = vsub.f32 %v7082, %v1282
        %v7167 = vsub.f32 %v7088, %v1283
        %v7168 = vsub.f32 %v7094, %v1284
        %v7169 = vsub.f32 %v7101, %v1281
        %v7170 = vsub.f32 %v7107, %v1282
        %v7171 = vsub.f32 %v7113, %v1283
        %v7172 = vsub.f32 %v7119, %v1284
        %v7173 = vsub.f32 %v7126, %v1281
        %v7174 = vsub.f32 %v7132, %v1282
        %v7175 = vsub.f32 %v7138, %v1283
        %v7176 = vsub.f32 %v7144, %v1284
        %v7177 = vmul.f32 %v7145, %v1285
        %v7178 = vmul.f32 %v7146, %v1286
        %v7179 = vmul.f32 %v7147, %v1287
        %v7180 = vmul.f32 %v7148, %v1288
        %v7181 = vmul.f32 %v7149, %v1285
        %v7182 = vmul.f32 %v7150, %v1286
        %v7183 = vmul.f32 %v7151, %v1287
        %v7184 = vmul.f32 %v7152, %v1288
        %v7185 = vmul.f32 %v7153, %v1285
        %v7186 = vmul.f32 %v7154, %v1286
        %v7187 = vmul.f32 %v7155, %v1287
        %v7188 = vmul.f32 %v7156, %v1288
        %v7189 = vmul.f32 %v7157, %v1285
        %v7190 = vmul.f32 %v7158, %v1286
        %v7191 = vmul.f32 %v7159, %v1287
        %v7192 = vmul.f32 %v7160, %v1288
        %v7193 = vmul.f32 %v7161, %v1285
        %v7194 = vmul.f32 %v7162, %v1286
        %v7195 = vmul.f32 %v7163, %v1287
        %v7196 = vmul.f32 %v7164, %v1288
        %v7197 = vmul.f32 %v7165, %v1285
        %v7198 = vmul.f32 %v7166, %v1286
        %v7199 = vmul.f32 %v7167, %v1287
        %v7200 = vmul.f32 %v7168, %v1288
        %v7201 = vmul.f32 %v7169, %v1285
        %v7202 = vmul.f32 %v7170, %v1286
        %v7203 = vmul.f32 %v7171, %v1287
        %v7204 = vmul.f32 %v7172, %v1288
        %v7205 = vmul.f32 %v7173, %v1285
        %v7206 = vmul.f32 %v7174, %v1286
        %v7207 = vmul.f32 %v7175, %v1287
        %v7208 = vmul.f32 %v7176, %v1288
        %v7209 = vxor.u32 %v7177, 2147483648
        %v7210 = vxor.u32 %v7178, 2147483648
        %v7211 = vxor.u32 %v7179, 2147483648
        %v7212 = vxor.u32 %v7180, 2147483648
        %v7213 = vxor.u32 %v7181, 2147483648
        %v7214 = vxor.u32 %v7182, 2147483648
        %v7215 = vxor.u32 %v7183, 2147483648
        %v7216 = vxor.u32 %v7184, 2147483648
        %v7217 = vxor.u32 %v7185, 2147483648
        %v7218 = vxor.u32 %v7186, 2147483648
        %v7219 = vxor.u32 %v7187, 2147483648
        %v7220 = vxor.u32 %v7188, 2147483648
        %v7221 = vxor.u32 %v7189, 2147483648
        %v7222 = vxor.u32 %v7190, 2147483648
        %v7223 = vxor.u32 %v7191, 2147483648
        %v7224 = vxor.u32 %v7192, 2147483648
        %v7225 = vxor.u32 %v7193, 2147483648
        %v7226 = vxor.u32 %v7194, 2147483648
        %v7227 = vxor.u32 %v7195, 2147483648
        %v7228 = vxor.u32 %v7196, 2147483648
        %v7229 = vxor.u32 %v7197, 2147483648
        %v7230 = vxor.u32 %v7198, 2147483648
        %v7231 = vxor.u32 %v7199, 2147483648
        %v7232 = vxor.u32 %v7200, 2147483648
        %v7233 = vxor.u32 %v7201, 2147483648
        %v7234 = vxor.u32 %v7202, 2147483648
        %v7235 = vxor.u32 %v7203, 2147483648
        %v7236 = vxor.u32 %v7204, 2147483648
        %v7237 = vxor.u32 %v7205, 2147483648
        %v7238 = vxor.u32 %v7206, 2147483648
        %v7239 = vxor.u32 %v7207, 2147483648
        %v7240 = vxor.u32 %v7208, 2147483648
        %v7241 = vmul.f32 %v7209, 1.442695
        %v7242 = vpow.pop %v7241
        %v7243 = vmul.f32 %v7210, 1.442695
        %v7244 = vpow.pop %v7243
        %v7245 = vmul.f32 %v7211, 1.442695
        %v7246 = vpow.pop %v7245
        %v7247 = vmul.f32 %v7212, 1.442695
        %v7248 = vpow.pop %v7247
        %v7249 = vmul.f32 %v7213, 1.442695
        %v7250 = vpow.pop %v7249
        %v7251 = vmul.f32 %v7214, 1.442695
        %v7252 = vpow.pop %v7251
        %v7253 = vmul.f32 %v7215, 1.442695
        %v7254 = vpow.pop %v7253
        %v7255 = vmul.f32 %v7216, 1.442695
        %v7256 = vpow.pop %v7255
        %v7257 = vmul.f32 %v7217, 1.442695
        %v7258 = vpow.pop %v7257
        %v7259 = vmul.f32 %v7218, 1.442695
        %v7260 = vpow.pop %v7259
        %v7261 = vmul.f32 %v7219, 1.442695
        %v7262 = vpow.pop %v7261
        %v7263 = vmul.f32 %v7220, 1.442695
        %v7264 = vpow.pop %v7263
        %v7265 = vmul.f32 %v7221, 1.442695
        %v7266 = vpow.pop %v7265
        %v7267 = vmul.f32 %v7222, 1.442695
        %v7268 = vpow.pop %v7267
        %v7269 = vmul.f32 %v7223, 1.442695
        %v7270 = vpow.pop %v7269
        %v7271 = vmul.f32 %v7224, 1.442695
        %v7272 = vpow.pop %v7271
        %v7273 = vmul.f32 %v7225, 1.442695
        %v7274 = vpow.pop %v7273
        %v7275 = vmul.f32 %v7226, 1.442695
        %v7276 = vpow.pop %v7275
        %v7277 = vmul.f32 %v7227, 1.442695
        %v7278 = vpow.pop %v7277
        %v7279 = vmul.f32 %v7228, 1.442695
        %v7280 = vpow.pop %v7279
        %v7281 = vmul.f32 %v7229, 1.442695
        %v7282 = vpow.pop %v7281
        %v7283 = vmul.f32 %v7230, 1.442695
        %v7284 = vpow.pop %v7283
        %v7285 = vmul.f32 %v7231, 1.442695
        %v7286 = vpow.pop %v7285
        %v7287 = vmul.f32 %v7232, 1.442695
        %v7288 = vpow.pop %v7287
        %v7289 = vmul.f32 %v7233, 1.442695
        %v7290 = vpow.pop %v7289
        %v7291 = vmul.f32 %v7234, 1.442695
        %v7292 = vpow.pop %v7291
        %v7293 = vmul.f32 %v7235, 1.442695
        %v7294 = vpow.pop %v7293
        %v7295 = vmul.f32 %v7236, 1.442695
        %v7296 = vpow.pop %v7295
        %v7297 = vmul.f32 %v7237, 1.442695
        %v7298 = vpow.pop %v7297
        %v7299 = vmul.f32 %v7238, 1.442695
        %v7300 = vpow.pop %v7299
        %v7301 = vmul.f32 %v7239, 1.442695
        %v7302 = vpow.pop %v7301
        %v7303 = vmul.f32 %v7240, 1.442695
        %v7304 = vpow.pop %v7303
        %v7305 = vadd.f32 %v7242, 1.0
        %v7306 = vadd.f32 %v7244, 1.0
        %v7307 = vadd.f32 %v7246, 1.0
        %v7308 = vadd.f32 %v7248, 1.0
        %v7309 = vadd.f32 %v7250, 1.0
        %v7310 = vadd.f32 %v7252, 1.0
        %v7311 = vadd.f32 %v7254, 1.0
        %v7312 = vadd.f32 %v7256, 1.0
        %v7313 = vadd.f32 %v7258, 1.0
        %v7314 = vadd.f32 %v7260, 1.0
        %v7315 = vadd.f32 %v7262, 1.0
        %v7316 = vadd.f32 %v7264, 1.0
        %v7317 = vadd.f32 %v7266, 1.0
        %v7318 = vadd.f32 %v7268, 1.0
        %v7319 = vadd.f32 %v7270, 1.0
        %v7320 = vadd.f32 %v7272, 1.0
        %v7321 = vadd.f32 %v7274, 1.0
        %v7322 = vadd.f32 %v7276, 1.0
        %v7323 = vadd.f32 %v7278, 1.0
        %v7324 = vadd.f32 %v7280, 1.0
        %v7325 = vadd.f32 %v7282, 1.0
        %v7326 = vadd.f32 %v7284, 1.0
        %v7327 = vadd.f32 %v7286, 1.0
        %v7328 = vadd.f32 %v7288, 1.0
        %v7329 = vadd.f32 %v7290, 1.0
        %v7330 = vadd.f32 %v7292, 1.0
        %v7331 = vadd.f32 %v7294, 1.0
        %v7332 = vadd.f32 %v7296, 1.0
        %v7333 = vadd.f32 %v7298, 1.0
        %v7334 = vadd.f32 %v7300, 1.0
        %v7335 = vadd.f32 %v7302, 1.0
        %v7336 = vadd.f32 %v7304, 1.0
        %v7337 = vrcp.pop %v7305
        %v7338 = vmul.f32 %v7305, %v7337
        %v7339 = vsub.f32 1.0, %v7338
        %v7340 = vmul.f32 %v7337, %v7339
        %v7341 = vadd.f32 %v7337, %v7340
        %vm7342 = vweird.f32 %v7305
        %vm7343 = vweird.f32 %v7337
        %vm7344 = vmor %vm7342, %vm7343
        %v7345 = vsel %vm7344, %v7337, %v7341
        %v7346 = vand.u32 2147483647, %v7305
        %vm7347 = vcmp.eq.f32.partialorder %v7346, 8.507059e+37
        %v7348 = vand.u32 %v7305, 2147483648
        %v7349 = vor.u32 1.1754944e-38, %v7348
        %v7350 = vsel %vm7347, %v7349, %v7345
        %v7351 = vmul.f32 1.0, %v7350
        %v7352 = vrcp.pop %v7306
        %v7353 = vmul.f32 %v7306, %v7352
        %v7354 = vsub.f32 1.0, %v7353
        %v7355 = vmul.f32 %v7352, %v7354
        %v7356 = vadd.f32 %v7352, %v7355
        %vm7357 = vweird.f32 %v7306
        %vm7358 = vweird.f32 %v7352
        %vm7359 = vmor %vm7357, %vm7358
        %v7360 = vsel %vm7359, %v7352, %v7356
        %v7361 = vand.u32 2147483647, %v7306
        %vm7362 = vcmp.eq.f32.partialorder %v7361, 8.507059e+37
        %v7363 = vand.u32 %v7306, 2147483648
        %v7364 = vor.u32 1.1754944e-38, %v7363
        %v7365 = vsel %vm7362, %v7364, %v7360
        %v7366 = vmul.f32 1.0, %v7365
        %v7367 = vrcp.pop %v7307
        %v7368 = vmul.f32 %v7307, %v7367
        %v7369 = vsub.f32 1.0, %v7368
        %v7370 = vmul.f32 %v7367, %v7369
        %v7371 = vadd.f32 %v7367, %v7370
        %vm7372 = vweird.f32 %v7307
        %vm7373 = vweird.f32 %v7367
        %vm7374 = vmor %vm7372, %vm7373
        %v7375 = vsel %vm7374, %v7367, %v7371
        %v7376 = vand.u32 2147483647, %v7307
        %vm7377 = vcmp.eq.f32.partialorder %v7376, 8.507059e+37
        %v7378 = vand.u32 %v7307, 2147483648
        %v7379 = vor.u32 1.1754944e-38, %v7378
        %v7380 = vsel %vm7377, %v7379, %v7375
        %v7381 = vmul.f32 1.0, %v7380
        %v7382 = vrcp.pop %v7308
        %v7383 = vmul.f32 %v7308, %v7382
        %v7384 = vsub.f32 1.0, %v7383
        %v7385 = vmul.f32 %v7382, %v7384
        %v7386 = vadd.f32 %v7382, %v7385
        %vm7387 = vweird.f32 %v7308
        %vm7388 = vweird.f32 %v7382
        %vm7389 = vmor %vm7387, %vm7388
        %v7390 = vsel %vm7389, %v7382, %v7386
        %v7391 = vand.u32 2147483647, %v7308
        %vm7392 = vcmp.eq.f32.partialorder %v7391, 8.507059e+37
        %v7393 = vand.u32 %v7308, 2147483648
        %v7394 = vor.u32 1.1754944e-38, %v7393
        %v7395 = vsel %vm7392, %v7394, %v7390
        %v7396 = vmul.f32 1.0, %v7395
        %v7397 = vrcp.pop %v7309
        %v7398 = vmul.f32 %v7309, %v7397
        %v7399 = vsub.f32 1.0, %v7398
        %v7400 = vmul.f32 %v7397, %v7399
        %v7401 = vadd.f32 %v7397, %v7400
        %vm7402 = vweird.f32 %v7309
        %vm7403 = vweird.f32 %v7397
        %vm7404 = vmor %vm7402, %vm7403
        %v7405 = vsel %vm7404, %v7397, %v7401
        %v7406 = vand.u32 2147483647, %v7309
        %vm7407 = vcmp.eq.f32.partialorder %v7406, 8.507059e+37
        %v7408 = vand.u32 %v7309, 2147483648
        %v7409 = vor.u32 1.1754944e-38, %v7408
        %v7410 = vsel %vm7407, %v7409, %v7405
        %v7411 = vmul.f32 1.0, %v7410
        %v7412 = vrcp.pop %v7310
        %v7413 = vmul.f32 %v7310, %v7412
        %v7414 = vsub.f32 1.0, %v7413
        %v7415 = vmul.f32 %v7412, %v7414
        %v7416 = vadd.f32 %v7412, %v7415
        %vm7417 = vweird.f32 %v7310
        %vm7418 = vweird.f32 %v7412
        %vm7419 = vmor %vm7417, %vm7418
        %v7420 = vsel %vm7419, %v7412, %v7416
        %v7421 = vand.u32 2147483647, %v7310
        %vm7422 = vcmp.eq.f32.partialorder %v7421, 8.507059e+37
        %v7423 = vand.u32 %v7310, 2147483648
        %v7424 = vor.u32 1.1754944e-38, %v7423
        %v7425 = vsel %vm7422, %v7424, %v7420
        %v7426 = vmul.f32 1.0, %v7425
        %v7427 = vrcp.pop %v7311
        %v7428 = vmul.f32 %v7311, %v7427
        %v7429 = vsub.f32 1.0, %v7428
        %v7430 = vmul.f32 %v7427, %v7429
        %v7431 = vadd.f32 %v7427, %v7430
        %vm7432 = vweird.f32 %v7311
        %vm7433 = vweird.f32 %v7427
        %vm7434 = vmor %vm7432, %vm7433
        %v7435 = vsel %vm7434, %v7427, %v7431
        %v7436 = vand.u32 2147483647, %v7311
        %vm7437 = vcmp.eq.f32.partialorder %v7436, 8.507059e+37
        %v7438 = vand.u32 %v7311, 2147483648
        %v7439 = vor.u32 1.1754944e-38, %v7438
        %v7440 = vsel %vm7437, %v7439, %v7435
        %v7441 = vmul.f32 1.0, %v7440
        %v7442 = vrcp.pop %v7312
        %v7443 = vmul.f32 %v7312, %v7442
        %v7444 = vsub.f32 1.0, %v7443
        %v7445 = vmul.f32 %v7442, %v7444
        %v7446 = vadd.f32 %v7442, %v7445
        %vm7447 = vweird.f32 %v7312
        %vm7448 = vweird.f32 %v7442
        %vm7449 = vmor %vm7447, %vm7448
        %v7450 = vsel %vm7449, %v7442, %v7446
        %v7451 = vand.u32 2147483647, %v7312
        %vm7452 = vcmp.eq.f32.partialorder %v7451, 8.507059e+37
        %v7453 = vand.u32 %v7312, 2147483648
        %v7454 = vor.u32 1.1754944e-38, %v7453
        %v7455 = vsel %vm7452, %v7454, %v7450
        %v7456 = vmul.f32 1.0, %v7455
        %v7457 = vrcp.pop %v7313
        %v7458 = vmul.f32 %v7313, %v7457
        %v7459 = vsub.f32 1.0, %v7458
        %v7460 = vmul.f32 %v7457, %v7459
        %v7461 = vadd.f32 %v7457, %v7460
        %vm7462 = vweird.f32 %v7313
        %vm7463 = vweird.f32 %v7457
        %vm7464 = vmor %vm7462, %vm7463
        %v7465 = vsel %vm7464, %v7457, %v7461
        %v7466 = vand.u32 2147483647, %v7313
        %vm7467 = vcmp.eq.f32.partialorder %v7466, 8.507059e+37
        %v7468 = vand.u32 %v7313, 2147483648
        %v7469 = vor.u32 1.1754944e-38, %v7468
        %v7470 = vsel %vm7467, %v7469, %v7465
        %v7471 = vmul.f32 1.0, %v7470
        %v7472 = vrcp.pop %v7314
        %v7473 = vmul.f32 %v7314, %v7472
        %v7474 = vsub.f32 1.0, %v7473
        %v7475 = vmul.f32 %v7472, %v7474
        %v7476 = vadd.f32 %v7472, %v7475
        %vm7477 = vweird.f32 %v7314
        %vm7478 = vweird.f32 %v7472
        %vm7479 = vmor %vm7477, %vm7478
        %v7480 = vsel %vm7479, %v7472, %v7476
        %v7481 = vand.u32 2147483647, %v7314
        %vm7482 = vcmp.eq.f32.partialorder %v7481, 8.507059e+37
        %v7483 = vand.u32 %v7314, 2147483648
        %v7484 = vor.u32 1.1754944e-38, %v7483
        %v7485 = vsel %vm7482, %v7484, %v7480
        %v7486 = vmul.f32 1.0, %v7485
        %v7487 = vrcp.pop %v7315
        %v7488 = vmul.f32 %v7315, %v7487
        %v7489 = vsub.f32 1.0, %v7488
        %v7490 = vmul.f32 %v7487, %v7489
        %v7491 = vadd.f32 %v7487, %v7490
        %vm7492 = vweird.f32 %v7315
        %vm7493 = vweird.f32 %v7487
        %vm7494 = vmor %vm7492, %vm7493
        %v7495 = vsel %vm7494, %v7487, %v7491
        %v7496 = vand.u32 2147483647, %v7315
        %vm7497 = vcmp.eq.f32.partialorder %v7496, 8.507059e+37
        %v7498 = vand.u32 %v7315, 2147483648
        %v7499 = vor.u32 1.1754944e-38, %v7498
        %v7500 = vsel %vm7497, %v7499, %v7495
        %v7501 = vmul.f32 1.0, %v7500
        %v7502 = vrcp.pop %v7316
        %v7503 = vmul.f32 %v7316, %v7502
        %v7504 = vsub.f32 1.0, %v7503
        %v7505 = vmul.f32 %v7502, %v7504
        %v7506 = vadd.f32 %v7502, %v7505
        %vm7507 = vweird.f32 %v7316
        %vm7508 = vweird.f32 %v7502
        %vm7509 = vmor %vm7507, %vm7508
        %v7510 = vsel %vm7509, %v7502, %v7506
        %v7511 = vand.u32 2147483647, %v7316
        %vm7512 = vcmp.eq.f32.partialorder %v7511, 8.507059e+37
        %v7513 = vand.u32 %v7316, 2147483648
        %v7514 = vor.u32 1.1754944e-38, %v7513
        %v7515 = vsel %vm7512, %v7514, %v7510
        %v7516 = vmul.f32 1.0, %v7515
        %v7517 = vrcp.pop %v7317
        %v7518 = vmul.f32 %v7317, %v7517
        %v7519 = vsub.f32 1.0, %v7518
        %v7520 = vmul.f32 %v7517, %v7519
        %v7521 = vadd.f32 %v7517, %v7520
        %vm7522 = vweird.f32 %v7317
        %vm7523 = vweird.f32 %v7517
        %vm7524 = vmor %vm7522, %vm7523
        %v7525 = vsel %vm7524, %v7517, %v7521
        %v7526 = vand.u32 2147483647, %v7317
        %vm7527 = vcmp.eq.f32.partialorder %v7526, 8.507059e+37
        %v7528 = vand.u32 %v7317, 2147483648
        %v7529 = vor.u32 1.1754944e-38, %v7528
        %v7530 = vsel %vm7527, %v7529, %v7525
        %v7531 = vmul.f32 1.0, %v7530
        %v7532 = vrcp.pop %v7318
        %v7533 = vmul.f32 %v7318, %v7532
        %v7534 = vsub.f32 1.0, %v7533
        %v7535 = vmul.f32 %v7532, %v7534
        %v7536 = vadd.f32 %v7532, %v7535
        %vm7537 = vweird.f32 %v7318
        %vm7538 = vweird.f32 %v7532
        %vm7539 = vmor %vm7537, %vm7538
        %v7540 = vsel %vm7539, %v7532, %v7536
        %v7541 = vand.u32 2147483647, %v7318
        %vm7542 = vcmp.eq.f32.partialorder %v7541, 8.507059e+37
        %v7543 = vand.u32 %v7318, 2147483648
        %v7544 = vor.u32 1.1754944e-38, %v7543
        %v7545 = vsel %vm7542, %v7544, %v7540
        %v7546 = vmul.f32 1.0, %v7545
        %v7547 = vrcp.pop %v7319
        %v7548 = vmul.f32 %v7319, %v7547
        %v7549 = vsub.f32 1.0, %v7548
        %v7550 = vmul.f32 %v7547, %v7549
        %v7551 = vadd.f32 %v7547, %v7550
        %vm7552 = vweird.f32 %v7319
        %vm7553 = vweird.f32 %v7547
        %vm7554 = vmor %vm7552, %vm7553
        %v7555 = vsel %vm7554, %v7547, %v7551
        %v7556 = vand.u32 2147483647, %v7319
        %vm7557 = vcmp.eq.f32.partialorder %v7556, 8.507059e+37
        %v7558 = vand.u32 %v7319, 2147483648
        %v7559 = vor.u32 1.1754944e-38, %v7558
        %v7560 = vsel %vm7557, %v7559, %v7555
        %v7561 = vmul.f32 1.0, %v7560
        %v7562 = vrcp.pop %v7320
        %v7563 = vmul.f32 %v7320, %v7562
        %v7564 = vsub.f32 1.0, %v7563
        %v7565 = vmul.f32 %v7562, %v7564
        %v7566 = vadd.f32 %v7562, %v7565
        %vm7567 = vweird.f32 %v7320
        %vm7568 = vweird.f32 %v7562
        %vm7569 = vmor %vm7567, %vm7568
        %v7570 = vsel %vm7569, %v7562, %v7566
        %v7571 = vand.u32 2147483647, %v7320
        %vm7572 = vcmp.eq.f32.partialorder %v7571, 8.507059e+37
        %v7573 = vand.u32 %v7320, 2147483648
        %v7574 = vor.u32 1.1754944e-38, %v7573
        %v7575 = vsel %vm7572, %v7574, %v7570
        %v7576 = vmul.f32 1.0, %v7575
        %v7577 = vrcp.pop %v7321
        %v7578 = vmul.f32 %v7321, %v7577
        %v7579 = vsub.f32 1.0, %v7578
        %v7580 = vmul.f32 %v7577, %v7579
        %v7581 = vadd.f32 %v7577, %v7580
        %vm7582 = vweird.f32 %v7321
        %vm7583 = vweird.f32 %v7577
        %vm7584 = vmor %vm7582, %vm7583
        %v7585 = vsel %vm7584, %v7577, %v7581
        %v7586 = vand.u32 2147483647, %v7321
        %vm7587 = vcmp.eq.f32.partialorder %v7586, 8.507059e+37
        %v7588 = vand.u32 %v7321, 2147483648
        %v7589 = vor.u32 1.1754944e-38, %v7588
        %v7590 = vsel %vm7587, %v7589, %v7585
        %v7591 = vmul.f32 1.0, %v7590
        %v7592 = vrcp.pop %v7322
        %v7593 = vmul.f32 %v7322, %v7592
        %v7594 = vsub.f32 1.0, %v7593
        %v7595 = vmul.f32 %v7592, %v7594
        %v7596 = vadd.f32 %v7592, %v7595
        %vm7597 = vweird.f32 %v7322
        %vm7598 = vweird.f32 %v7592
        %vm7599 = vmor %vm7597, %vm7598
        %v7600 = vsel %vm7599, %v7592, %v7596
        %v7601 = vand.u32 2147483647, %v7322
        %vm7602 = vcmp.eq.f32.partialorder %v7601, 8.507059e+37
        %v7603 = vand.u32 %v7322, 2147483648
        %v7604 = vor.u32 1.1754944e-38, %v7603
        %v7605 = vsel %vm7602, %v7604, %v7600
        %v7606 = vmul.f32 1.0, %v7605
        %v7607 = vrcp.pop %v7323
        %v7608 = vmul.f32 %v7323, %v7607
        %v7609 = vsub.f32 1.0, %v7608
        %v7610 = vmul.f32 %v7607, %v7609
        %v7611 = vadd.f32 %v7607, %v7610
        %vm7612 = vweird.f32 %v7323
        %vm7613 = vweird.f32 %v7607
        %vm7614 = vmor %vm7612, %vm7613
        %v7615 = vsel %vm7614, %v7607, %v7611
        %v7616 = vand.u32 2147483647, %v7323
        %vm7617 = vcmp.eq.f32.partialorder %v7616, 8.507059e+37
        %v7618 = vand.u32 %v7323, 2147483648
        %v7619 = vor.u32 1.1754944e-38, %v7618
        %v7620 = vsel %vm7617, %v7619, %v7615
        %v7621 = vmul.f32 1.0, %v7620
        %v7622 = vrcp.pop %v7324
        %v7623 = vmul.f32 %v7324, %v7622
        %v7624 = vsub.f32 1.0, %v7623
        %v7625 = vmul.f32 %v7622, %v7624
        %v7626 = vadd.f32 %v7622, %v7625
        %vm7627 = vweird.f32 %v7324
        %vm7628 = vweird.f32 %v7622
        %vm7629 = vmor %vm7627, %vm7628
        %v7630 = vsel %vm7629, %v7622, %v7626
        %v7631 = vand.u32 2147483647, %v7324
        %vm7632 = vcmp.eq.f32.partialorder %v7631, 8.507059e+37
        %v7633 = vand.u32 %v7324, 2147483648
        %v7634 = vor.u32 1.1754944e-38, %v7633
        %v7635 = vsel %vm7632, %v7634, %v7630
        %v7636 = vmul.f32 1.0, %v7635
        %v7637 = vrcp.pop %v7325
        %v7638 = vmul.f32 %v7325, %v7637
        %v7639 = vsub.f32 1.0, %v7638
        %v7640 = vmul.f32 %v7637, %v7639
        %v7641 = vadd.f32 %v7637, %v7640
        %vm7642 = vweird.f32 %v7325
        %vm7643 = vweird.f32 %v7637
        %vm7644 = vmor %vm7642, %vm7643
        %v7645 = vsel %vm7644, %v7637, %v7641
        %v7646 = vand.u32 2147483647, %v7325
        %vm7647 = vcmp.eq.f32.partialorder %v7646, 8.507059e+37
        %v7648 = vand.u32 %v7325, 2147483648
        %v7649 = vor.u32 1.1754944e-38, %v7648
        %v7650 = vsel %vm7647, %v7649, %v7645
        %v7651 = vmul.f32 1.0, %v7650
        %v7652 = vrcp.pop %v7326
        %v7653 = vmul.f32 %v7326, %v7652
        %v7654 = vsub.f32 1.0, %v7653
        %v7655 = vmul.f32 %v7652, %v7654
        %v7656 = vadd.f32 %v7652, %v7655
        %vm7657 = vweird.f32 %v7326
        %vm7658 = vweird.f32 %v7652
        %vm7659 = vmor %vm7657, %vm7658
        %v7660 = vsel %vm7659, %v7652, %v7656
        %v7661 = vand.u32 2147483647, %v7326
        %vm7662 = vcmp.eq.f32.partialorder %v7661, 8.507059e+37
        %v7663 = vand.u32 %v7326, 2147483648
        %v7664 = vor.u32 1.1754944e-38, %v7663
        %v7665 = vsel %vm7662, %v7664, %v7660
        %v7666 = vmul.f32 1.0, %v7665
        %v7667 = vrcp.pop %v7327
        %v7668 = vmul.f32 %v7327, %v7667
        %v7669 = vsub.f32 1.0, %v7668
        %v7670 = vmul.f32 %v7667, %v7669
        %v7671 = vadd.f32 %v7667, %v7670
        %vm7672 = vweird.f32 %v7327
        %vm7673 = vweird.f32 %v7667
        %vm7674 = vmor %vm7672, %vm7673
        %v7675 = vsel %vm7674, %v7667, %v7671
        %v7676 = vand.u32 2147483647, %v7327
        %vm7677 = vcmp.eq.f32.partialorder %v7676, 8.507059e+37
        %v7678 = vand.u32 %v7327, 2147483648
        %v7679 = vor.u32 1.1754944e-38, %v7678
        %v7680 = vsel %vm7677, %v7679, %v7675
        %v7681 = vmul.f32 1.0, %v7680
        %v7682 = vrcp.pop %v7328
        %v7683 = vmul.f32 %v7328, %v7682
        %v7684 = vsub.f32 1.0, %v7683
        %v7685 = vmul.f32 %v7682, %v7684
        %v7686 = vadd.f32 %v7682, %v7685
        %vm7687 = vweird.f32 %v7328
        %vm7688 = vweird.f32 %v7682
        %vm7689 = vmor %vm7687, %vm7688
        %v7690 = vsel %vm7689, %v7682, %v7686
        %v7691 = vand.u32 2147483647, %v7328
        %vm7692 = vcmp.eq.f32.partialorder %v7691, 8.507059e+37
        %v7693 = vand.u32 %v7328, 2147483648
        %v7694 = vor.u32 1.1754944e-38, %v7693
        %v7695 = vsel %vm7692, %v7694, %v7690
        %v7696 = vmul.f32 1.0, %v7695
        %v7697 = vrcp.pop %v7329
        %v7698 = vmul.f32 %v7329, %v7697
        %v7699 = vsub.f32 1.0, %v7698
        %v7700 = vmul.f32 %v7697, %v7699
        %v7701 = vadd.f32 %v7697, %v7700
        %vm7702 = vweird.f32 %v7329
        %vm7703 = vweird.f32 %v7697
        %vm7704 = vmor %vm7702, %vm7703
        %v7705 = vsel %vm7704, %v7697, %v7701
        %v7706 = vand.u32 2147483647, %v7329
        %vm7707 = vcmp.eq.f32.partialorder %v7706, 8.507059e+37
        %v7708 = vand.u32 %v7329, 2147483648
        %v7709 = vor.u32 1.1754944e-38, %v7708
        %v7710 = vsel %vm7707, %v7709, %v7705
        %v7711 = vmul.f32 1.0, %v7710
        %v7712 = vrcp.pop %v7330
        %v7713 = vmul.f32 %v7330, %v7712
        %v7714 = vsub.f32 1.0, %v7713
        %v7715 = vmul.f32 %v7712, %v7714
        %v7716 = vadd.f32 %v7712, %v7715
        %vm7717 = vweird.f32 %v7330
        %vm7718 = vweird.f32 %v7712
        %vm7719 = vmor %vm7717, %vm7718
        %v7720 = vsel %vm7719, %v7712, %v7716
        %v7721 = vand.u32 2147483647, %v7330
        %vm7722 = vcmp.eq.f32.partialorder %v7721, 8.507059e+37
        %v7723 = vand.u32 %v7330, 2147483648
        %v7724 = vor.u32 1.1754944e-38, %v7723
        %v7725 = vsel %vm7722, %v7724, %v7720
        %v7726 = vmul.f32 1.0, %v7725
        %v7727 = vrcp.pop %v7331
        %v7728 = vmul.f32 %v7331, %v7727
        %v7729 = vsub.f32 1.0, %v7728
        %v7730 = vmul.f32 %v7727, %v7729
        %v7731 = vadd.f32 %v7727, %v7730
        %vm7732 = vweird.f32 %v7331
        %vm7733 = vweird.f32 %v7727
        %vm7734 = vmor %vm7732, %vm7733
        %v7735 = vsel %vm7734, %v7727, %v7731
        %v7736 = vand.u32 2147483647, %v7331
        %vm7737 = vcmp.eq.f32.partialorder %v7736, 8.507059e+37
        %v7738 = vand.u32 %v7331, 2147483648
        %v7739 = vor.u32 1.1754944e-38, %v7738
        %v7740 = vsel %vm7737, %v7739, %v7735
        %v7741 = vmul.f32 1.0, %v7740
        %v7742 = vrcp.pop %v7332
        %v7743 = vmul.f32 %v7332, %v7742
        %v7744 = vsub.f32 1.0, %v7743
        %v7745 = vmul.f32 %v7742, %v7744
        %v7746 = vadd.f32 %v7742, %v7745
        %vm7747 = vweird.f32 %v7332
        %vm7748 = vweird.f32 %v7742
        %vm7749 = vmor %vm7747, %vm7748
        %v7750 = vsel %vm7749, %v7742, %v7746
        %v7751 = vand.u32 2147483647, %v7332
        %vm7752 = vcmp.eq.f32.partialorder %v7751, 8.507059e+37
        %v7753 = vand.u32 %v7332, 2147483648
        %v7754 = vor.u32 1.1754944e-38, %v7753
        %v7755 = vsel %vm7752, %v7754, %v7750
        %v7756 = vmul.f32 1.0, %v7755
        %v7757 = vrcp.pop %v7333
        %v7758 = vmul.f32 %v7333, %v7757
        %v7759 = vsub.f32 1.0, %v7758
        %v7760 = vmul.f32 %v7757, %v7759
        %v7761 = vadd.f32 %v7757, %v7760
        %vm7762 = vweird.f32 %v7333
        %vm7763 = vweird.f32 %v7757
        %vm7764 = vmor %vm7762, %vm7763
        %v7765 = vsel %vm7764, %v7757, %v7761
        %v7766 = vand.u32 2147483647, %v7333
        %vm7767 = vcmp.eq.f32.partialorder %v7766, 8.507059e+37
        %v7768 = vand.u32 %v7333, 2147483648
        %v7769 = vor.u32 1.1754944e-38, %v7768
        %v7770 = vsel %vm7767, %v7769, %v7765
        %v7771 = vmul.f32 1.0, %v7770
        %v7772 = vrcp.pop %v7334
        %v7773 = vmul.f32 %v7334, %v7772
        %v7774 = vsub.f32 1.0, %v7773
        %v7775 = vmul.f32 %v7772, %v7774
        %v7776 = vadd.f32 %v7772, %v7775
        %vm7777 = vweird.f32 %v7334
        %vm7778 = vweird.f32 %v7772
        %vm7779 = vmor %vm7777, %vm7778
        %v7780 = vsel %vm7779, %v7772, %v7776
        %v7781 = vand.u32 2147483647, %v7334
        %vm7782 = vcmp.eq.f32.partialorder %v7781, 8.507059e+37
        %v7783 = vand.u32 %v7334, 2147483648
        %v7784 = vor.u32 1.1754944e-38, %v7783
        %v7785 = vsel %vm7782, %v7784, %v7780
        %v7786 = vmul.f32 1.0, %v7785
        %v7787 = vrcp.pop %v7335
        %v7788 = vmul.f32 %v7335, %v7787
        %v7789 = vsub.f32 1.0, %v7788
        %v7790 = vmul.f32 %v7787, %v7789
        %v7791 = vadd.f32 %v7787, %v7790
        %vm7792 = vweird.f32 %v7335
        %vm7793 = vweird.f32 %v7787
        %vm7794 = vmor %vm7792, %vm7793
        %v7795 = vsel %vm7794, %v7787, %v7791
        %v7796 = vand.u32 2147483647, %v7335
        %vm7797 = vcmp.eq.f32.partialorder %v7796, 8.507059e+37
        %v7798 = vand.u32 %v7335, 2147483648
        %v7799 = vor.u32 1.1754944e-38, %v7798
        %v7800 = vsel %vm7797, %v7799, %v7795
        %v7801 = vmul.f32 1.0, %v7800
        %v7802 = vrcp.pop %v7336
        %v7803 = vmul.f32 %v7336, %v7802
        %v7804 = vsub.f32 1.0, %v7803
        %v7805 = vmul.f32 %v7802, %v7804
        %v7806 = vadd.f32 %v7802, %v7805
        %vm7807 = vweird.f32 %v7336
        %vm7808 = vweird.f32 %v7802
        %vm7809 = vmor %vm7807, %vm7808
        %v7810 = vsel %vm7809, %v7802, %v7806
        %v7811 = vand.u32 2147483647, %v7336
        %vm7812 = vcmp.eq.f32.partialorder %v7811, 8.507059e+37
        %v7813 = vand.u32 %v7336, 2147483648
        %v7814 = vor.u32 1.1754944e-38, %v7813
        %v7815 = vsel %vm7812, %v7814, %v7810
        %v7816 = vmul.f32 1.0, %v7815
        %v7817 = vmul.f32 %v859, %v7351
        %v7818 = vmul.f32 %v860, %v7366
        %v7819 = vmul.f32 %v861, %v7381
        %v7820 = vmul.f32 %v862, %v7396
        %v7821 = vmul.f32 %v859, %v7411
        %v7822 = vmul.f32 %v860, %v7426
        %v7823 = vmul.f32 %v861, %v7441
        %v7824 = vmul.f32 %v862, %v7456
        %v7825 = vmul.f32 %v859, %v7471
        %v7826 = vmul.f32 %v860, %v7486
        %v7827 = vmul.f32 %v861, %v7501
        %v7828 = vmul.f32 %v862, %v7516
        %v7829 = vmul.f32 %v859, %v7531
        %v7830 = vmul.f32 %v860, %v7546
        %v7831 = vmul.f32 %v861, %v7561
        %v7832 = vmul.f32 %v862, %v7576
        %v7833 = vmul.f32 %v859, %v7591
        %v7834 = vmul.f32 %v860, %v7606
        %v7835 = vmul.f32 %v861, %v7621
        %v7836 = vmul.f32 %v862, %v7636
        %v7837 = vmul.f32 %v859, %v7651
        %v7838 = vmul.f32 %v860, %v7666
        %v7839 = vmul.f32 %v861, %v7681
        %v7840 = vmul.f32 %v862, %v7696
        %v7841 = vmul.f32 %v859, %v7711
        %v7842 = vmul.f32 %v860, %v7726
        %v7843 = vmul.f32 %v861, %v7741
        %v7844 = vmul.f32 %v862, %v7756
        %v7845 = vmul.f32 %v859, %v7771
        %v7846 = vmul.f32 %v860, %v7786
        %v7847 = vmul.f32 %v861, %v7801
        %v7848 = vmul.f32 %v862, %v7816
        %v7849 = vadd.f32 %v7817, %v7818
        %v7850 = vadd.f32 %v7849, %v7819
        %v7851 = vadd.f32 %v7850, %v7820
        %v7852 = vrot.slane %v7851, 4
        %v7853 = vadd.f32 %v7851, %v7852
        %v7854 = vrot.slane %v7853, 2
        %v7855 = vadd.f32 %v7853, %v7854
        %v7856 = vrot.slane %v7855, 1
        %v7857 = vadd.f32 %v7855, %v7856
        %v7858 = vadd.f32 %v7821, %v7822
        %v7859 = vadd.f32 %v7858, %v7823
        %v7860 = vadd.f32 %v7859, %v7824
        %v7861 = vrot.slane %v7860, 4
        %v7862 = vadd.f32 %v7860, %v7861
        %v7863 = vrot.slane %v7862, 2
        %v7864 = vadd.f32 %v7862, %v7863
        %v7865 = vrot.slane %v7864, 1
        %v7866 = vadd.f32 %v7864, %v7865
        %v7867 = vadd.f32 %v7825, %v7826
        %v7868 = vadd.f32 %v7867, %v7827
        %v7869 = vadd.f32 %v7868, %v7828
        %v7870 = vrot.slane %v7869, 4
        %v7871 = vadd.f32 %v7869, %v7870
        %v7872 = vrot.slane %v7871, 2
        %v7873 = vadd.f32 %v7871, %v7872
        %v7874 = vrot.slane %v7873, 1
        %v7875 = vadd.f32 %v7873, %v7874
        %v7876 = vadd.f32 %v7829, %v7830
        %v7877 = vadd.f32 %v7876, %v7831
        %v7878 = vadd.f32 %v7877, %v7832
        %v7879 = vrot.slane %v7878, 4
        %v7880 = vadd.f32 %v7878, %v7879
        %v7881 = vrot.slane %v7880, 2
        %v7882 = vadd.f32 %v7880, %v7881
        %v7883 = vrot.slane %v7882, 1
        %v7884 = vadd.f32 %v7882, %v7883
        %v7885 = vadd.f32 %v7833, %v7834
        %v7886 = vadd.f32 %v7885, %v7835
        %v7887 = vadd.f32 %v7886, %v7836
        %v7888 = vrot.slane %v7887, 4
        %v7889 = vadd.f32 %v7887, %v7888
        %v7890 = vrot.slane %v7889, 2
        %v7891 = vadd.f32 %v7889, %v7890
        %v7892 = vrot.slane %v7891, 1
        %v7893 = vadd.f32 %v7891, %v7892
        %v7894 = vadd.f32 %v7837, %v7838
        %v7895 = vadd.f32 %v7894, %v7839
        %v7896 = vadd.f32 %v7895, %v7840
        %v7897 = vrot.slane %v7896, 4
        %v7898 = vadd.f32 %v7896, %v7897
        %v7899 = vrot.slane %v7898, 2
        %v7900 = vadd.f32 %v7898, %v7899
        %v7901 = vrot.slane %v7900, 1
        %v7902 = vadd.f32 %v7900, %v7901
        %v7903 = vadd.f32 %v7841, %v7842
        %v7904 = vadd.f32 %v7903, %v7843
        %v7905 = vadd.f32 %v7904, %v7844
        %v7906 = vrot.slane %v7905, 4
        %v7907 = vadd.f32 %v7905, %v7906
        %v7908 = vrot.slane %v7907, 2
        %v7909 = vadd.f32 %v7907, %v7908
        %v7910 = vrot.slane %v7909, 1
        %v7911 = vadd.f32 %v7909, %v7910
        %v7912 = vadd.f32 %v7845, %v7846
        %v7913 = vadd.f32 %v7912, %v7847
        %v7914 = vadd.f32 %v7913, %v7848
        %v7915 = vrot.slane %v7914, 4
        %v7916 = vadd.f32 %v7914, %v7915
        %v7917 = vrot.slane %v7916, 2
        %v7918 = vadd.f32 %v7916, %v7917
        %v7919 = vrot.slane %v7918, 1
        %v7920 = vadd.f32 %v7918, %v7919
        %v7921 = vmul.f32 %v851, %v7351
        %v7922 = vmul.f32 %v852, %v7366
        %v7923 = vmul.f32 %v853, %v7381
        %v7924 = vmul.f32 %v854, %v7396
        %v7925 = vmul.f32 %v851, %v7411
        %v7926 = vmul.f32 %v852, %v7426
        %v7927 = vmul.f32 %v853, %v7441
        %v7928 = vmul.f32 %v854, %v7456
        %v7929 = vmul.f32 %v851, %v7471
        %v7930 = vmul.f32 %v852, %v7486
        %v7931 = vmul.f32 %v853, %v7501
        %v7932 = vmul.f32 %v854, %v7516
        %v7933 = vmul.f32 %v851, %v7531
        %v7934 = vmul.f32 %v852, %v7546
        %v7935 = vmul.f32 %v853, %v7561
        %v7936 = vmul.f32 %v854, %v7576
        %v7937 = vmul.f32 %v851, %v7591
        %v7938 = vmul.f32 %v852, %v7606
        %v7939 = vmul.f32 %v853, %v7621
        %v7940 = vmul.f32 %v854, %v7636
        %v7941 = vmul.f32 %v851, %v7651
        %v7942 = vmul.f32 %v852, %v7666
        %v7943 = vmul.f32 %v853, %v7681
        %v7944 = vmul.f32 %v854, %v7696
        %v7945 = vmul.f32 %v851, %v7711
        %v7946 = vmul.f32 %v852, %v7726
        %v7947 = vmul.f32 %v853, %v7741
        %v7948 = vmul.f32 %v854, %v7756
        %v7949 = vmul.f32 %v851, %v7771
        %v7950 = vmul.f32 %v852, %v7786
        %v7951 = vmul.f32 %v853, %v7801
        %v7952 = vmul.f32 %v854, %v7816
        %v7953 = vadd.f32 %v7921, %v7922
        %v7954 = vadd.f32 %v7953, %v7923
        %v7955 = vadd.f32 %v7954, %v7924
        %v7956 = vrot.slane %v7955, 4
        %v7957 = vadd.f32 %v7955, %v7956
        %v7958 = vrot.slane %v7957, 2
        %v7959 = vadd.f32 %v7957, %v7958
        %v7960 = vrot.slane %v7959, 1
        %v7961 = vadd.f32 %v7959, %v7960
        %v7962 = vadd.f32 %v7925, %v7926
        %v7963 = vadd.f32 %v7962, %v7927
        %v7964 = vadd.f32 %v7963, %v7928
        %v7965 = vrot.slane %v7964, 4
        %v7966 = vadd.f32 %v7964, %v7965
        %v7967 = vrot.slane %v7966, 2
        %v7968 = vadd.f32 %v7966, %v7967
        %v7969 = vrot.slane %v7968, 1
        %v7970 = vadd.f32 %v7968, %v7969
        %v7971 = vadd.f32 %v7929, %v7930
        %v7972 = vadd.f32 %v7971, %v7931
        %v7973 = vadd.f32 %v7972, %v7932
        %v7974 = vrot.slane %v7973, 4
        %v7975 = vadd.f32 %v7973, %v7974
        %v7976 = vrot.slane %v7975, 2
        %v7977 = vadd.f32 %v7975, %v7976
        %v7978 = vrot.slane %v7977, 1
        %v7979 = vadd.f32 %v7977, %v7978
        %v7980 = vadd.f32 %v7933, %v7934
        %v7981 = vadd.f32 %v7980, %v7935
        %v7982 = vadd.f32 %v7981, %v7936
        %v7983 = vrot.slane %v7982, 4
        %v7984 = vadd.f32 %v7982, %v7983
        %v7985 = vrot.slane %v7984, 2
        %v7986 = vadd.f32 %v7984, %v7985
        %v7987 = vrot.slane %v7986, 1
        %v7988 = vadd.f32 %v7986, %v7987
        %v7989 = vadd.f32 %v7937, %v7938
        %v7990 = vadd.f32 %v7989, %v7939
        %v7991 = vadd.f32 %v7990, %v7940
        %v7992 = vrot.slane %v7991, 4
        %v7993 = vadd.f32 %v7991, %v7992
        %v7994 = vrot.slane %v7993, 2
        %v7995 = vadd.f32 %v7993, %v7994
        %v7996 = vrot.slane %v7995, 1
        %v7997 = vadd.f32 %v7995, %v7996
        %v7998 = vadd.f32 %v7941, %v7942
        %v7999 = vadd.f32 %v7998, %v7943
        %v8000 = vadd.f32 %v7999, %v7944
        %v8001 = vrot.slane %v8000, 4
        %v8002 = vadd.f32 %v8000, %v8001
        %v8003 = vrot.slane %v8002, 2
        %v8004 = vadd.f32 %v8002, %v8003
        %v8005 = vrot.slane %v8004, 1
        %v8006 = vadd.f32 %v8004, %v8005
        %v8007 = vadd.f32 %v7945, %v7946
        %v8008 = vadd.f32 %v8007, %v7947
        %v8009 = vadd.f32 %v8008, %v7948
        %v8010 = vrot.slane %v8009, 4
        %v8011 = vadd.f32 %v8009, %v8010
        %v8012 = vrot.slane %v8011, 2
        %v8013 = vadd.f32 %v8011, %v8012
        %v8014 = vrot.slane %v8013, 1
        %v8015 = vadd.f32 %v8013, %v8014
        %v8016 = vadd.f32 %v7949, %v7950
        %v8017 = vadd.f32 %v8016, %v7951
        %v8018 = vadd.f32 %v8017, %v7952
        %v8019 = vrot.slane %v8018, 4
        %v8020 = vadd.f32 %v8018, %v8019
        %v8021 = vrot.slane %v8020, 2
        %v8022 = vadd.f32 %v8020, %v8021
        %v8023 = vrot.slane %v8022, 1
        %v8024 = vadd.f32 %v8022, %v8023
        %v8025 = vmul.f32 %v1228, %v6944
        %v8026 = vadd.f32 %v8025, %v1258
        %v8035 = vsel %vm1243, %v7866, %v7857
        %v8036 = vsel %vm1245, %v7875, %v8035
        %v8037 = vsel %vm1247, %v7884, %v8036
        %v8038 = vsel %vm1249, %v7893, %v8037
        %v8039 = vsel %vm1251, %v7902, %v8038
        %v8040 = vsel %vm1253, %v7911, %v8039
        %v8041 = vsel %vm1255, %v7920, %v8040
        %v8043 = vadd.f32 %v8026, %v8041
        %v8052 = vsel %vm1243, %v7970, %v7961
        %v8053 = vsel %vm1245, %v7979, %v8052
        %v8054 = vsel %vm1247, %v7988, %v8053
        %v8055 = vsel %vm1249, %v7997, %v8054
        %v8056 = vsel %vm1251, %v8006, %v8055
        %v8057 = vsel %vm1253, %v8015, %v8056
        %v8058 = vsel %vm1255, %v8024, %v8057
        %v8060 = vadd.f32 %v1280, %v8058
        %v8061 = vrcp.pop %v8060
        %v8062 = vmul.f32 %v8060, %v8061
        %v8063 = vsub.f32 1.0, %v8062
        %v8064 = vmul.f32 %v8061, %v8063
        %v8065 = vadd.f32 %v8061, %v8064
        %vm8066 = vweird.f32 %v8060
        %vm8067 = vweird.f32 %v8061
        %vm8068 = vmor %vm8066, %vm8067
        %v8069 = vsel %vm8068, %v8061, %v8065
        %v8070 = vand.u32 2147483647, %v8060
        %vm8071 = vcmp.eq.f32.partialorder %v8070, 8.507059e+37
        %v8072 = vand.u32 %v8060, 2147483648
        %v8073 = vor.u32 1.1754944e-38, %v8072
        %v8074 = vsel %vm8071, %v8073, %v8069
        %v8075 = vmul.f32 %v8043, %v8074
        %8076 = vst [vmem:[%s838] sm:$0xff] %v8075
        %v8077 = vld [vmem:[%s17] sm:$0x1]
        %v8079 = vperm.slane %v8077, 0
        %v8081 = vmul.f32 %v8075, %v8079
        %v8082 = vld [vmem:[%s18] sm:$0x1]
        %v8084 = vperm.slane %v8082, 0
        %v8086 = vadd.f32 %v8081, %v8084
        %8087 = vst [vmem:[%s831] sm:$0xff] %v8086
        %s8088 = sand.u32 %s464, 1
        %s8089 = scalar_lea.sflag [#allocation4], %s8088
        %s8090 = sand.u32 %s464, 1
        %s8091 = smul.addr %s8090, 8
        %s8092 = scalar_lea.vmem [#allocation22], %s8091
        %s8093 = sand.u32 %s490, 1
        %s8094 = scalar_lea.sflag [#allocation24], %s8093
        %s8095 = sand.u32 %s490, 1
        %s8096 = smul.addr %s8095, 8
        %s8097 = scalar_lea.vmem [#allocation23], %s8096
        // Predicated region
        $region145: #{tpu_custom_call.1} parent=95 // pred_check
          %p8098 = pneg %p474
        $region146: #{tpu_custom_call.1} parent=95 // pred_check_branch
          %8100 = sbr.rel (%p8098) target = $region148
        $region147: #{tpu_custom_call.1} parent=95 // pred_region
          %8102 = vsyncadd %s8089, 0
          %s8103 = smul.addr %s47, 8
          %s8104 = scalar_lea.hbm %s19, %s8103
          %s8106 = sshll.u32 %s8092, 4
          %s8107 = int_to_ptr.vmem [resolvable:$true] %s8106
          %s8108 = sshll.u32 %s8104, 4
          %s8109 = int_to_ptr.hbm [resolvable:$true] %s8108
          %8111 = dma.vmem_to_hbm [thread:$0]  %s8107, 128, %s8109, %s8089
        $region148: #{tpu_custom_call.1} parent=95 // pred_fallthru
          _
        // Predicated region
        $region149: #{tpu_custom_call.1} parent=95 // pred_check
          %p8112 = pneg %p500
        $region150: #{tpu_custom_call.1} parent=95 // pred_check_branch
          %8114 = sbr.rel (%p8112) target = $region152
        $region151: #{tpu_custom_call.1} parent=95 // pred_region
          %8116 = vsyncadd %s8094, 0
          %s8117 = smul.addr %s47, 8
          %s8118 = scalar_lea.hbm %s20, %s8117
          %s8120 = sshll.u32 %s8097, 4
          %s8121 = int_to_ptr.vmem [resolvable:$true] %s8120
          %s8122 = sshll.u32 %s8118, 4
          %s8123 = int_to_ptr.hbm [resolvable:$true] %s8122
          %8125 = dma.vmem_to_hbm [thread:$0]  %s8121, 128, %s8123, %s8094
        $region152: #{tpu_custom_call.1} parent=95 // pred_fallthru
          _
      $region96: #{tpu_custom_call.1} parent=5 // pred_fallthru
        _
      %p8126 = scmp.le.s32.totalorder 2, %s42
      // Predicated region
      $region153: #{tpu_custom_call.1} parent=5 // pred_check
        %p8127 = pneg %p8126
      $region154: #{tpu_custom_call.1} parent=5 // pred_check_branch
        %8129 = sbr.rel (%p8127) target = $region156
      $region155: #{tpu_custom_call.1} parent=5 // pred_region
        %s8130 = ssub.s32 %s42, 2
        // Predicated region
        $region157: #{tpu_custom_call.1} parent=155 // pred_check
          %p8131 = pneg %p480
        $region158: #{tpu_custom_call.1} parent=155 // pred_check_branch
          %8133 = sbr.rel (%p8131) target = $region160
        $region159: #{tpu_custom_call.1} parent=155 // pred_region
          %s8134 = sand.u32 %s465, 1
          %s8135 = scalar_lea.sflag [#allocation4], %s8134
          %s8136 = sand.u32 %s465, 1
          %s8137 = smul.addr %s8136, 8
          %s8138 = scalar_lea.vmem [#allocation22], %s8137
          %8140 = dma.done %s8135, 128
        $region160: #{tpu_custom_call.1} parent=155 // pred_fallthru
          _
        // Predicated region
        $region161: #{tpu_custom_call.1} parent=155 // pred_check
          %p8141 = pneg %p506
        $region162: #{tpu_custom_call.1} parent=155 // pred_check_branch
          %8143 = sbr.rel (%p8141) target = $region164
        $region163: #{tpu_custom_call.1} parent=155 // pred_region
          %s8144 = sand.u32 %s491, 1
          %s8145 = scalar_lea.sflag [#allocation24], %s8144
          %s8146 = sand.u32 %s491, 1
          %s8147 = smul.addr %s8146, 8
          %s8148 = scalar_lea.vmem [#allocation23], %s8147
          %8150 = dma.done %s8145, 128
        $region164: #{tpu_custom_call.1} parent=155 // pred_fallthru
          _
      $region156: #{tpu_custom_call.1} parent=5 // pred_fallthru
        _
    $region6: #{tpu_custom_call.1} parent=1 // loop_footer
      %s46 = sadd.s32 1, %s42
    $region7: #{tpu_custom_call.1} parent=1 // loop_footer_branch
      %41 = sbr.rel target = $region3
    $region8: #{tpu_custom_call.1} parent=1 // loop_exit
      _
    %8151 = vsyncpa [#allocation3], 1
    %s8152 = scalar_lea.sflag [#allocation3], 1
    %8153 = vsyncpa %s8152, 1
    %8154 = vsyncpa [#allocation6], 1
    %8155 = vsyncpa [#allocation9], 1
    %8156 = vsyncpa [#allocation12], 1
    %8157 = vsyncpa [#allocation15], 1
    %8158 = vsyncpa [#allocation18], 1
    %8159 = vsyncpa [#allocation21], 1
    %8160 = vsyncpa [#allocation4], 1
    %s8161 = scalar_lea.sflag [#allocation4], 1
    %8162 = vsyncpa %s8161, 1
    %8163 = vsyncpa [#allocation24], 1
    %s8164 = scalar_lea.sflag [#allocation24], 1
    %8165 = vsyncpa %s8164, 1

</llo_original>
